<compile_context>
chip_gen: v7x
topology: tpu7x:2x2x1
jax: 0.10.0
libtpu: 0.0.40
codegen_flags: <defaults>
</compile_context>

<pallas_src>
import functools

import jax
import jax.numpy as jnp
from jax.experimental import pallas as pl
from jax.experimental.pallas import tpu as pltpu

BN_EPS = 1e-5


def _cdiv(a, b):
    return -(-a // b)


def _round_up(a, b):
    return _cdiv(a, b) * b


def _vmem_limit_bytes():
    """Scoped-VMEM budget: half the physical VMEM (=> 64 MiB on 128-MiB parts
    like v5e/v6e, 32 MiB on 64-MiB v7x), never below the 32 MiB default."""
    try:
        cap = int(pltpu.get_tpu_info().vmem_capacity_bytes)
    except Exception:
        cap = 64 * 1024 * 1024
    return max(32 * 1024 * 1024, min(cap // 2, 100 * 1024 * 1024))


def _make_stats_kernel(*, num_layers, spill, tile_n, n_rows, tiles_per_core,
                       any_partial, compute_dtype):
    """Row-tiled kernel: apply `num_layers` x (Linear -> ReLU) to the input
    activation tile, accumulate per-feature sum / sum-of-squares of the last
    activation into per-TensorCore partials, optionally spill it to HBM."""

    def kernel(*refs):
        in_ref = refs[0]
        wb_refs = refs[1:1 + 2 * num_layers]
        sum_ref = refs[1 + 2 * num_layers]
        sq_ref = refs[2 + 2 * num_layers]
        act_ref = refs[3 + 2 * num_layers] if spill else None

        c = pl.program_id(0)          # TensorCore split  ("parallel")
        i = pl.program_id(1)          # this core's row tiles ("arbitrary")

        @pl.when(i == 0)
        def _init():
            sum_ref[...] = jnp.zeros_like(sum_ref)
            sq_ref[...] = jnp.zeros_like(sq_ref)

        h = in_ref[...].astype(compute_dtype)
        for layer in range(num_layers):
            w = wb_refs[2 * layer][...]
            b = wb_refs[2 * layer + 1][...]
            h = jnp.dot(h, w, preferred_element_type=jnp.float32)
            h = jnp.maximum(h + b, 0.0)
            if layer + 1 < num_layers:
                h = h.astype(compute_dtype)

        if spill:
            act_ref[...] = h.astype(act_ref.dtype)   # padded rows dropped by Pallas

        def _accum(hv):
            sum_ref[0:1, :] += jnp.sum(hv, axis=0, keepdims=True)
            sq_ref[0:1, :] += jnp.sum(hv * hv, axis=0, keepdims=True)

        if any_partial:
            row0 = (c * tiles_per_core + i) * tile_n
            is_partial = row0 + tile_n > n_rows

            @pl.when(jnp.logical_not(is_partial))
            def _full_tile():                 # no masking cost on full tiles
                _accum(h)

            @pl.when(is_partial)
            def _partial_tile():              # boundary / clamped tiles only
                rows = row0 + jax.lax.broadcasted_iota(jnp.int32, (tile_n, 1), 0)
                _accum(jnp.where(rows < n_rows, h, 0.0))
        else:
            _accum(h)

    return kernel


def _logits_kernel(h2_ref, w3_ref, b3_ref, o_ref):
    """logits tile = h2 @ (BN2-folded W3, f32) + b3."""
    h2 = h2_ref[...].astype(jnp.float32)
    out = jnp.dot(h2, w3_ref[...], preferred_element_type=jnp.float32)
    o_ref[...] = (out + b3_ref[...]).astype(o_ref.dtype)


def pixel_classifier_forward(x, params, *, tile_n=None,
                             compute_dtype=jnp.bfloat16, spill_h1=None):
    """x: [N, dim].  params: dict from `init_params` (weights stored [in, out])."""
    n, dim = x.shape
    h1f = params["w1"].shape[1]           # 128 (class_num < 30) or 256
    h2f = params["w2"].shape[1]           # 32  (class_num < 30) or 128
    class_num = params["w3"].shape[1]
    f32 = jnp.float32
    csz = jnp.dtype(compute_dtype).itemsize
    xsz = jnp.dtype(x.dtype).itemsize
    if spill_h1 is None:
        # Wide features: spilling h1 (csz*h1f B/row) once beats re-reading x
        # and redoing the dim->h1f matmul in pass 2.
        spill_h1 = dim > h1f

    # ---- tile sizing: count everything that scales with the row tile
    # (double-buffered ins/outs + f32 temporaries); keep <= 75% of the budget.
    vmem_limit = _vmem_limit_bytes()
    bytes_per_row = (2 * xsz * dim                      # x tile, double-buffered
                     + 4 * h1f + 4 * h2f                # f32 h1/h2 temporaries
                     + 2 * csz * h2f                    # h2 spill, double-buffered
                     + 2 * 4 * class_num                # logits tile, double-buffered
                     + (2 * csz * h1f if spill_h1 else 0))
    max_rows = max(16, int(0.75 * vmem_limit) // bytes_per_row)
    if tile_n is None:
        tile_n = 8192                                   # amortize ~0.35us/step
    tile_n = max(16, min(tile_n, max_rows, _round_up(n, 16)))
    tile_n = max(16, tile_n // 16 * 16)

    num_row_tiles = _cdiv(n, tile_n)
    # Split stats row tiles across 2 TensorCores (v7x); harmless elsewhere.
    num_cores = 2 if num_row_tiles >= 2 else 1
    tiles_per_core = _cdiv(num_row_tiles, num_cores)
    covered_rows = num_cores * tiles_per_core * tile_n
    any_partial = covered_rows != n
    clamp = num_cores * tiles_per_core > num_row_tiles   # duplicate tail tiles
    last_block = num_row_tiles - 1

    if clamp:
        def row_block(c, i):
            return (jnp.minimum(c * tiles_per_core + i, last_block), 0)
    else:
        def row_block(c, i):
            return (c * tiles_per_core + i, 0)

    def const2(c, i):
        return (0, 0)

    def core_block(c, i):
        return (c, 0)

    stats_cparams = pltpu.CompilerParams(
        dimension_semantics=("parallel", "arbitrary"),
        vmem_limit_bytes=vmem_limit)

    w1 = params["w1"].astype(compute_dtype)
    b1 = params["b1"].astype(f32)

    def stat_outs(feat):
        # (8*num_cores, feat) f32 partials, block (8, feat) per core; only row 0
        # of each core block is accumulated, rows 1-7 stay zero.
        shapes = [jax.ShapeDtypeStruct((8 * num_cores, feat), f32)] * 2
        specs = [pl.BlockSpec((8, feat), core_block)] * 2
        return shapes, specs

    # ---------------- pass 1: stats of h1 = ReLU(x @ W1 + b1) ----------------
    out_shape1, out_specs1 = stat_outs(h1f)
    out_shape1, out_specs1 = list(out_shape1), list(out_specs1)
    if spill_h1:
        out_shape1.append(jax.ShapeDtypeStruct((n, h1f), compute_dtype))
        out_specs1.append(pl.BlockSpec((tile_n, h1f), row_block))

    res1 = pl.pallas_call(
        _make_stats_kernel(num_layers=1, spill=spill_h1, tile_n=tile_n,
                           n_rows=n, tiles_per_core=tiles_per_core,
                           any_partial=any_partial, compute_dtype=compute_dtype),
        grid=(num_cores, tiles_per_core),
        in_specs=[pl.BlockSpec((tile_n, dim), row_block),
                  pl.BlockSpec((dim, h1f), const2),
                  pl.BlockSpec((1, h1f), const2)],
        out_specs=out_specs1,
        out_shape=out_shape1,
        compiler_params=stats_cparams,
    )(x, w1, b1)
    sum1p, sq1p = res1[0], res1[1]
    h1_act = res1[2] if spill_h1 else None

    # Fold BN1 (training-mode batch stats, biased variance) into Linear #2.
    sum1 = jnp.sum(sum1p, axis=0, keepdims=True)
    sq1 = jnp.sum(sq1p, axis=0, keepdims=True)
    mean1 = sum1 / n
    var1 = jnp.maximum(sq1 / n - mean1 * mean1, 0.0)
    scale1 = params["g1"].astype(f32) * jax.lax.rsqrt(var1 + BN_EPS)     # [1,h1f]
    shift1 = params["be1"].astype(f32) - mean1 * scale1
    w2_f32 = params["w2"].astype(f32)
    w2 = (scale1.reshape(h1f, 1) * w2_f32).astype(compute_dtype)         # [h1f,h2f]
    b2 = params["b2"].astype(f32) + shift1 @ w2_f32                      # [1,h2f]

    # -------- pass 2: stats of h2 = ReLU(BN1(h1) @ W2 + b2), spill h2 --------
    out_shape2, out_specs2 = stat_outs(h2f)
    out_shape2 = list(out_shape2) + [jax.ShapeDtypeStruct((n, h2f), compute_dtype)]
    out_specs2 = list(out_specs2) + [pl.BlockSpec((tile_n, h2f), row_block)]

    if spill_h1:
        ins2 = (h1_act, w2, b2)
        in_specs2 = [pl.BlockSpec((tile_n, h1f), row_block),
                     pl.BlockSpec((h1f, h2f), const2),
                     pl.BlockSpec((1, h2f), const2)]
        n_layers2 = 1
    else:
        ins2 = (x, w1, b1, w2, b2)
        in_specs2 = [pl.BlockSpec((tile_n, dim), row_block),
                     pl.BlockSpec((dim, h1f), const2),
                     pl.BlockSpec((1, h1f), const2),
                     pl.BlockSpec((h1f, h2f), const2),
                     pl.BlockSpec((1, h2f), const2)]
        n_layers2 = 2

    sum2p, sq2p, h2_act = pl.pallas_call(
        _make_stats_kernel(num_layers=n_layers2, spill=True, tile_n=tile_n,
                           n_rows=n, tiles_per_core=tiles_per_core,
                           any_partial=any_partial, compute_dtype=compute_dtype),
        grid=(num_cores, tiles_per_core),
        in_specs=in_specs2,
        out_specs=out_specs2,
        out_shape=out_shape2,
        compiler_params=stats_cparams,
    )(*ins2)

    # Fold BN2 into the classifier Linear; keep this fold in f32 (tiny matmul,
    # avoids quantizing scale2*W3).
    sum2 = jnp.sum(sum2p, axis=0, keepdims=True)
    sq2 = jnp.sum(sq2p, axis=0, keepdims=True)
    mean2 = sum2 / n
    var2 = jnp.maximum(sq2 / n - mean2 * mean2, 0.0)
    scale2 = params["g2"].astype(f32) * jax.lax.rsqrt(var2 + BN_EPS)     # [1,h2f]
    shift2 = params["be2"].astype(f32) - mean2 * scale2
    w3_f32 = params["w3"].astype(f32)
    w3 = scale2.reshape(h2f, 1) * w3_f32                                 # [h2f,C] f32
    b3 = params["b3"].astype(f32) + shift2 @ w3_f32                      # [1,C]

    # ------------- pass 3: logits from the spilled h2 (tiny matmul) ----------
    out = pl.pallas_call(
        _logits_kernel,
        grid=(num_row_tiles,),
        in_specs=[pl.BlockSpec((tile_n, h2f), lambda i: (i, 0)),
                  pl.BlockSpec((h2f, class_num), lambda i: (0, 0)),
                  pl.BlockSpec((1, class_num), lambda i: (0, 0))],
        out_specs=pl.BlockSpec((tile_n, class_num), lambda i: (i, 0)),
        out_shape=jax.ShapeDtypeStruct((n, class_num), f32),
        compiler_params=pltpu.CompilerParams(
            dimension_semantics=("parallel",), vmem_limit_bytes=vmem_limit),
    )(h2_act, w3, b3)
    return out


def init_params(key, dim, class_num):
    """Deterministic synthetic parameters. Linear weights stored [in, out]
    (transpose of PyTorch's [out, in]); init_weights('normal', gain=0.02) uses
    N(0, 0.02) weights. Biases / BN params are made non-trivial so the
    BN-folding paths are genuinely exercised."""
    h1, h2 = (128, 32) if class_num < 30 else (256, 128)
    ks = jax.random.split(key, 9)
    gain = 0.02
    f32 = jnp.float32
    return {
        "w1": gain * jax.random.normal(ks[0], (dim, h1), f32),
        "b1": 0.1 * jax.random.normal(ks[1], (1, h1), f32),
        "g1": 1.0 + 0.1 * jax.random.normal(ks[2], (1, h1), f32),
        "be1": 0.1 * jax.random.normal(ks[3], (1, h1), f32),
        "w2": gain * jax.random.normal(ks[4], (h1, h2), f32),
        "b2": 0.1 * jax.random.normal(ks[5], (1, h2), f32),
        "g2": 1.0 + 0.1 * jax.random.normal(ks[6], (1, h2), f32),
        "be2": 0.1 * jax.random.normal(ks[7], (1, h2), f32),
        "w3": gain * jax.random.normal(ks[8], (h2, class_num), f32),
        "b3": 0.1 * jax.random.normal(jax.random.fold_in(key, 99), (1, class_num), f32),
    }


def _reference(x, p):
    """Plain-JAX f32 reference matching the PyTorch training-mode forward."""
    h = jnp.maximum(x @ p["w1"] + p["b1"], 0.0)
    m, v = jnp.mean(h, 0, keepdims=True), jnp.var(h, 0, keepdims=True)
    h = (h - m) * jax.lax.rsqrt(v + BN_EPS) * p["g1"] + p["be1"]
    h = jnp.maximum(h @ p["w2"] + p["b2"], 0.0)
    m, v = jnp.mean(h, 0, keepdims=True), jnp.var(h, 0, keepdims=True)
    h = (h - m) * jax.lax.rsqrt(v + BN_EPS) * p["g2"] + p["be2"]
    return h @ p["w3"] + p["b3"]


if __name__ == "__main__":
    key = jax.random.PRNGKey(0)
    k_xa, k_pa, k_xb, k_pb = jax.random.split(key, 4)

    N = 48 * 48        # pixels of a small 48x48 feature map
    class_num = 8      # < 30 -> Linear(dim,128)/ReLU/BN/Linear(128,32)/ReLU/BN/Linear(32,C)

    # --- config A: narrow features (dim < 128 -> recompute-h1 path) ---
    dim_a = 32
    x_a = jax.random.normal(k_xa, (N, dim_a), jnp.float32)
    p_a = init_params(k_pa, dim_a, class_num)
    ref_a = _reference(x_a, p_a)

    # f32 compute path, small tile: exercises multi-tile grid, 2-core stats
    # split, index-map clamping and last-tile masking; tight tolerance.
    out = jax.block_until_ready(jax.jit(functools.partial(
        pixel_classifier_forward, tile_n=512, compute_dtype=jnp.float32))(x_a, p_a))
    assert out.shape == (N, class_num)
    assert jnp.allclose(out, ref_a, atol=1e-4, rtol=1e-4)

    # default bf16 MXU path, auto tile sizing (single full tile, no masking).
    out = jax.block_until_ready(jax.jit(pixel_classifier_forward)(x_a, p_a))
    assert out.shape == (N, class_num)
    assert jnp.allclose(out, ref_a, atol=5e-2, rtol=5e-2)

    # --- config B: wide features (dim > 128 -> h1 spilled from pass 1) ---
    dim_b = 256
    x_b = jax.random.normal(k_xb, (N, dim_b), jnp.float32)
    p_b = init_params(k_pb, dim_b, class_num)
    ref_b = _reference(x_b, p_b)

    out = jax.block_until_ready(jax.jit(functools.partial(
        pixel_classifier_forward, tile_n=768, compute_dtype=jnp.float32))(x_b, p_b))
    assert out.shape == (N, class_num)
    assert jnp.allclose(out, ref_b, atol=1e-4, rtol=1e-4)

    out = jax.block_until_ready(jax.jit(pixel_classifier_forward)(x_b, p_b))
    assert out.shape == (N, class_num)
    assert jnp.allclose(out, ref_b, atol=5e-2, rtol=5e-2)

    print("KERNEL_OK")
</pallas_src>

<mosaic_0001>
module attributes {stable_mosaic.version = 11 : i64} {
  func.func @kernel(%arg0: i32, %arg1: i32, %arg2: memref<512x32xf32, #tpu.memory_space<vmem>>, %arg3: memref<32x128xf32, #tpu.memory_space<vmem>>, %arg4: memref<1x128xf32, #tpu.memory_space<vmem>>, %arg5: memref<8x128xf32, #tpu.memory_space<vmem>>, %arg6: memref<8x128xf32, #tpu.memory_space<vmem>>) attributes {dimension_semantics = [#tpu.dimension_semantics<parallel>, #tpu.dimension_semantics<arbitrary>], iteration_bounds = array<i64: 2, 3>, scalar_prefetch = 0 : i64, scratch_operands = 0 : i64, tpu.core_type = #tpu.core_type<tc>, window_params = [{transform_indices = @transform_0, window_bounds = array<i64: 512, 32>}, {pipeline_mode = #tpu.pipeline_mode<synchronous>, transform_indices = @transform_1, window_bounds = array<i64: 32, 128>}, {pipeline_mode = #tpu.pipeline_mode<synchronous>, transform_indices = @transform_2, window_bounds = array<i64: 1, 128>}, {transform_indices = @transform_3, window_bounds = array<i64: 8, 128>}, {transform_indices = @transform_4, window_bounds = array<i64: 8, 128>}]} {
    %c0_i32 = arith.constant 0 : i32
    %0 = arith.cmpi eq, %arg1, %c0_i32 : i32
    %1 = arith.extui %0 : i1 to i32
    %c0_i32_0 = arith.constant 0 : i32
    %2 = arith.cmpi ne, %1, %c0_i32_0 : i32
    scf.if %2 {
      %cst_10 = arith.constant 0.000000e+00 : f32
      %21 = vector.broadcast %cst_10 : f32 to vector<8x128xf32>
      %c0_11 = arith.constant 0 : index
      %c0_12 = arith.constant 0 : index
      %22 = vector.load %arg5[%c0_11, %c0_12] : memref<8x128xf32, #tpu.memory_space<vmem>>, vector<8x128xf32>
      tpu.vector_store %arg5[%c0_11, %c0_12], %21 {strides = array<i32>} : memref<8x128xf32, #tpu.memory_space<vmem>>, vector<8x128xf32>,
      %cst_13 = arith.constant 0.000000e+00 : f32
      %23 = vector.broadcast %cst_13 : f32 to vector<8x128xf32>
      %c0_14 = arith.constant 0 : index
      %c0_15 = arith.constant 0 : index
      %24 = vector.load %arg6[%c0_14, %c0_15] : memref<8x128xf32, #tpu.memory_space<vmem>>, vector<8x128xf32>
      tpu.vector_store %arg6[%c0_14, %c0_15], %23 {strides = array<i32>} : memref<8x128xf32, #tpu.memory_space<vmem>>, vector<8x128xf32>,
    } else {
    }
    %c0 = arith.constant 0 : index
    %c0_1 = arith.constant 0 : index
    %3 = vector.load %arg2[%c0, %c0_1] : memref<512x32xf32, #tpu.memory_space<vmem>>, vector<512x32xf32>
    %c0_2 = arith.constant 0 : index
    %c0_3 = arith.constant 0 : index
    %4 = vector.load %arg3[%c0_2, %c0_3] : memref<32x128xf32, #tpu.memory_space<vmem>>, vector<32x128xf32>
    %c0_4 = arith.constant 0 : index
    %c0_5 = arith.constant 0 : index
    %5 = vector.load %arg4[%c0_4, %c0_5] : memref<1x128xf32, #tpu.memory_space<vmem>>, vector<1x128xf32>
    %cst = arith.constant dense<0.000000e+00> : vector<512x128xf32>
    %6 = tpu.matmul %3, %4, %cst {dimension_numbers = #tpu.dot_dimension_numbers<[1], [0], [0], [1], [0, 0, 1, 1], [], []>} : vector<512x32xf32>, vector<32x128xf32>, vector<512x128xf32> -> vector<512x128xf32>
    %7 = vector.broadcast %5 : vector<1x128xf32> to vector<512x128xf32>
    %8 = arith.addf %6, %7 : vector<512x128xf32>
    %cst_6 = arith.constant 0.000000e+00 : f32
    %9 = vector.broadcast %cst_6 : f32 to vector<512x128xf32>
    %10 = arith.maximumf %8, %9 : vector<512x128xf32>
    %c3_i32 = arith.constant 3 : i32
    %11 = arith.muli %arg0, %c3_i32 : i32
    %12 = arith.addi %11, %arg1 : i32
    %c512_i32 = arith.constant 512 : i32
    %13 = arith.muli %12, %c512_i32 : i32
    %c512_i32_7 = arith.constant 512 : i32
    %14 = arith.addi %13, %c512_i32_7 : i32
    %c2304_i32 = arith.constant 2304 : i32
    %15 = arith.cmpi sgt, %14, %c2304_i32 : i32
    %true = arith.constant true
    %16 = arith.xori %15, %true : i1
    %17 = arith.extui %16 : i1 to i32
    %c0_i32_8 = arith.constant 0 : i32
    %18 = arith.cmpi ne, %17, %c0_i32_8 : i32
    scf.if %18 {
      %c0_10 = arith.constant 0 : index
      %c0_11 = arith.constant 0 : index
      %21 = vector.load %arg5[%c0_10, %c0_11] : memref<8x128xf32, #tpu.memory_space<vmem>>, vector<1x128xf32>
      %cst_12 = arith.constant dense<0.000000e+00> : vector<128xf32>
      %22 = vector.multi_reduction <add>, %10, %cst_12 [0] : vector<512x128xf32> to vector<128xf32>
      %23 = vector.shape_cast %22 : vector<128xf32> to vector<1x128xf32>
      %24 = arith.addf %21, %23 : vector<1x128xf32>
      %c0_13 = arith.constant 0 : index
      %c0_14 = arith.constant 0 : index
      %25 = vector.load %arg5[%c0_13, %c0_14] : memref<8x128xf32, #tpu.memory_space<vmem>>, vector<1x128xf32>
      tpu.vector_store %arg5[%c0_13, %c0_14], %24 {strides = array<i32>} : memref<8x128xf32, #tpu.memory_space<vmem>>, vector<1x128xf32>,
      %c0_15 = arith.constant 0 : index
      %c0_16 = arith.constant 0 : index
      %26 = vector.load %arg6[%c0_15, %c0_16] : memref<8x128xf32, #tpu.memory_space<vmem>>, vector<1x128xf32>
      %27 = arith.mulf %10, %10 : vector<512x128xf32>
      %cst_17 = arith.constant dense<0.000000e+00> : vector<128xf32>
      %28 = vector.multi_reduction <add>, %27, %cst_17 [0] : vector<512x128xf32> to vector<128xf32>
      %29 = vector.shape_cast %28 : vector<128xf32> to vector<1x128xf32>
      %30 = arith.addf %26, %29 : vector<1x128xf32>
      %c0_18 = arith.constant 0 : index
      %c0_19 = arith.constant 0 : index
      %31 = vector.load %arg6[%c0_18, %c0_19] : memref<8x128xf32, #tpu.memory_space<vmem>>, vector<1x128xf32>
      tpu.vector_store %arg6[%c0_18, %c0_19], %30 {strides = array<i32>} : memref<8x128xf32, #tpu.memory_space<vmem>>, vector<1x128xf32>,
    } else {
    }
    %19 = arith.extui %15 : i1 to i32
    %c0_i32_9 = arith.constant 0 : i32
    %20 = arith.cmpi ne, %19, %c0_i32_9 : i32
    scf.if %20 {
      %21 = tpu.iota {dimensions = array<i32: 0>} : vector<512x1xi32>
      %22 = vector.broadcast %13 : i32 to vector<512x1xi32>
      %23 = arith.addi %22, %21 : vector<512x1xi32>
      %c2304_i32_10 = arith.constant 2304 : i32
      %24 = vector.broadcast %c2304_i32_10 : i32 to vector<512x1xi32>
      %25 = arith.cmpi slt, %23, %24 : vector<512x1xi32>
      %cst_11 = arith.constant 0.000000e+00 : f32
      %26 = vector.shape_cast %25 : vector<512x1xi1> to vector<512x1xi1>
      %27 = vector.broadcast %26 : vector<512x1xi1> to vector<512x128xi1>
      %28 = vector.broadcast %cst_11 : f32 to vector<512x128xf32>
      %29 = arith.select %27, %10, %28 : vector<512x128xi1>, vector<512x128xf32>
      %c0_12 = arith.constant 0 : index
      %c0_13 = arith.constant 0 : index
      %30 = vector.load %arg5[%c0_12, %c0_13] : memref<8x128xf32, #tpu.memory_space<vmem>>, vector<1x128xf32>
      %cst_14 = arith.constant dense<0.000000e+00> : vector<128xf32>
      %31 = vector.multi_reduction <add>, %29, %cst_14 [0] : vector<512x128xf32> to vector<128xf32>
      %32 = vector.shape_cast %31 : vector<128xf32> to vector<1x128xf32>
      %33 = arith.addf %30, %32 : vector<1x128xf32>
      %c0_15 = arith.constant 0 : index
      %c0_16 = arith.constant 0 : index
      %34 = vector.load %arg5[%c0_15, %c0_16] : memref<8x128xf32, #tpu.memory_space<vmem>>, vector<1x128xf32>
      tpu.vector_store %arg5[%c0_15, %c0_16], %33 {strides = array<i32>} : memref<8x128xf32, #tpu.memory_space<vmem>>, vector<1x128xf32>,
      %c0_17 = arith.constant 0 : index
      %c0_18 = arith.constant 0 : index
      %35 = vector.load %arg6[%c0_17, %c0_18] : memref<8x128xf32, #tpu.memory_space<vmem>>, vector<1x128xf32>
      %36 = arith.mulf %29, %29 : vector<512x128xf32>
      %cst_19 = arith.constant dense<0.000000e+00> : vector<128xf32>
      %37 = vector.multi_reduction <add>, %36, %cst_19 [0] : vector<512x128xf32> to vector<128xf32>
      %38 = vector.shape_cast %37 : vector<128xf32> to vector<1x128xf32>
      %39 = arith.addf %35, %38 : vector<1x128xf32>
      %c0_20 = arith.constant 0 : index
      %c0_21 = arith.constant 0 : index
      %40 = vector.load %arg6[%c0_20, %c0_21] : memref<8x128xf32, #tpu.memory_space<vmem>>, vector<1x128xf32>
      tpu.vector_store %arg6[%c0_20, %c0_21], %39 {strides = array<i32>} : memref<8x128xf32, #tpu.memory_space<vmem>>, vector<1x128xf32>,
    } else {
    }
    return
  }
  func.func @transform_0(%arg0: i32, %arg1: i32) -> (i32, i32) {
    %c3_i32 = arith.constant 3 : i32
    %0 = arith.muli %arg0, %c3_i32 : i32
    %1 = arith.addi %0, %arg1 : i32
    %c4_i32 = arith.constant 4 : i32
    %2 = arith.minsi %1, %c4_i32 : i32
    %c0_i32 = arith.constant 0 : i32
    %c0_i32_0 = arith.constant 0 : i32
    return %2, %c0_i32 : i32, i32
  }
  func.func @transform_1(%arg0: i32, %arg1: i32) -> (i32, i32) {
    %c0_i32 = arith.constant 0 : i32
    %c0_i32_0 = arith.constant 0 : i32
    %c0_i32_1 = arith.constant 0 : i32
    return %c0_i32, %c0_i32_0 : i32, i32
  }
  func.func @transform_2(%arg0: i32, %arg1: i32) -> (i32, i32) {
    %c0_i32 = arith.constant 0 : i32
    %c0_i32_0 = arith.constant 0 : i32
    %c0_i32_1 = arith.constant 0 : i32
    return %c0_i32, %c0_i32_0 : i32, i32
  }
  func.func @transform_3(%arg0: i32, %arg1: i32) -> (i32, i32) {
    %c0_i32 = arith.constant 0 : i32
    %c0_i32_0 = arith.constant 0 : i32
    return %arg0, %c0_i32 : i32, i32
  }
  func.func @transform_4(%arg0: i32, %arg1: i32) -> (i32, i32) {
    %c0_i32 = arith.constant 0 : i32
    %c0_i32_0 = arith.constant 0 : i32
    return %arg0, %c0_i32 : i32, i32
  }
}

module attributes {stable_mosaic.version = 11 : i64} {
  func.func @_logits_kernel(%arg0: i32, %arg1: memref<512x32xf32, #tpu.memory_space<vmem>>, %arg2: memref<32x8xf32, #tpu.memory_space<vmem>>, %arg3: memref<1x8xf32, #tpu.memory_space<vmem>>, %arg4: memref<512x8xf32, #tpu.memory_space<vmem>>) attributes {dimension_semantics = [#tpu.dimension_semantics<parallel>], iteration_bounds = array<i64: 5>, scalar_prefetch = 0 : i64, scratch_operands = 0 : i64, tpu.core_type = #tpu.core_type<tc>, window_params = [{transform_indices = @transform_0, window_bounds = array<i64: 512, 32>}, {pipeline_mode = #tpu.pipeline_mode<synchronous>, transform_indices = @transform_1, window_bounds = array<i64: 32, 8>}, {pipeline_mode = #tpu.pipeline_mode<synchronous>, transform_indices = @transform_2, window_bounds = array<i64: 1, 8>}, {transform_indices = @transform_3, window_bounds = array<i64: 512, 8>}]} {
    %c0 = arith.constant 0 : index
    %c0_0 = arith.constant 0 : index
    %0 = vector.load %arg1[%c0, %c0_0] : memref<512x32xf32, #tpu.memory_space<vmem>>, vector<512x32xf32>
    %c0_1 = arith.constant 0 : index
    %c0_2 = arith.constant 0 : index
    %1 = vector.load %arg2[%c0_1, %c0_2] : memref<32x8xf32, #tpu.memory_space<vmem>>, vector<32x8xf32>
    %cst = arith.constant dense<0.000000e+00> : vector<512x8xf32>
    %2 = tpu.matmul %0, %1, %cst {dimension_numbers = #tpu.dot_dimension_numbers<[1], [0], [0], [1], [0, 0, 1, 1], [], []>} : vector<512x32xf32>, vector<32x8xf32>, vector<512x8xf32> -> vector<512x8xf32>
    %c0_3 = arith.constant 0 : index
    %c0_4 = arith.constant 0 : index
    %3 = vector.load %arg3[%c0_3, %c0_4] : memref<1x8xf32, #tpu.memory_space<vmem>>, vector<1x8xf32>
    %4 = vector.broadcast %3 : vector<1x8xf32> to vector<512x8xf32>
    %5 = arith.addf %2, %4 : vector<512x8xf32>
    %c0_5 = arith.constant 0 : index
    %c0_6 = arith.constant 0 : index
    %6 = vector.load %arg4[%c0_5, %c0_6] : memref<512x8xf32, #tpu.memory_space<vmem>>, vector<512x8xf32>
    tpu.vector_store %arg4[%c0_5, %c0_6], %5 {strides = array<i32>} : memref<512x8xf32, #tpu.memory_space<vmem>>, vector<512x8xf32>,
    return
  }
  func.func @transform_0(%arg0: i32) -> (i32, i32) {
    %c0_i32 = arith.constant 0 : i32
    %c0_i32_0 = arith.constant 0 : i32
    return %arg0, %c0_i32 : i32, i32
  }
  func.func @transform_1(%arg0: i32) -> (i32, i32) {
    %c0_i32 = arith.constant 0 : i32
    %c0_i32_0 = arith.constant 0 : i32
    %c0_i32_1 = arith.constant 0 : i32
    return %c0_i32, %c0_i32_0 : i32, i32
  }
  func.func @transform_2(%arg0: i32) -> (i32, i32) {
    %c0_i32 = arith.constant 0 : i32
    %c0_i32_0 = arith.constant 0 : i32
    %c0_i32_1 = arith.constant 0 : i32
    return %c0_i32, %c0_i32_0 : i32, i32
  }
  func.func @transform_3(%arg0: i32) -> (i32, i32) {
    %c0_i32 = arith.constant 0 : i32
    %c0_i32_0 = arith.constant 0 : i32
    return %arg0, %c0_i32 : i32, i32
  }
}

module attributes {stable_mosaic.version = 11 : i64} {
  func.func @kernel(%arg0: i32, %arg1: i32, %arg2: memref<512x32xf32, #tpu.memory_space<vmem>>, %arg3: memref<32x128xf32, #tpu.memory_space<vmem>>, %arg4: memref<1x128xf32, #tpu.memory_space<vmem>>, %arg5: memref<128x32xf32, #tpu.memory_space<vmem>>, %arg6: memref<1x32xf32, #tpu.memory_space<vmem>>, %arg7: memref<8x32xf32, #tpu.memory_space<vmem>>, %arg8: memref<8x32xf32, #tpu.memory_space<vmem>>, %arg9: memref<512x32xf32, #tpu.memory_space<vmem>>) attributes {dimension_semantics = [#tpu.dimension_semantics<parallel>, #tpu.dimension_semantics<arbitrary>], iteration_bounds = array<i64: 2, 3>, scalar_prefetch = 0 : i64, scratch_operands = 0 : i64, tpu.core_type = #tpu.core_type<tc>, window_params = [{transform_indices = @transform_0, window_bounds = array<i64: 512, 32>}, {pipeline_mode = #tpu.pipeline_mode<synchronous>, transform_indices = @transform_1, window_bounds = array<i64: 32, 128>}, {pipeline_mode = #tpu.pipeline_mode<synchronous>, transform_indices = @transform_2, window_bounds = array<i64: 1, 128>}, {pipeline_mode = #tpu.pipeline_mode<synchronous>, transform_indices = @transform_3, window_bounds = array<i64: 128, 32>}, {pipeline_mode = #tpu.pipeline_mode<synchronous>, transform_indices = @transform_4, window_bounds = array<i64: 1, 32>}, {transform_indices = @transform_5, window_bounds = array<i64: 8, 32>}, {transform_indices = @transform_6, window_bounds = array<i64: 8, 32>}, {transform_indices = @transform_7, window_bounds = array<i64: 512, 32>}]} {
    %c0_i32 = arith.constant 0 : i32
    %0 = arith.cmpi eq, %arg1, %c0_i32 : i32
    %1 = arith.extui %0 : i1 to i32
    %c0_i32_0 = arith.constant 0 : i32
    %2 = arith.cmpi ne, %1, %c0_i32_0 : i32
    scf.if %2 {
      %cst_18 = arith.constant 0.000000e+00 : f32
      %29 = vector.broadcast %cst_18 : f32 to vector<8x32xf32>
      %c0_19 = arith.constant 0 : index
      %c0_20 = arith.constant 0 : index
      %30 = vector.load %arg7[%c0_19, %c0_20] : memref<8x32xf32, #tpu.memory_space<vmem>>, vector<8x32xf32>
      tpu.vector_store %arg7[%c0_19, %c0_20], %29 {strides = array<i32>} : memref<8x32xf32, #tpu.memory_space<vmem>>, vector<8x32xf32>,
      %cst_21 = arith.constant 0.000000e+00 : f32
      %31 = vector.broadcast %cst_21 : f32 to vector<8x32xf32>
      %c0_22 = arith.constant 0 : index
      %c0_23 = arith.constant 0 : index
      %32 = vector.load %arg8[%c0_22, %c0_23] : memref<8x32xf32, #tpu.memory_space<vmem>>, vector<8x32xf32>
      tpu.vector_store %arg8[%c0_22, %c0_23], %31 {strides = array<i32>} : memref<8x32xf32, #tpu.memory_space<vmem>>, vector<8x32xf32>,
    } else {
    }
    %c0 = arith.constant 0 : index
    %c0_1 = arith.constant 0 : index
    %3 = vector.load %arg2[%c0, %c0_1] : memref<512x32xf32, #tpu.memory_space<vmem>>, vector<512x32xf32>
    %c0_2 = arith.constant 0 : index
    %c0_3 = arith.constant 0 : index
    %4 = vector.load %arg3[%c0_2, %c0_3] : memref<32x128xf32, #tpu.memory_space<vmem>>, vector<32x128xf32>
    %c0_4 = arith.constant 0 : index
    %c0_5 = arith.constant 0 : index
    %5 = vector.load %arg4[%c0_4, %c0_5] : memref<1x128xf32, #tpu.memory_space<vmem>>, vector<1x128xf32>
    %cst = arith.constant dense<0.000000e+00> : vector<512x128xf32>
    %6 = tpu.matmul %3, %4, %cst {dimension_numbers = #tpu.dot_dimension_numbers<[1], [0], [0], [1], [0, 0, 1, 1], [], []>} : vector<512x32xf32>, vector<32x128xf32>, vector<512x128xf32> -> vector<512x128xf32>
    %7 = vector.broadcast %5 : vector<1x128xf32> to vector<512x128xf32>
    %8 = arith.addf %6, %7 : vector<512x128xf32>
    %cst_6 = arith.constant 0.000000e+00 : f32
    %9 = vector.broadcast %cst_6 : f32 to vector<512x128xf32>
    %10 = arith.maximumf %8, %9 : vector<512x128xf32>
    %c0_7 = arith.constant 0 : index
    %c0_8 = arith.constant 0 : index
    %11 = vector.load %arg5[%c0_7, %c0_8] : memref<128x32xf32, #tpu.memory_space<vmem>>, vector<128x32xf32>
    %c0_9 = arith.constant 0 : index
    %c0_10 = arith.constant 0 : index
    %12 = vector.load %arg6[%c0_9, %c0_10] : memref<1x32xf32, #tpu.memory_space<vmem>>, vector<1x32xf32>
    %cst_11 = arith.constant dense<0.000000e+00> : vector<512x32xf32>
    %13 = tpu.matmul %10, %11, %cst_11 {dimension_numbers = #tpu.dot_dimension_numbers<[1], [0], [0], [1], [0, 0, 1, 1], [], []>} : vector<512x128xf32>, vector<128x32xf32>, vector<512x32xf32> -> vector<512x32xf32>
    %14 = vector.broadcast %12 : vector<1x32xf32> to vector<512x32xf32>
    %15 = arith.addf %13, %14 : vector<512x32xf32>
    %cst_12 = arith.constant 0.000000e+00 : f32
    %16 = vector.broadcast %cst_12 : f32 to vector<512x32xf32>
    %17 = arith.maximumf %15, %16 : vector<512x32xf32>
    %c0_13 = arith.constant 0 : index
    %c0_14 = arith.constant 0 : index
    %18 = vector.load %arg9[%c0_13, %c0_14] : memref<512x32xf32, #tpu.memory_space<vmem>>, vector<512x32xf32>
    tpu.vector_store %arg9[%c0_13, %c0_14], %17 {strides = array<i32>} : memref<512x32xf32, #tpu.memory_space<vmem>>, vector<512x32xf32>,
    %c3_i32 = arith.constant 3 : i32
    %19 = arith.muli %arg0, %c3_i32 : i32
    %20 = arith.addi %19, %arg1 : i32
    %c512_i32 = arith.constant 512 : i32
    %21 = arith.muli %20, %c512_i32 : i32
    %c512_i32_15 = arith.constant 512 : i32
    %22 = arith.addi %21, %c512_i32_15 : i32
    %c2304_i32 = arith.constant 2304 : i32
    %23 = arith.cmpi sgt, %22, %c2304_i32 : i32
    %true = arith.constant true
    %24 = arith.xori %23, %true : i1
    %25 = arith.extui %24 : i1 to i32
    %c0_i32_16 = arith.constant 0 : i32
    %26 = arith.cmpi ne, %25, %c0_i32_16 : i32
    scf.if %26 {
      %c0_18 = arith.constant 0 : index
      %c0_19 = arith.constant 0 : index
      %29 = vector.load %arg7[%c0_18, %c0_19] : memref<8x32xf32, #tpu.memory_space<vmem>>, vector<1x32xf32>
      %cst_20 = arith.constant dense<0.000000e+00> : vector<32xf32>
      %30 = vector.multi_reduction <add>, %17, %cst_20 [0] : vector<512x32xf32> to vector<32xf32>
      %31 = vector.shape_cast %30 : vector<32xf32> to vector<1x32xf32>
      %32 = arith.addf %29, %31 : vector<1x32xf32>
      %c0_21 = arith.constant 0 : index
      %c0_22 = arith.constant 0 : index
      %33 = vector.load %arg7[%c0_21, %c0_22] : memref<8x32xf32, #tpu.memory_space<vmem>>, vector<1x32xf32>
      tpu.vector_store %arg7[%c0_21, %c0_22], %32 {strides = array<i32>} : memref<8x32xf32, #tpu.memory_space<vmem>>, vector<1x32xf32>,
      %c0_23 = arith.constant 0 : index
      %c0_24 = arith.constant 0 : index
      %34 = vector.load %arg8[%c0_23, %c0_24] : memref<8x32xf32, #tpu.memory_space<vmem>>, vector<1x32xf32>
      %35 = arith.mulf %17, %17 : vector<512x32xf32>
      %cst_25 = arith.constant dense<0.000000e+00> : vector<32xf32>
      %36 = vector.multi_reduction <add>, %35, %cst_25 [0] : vector<512x32xf32> to vector<32xf32>
      %37 = vector.shape_cast %36 : vector<32xf32> to vector<1x32xf32>
      %38 = arith.addf %34, %37 : vector<1x32xf32>
      %c0_26 = arith.constant 0 : index
      %c0_27 = arith.constant 0 : index
      %39 = vector.load %arg8[%c0_26, %c0_27] : memref<8x32xf32, #tpu.memory_space<vmem>>, vector<1x32xf32>
      tpu.vector_store %arg8[%c0_26, %c0_27], %38 {strides = array<i32>} : memref<8x32xf32, #tpu.memory_space<vmem>>, vector<1x32xf32>,
    } else {
    }
    %27 = arith.extui %23 : i1 to i32
    %c0_i32_17 = arith.constant 0 : i32
    %28 = arith.cmpi ne, %27, %c0_i32_17 : i32
    scf.if %28 {
      %29 = tpu.iota {dimensions = array<i32: 0>} : vector<512x1xi32>
      %30 = vector.broadcast %21 : i32 to vector<512x1xi32>
      %31 = arith.addi %30, %29 : vector<512x1xi32>
      %c2304_i32_18 = arith.constant 2304 : i32
      %32 = vector.broadcast %c2304_i32_18 : i32 to vector<512x1xi32>
      %33 = arith.cmpi slt, %31, %32 : vector<512x1xi32>
      %cst_19 = arith.constant 0.000000e+00 : f32
      %34 = vector.shape_cast %33 : vector<512x1xi1> to vector<512x1xi1>
      %35 = vector.broadcast %34 : vector<512x1xi1> to vector<512x32xi1>
      %36 = vector.broadcast %cst_19 : f32 to vector<512x32xf32>
      %37 = arith.select %35, %17, %36 : vector<512x32xi1>, vector<512x32xf32>
      %c0_20 = arith.constant 0 : index
      %c0_21 = arith.constant 0 : index
      %38 = vector.load %arg7[%c0_20, %c0_21] : memref<8x32xf32, #tpu.memory_space<vmem>>, vector<1x32xf32>
      %cst_22 = arith.constant dense<0.000000e+00> : vector<32xf32>
      %39 = vector.multi_reduction <add>, %37, %cst_22 [0] : vector<512x32xf32> to vector<32xf32>
      %40 = vector.shape_cast %39 : vector<32xf32> to vector<1x32xf32>
      %41 = arith.addf %38, %40 : vector<1x32xf32>
      %c0_23 = arith.constant 0 : index
      %c0_24 = arith.constant 0 : index
      %42 = vector.load %arg7[%c0_23, %c0_24] : memref<8x32xf32, #tpu.memory_space<vmem>>, vector<1x32xf32>
      tpu.vector_store %arg7[%c0_23, %c0_24], %41 {strides = array<i32>} : memref<8x32xf32, #tpu.memory_space<vmem>>, vector<1x32xf32>,
      %c0_25 = arith.constant 0 : index
      %c0_26 = arith.constant 0 : index
      %43 = vector.load %arg8[%c0_25, %c0_26] : memref<8x32xf32, #tpu.memory_space<vmem>>, vector<1x32xf32>
      %44 = arith.mulf %37, %37 : vector<512x32xf32>
      %cst_27 = arith.constant dense<0.000000e+00> : vector<32xf32>
      %45 = vector.multi_reduction <add>, %44, %cst_27 [0] : vector<512x32xf32> to vector<32xf32>
      %46 = vector.shape_cast %45 : vector<32xf32> to vector<1x32xf32>
      %47 = arith.addf %43, %46 : vector<1x32xf32>
      %c0_28 = arith.constant 0 : index
      %c0_29 = arith.constant 0 : index
      %48 = vector.load %arg8[%c0_28, %c0_29] : memref<8x32xf32, #tpu.memory_space<vmem>>, vector<1x32xf32>
      tpu.vector_store %arg8[%c0_28, %c0_29], %47 {strides = array<i32>} : memref<8x32xf32, #tpu.memory_space<vmem>>, vector<1x32xf32>,
    } else {
    }
    return
  }
  func.func @transform_0(%arg0: i32, %arg1: i32) -> (i32, i32) {
    %c3_i32 = arith.constant 3 : i32
    %0 = arith.muli %arg0, %c3_i32 : i32
    %1 = arith.addi %0, %arg1 : i32
    %c4_i32 = arith.constant 4 : i32
    %2 = arith.minsi %1, %c4_i32 : i32
    %c0_i32 = arith.constant 0 : i32
    %c0_i32_0 = arith.constant 0 : i32
    return %2, %c0_i32 : i32, i32
  }
  func.func @transform_1(%arg0: i32, %arg1: i32) -> (i32, i32) {
    %c0_i32 = arith.constant 0 : i32
    %c0_i32_0 = arith.constant 0 : i32
    %c0_i32_1 = arith.constant 0 : i32
    return %c0_i32, %c0_i32_0 : i32, i32
  }
  func.func @transform_2(%arg0: i32, %arg1: i32) -> (i32, i32) {
    %c0_i32 = arith.constant 0 : i32
    %c0_i32_0 = arith.constant 0 : i32
    %c0_i32_1 = arith.constant 0 : i32
    return %c0_i32, %c0_i32_0 : i32, i32
  }
  func.func @transform_3(%arg0: i32, %arg1: i32) -> (i32, i32) {
    %c0_i32 = arith.constant 0 : i32
    %c0_i32_0 = arith.constant 0 : i32
    %c0_i32_1 = arith.constant 0 : i32
    return %c0_i32, %c0_i32_0 : i32, i32
  }
  func.func @transform_4(%arg0: i32, %arg1: i32) -> (i32, i32) {
    %c0_i32 = arith.constant 0 : i32
    %c0_i32_0 = arith.constant 0 : i32
    %c0_i32_1 = arith.constant 0 : i32
    return %c0_i32, %c0_i32_0 : i32, i32
  }
  func.func @transform_5(%arg0: i32, %arg1: i32) -> (i32, i32) {
    %c0_i32 = arith.constant 0 : i32
    %c0_i32_0 = arith.constant 0 : i32
    return %arg0, %c0_i32 : i32, i32
  }
  func.func @transform_6(%arg0: i32, %arg1: i32) -> (i32, i32) {
    %c0_i32 = arith.constant 0 : i32
    %c0_i32_0 = arith.constant 0 : i32
    return %arg0, %c0_i32 : i32, i32
  }
  func.func @transform_7(%arg0: i32, %arg1: i32) -> (i32, i32) {
    %c3_i32 = arith.constant 3 : i32
    %0 = arith.muli %arg0, %c3_i32 : i32
    %1 = arith.addi %0, %arg1 : i32
    %c4_i32 = arith.constant 4 : i32
    %2 = arith.minsi %1, %c4_i32 : i32
    %c0_i32 = arith.constant 0 : i32
    %c0_i32_0 = arith.constant 0 : i32
    return %2, %c0_i32 : i32, i32
  }
}

</mosaic_0001>

<llo_original>
// kernel: pixel_classifier_forward.5
$region0: #{pixel_classifier_forward.5}
  #allocation0 [shape = 'u32[]', space=smem, size = 0x4, offset = 0x4, fixed_abs, tag = 'smem constant byte address 0x4 - core index']
  #allocation1 [shape = 'u32[144,128]{1,0:T(1,128)}', space=vmem, size = 0x12000, scoped, tag = 'internal scratch']
  %s0 = inlined_call_operand.vmem [shape: f32[2304,32], index: 0, kind: input, shape index: {}]
  %s1 = inlined_call_operand.vmem [shape: f32[32,8], index: 1, kind: input, shape index: {}]
  %s2 = inlined_call_operand.vmem [shape: f32[1,8], index: 2, kind: input, shape index: {}]
  %s3 = inlined_call_operand.vmem [shape: f32[2304,8], index: 3, kind: output, shape index: {}]
  %s4 = sld [smem:[#allocation0]]
  $region93: #{pixel_classifier_forward.5} parent=0
    _
  %s6 = ssub.s32 1, %s4
  %s7 = scalar_select 0, %s6, %s4
  $region1: #{pixel_classifier_forward.5} parent=0
    #allocation2 [shape = 'u8[524288]{0}', space=vmem, size = 0x80000, scoped, tag = 'output window, operand 0']
    loop: start=0, step=1, limit=7
    $region2: #{pixel_classifier_forward.5} parent=1 // loop_pre_header
      _
    $region3: #{pixel_classifier_forward.5} parent=1 // loop_header
      %s9 = sphi 0, %s13
      %p10 = scmp.ge.s32.totalorder %s9, 7
      %s19 = sphi 0, %s21
      %s22 = sphi 0, %s19
      %s23 = sphi 0, %s22
      %s39 = sphi 0, %s23
      %s43 = sphi 0, %s43
      %s45 = sphi 0, %s43
      %s46 = sphi 0, %s45
      %s60 = sphi 0, %s46
      %s64 = sphi 0, %s64
      %s66 = sphi 0, %s64
      %s67 = sphi 0, %s66
      %s81 = sphi 0, %s67
      %s87 = sphi 0, %s89
      %s90 = sphi 0, %s87
      %s91 = sphi 0, %s90
      %s107 = sphi 0, %s91
    $region4: #{pixel_classifier_forward.5} parent=1 // loop_header_branch
      %12 = sbr.rel (%p10) target = $region8
    $region5: #{pixel_classifier_forward.5} parent=1 // loop_body
      %s14 = ssub.s32 %s9, 1
      %s15 = ssub.s32 %s9, 2
      %s16 = sadd.s32 %s9, 1
      %s17 = ssub.s32 %s9, %s16
      %p18 = scmp.eq.s32.totalorder %s17, 0
      %s20 = sadd.s32 %s19, 1
      %s21 = scalar_select %p18, %s19, %s20
      %p24 = pneg %p18
      %p25 = scmp.eq.s32.totalorder %s9, 4
      %p26 = por %p24, %p25
      %p27 = scmp.ne.s32.totalorder %s19, %s22
      %p28 = scmp.eq.s32.totalorder %s9, 0
      %p29 = por %p27, %p28
      %p30 = scmp.ne.s32.totalorder %s19, %s22
      %p31 = scmp.eq.s32.totalorder %s14, 4
      %p32 = por %p30, %p31
      %p33 = scmp.ne.s32.totalorder %s22, %s23
      %p34 = scmp.eq.s32.totalorder %s14, 0
      %p35 = por %p33, %p34
      %p36 = scmp.ne.s32.totalorder %s22, %s23
      %p37 = scmp.eq.s32.totalorder %s15, 4
      %p38 = por %p36, %p37
      %p40 = scmp.ne.s32.totalorder %s23, %s39
      %p41 = scmp.eq.s32.totalorder %s15, 0
      %p42 = por %p40, %p41
      %s44 = sadd.s32 %s43, 1
      %p47 = scmp.eq.s32.totalorder %s9, 4
      %p48 = scmp.ne.s32.totalorder %s43, %s45
      %p49 = scmp.eq.s32.totalorder %s9, 0
      %p50 = por %p48, %p49
      %p51 = scmp.ne.s32.totalorder %s43, %s45
      %p52 = scmp.eq.s32.totalorder %s14, 4
      %p53 = por %p51, %p52
      %p54 = scmp.ne.s32.totalorder %s45, %s46
      %p55 = scmp.eq.s32.totalorder %s14, 0
      %p56 = por %p54, %p55
      %p57 = scmp.ne.s32.totalorder %s45, %s46
      %p58 = scmp.eq.s32.totalorder %s15, 4
      %p59 = por %p57, %p58
      %p61 = scmp.ne.s32.totalorder %s46, %s60
      %p62 = scmp.eq.s32.totalorder %s15, 0
      %p63 = por %p61, %p62
      %s65 = sadd.s32 %s64, 1
      %p68 = scmp.eq.s32.totalorder %s9, 4
      %p69 = scmp.ne.s32.totalorder %s64, %s66
      %p70 = scmp.eq.s32.totalorder %s9, 0
      %p71 = por %p69, %p70
      %p72 = scmp.ne.s32.totalorder %s64, %s66
      %p73 = scmp.eq.s32.totalorder %s14, 4
      %p74 = por %p72, %p73
      %p75 = scmp.ne.s32.totalorder %s66, %s67
      %p76 = scmp.eq.s32.totalorder %s14, 0
      %p77 = por %p75, %p76
      %p78 = scmp.ne.s32.totalorder %s66, %s67
      %p79 = scmp.eq.s32.totalorder %s15, 4
      %p80 = por %p78, %p79
      %p82 = scmp.ne.s32.totalorder %s67, %s81
      %p83 = scmp.eq.s32.totalorder %s15, 0
      %p84 = por %p82, %p83
      %s85 = ssub.s32 %s9, %s16
      %p86 = scmp.eq.s32.totalorder %s85, 0
      %s88 = sadd.s32 %s87, 1
      %s89 = scalar_select %p86, %s87, %s88
      %p92 = pneg %p86
      %p93 = scmp.eq.s32.totalorder %s9, 4
      %p94 = por %p92, %p93
      %p95 = scmp.ne.s32.totalorder %s87, %s90
      %p96 = scmp.eq.s32.totalorder %s9, 0
      %p97 = por %p95, %p96
      %p98 = scmp.ne.s32.totalorder %s87, %s90
      %p99 = scmp.eq.s32.totalorder %s14, 4
      %p100 = por %p98, %p99
      %p101 = scmp.ne.s32.totalorder %s90, %s91
      %p102 = scmp.eq.s32.totalorder %s14, 0
      %p103 = por %p101, %p102
      %p104 = scmp.ne.s32.totalorder %s90, %s91
      %p105 = scmp.eq.s32.totalorder %s15, 4
      %p106 = por %p104, %p105
      %p108 = scmp.ne.s32.totalorder %s91, %s107
      %p109 = scmp.eq.s32.totalorder %s15, 0
      %p110 = por %p108, %p109
      %p111 = scmp.le.s32.totalorder 1, %s9
      %p112 = scmp.lt.s32.totalorder %s9, 6
      %p113 = pnand %p111, %p112
      %p114 = pneg %p113
      // Predicated region
      $region9: #{pixel_classifier_forward.5} parent=5 // pred_check
        _
      $region10: #{pixel_classifier_forward.5} parent=5 // pred_check_branch
        %116 = sbr.rel (%p113) target = $region12
      $region11: #{pixel_classifier_forward.5} parent=5 // pred_region
        %s117 = ssub.s32 %s9, 1
        // Predicated region
        $region13: #{pixel_classifier_forward.5} parent=11 // pred_check
          %p118 = pneg %p56
        $region14: #{pixel_classifier_forward.5} parent=11 // pred_check_branch
          %120 = sbr.rel (%p118) target = $region16
        $region15: #{pixel_classifier_forward.5} parent=11 // pred_region
          _
        $region16: #{pixel_classifier_forward.5} parent=11 // pred_fallthru
          _
        // Predicated region
        $region17: #{pixel_classifier_forward.5} parent=11 // pred_check
          %p121 = pneg %p77
        $region18: #{pixel_classifier_forward.5} parent=11 // pred_check_branch
          %123 = sbr.rel (%p121) target = $region20
        $region19: #{pixel_classifier_forward.5} parent=11 // pred_region
          _
        $region20: #{pixel_classifier_forward.5} parent=11 // pred_fallthru
          _
      $region12: #{pixel_classifier_forward.5} parent=5 // pred_fallthru
        _
      %p124 = scmp.lt.s32.totalorder %s9, 5
      // Predicated region
      $region21: #{pixel_classifier_forward.5} parent=5 // pred_check
        %p125 = pneg %p124
      $region22: #{pixel_classifier_forward.5} parent=5 // pred_check_branch
        %127 = sbr.rel (%p125) target = $region24
      $region23: #{pixel_classifier_forward.5} parent=5 // pred_region
        // Predicated region
        $region25: #{pixel_classifier_forward.5} parent=23 // pred_check
          %p128 = pneg %p29
        $region26: #{pixel_classifier_forward.5} parent=23 // pred_check_branch
          %130 = sbr.rel (%p128) target = $region28
        $region27: #{pixel_classifier_forward.5} parent=23 // pred_region
          %s131 = smul.u32 64, %s9
          %s132 = ssub.s32 288, %s131
          %p133 = scmp.lt.s32.totalorder %s132, 64
          %s134 = scalar_select %p133, %s132, 64
          %s135 = smul.u32 128, %s134
          %p136 = scmp.lt.s32.totalorder %s131, 287
          %s137 = scalar_select %p136, %s131, 287
          %s138 = smul.addr %s137, 8
          %s139 = scalar_lea.vmem %s0, %s138
          %s140 = smul.u32 64, %s9
          %s141 = ssub.s32 288, %s140
          %p142 = scmp.lt.s32.totalorder %s141, 64
          %s143 = scalar_select %p142, %s141, 64
          %s144 = smul.u32 128, %s143
        $region28: #{pixel_classifier_forward.5} parent=23 // pred_fallthru
          _
      $region24: #{pixel_classifier_forward.5} parent=5 // pred_fallthru
        _
      %p145 = scmp.le.s32.totalorder 1, %s9
      %p146 = scmp.lt.s32.totalorder %s9, 6
      %p147 = pnand %p145, %p146
      %p148 = pneg %p147
      // Predicated region
      $region29: #{pixel_classifier_forward.5} parent=5 // pred_check
        _
      $region30: #{pixel_classifier_forward.5} parent=5 // pred_check_branch
        %150 = sbr.rel (%p147) target = $region32
      $region31: #{pixel_classifier_forward.5} parent=5 // pred_region
        %s151 = ssub.s32 %s9, 1
        %s152 = smul.u32 64, %s14
        %s153 = ssub.s32 288, %s152
        %p154 = scmp.lt.s32.totalorder %s153, 64
        %s155 = scalar_select %p154, %s153, 64
        %s156 = smul.u32 128, %s155
        %p157 = scmp.lt.s32.totalorder %s152, 287
        %s158 = scalar_select %p157, %s152, 287
        %s159 = smul.addr %s158, 8
        %s160 = scalar_lea.vmem %s0, %s159
        %p161 = pneg %p35
        %p162 = pneg %p32
        %p163 = pneg %p56
        %p164 = pneg %p53
        %p165 = pneg %p77
        %p166 = pneg %p74
        %p167 = pneg %p103
        %p168 = pneg %p100
        %s169 = sand.u32 %s90, 1
        %s170 = sand.u32 %s90, 1
        %s171 = smul.addr %s170, 512
        %s172 = scalar_lea.vmem [#allocation2], %s171
        %s173 = smul.u32 64, %s14
        %s174 = ssub.s32 288, %s173
        %p175 = scmp.lt.s32.totalorder %s174, 64
        %s176 = scalar_select %p175, %s174, 64
        %s177 = smul.u32 128, %s176
        %p178 = scmp.lt.s32.totalorder %s173, 287
        %s179 = scalar_select %p178, %s173, 287
        %s180 = smul.addr %s179, 8
        %s181 = scalar_lea.vmem %s0, %s180
        %s182 = smul.u32 64, %s14
        %s183 = ssub.s32 288, %s182
        %p184 = scmp.lt.s32.totalorder %s183, 64
        %s185 = scalar_select %p184, %s183, 64
        %s186 = smul.u32 128, %s185
        %s187 = smul.u32 64, %s14
        %s188 = ssub.s32 288, %s187
        %p189 = scmp.lt.s32.totalorder %s188, 64
        %s190 = scalar_select %p189, %s188, 64
        %s191 = smul.u32 128, %s190
        %v192 = vld [vmem:[%s181] sm:$0xff]
        %v193 = vld [vmem:[%s181 + $0x8] sm:$0xff]
        %v194 = vld [vmem:[%s181 + $0x10] sm:$0xff]
        %v195 = vld [vmem:[%s181 + $0x18] sm:$0xff]
        %v196 = vld [vmem:[%s181 + $0x20] sm:$0xff]
        %v197 = vld [vmem:[%s181 + $0x28] sm:$0xff]
        %v198 = vld [vmem:[%s181 + $0x30] sm:$0xff]
        %v199 = vld [vmem:[%s181 + $0x38] sm:$0xff]
        %v200 = vld [vmem:[%s181 + $0x40] sm:$0xff]
        %v201 = vld [vmem:[%s181 + $0x48] sm:$0xff]
        %v202 = vld [vmem:[%s181 + $0x50] sm:$0xff]
        %v203 = vld [vmem:[%s181 + $0x58] sm:$0xff]
        %v204 = vld [vmem:[%s181 + $0x60] sm:$0xff]
        %v205 = vld [vmem:[%s181 + $0x68] sm:$0xff]
        %v206 = vld [vmem:[%s181 + $0x70] sm:$0xff]
        %v207 = vld [vmem:[%s181 + $0x78] sm:$0xff]
        %v208 = vld [vmem:[%s181 + $0x80] sm:$0xff]
        %v209 = vld [vmem:[%s181 + $0x88] sm:$0xff]
        %v210 = vld [vmem:[%s181 + $0x90] sm:$0xff]
        %v211 = vld [vmem:[%s181 + $0x98] sm:$0xff]
        %v212 = vld [vmem:[%s181 + $0xa0] sm:$0xff]
        %v213 = vld [vmem:[%s181 + $0xa8] sm:$0xff]
        %v214 = vld [vmem:[%s181 + $0xb0] sm:$0xff]
        %v215 = vld [vmem:[%s181 + $0xb8] sm:$0xff]
        %v216 = vld [vmem:[%s181 + $0xc0] sm:$0xff]
        %v217 = vld [vmem:[%s181 + $0xc8] sm:$0xff]
        %v218 = vld [vmem:[%s181 + $0xd0] sm:$0xff]
        %v219 = vld [vmem:[%s181 + $0xd8] sm:$0xff]
        %v220 = vld [vmem:[%s181 + $0xe0] sm:$0xff]
        %v221 = vld [vmem:[%s181 + $0xe8] sm:$0xff]
        %v222 = vld [vmem:[%s181 + $0xf0] sm:$0xff]
        %v223 = vld [vmem:[%s181 + $0xf8] sm:$0xff]
        %v224 = vld [vmem:[%s181 + $0x100] sm:$0xff]
        %v225 = vld [vmem:[%s181 + $0x108] sm:$0xff]
        %v226 = vld [vmem:[%s181 + $0x110] sm:$0xff]
        %v227 = vld [vmem:[%s181 + $0x118] sm:$0xff]
        %v228 = vld [vmem:[%s181 + $0x120] sm:$0xff]
        %v229 = vld [vmem:[%s181 + $0x128] sm:$0xff]
        %v230 = vld [vmem:[%s181 + $0x130] sm:$0xff]
        %v231 = vld [vmem:[%s181 + $0x138] sm:$0xff]
        %v232 = vld [vmem:[%s181 + $0x140] sm:$0xff]
        %v233 = vld [vmem:[%s181 + $0x148] sm:$0xff]
        %v234 = vld [vmem:[%s181 + $0x150] sm:$0xff]
        %v235 = vld [vmem:[%s181 + $0x158] sm:$0xff]
        %v236 = vld [vmem:[%s181 + $0x160] sm:$0xff]
        %v237 = vld [vmem:[%s181 + $0x168] sm:$0xff]
        %v238 = vld [vmem:[%s181 + $0x170] sm:$0xff]
        %v239 = vld [vmem:[%s181 + $0x178] sm:$0xff]
        %v240 = vld [vmem:[%s181 + $0x180] sm:$0xff]
        %v241 = vld [vmem:[%s181 + $0x188] sm:$0xff]
        %v242 = vld [vmem:[%s181 + $0x190] sm:$0xff]
        %v243 = vld [vmem:[%s181 + $0x198] sm:$0xff]
        %v244 = vld [vmem:[%s181 + $0x1a0] sm:$0xff]
        %v245 = vld [vmem:[%s181 + $0x1a8] sm:$0xff]
        %v246 = vld [vmem:[%s181 + $0x1b0] sm:$0xff]
        %v247 = vld [vmem:[%s181 + $0x1b8] sm:$0xff]
        %v248 = vld [vmem:[%s181 + $0x1c0] sm:$0xff]
        %v249 = vld [vmem:[%s181 + $0x1c8] sm:$0xff]
        %v250 = vld [vmem:[%s181 + $0x1d0] sm:$0xff]
        %v251 = vld [vmem:[%s181 + $0x1d8] sm:$0xff]
        %v252 = vld [vmem:[%s181 + $0x1e0] sm:$0xff]
        %v253 = vld [vmem:[%s181 + $0x1e8] sm:$0xff]
        %v254 = vld [vmem:[%s181 + $0x1f0] sm:$0xff]
        %v255 = vld [vmem:[%s181 + $0x1f8] sm:$0xff]
        %v256 = vld [vmem:[%s1] sm:$0xff]
        %v257 = vld [vmem:[%s1 + $0x8] sm:$0xff]
        %v258 = vld [vmem:[%s1 + $0x10] sm:$0xff]
        %v259 = vld [vmem:[%s1 + $0x18] sm:$0xff]
        %v260 = vld [vmem:[%s2] sm:$0x1]
        %v262 = vlaneseq
        %v263 = vshrl.u32 %v262, 7
        %v264 = vsub.s32 0, %v263
        %v265 = vrot.slane %v260, %v264
        %vm267 = vcmask 261120
        %v269 = vsel %vm267, %v192, 0
        %v272 = vsel %vm267, %v193, 0
        %v275 = vsel %vm267, %v194, 0
        %v278 = vsel %vm267, %v195, 0
        %v281 = vsel %vm267, %v196, 0
        %v284 = vsel %vm267, %v197, 0
        %v287 = vsel %vm267, %v198, 0
        %v290 = vsel %vm267, %v199, 0
        %v293 = vsel %vm267, %v200, 0
        %v296 = vsel %vm267, %v201, 0
        %v299 = vsel %vm267, %v202, 0
        %v302 = vsel %vm267, %v203, 0
        %v305 = vsel %vm267, %v204, 0
        %v308 = vsel %vm267, %v205, 0
        %v311 = vsel %vm267, %v206, 0
        %v314 = vsel %vm267, %v207, 0
        %v317 = vsel %vm267, %v208, 0
        %v320 = vsel %vm267, %v209, 0
        %v323 = vsel %vm267, %v210, 0
        %v326 = vsel %vm267, %v211, 0
        %v329 = vsel %vm267, %v212, 0
        %v332 = vsel %vm267, %v213, 0
        %v335 = vsel %vm267, %v214, 0
        %v338 = vsel %vm267, %v215, 0
        %v341 = vsel %vm267, %v216, 0
        %v344 = vsel %vm267, %v217, 0
        %v347 = vsel %vm267, %v218, 0
        %v350 = vsel %vm267, %v219, 0
        %v353 = vsel %vm267, %v220, 0
        %v356 = vsel %vm267, %v221, 0
        %v359 = vsel %vm267, %v222, 0
        %v362 = vsel %vm267, %v223, 0
        %v365 = vsel %vm267, %v224, 0
        %v368 = vsel %vm267, %v225, 0
        %v371 = vsel %vm267, %v226, 0
        %v374 = vsel %vm267, %v227, 0
        %v377 = vsel %vm267, %v228, 0
        %v380 = vsel %vm267, %v229, 0
        %v383 = vsel %vm267, %v230, 0
        %v386 = vsel %vm267, %v231, 0
        %v389 = vsel %vm267, %v232, 0
        %v392 = vsel %vm267, %v233, 0
        %v395 = vsel %vm267, %v234, 0
        %v398 = vsel %vm267, %v235, 0
        %v401 = vsel %vm267, %v236, 0
        %v404 = vsel %vm267, %v237, 0
        %v407 = vsel %vm267, %v238, 0
        %v410 = vsel %vm267, %v239, 0
        %v413 = vsel %vm267, %v240, 0
        %v416 = vsel %vm267, %v241, 0
        %v419 = vsel %vm267, %v242, 0
        %v422 = vsel %vm267, %v243, 0
        %v425 = vsel %vm267, %v244, 0
        %v428 = vsel %vm267, %v245, 0
        %v431 = vsel %vm267, %v246, 0
        %v434 = vsel %vm267, %v247, 0
        %v437 = vsel %vm267, %v248, 0
        %v440 = vsel %vm267, %v249, 0
        %v443 = vsel %vm267, %v250, 0
        %v446 = vsel %vm267, %v251, 0
        %v449 = vsel %vm267, %v252, 0
        %v452 = vsel %vm267, %v253, 0
        %v455 = vsel %vm267, %v254, 0
        %v458 = vsel %vm267, %v255, 0
        %460 = vmatprep.subr.mxu0 0.0
        %461 = vmatpush1.msra.mxu0 %v256
        %462 = vmatprep.subr.mxu0 0.0
        %463 = vmatpush1.msra.mxu0 %v257
        %464 = vmatprep.subr.mxu0 0.0
        %465 = vmatpush1.msra.mxu0 %v258
        %466 = vmatprep.subr.mxu0 0.0
        %467 = vmatpush1.msra.mxu0 %v259
        %468 = vmatprep.subr.mxu0 0.0
        %469 = vmatpush1.msra.mxu0 0.0
        %470 = vmatprep.subr.mxu0 0.0
        %471 = vmatpush1.msra.mxu0 0.0
        %472 = vmatprep.subr.mxu0 0.0
        %473 = vmatpush1.msra.mxu0 0.0
        %474 = vmatprep.subr.mxu0 0.0
        %475 = vmatpush1.msra.mxu0 0.0
        %476 = vmatprep.subr.mxu0 0.0
        %477 = vmatpush1.msra.mxu0 0.0
        %478 = vmatprep.subr.mxu0 0.0
        %479 = vmatpush1.msra.mxu0 0.0
        %480 = vmatprep.subr.mxu0 0.0
        %481 = vmatpush1.msra.mxu0 0.0
        %482 = vmatprep.subr.mxu0 0.0
        %483 = vmatpush1.msra.mxu0 0.0
        %484 = vmatprep.subr.mxu0 0.0
        %485 = vmatpush1.msra.mxu0 0.0
        %486 = vmatprep.subr.mxu0 0.0
        %487 = vmatpush1.msra.mxu0 0.0
        %488 = vmatprep.subr.mxu0 0.0
        %489 = vmatpush1.msra.mxu0 0.0
        %490 = vmatprep.subr.mxu0 0.0
        %491 = vmatpush1.msra.mxu0 0.0
        %492 = vmatprep.subr.mxu0 0.0
        %493 = vmatpush1.msra.mxu0 0.0
        %494 = vmatprep.subr.mxu0 0.0
        %495 = vmatpush1.msra.mxu0 0.0
        %496 = vmatprep.subr.mxu0 0.0
        %497 = vmatpush1.msra.mxu0 0.0
        %498 = vmatprep.subr.mxu0 0.0
        %499 = vmatpush1.msra.mxu0 0.0
        %500 = vmatprep.subr.mxu0 0.0
        %501 = vmatpush1.msra.mxu0 0.0
        %502 = vmatprep.subr.mxu0 0.0
        %503 = vmatpush1.msra.mxu0 0.0
        %504 = vmatprep.subr.mxu0 0.0
        %505 = vmatpush1.msra.mxu0 0.0
        %506 = vmatprep.subr.mxu0 0.0
        %507 = vmatpush1.msra.mxu0 0.0
        %508 = vmatprep.subr.mxu0 0.0
        %509 = vmatpush1.msra.mxu0 0.0
        %510 = vmatprep.subr.mxu0 0.0
        %511 = vmatpush1.msra.mxu0 0.0
        %512 = vmatprep.subr.mxu0 0.0
        %513 = vmatpush1.msra.mxu0 0.0
        %514 = vmatprep.subr.mxu0 0.0
        %515 = vmatpush1.msra.mxu0 0.0
        %516 = vmatprep.subr.mxu0 0.0
        %517 = vmatpush1.msra.mxu0 0.0
        %518 = vmatprep.subr.mxu0 0.0
        %519 = vmatpush1.msra.mxu0 0.0
        %520 = vmatprep.subr.mxu0 0.0
        %521 = vmatpush1.msra.mxu0 0.0
        %522 = vmatprep.subr.mxu0 0.0
        %523 = vmatpush1.msra.mxu0 0.0
        %524 = vmatprep.mubr.f32.mxu0 0.0
        %525 = vmatmul.mubr.f32.gmra.mrb[0].mxu0 %v269
        %v526 = vpop.f32.mrb[0].mxu0
        %v527 = vadd.f32 %v265, %v526
        %v528 = vpop.f32.mrb[0].mxu0
        %529 = vmatprep.mubr.f32.mxu0 0.0
        %530 = vmatmul.mubr.f32.gmra.mrb[0].mxu0 %v272
        %v531 = vpop.f32.mrb[0].mxu0
        %v532 = vadd.f32 %v265, %v531
        %v533 = vpop.f32.mrb[0].mxu0
        %534 = vmatprep.mubr.f32.mxu0 0.0
        %535 = vmatmul.mubr.f32.gmra.mrb[0].mxu0 %v275
        %v536 = vpop.f32.mrb[0].mxu0
        %v537 = vadd.f32 %v265, %v536
        %v538 = vpop.f32.mrb[0].mxu0
        %539 = vmatprep.mubr.f32.mxu0 0.0
        %540 = vmatmul.mubr.f32.gmra.mrb[0].mxu0 %v278
        %v541 = vpop.f32.mrb[0].mxu0
        %v542 = vadd.f32 %v265, %v541
        %v543 = vpop.f32.mrb[0].mxu0
        %544 = vmatprep.mubr.f32.mxu0 0.0
        %545 = vmatmul.mubr.f32.gmra.mrb[0].mxu0 %v281
        %v546 = vpop.f32.mrb[0].mxu0
        %v547 = vadd.f32 %v265, %v546
        %v548 = vpop.f32.mrb[0].mxu0
        %549 = vmatprep.mubr.f32.mxu0 0.0
        %550 = vmatmul.mubr.f32.gmra.mrb[0].mxu0 %v284
        %v551 = vpop.f32.mrb[0].mxu0
        %v552 = vadd.f32 %v265, %v551
        %v553 = vpop.f32.mrb[0].mxu0
        %554 = vmatprep.mubr.f32.mxu0 0.0
        %555 = vmatmul.mubr.f32.gmra.mrb[0].mxu0 %v287
        %v556 = vpop.f32.mrb[0].mxu0
        %v557 = vadd.f32 %v265, %v556
        %v558 = vpop.f32.mrb[0].mxu0
        %559 = vmatprep.mubr.f32.mxu0 0.0
        %560 = vmatmul.mubr.f32.gmra.mrb[0].mxu0 %v290
        %v561 = vpop.f32.mrb[0].mxu0
        %v562 = vadd.f32 %v265, %v561
        %v563 = vpop.f32.mrb[0].mxu0
        %564 = vmatprep.mubr.f32.mxu0 0.0
        %565 = vmatmul.mubr.f32.gmra.mrb[0].mxu0 %v293
        %v566 = vpop.f32.mrb[0].mxu0
        %v567 = vadd.f32 %v265, %v566
        %v568 = vpop.f32.mrb[0].mxu0
        %569 = vmatprep.mubr.f32.mxu0 0.0
        %570 = vmatmul.mubr.f32.gmra.mrb[0].mxu0 %v296
        %v571 = vpop.f32.mrb[0].mxu0
        %v572 = vadd.f32 %v265, %v571
        %v573 = vpop.f32.mrb[0].mxu0
        %574 = vmatprep.mubr.f32.mxu0 0.0
        %575 = vmatmul.mubr.f32.gmra.mrb[0].mxu0 %v299
        %v576 = vpop.f32.mrb[0].mxu0
        %v577 = vadd.f32 %v265, %v576
        %v578 = vpop.f32.mrb[0].mxu0
        %579 = vmatprep.mubr.f32.mxu0 0.0
        %580 = vmatmul.mubr.f32.gmra.mrb[0].mxu0 %v302
        %v581 = vpop.f32.mrb[0].mxu0
        %v582 = vadd.f32 %v265, %v581
        %v583 = vpop.f32.mrb[0].mxu0
        %584 = vmatprep.mubr.f32.mxu0 0.0
        %585 = vmatmul.mubr.f32.gmra.mrb[0].mxu0 %v305
        %v586 = vpop.f32.mrb[0].mxu0
        %v587 = vadd.f32 %v265, %v586
        %v588 = vpop.f32.mrb[0].mxu0
        %589 = vmatprep.mubr.f32.mxu0 0.0
        %590 = vmatmul.mubr.f32.gmra.mrb[0].mxu0 %v308
        %v591 = vpop.f32.mrb[0].mxu0
        %v592 = vadd.f32 %v265, %v591
        %v593 = vpop.f32.mrb[0].mxu0
        %594 = vmatprep.mubr.f32.mxu0 0.0
        %595 = vmatmul.mubr.f32.gmra.mrb[0].mxu0 %v311
        %v596 = vpop.f32.mrb[0].mxu0
        %v597 = vadd.f32 %v265, %v596
        %v598 = vpop.f32.mrb[0].mxu0
        %599 = vmatprep.mubr.f32.mxu0 0.0
        %600 = vmatmul.mubr.f32.gmra.mrb[0].mxu0 %v314
        %v601 = vpop.f32.mrb[0].mxu0
        %v602 = vadd.f32 %v265, %v601
        %v603 = vpop.f32.mrb[0].mxu0
        %604 = vmatprep.mubr.f32.mxu0 0.0
        %605 = vmatmul.mubr.f32.gmra.mrb[0].mxu0 %v317
        %v606 = vpop.f32.mrb[0].mxu0
        %v607 = vadd.f32 %v265, %v606
        %v608 = vpop.f32.mrb[0].mxu0
        %609 = vmatprep.mubr.f32.mxu0 0.0
        %610 = vmatmul.mubr.f32.gmra.mrb[0].mxu0 %v320
        %v611 = vpop.f32.mrb[0].mxu0
        %v612 = vadd.f32 %v265, %v611
        %v613 = vpop.f32.mrb[0].mxu0
        %614 = vmatprep.mubr.f32.mxu0 0.0
        %615 = vmatmul.mubr.f32.gmra.mrb[0].mxu0 %v323
        %v616 = vpop.f32.mrb[0].mxu0
        %v617 = vadd.f32 %v265, %v616
        %v618 = vpop.f32.mrb[0].mxu0
        %619 = vmatprep.mubr.f32.mxu0 0.0
        %620 = vmatmul.mubr.f32.gmra.mrb[0].mxu0 %v326
        %v621 = vpop.f32.mrb[0].mxu0
        %v622 = vadd.f32 %v265, %v621
        %v623 = vpop.f32.mrb[0].mxu0
        %624 = vmatprep.mubr.f32.mxu0 0.0
        %625 = vmatmul.mubr.f32.gmra.mrb[0].mxu0 %v329
        %v626 = vpop.f32.mrb[0].mxu0
        %v627 = vadd.f32 %v265, %v626
        %v628 = vpop.f32.mrb[0].mxu0
        %629 = vmatprep.mubr.f32.mxu0 0.0
        %630 = vmatmul.mubr.f32.gmra.mrb[0].mxu0 %v332
        %v631 = vpop.f32.mrb[0].mxu0
        %v632 = vadd.f32 %v265, %v631
        %v633 = vpop.f32.mrb[0].mxu0
        %634 = vmatprep.mubr.f32.mxu0 0.0
        %635 = vmatmul.mubr.f32.gmra.mrb[0].mxu0 %v335
        %v636 = vpop.f32.mrb[0].mxu0
        %v637 = vadd.f32 %v265, %v636
        %v638 = vpop.f32.mrb[0].mxu0
        %639 = vmatprep.mubr.f32.mxu0 0.0
        %640 = vmatmul.mubr.f32.gmra.mrb[0].mxu0 %v338
        %v641 = vpop.f32.mrb[0].mxu0
        %v642 = vadd.f32 %v265, %v641
        %v643 = vpop.f32.mrb[0].mxu0
        %644 = vmatprep.mubr.f32.mxu0 0.0
        %645 = vmatmul.mubr.f32.gmra.mrb[0].mxu0 %v341
        %v646 = vpop.f32.mrb[0].mxu0
        %v647 = vadd.f32 %v265, %v646
        %v648 = vpop.f32.mrb[0].mxu0
        %649 = vmatprep.mubr.f32.mxu0 0.0
        %650 = vmatmul.mubr.f32.gmra.mrb[0].mxu0 %v344
        %v651 = vpop.f32.mrb[0].mxu0
        %v652 = vadd.f32 %v265, %v651
        %v653 = vpop.f32.mrb[0].mxu0
        %654 = vmatprep.mubr.f32.mxu0 0.0
        %655 = vmatmul.mubr.f32.gmra.mrb[0].mxu0 %v347
        %v656 = vpop.f32.mrb[0].mxu0
        %v657 = vadd.f32 %v265, %v656
        %v658 = vpop.f32.mrb[0].mxu0
        %659 = vmatprep.mubr.f32.mxu0 0.0
        %660 = vmatmul.mubr.f32.gmra.mrb[0].mxu0 %v350
        %v661 = vpop.f32.mrb[0].mxu0
        %v662 = vadd.f32 %v265, %v661
        %v663 = vpop.f32.mrb[0].mxu0
        %664 = vmatprep.mubr.f32.mxu0 0.0
        %665 = vmatmul.mubr.f32.gmra.mrb[0].mxu0 %v353
        %v666 = vpop.f32.mrb[0].mxu0
        %v667 = vadd.f32 %v265, %v666
        %v668 = vpop.f32.mrb[0].mxu0
        %669 = vmatprep.mubr.f32.mxu0 0.0
        %670 = vmatmul.mubr.f32.gmra.mrb[0].mxu0 %v356
        %v671 = vpop.f32.mrb[0].mxu0
        %v672 = vadd.f32 %v265, %v671
        %v673 = vpop.f32.mrb[0].mxu0
        %674 = vmatprep.mubr.f32.mxu0 0.0
        %675 = vmatmul.mubr.f32.gmra.mrb[0].mxu0 %v359
        %v676 = vpop.f32.mrb[0].mxu0
        %v677 = vadd.f32 %v265, %v676
        %v678 = vpop.f32.mrb[0].mxu0
        %679 = vmatprep.mubr.f32.mxu0 0.0
        %680 = vmatmul.mubr.f32.gmra.mrb[0].mxu0 %v362
        %v681 = vpop.f32.mrb[0].mxu0
        %v682 = vadd.f32 %v265, %v681
        %v683 = vpop.f32.mrb[0].mxu0
        %684 = vmatprep.mubr.f32.mxu0 0.0
        %685 = vmatmul.mubr.f32.gmra.mrb[0].mxu0 %v365
        %v686 = vpop.f32.mrb[0].mxu0
        %v687 = vadd.f32 %v265, %v686
        %v688 = vpop.f32.mrb[0].mxu0
        %689 = vmatprep.mubr.f32.mxu0 0.0
        %690 = vmatmul.mubr.f32.gmra.mrb[0].mxu0 %v368
        %v691 = vpop.f32.mrb[0].mxu0
        %v692 = vadd.f32 %v265, %v691
        %v693 = vpop.f32.mrb[0].mxu0
        %694 = vmatprep.mubr.f32.mxu0 0.0
        %695 = vmatmul.mubr.f32.gmra.mrb[0].mxu0 %v371
        %v696 = vpop.f32.mrb[0].mxu0
        %v697 = vadd.f32 %v265, %v696
        %v698 = vpop.f32.mrb[0].mxu0
        %699 = vmatprep.mubr.f32.mxu0 0.0
        %700 = vmatmul.mubr.f32.gmra.mrb[0].mxu0 %v374
        %v701 = vpop.f32.mrb[0].mxu0
        %v702 = vadd.f32 %v265, %v701
        %v703 = vpop.f32.mrb[0].mxu0
        %704 = vmatprep.mubr.f32.mxu0 0.0
        %705 = vmatmul.mubr.f32.gmra.mrb[0].mxu0 %v377
        %v706 = vpop.f32.mrb[0].mxu0
        %v707 = vadd.f32 %v265, %v706
        %v708 = vpop.f32.mrb[0].mxu0
        %709 = vmatprep.mubr.f32.mxu0 0.0
        %710 = vmatmul.mubr.f32.gmra.mrb[0].mxu0 %v380
        %v711 = vpop.f32.mrb[0].mxu0
        %v712 = vadd.f32 %v265, %v711
        %v713 = vpop.f32.mrb[0].mxu0
        %714 = vmatprep.mubr.f32.mxu0 0.0
        %715 = vmatmul.mubr.f32.gmra.mrb[0].mxu0 %v383
        %v716 = vpop.f32.mrb[0].mxu0
        %v717 = vadd.f32 %v265, %v716
        %v718 = vpop.f32.mrb[0].mxu0
        %719 = vmatprep.mubr.f32.mxu0 0.0
        %720 = vmatmul.mubr.f32.gmra.mrb[0].mxu0 %v386
        %v721 = vpop.f32.mrb[0].mxu0
        %v722 = vadd.f32 %v265, %v721
        %v723 = vpop.f32.mrb[0].mxu0
        %724 = vmatprep.mubr.f32.mxu0 0.0
        %725 = vmatmul.mubr.f32.gmra.mrb[0].mxu0 %v389
        %v726 = vpop.f32.mrb[0].mxu0
        %v727 = vadd.f32 %v265, %v726
        %v728 = vpop.f32.mrb[0].mxu0
        %729 = vmatprep.mubr.f32.mxu0 0.0
        %730 = vmatmul.mubr.f32.gmra.mrb[0].mxu0 %v392
        %v731 = vpop.f32.mrb[0].mxu0
        %v732 = vadd.f32 %v265, %v731
        %v733 = vpop.f32.mrb[0].mxu0
        %734 = vmatprep.mubr.f32.mxu0 0.0
        %735 = vmatmul.mubr.f32.gmra.mrb[0].mxu0 %v395
        %v736 = vpop.f32.mrb[0].mxu0
        %v737 = vadd.f32 %v265, %v736
        %v738 = vpop.f32.mrb[0].mxu0
        %739 = vmatprep.mubr.f32.mxu0 0.0
        %740 = vmatmul.mubr.f32.gmra.mrb[0].mxu0 %v398
        %v741 = vpop.f32.mrb[0].mxu0
        %v742 = vadd.f32 %v265, %v741
        %v743 = vpop.f32.mrb[0].mxu0
        %744 = vmatprep.mubr.f32.mxu0 0.0
        %745 = vmatmul.mubr.f32.gmra.mrb[0].mxu0 %v401
        %v746 = vpop.f32.mrb[0].mxu0
        %v747 = vadd.f32 %v265, %v746
        %v748 = vpop.f32.mrb[0].mxu0
        %749 = vmatprep.mubr.f32.mxu0 0.0
        %750 = vmatmul.mubr.f32.gmra.mrb[0].mxu0 %v404
        %v751 = vpop.f32.mrb[0].mxu0
        %v752 = vadd.f32 %v265, %v751
        %v753 = vpop.f32.mrb[0].mxu0
        %754 = vmatprep.mubr.f32.mxu0 0.0
        %755 = vmatmul.mubr.f32.gmra.mrb[0].mxu0 %v407
        %v756 = vpop.f32.mrb[0].mxu0
        %v757 = vadd.f32 %v265, %v756
        %v758 = vpop.f32.mrb[0].mxu0
        %759 = vmatprep.mubr.f32.mxu0 0.0
        %760 = vmatmul.mubr.f32.gmra.mrb[0].mxu0 %v410
        %v761 = vpop.f32.mrb[0].mxu0
        %v762 = vadd.f32 %v265, %v761
        %v763 = vpop.f32.mrb[0].mxu0
        %764 = vmatprep.mubr.f32.mxu0 0.0
        %765 = vmatmul.mubr.f32.gmra.mrb[0].mxu0 %v413
        %v766 = vpop.f32.mrb[0].mxu0
        %v767 = vadd.f32 %v265, %v766
        %v768 = vpop.f32.mrb[0].mxu0
        %769 = vmatprep.mubr.f32.mxu0 0.0
        %770 = vmatmul.mubr.f32.gmra.mrb[0].mxu0 %v416
        %v771 = vpop.f32.mrb[0].mxu0
        %v772 = vadd.f32 %v265, %v771
        %v773 = vpop.f32.mrb[0].mxu0
        %774 = vmatprep.mubr.f32.mxu0 0.0
        %775 = vmatmul.mubr.f32.gmra.mrb[0].mxu0 %v419
        %v776 = vpop.f32.mrb[0].mxu0
        %v777 = vadd.f32 %v265, %v776
        %v778 = vpop.f32.mrb[0].mxu0
        %779 = vmatprep.mubr.f32.mxu0 0.0
        %780 = vmatmul.mubr.f32.gmra.mrb[0].mxu0 %v422
        %v781 = vpop.f32.mrb[0].mxu0
        %v782 = vadd.f32 %v265, %v781
        %v783 = vpop.f32.mrb[0].mxu0
        %784 = vmatprep.mubr.f32.mxu0 0.0
        %785 = vmatmul.mubr.f32.gmra.mrb[0].mxu0 %v425
        %v786 = vpop.f32.mrb[0].mxu0
        %v787 = vadd.f32 %v265, %v786
        %v788 = vpop.f32.mrb[0].mxu0
        %789 = vmatprep.mubr.f32.mxu0 0.0
        %790 = vmatmul.mubr.f32.gmra.mrb[0].mxu0 %v428
        %v791 = vpop.f32.mrb[0].mxu0
        %v792 = vadd.f32 %v265, %v791
        %v793 = vpop.f32.mrb[0].mxu0
        %794 = vmatprep.mubr.f32.mxu0 0.0
        %795 = vmatmul.mubr.f32.gmra.mrb[0].mxu0 %v431
        %v796 = vpop.f32.mrb[0].mxu0
        %v797 = vadd.f32 %v265, %v796
        %v798 = vpop.f32.mrb[0].mxu0
        %799 = vmatprep.mubr.f32.mxu0 0.0
        %800 = vmatmul.mubr.f32.gmra.mrb[0].mxu0 %v434
        %v801 = vpop.f32.mrb[0].mxu0
        %v802 = vadd.f32 %v265, %v801
        %v803 = vpop.f32.mrb[0].mxu0
        %804 = vmatprep.mubr.f32.mxu0 0.0
        %805 = vmatmul.mubr.f32.gmra.mrb[0].mxu0 %v437
        %v806 = vpop.f32.mrb[0].mxu0
        %v807 = vadd.f32 %v265, %v806
        %v808 = vpop.f32.mrb[0].mxu0
        %809 = vmatprep.mubr.f32.mxu0 0.0
        %810 = vmatmul.mubr.f32.gmra.mrb[0].mxu0 %v440
        %v811 = vpop.f32.mrb[0].mxu0
        %v812 = vadd.f32 %v265, %v811
        %v813 = vpop.f32.mrb[0].mxu0
        %814 = vmatprep.mubr.f32.mxu0 0.0
        %815 = vmatmul.mubr.f32.gmra.mrb[0].mxu0 %v443
        %v816 = vpop.f32.mrb[0].mxu0
        %v817 = vadd.f32 %v265, %v816
        %v818 = vpop.f32.mrb[0].mxu0
        %819 = vmatprep.mubr.f32.mxu0 0.0
        %820 = vmatmul.mubr.f32.gmra.mrb[0].mxu0 %v446
        %v821 = vpop.f32.mrb[0].mxu0
        %v822 = vadd.f32 %v265, %v821
        %v823 = vpop.f32.mrb[0].mxu0
        %824 = vmatprep.mubr.f32.mxu0 0.0
        %825 = vmatmul.mubr.f32.gmra.mrb[0].mxu0 %v449
        %v826 = vpop.f32.mrb[0].mxu0
        %v827 = vadd.f32 %v265, %v826
        %v828 = vpop.f32.mrb[0].mxu0
        %829 = vmatprep.mubr.f32.mxu0 0.0
        %830 = vmatmul.mubr.f32.gmra.mrb[0].mxu0 %v452
        %v831 = vpop.f32.mrb[0].mxu0
        %v832 = vadd.f32 %v265, %v831
        %v833 = vpop.f32.mrb[0].mxu0
        %834 = vmatprep.mubr.f32.mxu0 0.0
        %835 = vmatmul.mubr.f32.gmra.mrb[0].mxu0 %v455
        %v836 = vpop.f32.mrb[0].mxu0
        %v837 = vadd.f32 %v265, %v836
        %v838 = vpop.f32.mrb[0].mxu0
        %839 = vmatprep.mubr.f32.mxu0 0.0
        %840 = vmatmul.mubr.f32.gmra.mrb[0].mxu0 %v458
        %v841 = vpop.f32.mrb[0].mxu0
        %v842 = vadd.f32 %v265, %v841
        %v843 = vpop.f32.mrb[0].mxu0
        %844 = vdwg.mxu0
        %vm845 = vcmask 64512
        %846 = vst.msk [vmem:[%s172] sm:$0xff] %vm845, %v527
        %847 = vst.msk [vmem:[%s172 + $0x8] sm:$0xff] %vm845, %v532
        %848 = vst.msk [vmem:[%s172 + $0x10] sm:$0xff] %vm845, %v537
        %849 = vst.msk [vmem:[%s172 + $0x18] sm:$0xff] %vm845, %v542
        %850 = vst.msk [vmem:[%s172 + $0x20] sm:$0xff] %vm845, %v547
        %851 = vst.msk [vmem:[%s172 + $0x28] sm:$0xff] %vm845, %v552
        %852 = vst.msk [vmem:[%s172 + $0x30] sm:$0xff] %vm845, %v557
        %853 = vst.msk [vmem:[%s172 + $0x38] sm:$0xff] %vm845, %v562
        %854 = vst.msk [vmem:[%s172 + $0x40] sm:$0xff] %vm845, %v567
        %855 = vst.msk [vmem:[%s172 + $0x48] sm:$0xff] %vm845, %v572
        %856 = vst.msk [vmem:[%s172 + $0x50] sm:$0xff] %vm845, %v577
        %857 = vst.msk [vmem:[%s172 + $0x58] sm:$0xff] %vm845, %v582
        %858 = vst.msk [vmem:[%s172 + $0x60] sm:$0xff] %vm845, %v587
        %859 = vst.msk [vmem:[%s172 + $0x68] sm:$0xff] %vm845, %v592
        %860 = vst.msk [vmem:[%s172 + $0x70] sm:$0xff] %vm845, %v597
        %861 = vst.msk [vmem:[%s172 + $0x78] sm:$0xff] %vm845, %v602
        %862 = vst.msk [vmem:[%s172 + $0x80] sm:$0xff] %vm845, %v607
        %863 = vst.msk [vmem:[%s172 + $0x88] sm:$0xff] %vm845, %v612
        %864 = vst.msk [vmem:[%s172 + $0x90] sm:$0xff] %vm845, %v617
        %865 = vst.msk [vmem:[%s172 + $0x98] sm:$0xff] %vm845, %v622
        %866 = vst.msk [vmem:[%s172 + $0xa0] sm:$0xff] %vm845, %v627
        %867 = vst.msk [vmem:[%s172 + $0xa8] sm:$0xff] %vm845, %v632
        %868 = vst.msk [vmem:[%s172 + $0xb0] sm:$0xff] %vm845, %v637
        %869 = vst.msk [vmem:[%s172 + $0xb8] sm:$0xff] %vm845, %v642
        %870 = vst.msk [vmem:[%s172 + $0xc0] sm:$0xff] %vm845, %v647
        %871 = vst.msk [vmem:[%s172 + $0xc8] sm:$0xff] %vm845, %v652
        %872 = vst.msk [vmem:[%s172 + $0xd0] sm:$0xff] %vm845, %v657
        %873 = vst.msk [vmem:[%s172 + $0xd8] sm:$0xff] %vm845, %v662
        %874 = vst.msk [vmem:[%s172 + $0xe0] sm:$0xff] %vm845, %v667
        %875 = vst.msk [vmem:[%s172 + $0xe8] sm:$0xff] %vm845, %v672
        %876 = vst.msk [vmem:[%s172 + $0xf0] sm:$0xff] %vm845, %v677
        %877 = vst.msk [vmem:[%s172 + $0xf8] sm:$0xff] %vm845, %v682
        %878 = vst.msk [vmem:[%s172 + $0x100] sm:$0xff] %vm845, %v687
        %879 = vst.msk [vmem:[%s172 + $0x108] sm:$0xff] %vm845, %v692
        %880 = vst.msk [vmem:[%s172 + $0x110] sm:$0xff] %vm845, %v697
        %881 = vst.msk [vmem:[%s172 + $0x118] sm:$0xff] %vm845, %v702
        %882 = vst.msk [vmem:[%s172 + $0x120] sm:$0xff] %vm845, %v707
        %883 = vst.msk [vmem:[%s172 + $0x128] sm:$0xff] %vm845, %v712
        %884 = vst.msk [vmem:[%s172 + $0x130] sm:$0xff] %vm845, %v717
        %885 = vst.msk [vmem:[%s172 + $0x138] sm:$0xff] %vm845, %v722
        %886 = vst.msk [vmem:[%s172 + $0x140] sm:$0xff] %vm845, %v727
        %887 = vst.msk [vmem:[%s172 + $0x148] sm:$0xff] %vm845, %v732
        %888 = vst.msk [vmem:[%s172 + $0x150] sm:$0xff] %vm845, %v737
        %889 = vst.msk [vmem:[%s172 + $0x158] sm:$0xff] %vm845, %v742
        %890 = vst.msk [vmem:[%s172 + $0x160] sm:$0xff] %vm845, %v747
        %891 = vst.msk [vmem:[%s172 + $0x168] sm:$0xff] %vm845, %v752
        %892 = vst.msk [vmem:[%s172 + $0x170] sm:$0xff] %vm845, %v757
        %893 = vst.msk [vmem:[%s172 + $0x178] sm:$0xff] %vm845, %v762
        %894 = vst.msk [vmem:[%s172 + $0x180] sm:$0xff] %vm845, %v767
        %895 = vst.msk [vmem:[%s172 + $0x188] sm:$0xff] %vm845, %v772
        %896 = vst.msk [vmem:[%s172 + $0x190] sm:$0xff] %vm845, %v777
        %897 = vst.msk [vmem:[%s172 + $0x198] sm:$0xff] %vm845, %v782
        %898 = vst.msk [vmem:[%s172 + $0x1a0] sm:$0xff] %vm845, %v787
        %899 = vst.msk [vmem:[%s172 + $0x1a8] sm:$0xff] %vm845, %v792
        %900 = vst.msk [vmem:[%s172 + $0x1b0] sm:$0xff] %vm845, %v797
        %901 = vst.msk [vmem:[%s172 + $0x1b8] sm:$0xff] %vm845, %v802
        %902 = vst.msk [vmem:[%s172 + $0x1c0] sm:$0xff] %vm845, %v807
        %903 = vst.msk [vmem:[%s172 + $0x1c8] sm:$0xff] %vm845, %v812
        %904 = vst.msk [vmem:[%s172 + $0x1d0] sm:$0xff] %vm845, %v817
        %905 = vst.msk [vmem:[%s172 + $0x1d8] sm:$0xff] %vm845, %v822
        %906 = vst.msk [vmem:[%s172 + $0x1e0] sm:$0xff] %vm845, %v827
        %907 = vst.msk [vmem:[%s172 + $0x1e8] sm:$0xff] %vm845, %v832
        %908 = vst.msk [vmem:[%s172 + $0x1f0] sm:$0xff] %vm845, %v837
        %909 = vst.msk [vmem:[%s172 + $0x1f8] sm:$0xff] %vm845, %v842
        %s910 = sand.u32 %s90, 1
        %s911 = sand.u32 %s90, 1
        %s912 = smul.addr %s911, 512
        %s913 = scalar_lea.vmem [#allocation2], %s912
        // Predicated region
        $region33: #{pixel_classifier_forward.5} parent=31 // pred_check
          %p914 = pneg %p100
        $region34: #{pixel_classifier_forward.5} parent=31 // pred_check_branch
          %916 = sbr.rel (%p914) target = $region36
        $region35: #{pixel_classifier_forward.5} parent=31 // pred_region
          %s917 = smul.u32 64, %s14
          %s918 = ssub.s32 288, %s917
          %p919 = scmp.lt.s32.totalorder %s918, 64
          %s920 = scalar_select %p919, %s918, 64
          %s921 = smul.u32 128, %s920
          %p922 = scmp.ne.s32.totalorder 0, %s921
          %s923 = smul.addr %s917, 8
          %s924 = scalar_lea.vmem %s3, %s923
          // Predicated region
          $region37: #{pixel_classifier_forward.5} parent=35 // pred_check
            %p925 = pneg %p922
          $region38: #{pixel_classifier_forward.5} parent=35 // pred_check_branch
            %927 = sbr.rel (%p925) target = $region40
          $region39: #{pixel_classifier_forward.5} parent=35 // pred_region
            // Predicated region
            $region41: #{pixel_classifier_forward.5} parent=39 // pred_check
              _
            $region42: #{pixel_classifier_forward.5} parent=39 // pred_check_branch
              %929 = sbr.rel (0) target = $region44
            $region43: #{pixel_classifier_forward.5} parent=39 // pred_region
              // Predicated region
              $region63: #{pixel_classifier_forward.5} parent=43 // pred_check
                _
              $region64: #{pixel_classifier_forward.5} parent=43 // pred_check_branch
                %1104 = sbr.rel (0) target = $region66
              $region65: #{pixel_classifier_forward.5} parent=43 // pred_region
                %s1105 = sshrl.u32 %s920, 6
                // While loop
                $region67: #{pixel_classifier_forward.5} parent=65 // loop_pre_header
                  _
                $region68: #{pixel_classifier_forward.5} parent=65 // loop_header
                  %s1107 = sphi 0, %s1109
                  %p1108 = scmp.ge.s32.totalorder %s1107, %s1105
                  %s1112 = sphi 0, %s1245
                  %s1113 = sphi %s913, %s1248
                  %s1114 = sphi %s924, %s1249
                $region69: #{pixel_classifier_forward.5} parent=65 // loop_header_branch
                  %1111 = sbr.rel (%p1108) target = $region73
                $region70: #{pixel_classifier_forward.5} parent=65 // loop_body
                  %v1115 = vld [vmem:[%s1113] sm:$0xff]
                  %1116 = vst [vmem:[%s1114] sm:$0xff] %v1115
                  %v1117 = vld [vmem:[%s1113 + $0x8] sm:$0xff]
                  %1118 = vst [vmem:[%s1114 + $0x8] sm:$0xff] %v1117
                  %v1119 = vld [vmem:[%s1113 + $0x10] sm:$0xff]
                  %1120 = vst [vmem:[%s1114 + $0x10] sm:$0xff] %v1119
                  %v1121 = vld [vmem:[%s1113 + $0x18] sm:$0xff]
                  %1122 = vst [vmem:[%s1114 + $0x18] sm:$0xff] %v1121
                  %v1123 = vld [vmem:[%s1113 + $0x20] sm:$0xff]
                  %1124 = vst [vmem:[%s1114 + $0x20] sm:$0xff] %v1123
                  %v1125 = vld [vmem:[%s1113 + $0x28] sm:$0xff]
                  %1126 = vst [vmem:[%s1114 + $0x28] sm:$0xff] %v1125
                  %v1127 = vld [vmem:[%s1113 + $0x30] sm:$0xff]
                  %1128 = vst [vmem:[%s1114 + $0x30] sm:$0xff] %v1127
                  %v1129 = vld [vmem:[%s1113 + $0x38] sm:$0xff]
                  %1130 = vst [vmem:[%s1114 + $0x38] sm:$0xff] %v1129
                  %v1131 = vld [vmem:[%s1113 + $0x40] sm:$0xff]
                  %1132 = vst [vmem:[%s1114 + $0x40] sm:$0xff] %v1131
                  %v1133 = vld [vmem:[%s1113 + $0x48] sm:$0xff]
                  %1134 = vst [vmem:[%s1114 + $0x48] sm:$0xff] %v1133
                  %v1135 = vld [vmem:[%s1113 + $0x50] sm:$0xff]
                  %1136 = vst [vmem:[%s1114 + $0x50] sm:$0xff] %v1135
                  %v1137 = vld [vmem:[%s1113 + $0x58] sm:$0xff]
                  %1138 = vst [vmem:[%s1114 + $0x58] sm:$0xff] %v1137
                  %v1139 = vld [vmem:[%s1113 + $0x60] sm:$0xff]
                  %1140 = vst [vmem:[%s1114 + $0x60] sm:$0xff] %v1139
                  %v1141 = vld [vmem:[%s1113 + $0x68] sm:$0xff]
                  %1142 = vst [vmem:[%s1114 + $0x68] sm:$0xff] %v1141
                  %v1143 = vld [vmem:[%s1113 + $0x70] sm:$0xff]
                  %1144 = vst [vmem:[%s1114 + $0x70] sm:$0xff] %v1143
                  %v1145 = vld [vmem:[%s1113 + $0x78] sm:$0xff]
                  %1146 = vst [vmem:[%s1114 + $0x78] sm:$0xff] %v1145
                  %v1147 = vld [vmem:[%s1113 + $0x80] sm:$0xff]
                  %1148 = vst [vmem:[%s1114 + $0x80] sm:$0xff] %v1147
                  %v1149 = vld [vmem:[%s1113 + $0x88] sm:$0xff]
                  %1150 = vst [vmem:[%s1114 + $0x88] sm:$0xff] %v1149
                  %v1151 = vld [vmem:[%s1113 + $0x90] sm:$0xff]
                  %1152 = vst [vmem:[%s1114 + $0x90] sm:$0xff] %v1151
                  %v1153 = vld [vmem:[%s1113 + $0x98] sm:$0xff]
                  %1154 = vst [vmem:[%s1114 + $0x98] sm:$0xff] %v1153
                  %v1155 = vld [vmem:[%s1113 + $0xa0] sm:$0xff]
                  %1156 = vst [vmem:[%s1114 + $0xa0] sm:$0xff] %v1155
                  %v1157 = vld [vmem:[%s1113 + $0xa8] sm:$0xff]
                  %1158 = vst [vmem:[%s1114 + $0xa8] sm:$0xff] %v1157
                  %v1159 = vld [vmem:[%s1113 + $0xb0] sm:$0xff]
                  %1160 = vst [vmem:[%s1114 + $0xb0] sm:$0xff] %v1159
                  %v1161 = vld [vmem:[%s1113 + $0xb8] sm:$0xff]
                  %1162 = vst [vmem:[%s1114 + $0xb8] sm:$0xff] %v1161
                  %v1163 = vld [vmem:[%s1113 + $0xc0] sm:$0xff]
                  %1164 = vst [vmem:[%s1114 + $0xc0] sm:$0xff] %v1163
                  %v1165 = vld [vmem:[%s1113 + $0xc8] sm:$0xff]
                  %1166 = vst [vmem:[%s1114 + $0xc8] sm:$0xff] %v1165
                  %v1167 = vld [vmem:[%s1113 + $0xd0] sm:$0xff]
                  %1168 = vst [vmem:[%s1114 + $0xd0] sm:$0xff] %v1167
                  %v1169 = vld [vmem:[%s1113 + $0xd8] sm:$0xff]
                  %1170 = vst [vmem:[%s1114 + $0xd8] sm:$0xff] %v1169
                  %v1171 = vld [vmem:[%s1113 + $0xe0] sm:$0xff]
                  %1172 = vst [vmem:[%s1114 + $0xe0] sm:$0xff] %v1171
                  %v1173 = vld [vmem:[%s1113 + $0xe8] sm:$0xff]
                  %1174 = vst [vmem:[%s1114 + $0xe8] sm:$0xff] %v1173
                  %v1175 = vld [vmem:[%s1113 + $0xf0] sm:$0xff]
                  %1176 = vst [vmem:[%s1114 + $0xf0] sm:$0xff] %v1175
                  %v1177 = vld [vmem:[%s1113 + $0xf8] sm:$0xff]
                  %1178 = vst [vmem:[%s1114 + $0xf8] sm:$0xff] %v1177
                  %v1179 = vld [vmem:[%s1113 + $0x100] sm:$0xff]
                  %1180 = vst [vmem:[%s1114 + $0x100] sm:$0xff] %v1179
                  %v1181 = vld [vmem:[%s1113 + $0x108] sm:$0xff]
                  %1182 = vst [vmem:[%s1114 + $0x108] sm:$0xff] %v1181
                  %v1183 = vld [vmem:[%s1113 + $0x110] sm:$0xff]
                  %1184 = vst [vmem:[%s1114 + $0x110] sm:$0xff] %v1183
                  %v1185 = vld [vmem:[%s1113 + $0x118] sm:$0xff]
                  %1186 = vst [vmem:[%s1114 + $0x118] sm:$0xff] %v1185
                  %v1187 = vld [vmem:[%s1113 + $0x120] sm:$0xff]
                  %1188 = vst [vmem:[%s1114 + $0x120] sm:$0xff] %v1187
                  %v1189 = vld [vmem:[%s1113 + $0x128] sm:$0xff]
                  %1190 = vst [vmem:[%s1114 + $0x128] sm:$0xff] %v1189
                  %v1191 = vld [vmem:[%s1113 + $0x130] sm:$0xff]
                  %1192 = vst [vmem:[%s1114 + $0x130] sm:$0xff] %v1191
                  %v1193 = vld [vmem:[%s1113 + $0x138] sm:$0xff]
                  %1194 = vst [vmem:[%s1114 + $0x138] sm:$0xff] %v1193
                  %v1195 = vld [vmem:[%s1113 + $0x140] sm:$0xff]
                  %1196 = vst [vmem:[%s1114 + $0x140] sm:$0xff] %v1195
                  %v1197 = vld [vmem:[%s1113 + $0x148] sm:$0xff]
                  %1198 = vst [vmem:[%s1114 + $0x148] sm:$0xff] %v1197
                  %v1199 = vld [vmem:[%s1113 + $0x150] sm:$0xff]
                  %1200 = vst [vmem:[%s1114 + $0x150] sm:$0xff] %v1199
                  %v1201 = vld [vmem:[%s1113 + $0x158] sm:$0xff]
                  %1202 = vst [vmem:[%s1114 + $0x158] sm:$0xff] %v1201
                  %v1203 = vld [vmem:[%s1113 + $0x160] sm:$0xff]
                  %1204 = vst [vmem:[%s1114 + $0x160] sm:$0xff] %v1203
                  %v1205 = vld [vmem:[%s1113 + $0x168] sm:$0xff]
                  %1206 = vst [vmem:[%s1114 + $0x168] sm:$0xff] %v1205
                  %v1207 = vld [vmem:[%s1113 + $0x170] sm:$0xff]
                  %1208 = vst [vmem:[%s1114 + $0x170] sm:$0xff] %v1207
                  %v1209 = vld [vmem:[%s1113 + $0x178] sm:$0xff]
                  %1210 = vst [vmem:[%s1114 + $0x178] sm:$0xff] %v1209
                  %v1211 = vld [vmem:[%s1113 + $0x180] sm:$0xff]
                  %1212 = vst [vmem:[%s1114 + $0x180] sm:$0xff] %v1211
                  %v1213 = vld [vmem:[%s1113 + $0x188] sm:$0xff]
                  %1214 = vst [vmem:[%s1114 + $0x188] sm:$0xff] %v1213
                  %v1215 = vld [vmem:[%s1113 + $0x190] sm:$0xff]
                  %1216 = vst [vmem:[%s1114 + $0x190] sm:$0xff] %v1215
                  %v1217 = vld [vmem:[%s1113 + $0x198] sm:$0xff]
                  %1218 = vst [vmem:[%s1114 + $0x198] sm:$0xff] %v1217
                  %v1219 = vld [vmem:[%s1113 + $0x1a0] sm:$0xff]
                  %1220 = vst [vmem:[%s1114 + $0x1a0] sm:$0xff] %v1219
                  %v1221 = vld [vmem:[%s1113 + $0x1a8] sm:$0xff]
                  %1222 = vst [vmem:[%s1114 + $0x1a8] sm:$0xff] %v1221
                  %v1223 = vld [vmem:[%s1113 + $0x1b0] sm:$0xff]
                  %1224 = vst [vmem:[%s1114 + $0x1b0] sm:$0xff] %v1223
                  %v1225 = vld [vmem:[%s1113 + $0x1b8] sm:$0xff]
                  %1226 = vst [vmem:[%s1114 + $0x1b8] sm:$0xff] %v1225
                  %v1227 = vld [vmem:[%s1113 + $0x1c0] sm:$0xff]
                  %1228 = vst [vmem:[%s1114 + $0x1c0] sm:$0xff] %v1227
                  %v1229 = vld [vmem:[%s1113 + $0x1c8] sm:$0xff]
                  %1230 = vst [vmem:[%s1114 + $0x1c8] sm:$0xff] %v1229
                  %v1231 = vld [vmem:[%s1113 + $0x1d0] sm:$0xff]
                  %1232 = vst [vmem:[%s1114 + $0x1d0] sm:$0xff] %v1231
                  %v1233 = vld [vmem:[%s1113 + $0x1d8] sm:$0xff]
                  %1234 = vst [vmem:[%s1114 + $0x1d8] sm:$0xff] %v1233
                  %v1235 = vld [vmem:[%s1113 + $0x1e0] sm:$0xff]
                  %1236 = vst [vmem:[%s1114 + $0x1e0] sm:$0xff] %v1235
                  %v1237 = vld [vmem:[%s1113 + $0x1e8] sm:$0xff]
                  %1238 = vst [vmem:[%s1114 + $0x1e8] sm:$0xff] %v1237
                  %v1239 = vld [vmem:[%s1113 + $0x1f0] sm:$0xff]
                  %1240 = vst [vmem:[%s1114 + $0x1f0] sm:$0xff] %v1239
                  %v1241 = vld [vmem:[%s1113 + $0x1f8] sm:$0xff]
                  %1242 = vst [vmem:[%s1114 + $0x1f8] sm:$0xff] %v1241
                  %s1243 = sadd.s32 1, %s1112
                  %p1244 = scmp.ge.s32.totalorder %s1243, %s1105
                  %s1245 = scalar_select %p1244, 0, %s1243
                  %s1246 = smul.u32 %s1245, 512
                  %s1247 = smul.u32 %s1245, 512
                  %s1248 = scalar_lea.vmem %s913, %s1246 [#allocation2]
                  %s1249 = scalar_lea.vmem %s924, %s1247
                $region71: #{pixel_classifier_forward.5} parent=65 // loop_footer
                  %s1109 = sadd.s32 %s1107, 1
                $region72: #{pixel_classifier_forward.5} parent=65 // loop_footer_branch
                  %1106 = sbr.rel target = $region68
                $region73: #{pixel_classifier_forward.5} parent=65 // loop_exit
                  _
                %s1250 = sshrl.u32 %s920, 6
                %s1251 = sand.u32 %s920, 63
                %s1252 = smul.u32 %s1250, 64
                %s1253 = smul.u32 8, %s1252
                %s1254 = scalar_lea.vmem %s913, %s1253 [#allocation2]
                %s1255 = smul.u32 8, %s1252
                %s1256 = scalar_lea.vmem %s924, %s1255
                // While loop
                $region74: #{pixel_classifier_forward.5} parent=65 // loop_pre_header
                  _
                $region75: #{pixel_classifier_forward.5} parent=65 // loop_header
                  %s1258 = sphi 0, %s1260
                  %p1259 = scmp.ge.s32.totalorder %s1258, %s1251
                  %s1263 = sphi 0, %s1270
                  %s1264 = sphi %s1254, %s1273
                  %s1265 = sphi %s1256, %s1274
                $region76: #{pixel_classifier_forward.5} parent=65 // loop_header_branch
                  %1262 = sbr.rel (%p1259) target = $region80
                $region77: #{pixel_classifier_forward.5} parent=65 // loop_body
                  %v1266 = vld [vmem:[%s1264] sm:$0xff]
                  %1267 = vst [vmem:[%s1265] sm:$0xff] %v1266
                  %s1268 = sadd.s32 1, %s1263
                  %p1269 = scmp.ge.s32.totalorder %s1268, %s1251
                  %s1270 = scalar_select %p1269, 0, %s1268
                  %s1271 = smul.u32 %s1270, 8
                  %s1272 = smul.u32 %s1270, 8
                  %s1273 = scalar_lea.vmem %s1254, %s1271 [#allocation2]
                  %s1274 = scalar_lea.vmem %s1256, %s1272
                $region78: #{pixel_classifier_forward.5} parent=65 // loop_footer
                  %s1260 = sadd.s32 %s1258, 1
                $region79: #{pixel_classifier_forward.5} parent=65 // loop_footer_branch
                  %1257 = sbr.rel target = $region75
                $region80: #{pixel_classifier_forward.5} parent=65 // loop_exit
                  _
              $region66: #{pixel_classifier_forward.5} parent=43 // pred_fallthru
                _
              // Predicated region
              $region81: #{pixel_classifier_forward.5} parent=43 // pred_check
                _
              $region82: #{pixel_classifier_forward.5} parent=43 // pred_check_branch
                %1276 = sbr.rel target = $region84
              $region83: #{pixel_classifier_forward.5} parent=43 // pred_region
                _
              $region84: #{pixel_classifier_forward.5} parent=43 // pred_fallthru
                _
            $region44: #{pixel_classifier_forward.5} parent=39 // pred_fallthru
              _
            // Predicated region
            $region45: #{pixel_classifier_forward.5} parent=39 // pred_check
              _
            $region46: #{pixel_classifier_forward.5} parent=39 // pred_check_branch
              %931 = sbr.rel target = $region48
            $region47: #{pixel_classifier_forward.5} parent=39 // pred_region
              %s933 = sshrl.u32 %s920, 6
              // While loop
              $region49: #{pixel_classifier_forward.5} parent=47 // loop_pre_header
                _
              $region50: #{pixel_classifier_forward.5} parent=47 // loop_header
                %s935 = sphi 0, %s937
                %p936 = scmp.ge.s32.totalorder %s935, %s933
                %s940 = sphi 0, %s1073
                %s941 = sphi %s913, %s1076
                %s942 = sphi %s924, %s1077
              $region51: #{pixel_classifier_forward.5} parent=47 // loop_header_branch
                %939 = sbr.rel (%p936) target = $region55
              $region52: #{pixel_classifier_forward.5} parent=47 // loop_body
                %v943 = vld [vmem:[%s941] sm:$0xff]
                %944 = vst [vmem:[%s942] sm:$0xff] %v943
                %v945 = vld [vmem:[%s941 + $0x8] sm:$0xff]
                %946 = vst [vmem:[%s942 + $0x8] sm:$0xff] %v945
                %v947 = vld [vmem:[%s941 + $0x10] sm:$0xff]
                %948 = vst [vmem:[%s942 + $0x10] sm:$0xff] %v947
                %v949 = vld [vmem:[%s941 + $0x18] sm:$0xff]
                %950 = vst [vmem:[%s942 + $0x18] sm:$0xff] %v949
                %v951 = vld [vmem:[%s941 + $0x20] sm:$0xff]
                %952 = vst [vmem:[%s942 + $0x20] sm:$0xff] %v951
                %v953 = vld [vmem:[%s941 + $0x28] sm:$0xff]
                %954 = vst [vmem:[%s942 + $0x28] sm:$0xff] %v953
                %v955 = vld [vmem:[%s941 + $0x30] sm:$0xff]
                %956 = vst [vmem:[%s942 + $0x30] sm:$0xff] %v955
                %v957 = vld [vmem:[%s941 + $0x38] sm:$0xff]
                %958 = vst [vmem:[%s942 + $0x38] sm:$0xff] %v957
                %v959 = vld [vmem:[%s941 + $0x40] sm:$0xff]
                %960 = vst [vmem:[%s942 + $0x40] sm:$0xff] %v959
                %v961 = vld [vmem:[%s941 + $0x48] sm:$0xff]
                %962 = vst [vmem:[%s942 + $0x48] sm:$0xff] %v961
                %v963 = vld [vmem:[%s941 + $0x50] sm:$0xff]
                %964 = vst [vmem:[%s942 + $0x50] sm:$0xff] %v963
                %v965 = vld [vmem:[%s941 + $0x58] sm:$0xff]
                %966 = vst [vmem:[%s942 + $0x58] sm:$0xff] %v965
                %v967 = vld [vmem:[%s941 + $0x60] sm:$0xff]
                %968 = vst [vmem:[%s942 + $0x60] sm:$0xff] %v967
                %v969 = vld [vmem:[%s941 + $0x68] sm:$0xff]
                %970 = vst [vmem:[%s942 + $0x68] sm:$0xff] %v969
                %v971 = vld [vmem:[%s941 + $0x70] sm:$0xff]
                %972 = vst [vmem:[%s942 + $0x70] sm:$0xff] %v971
                %v973 = vld [vmem:[%s941 + $0x78] sm:$0xff]
                %974 = vst [vmem:[%s942 + $0x78] sm:$0xff] %v973
                %v975 = vld [vmem:[%s941 + $0x80] sm:$0xff]
                %976 = vst [vmem:[%s942 + $0x80] sm:$0xff] %v975
                %v977 = vld [vmem:[%s941 + $0x88] sm:$0xff]
                %978 = vst [vmem:[%s942 + $0x88] sm:$0xff] %v977
                %v979 = vld [vmem:[%s941 + $0x90] sm:$0xff]
                %980 = vst [vmem:[%s942 + $0x90] sm:$0xff] %v979
                %v981 = vld [vmem:[%s941 + $0x98] sm:$0xff]
                %982 = vst [vmem:[%s942 + $0x98] sm:$0xff] %v981
                %v983 = vld [vmem:[%s941 + $0xa0] sm:$0xff]
                %984 = vst [vmem:[%s942 + $0xa0] sm:$0xff] %v983
                %v985 = vld [vmem:[%s941 + $0xa8] sm:$0xff]
                %986 = vst [vmem:[%s942 + $0xa8] sm:$0xff] %v985
                %v987 = vld [vmem:[%s941 + $0xb0] sm:$0xff]
                %988 = vst [vmem:[%s942 + $0xb0] sm:$0xff] %v987
                %v989 = vld [vmem:[%s941 + $0xb8] sm:$0xff]
                %990 = vst [vmem:[%s942 + $0xb8] sm:$0xff] %v989
                %v991 = vld [vmem:[%s941 + $0xc0] sm:$0xff]
                %992 = vst [vmem:[%s942 + $0xc0] sm:$0xff] %v991
                %v993 = vld [vmem:[%s941 + $0xc8] sm:$0xff]
                %994 = vst [vmem:[%s942 + $0xc8] sm:$0xff] %v993
                %v995 = vld [vmem:[%s941 + $0xd0] sm:$0xff]
                %996 = vst [vmem:[%s942 + $0xd0] sm:$0xff] %v995
                %v997 = vld [vmem:[%s941 + $0xd8] sm:$0xff]
                %998 = vst [vmem:[%s942 + $0xd8] sm:$0xff] %v997
                %v999 = vld [vmem:[%s941 + $0xe0] sm:$0xff]
                %1000 = vst [vmem:[%s942 + $0xe0] sm:$0xff] %v999
                %v1001 = vld [vmem:[%s941 + $0xe8] sm:$0xff]
                %1002 = vst [vmem:[%s942 + $0xe8] sm:$0xff] %v1001
                %v1003 = vld [vmem:[%s941 + $0xf0] sm:$0xff]
                %1004 = vst [vmem:[%s942 + $0xf0] sm:$0xff] %v1003
                %v1005 = vld [vmem:[%s941 + $0xf8] sm:$0xff]
                %1006 = vst [vmem:[%s942 + $0xf8] sm:$0xff] %v1005
                %v1007 = vld [vmem:[%s941 + $0x100] sm:$0xff]
                %1008 = vst [vmem:[%s942 + $0x100] sm:$0xff] %v1007
                %v1009 = vld [vmem:[%s941 + $0x108] sm:$0xff]
                %1010 = vst [vmem:[%s942 + $0x108] sm:$0xff] %v1009
                %v1011 = vld [vmem:[%s941 + $0x110] sm:$0xff]
                %1012 = vst [vmem:[%s942 + $0x110] sm:$0xff] %v1011
                %v1013 = vld [vmem:[%s941 + $0x118] sm:$0xff]
                %1014 = vst [vmem:[%s942 + $0x118] sm:$0xff] %v1013
                %v1015 = vld [vmem:[%s941 + $0x120] sm:$0xff]
                %1016 = vst [vmem:[%s942 + $0x120] sm:$0xff] %v1015
                %v1017 = vld [vmem:[%s941 + $0x128] sm:$0xff]
                %1018 = vst [vmem:[%s942 + $0x128] sm:$0xff] %v1017
                %v1019 = vld [vmem:[%s941 + $0x130] sm:$0xff]
                %1020 = vst [vmem:[%s942 + $0x130] sm:$0xff] %v1019
                %v1021 = vld [vmem:[%s941 + $0x138] sm:$0xff]
                %1022 = vst [vmem:[%s942 + $0x138] sm:$0xff] %v1021
                %v1023 = vld [vmem:[%s941 + $0x140] sm:$0xff]
                %1024 = vst [vmem:[%s942 + $0x140] sm:$0xff] %v1023
                %v1025 = vld [vmem:[%s941 + $0x148] sm:$0xff]
                %1026 = vst [vmem:[%s942 + $0x148] sm:$0xff] %v1025
                %v1027 = vld [vmem:[%s941 + $0x150] sm:$0xff]
                %1028 = vst [vmem:[%s942 + $0x150] sm:$0xff] %v1027
                %v1029 = vld [vmem:[%s941 + $0x158] sm:$0xff]
                %1030 = vst [vmem:[%s942 + $0x158] sm:$0xff] %v1029
                %v1031 = vld [vmem:[%s941 + $0x160] sm:$0xff]
                %1032 = vst [vmem:[%s942 + $0x160] sm:$0xff] %v1031
                %v1033 = vld [vmem:[%s941 + $0x168] sm:$0xff]
                %1034 = vst [vmem:[%s942 + $0x168] sm:$0xff] %v1033
                %v1035 = vld [vmem:[%s941 + $0x170] sm:$0xff]
                %1036 = vst [vmem:[%s942 + $0x170] sm:$0xff] %v1035
                %v1037 = vld [vmem:[%s941 + $0x178] sm:$0xff]
                %1038 = vst [vmem:[%s942 + $0x178] sm:$0xff] %v1037
                %v1039 = vld [vmem:[%s941 + $0x180] sm:$0xff]
                %1040 = vst [vmem:[%s942 + $0x180] sm:$0xff] %v1039
                %v1041 = vld [vmem:[%s941 + $0x188] sm:$0xff]
                %1042 = vst [vmem:[%s942 + $0x188] sm:$0xff] %v1041
                %v1043 = vld [vmem:[%s941 + $0x190] sm:$0xff]
                %1044 = vst [vmem:[%s942 + $0x190] sm:$0xff] %v1043
                %v1045 = vld [vmem:[%s941 + $0x198] sm:$0xff]
                %1046 = vst [vmem:[%s942 + $0x198] sm:$0xff] %v1045
                %v1047 = vld [vmem:[%s941 + $0x1a0] sm:$0xff]
                %1048 = vst [vmem:[%s942 + $0x1a0] sm:$0xff] %v1047
                %v1049 = vld [vmem:[%s941 + $0x1a8] sm:$0xff]
                %1050 = vst [vmem:[%s942 + $0x1a8] sm:$0xff] %v1049
                %v1051 = vld [vmem:[%s941 + $0x1b0] sm:$0xff]
                %1052 = vst [vmem:[%s942 + $0x1b0] sm:$0xff] %v1051
                %v1053 = vld [vmem:[%s941 + $0x1b8] sm:$0xff]
                %1054 = vst [vmem:[%s942 + $0x1b8] sm:$0xff] %v1053
                %v1055 = vld [vmem:[%s941 + $0x1c0] sm:$0xff]
                %1056 = vst [vmem:[%s942 + $0x1c0] sm:$0xff] %v1055
                %v1057 = vld [vmem:[%s941 + $0x1c8] sm:$0xff]
                %1058 = vst [vmem:[%s942 + $0x1c8] sm:$0xff] %v1057
                %v1059 = vld [vmem:[%s941 + $0x1d0] sm:$0xff]
                %1060 = vst [vmem:[%s942 + $0x1d0] sm:$0xff] %v1059
                %v1061 = vld [vmem:[%s941 + $0x1d8] sm:$0xff]
                %1062 = vst [vmem:[%s942 + $0x1d8] sm:$0xff] %v1061
                %v1063 = vld [vmem:[%s941 + $0x1e0] sm:$0xff]
                %1064 = vst [vmem:[%s942 + $0x1e0] sm:$0xff] %v1063
                %v1065 = vld [vmem:[%s941 + $0x1e8] sm:$0xff]
                %1066 = vst [vmem:[%s942 + $0x1e8] sm:$0xff] %v1065
                %v1067 = vld [vmem:[%s941 + $0x1f0] sm:$0xff]
                %1068 = vst [vmem:[%s942 + $0x1f0] sm:$0xff] %v1067
                %v1069 = vld [vmem:[%s941 + $0x1f8] sm:$0xff]
                %1070 = vst [vmem:[%s942 + $0x1f8] sm:$0xff] %v1069
                %s1071 = sadd.s32 1, %s940
                %p1072 = scmp.ge.s32.totalorder %s1071, %s933
                %s1073 = scalar_select %p1072, 0, %s1071
                %s1074 = smul.u32 %s1073, 512
                %s1075 = smul.u32 %s1073, 512
                %s1076 = scalar_lea.vmem %s913, %s1074 [#allocation2]
                %s1077 = scalar_lea.vmem %s924, %s1075
              $region53: #{pixel_classifier_forward.5} parent=47 // loop_footer
                %s937 = sadd.s32 %s935, 1
              $region54: #{pixel_classifier_forward.5} parent=47 // loop_footer_branch
                %934 = sbr.rel target = $region50
              $region55: #{pixel_classifier_forward.5} parent=47 // loop_exit
                _
              %s1078 = sshrl.u32 %s920, 6
              %s1079 = sand.u32 %s920, 63
              %s1080 = smul.u32 %s1078, 64
              %s1081 = smul.u32 8, %s1080
              %s1082 = scalar_lea.vmem %s913, %s1081 [#allocation2]
              %s1083 = smul.u32 8, %s1080
              %s1084 = scalar_lea.vmem %s924, %s1083
              // While loop
              $region56: #{pixel_classifier_forward.5} parent=47 // loop_pre_header
                _
              $region57: #{pixel_classifier_forward.5} parent=47 // loop_header
                %s1086 = sphi 0, %s1088
                %p1087 = scmp.ge.s32.totalorder %s1086, %s1079
                %s1091 = sphi 0, %s1098
                %s1092 = sphi %s1082, %s1101
                %s1093 = sphi %s1084, %s1102
              $region58: #{pixel_classifier_forward.5} parent=47 // loop_header_branch
                %1090 = sbr.rel (%p1087) target = $region62
              $region59: #{pixel_classifier_forward.5} parent=47 // loop_body
                %v1094 = vld [vmem:[%s1092] sm:$0xff]
                %1095 = vst [vmem:[%s1093] sm:$0xff] %v1094
                %s1096 = sadd.s32 1, %s1091
                %p1097 = scmp.ge.s32.totalorder %s1096, %s1079
                %s1098 = scalar_select %p1097, 0, %s1096
                %s1099 = smul.u32 %s1098, 8
                %s1100 = smul.u32 %s1098, 8
                %s1101 = scalar_lea.vmem %s1082, %s1099 [#allocation2]
                %s1102 = scalar_lea.vmem %s1084, %s1100
              $region60: #{pixel_classifier_forward.5} parent=47 // loop_footer
                %s1088 = sadd.s32 %s1086, 1
              $region61: #{pixel_classifier_forward.5} parent=47 // loop_footer_branch
                %1085 = sbr.rel target = $region57
              $region62: #{pixel_classifier_forward.5} parent=47 // loop_exit
                _
            $region48: #{pixel_classifier_forward.5} parent=39 // pred_fallthru
              _
          $region40: #{pixel_classifier_forward.5} parent=35 // pred_fallthru
            _
          %1277 = vnop
        $region36: #{pixel_classifier_forward.5} parent=31 // pred_fallthru
          _
      $region32: #{pixel_classifier_forward.5} parent=5 // pred_fallthru
        _
      %p1278 = scmp.le.s32.totalorder 2, %s9
      // Predicated region
      $region85: #{pixel_classifier_forward.5} parent=5 // pred_check
        %p1279 = pneg %p1278
      $region86: #{pixel_classifier_forward.5} parent=5 // pred_check_branch
        %1281 = sbr.rel (%p1279) target = $region88
      $region87: #{pixel_classifier_forward.5} parent=5 // pred_region
        %s1282 = ssub.s32 %s9, 2
        // Predicated region
        $region89: #{pixel_classifier_forward.5} parent=87 // pred_check
          %p1283 = pneg %p106
        $region90: #{pixel_classifier_forward.5} parent=87 // pred_check_branch
          %1285 = sbr.rel (%p1283) target = $region92
        $region91: #{pixel_classifier_forward.5} parent=87 // pred_region
          %s1286 = sand.u32 %s91, 1
          %s1287 = sand.u32 %s91, 1
          %s1288 = smul.addr %s1287, 512
          %s1289 = scalar_lea.vmem [#allocation2], %s1288
        $region92: #{pixel_classifier_forward.5} parent=87 // pred_fallthru
          _
      $region88: #{pixel_classifier_forward.5} parent=5 // pred_fallthru
        _
    $region6: #{pixel_classifier_forward.5} parent=1 // loop_footer
      %s13 = sadd.s32 1, %s9
    $region7: #{pixel_classifier_forward.5} parent=1 // loop_footer_branch
      %8 = sbr.rel target = $region3
    $region8: #{pixel_classifier_forward.5} parent=1 // loop_exit
      _

// kernel: pixel_classifier_forward.3
$region0: #{pixel_classifier_forward.3}
  #allocation0 [shape = 'u32[]', space=smem, size = 0x4, offset = 0x4, fixed_abs, tag = 'smem constant byte address 0x4 - core index']
  #allocation1 [shape = 'u32[144,128]{1,0:T(1,128)}', space=vmem, size = 0x12000, scoped, tag = 'internal scratch']
  %s0 = inlined_call_operand.vmem [shape: f32[2304,32], index: 0, kind: input, shape index: {}]
  %s1 = inlined_call_operand.vmem [shape: f32[32,128], index: 1, kind: input, shape index: {}]
  %s2 = inlined_call_operand.vmem [shape: f32[1,128], index: 2, kind: input, shape index: {}]
  %s3 = inlined_call_operand.vmem [shape: f32[16,128], index: 3, kind: output, shape index: {0}]
  %s4 = inlined_call_operand.vmem [shape: f32[16,128], index: 4, kind: output, shape index: {1}]
  %5 = xla_tuple %s3, %s4
  %s6 = sld [smem:[#allocation0]]
  $region65: #{pixel_classifier_forward.3} parent=0
    _
  %s8 = ssub.s32 1, %s6
  %s9 = scalar_select 0, %s8, %s6
  loop: start=0, step=1, limit=8
  $region2: #{pixel_classifier_forward.3} parent=0 // loop_pre_header
    _
  $region3: #{pixel_classifier_forward.3} parent=0 // loop_header
    %s11 = sphi 0, %s15
    %p12 = scmp.ge.s32.totalorder %s11, 8
    %s18 = sphi 0, %s30
    %s19 = sphi 0, %s26
    %s20 = sphi 0, %s18
    %s21 = sphi 0, %s19
    %s22 = sphi 0, %s20
    %s23 = sphi 0, %s21
    %s41 = sphi 0, %s43
    %s44 = sphi 0, %s41
    %s45 = sphi 0, %s44
    %s61 = sphi 0, %s45
    %s65 = sphi 0, %s65
    %s67 = sphi 0, %s65
    %s68 = sphi 0, %s67
    %s82 = sphi 0, %s68
    %s86 = sphi 0, %s86
    %s88 = sphi 0, %s86
    %s89 = sphi 0, %s88
    %s103 = sphi 0, %s89
    %s109 = sphi 0, %s111
    %s112 = sphi 0, %s109
    %s113 = sphi 0, %s112
    %s129 = sphi 0, %s113
    %s135 = sphi 0, %s137
    %s138 = sphi 0, %s135
    %s139 = sphi 0, %s138
    %s155 = sphi 0, %s139
  $region4: #{pixel_classifier_forward.3} parent=0 // loop_header_branch
    %14 = sbr.rel (%p12) target = $region8
  $region5: #{pixel_classifier_forward.3} parent=0 // loop_body
    %s16 = ssub.s32 %s11, 1
    %s17 = ssub.s32 %s11, 2
    %s24 = sadd.s32 1, %s19
    %p25 = scmp.ge.s32.totalorder %s24, 3
    %s26 = scalar_select %p25, 0, %s24
    %s27 = sadd.s32 1, %s18
    %s28 = scalar_select %p25, %s27, %s18
    %p29 = scmp.ge.s32.totalorder %s28, 2
    %s30 = scalar_select %p29, 0, %s28
    %s31 = smul.u32 %s18, 3
    %s32 = sadd.s32 %s31, %s19
    %p33 = scmp.lt.s32.totalorder %s32, 4
    %s34 = scalar_select %p33, %s32, 4
    %s35 = smul.u32 %s30, 3
    %s36 = sadd.s32 %s35, %s26
    %p37 = scmp.lt.s32.totalorder %s36, 4
    %s38 = scalar_select %p37, %s36, 4
    %s39 = ssub.s32 %s34, %s38
    %p40 = scmp.eq.s32.totalorder %s39, 0
    %s42 = sadd.s32 %s41, 1
    %s43 = scalar_select %p40, %s41, %s42
    %p46 = pneg %p40
    %p47 = scmp.eq.s32.totalorder %s11, 5
    %p48 = por %p46, %p47
    %p49 = scmp.ne.s32.totalorder %s41, %s44
    %p50 = scmp.eq.s32.totalorder %s11, 0
    %p51 = por %p49, %p50
    %p52 = scmp.ne.s32.totalorder %s41, %s44
    %p53 = scmp.eq.s32.totalorder %s16, 5
    %p54 = por %p52, %p53
    %p55 = scmp.ne.s32.totalorder %s44, %s45
    %p56 = scmp.eq.s32.totalorder %s16, 0
    %p57 = por %p55, %p56
    %p58 = scmp.ne.s32.totalorder %s44, %s45
    %p59 = scmp.eq.s32.totalorder %s17, 5
    %p60 = por %p58, %p59
    %p62 = scmp.ne.s32.totalorder %s45, %s61
    %p63 = scmp.eq.s32.totalorder %s17, 0
    %p64 = por %p62, %p63
    %s66 = sadd.s32 %s65, 1
    %p69 = scmp.eq.s32.totalorder %s11, 5
    %p70 = scmp.ne.s32.totalorder %s65, %s67
    %p71 = scmp.eq.s32.totalorder %s11, 0
    %p72 = por %p70, %p71
    %p73 = scmp.ne.s32.totalorder %s65, %s67
    %p74 = scmp.eq.s32.totalorder %s16, 5
    %p75 = por %p73, %p74
    %p76 = scmp.ne.s32.totalorder %s67, %s68
    %p77 = scmp.eq.s32.totalorder %s16, 0
    %p78 = por %p76, %p77
    %p79 = scmp.ne.s32.totalorder %s67, %s68
    %p80 = scmp.eq.s32.totalorder %s17, 5
    %p81 = por %p79, %p80
    %p83 = scmp.ne.s32.totalorder %s68, %s82
    %p84 = scmp.eq.s32.totalorder %s17, 0
    %p85 = por %p83, %p84
    %s87 = sadd.s32 %s86, 1
    %p90 = scmp.eq.s32.totalorder %s11, 5
    %p91 = scmp.ne.s32.totalorder %s86, %s88
    %p92 = scmp.eq.s32.totalorder %s11, 0
    %p93 = por %p91, %p92
    %p94 = scmp.ne.s32.totalorder %s86, %s88
    %p95 = scmp.eq.s32.totalorder %s16, 5
    %p96 = por %p94, %p95
    %p97 = scmp.ne.s32.totalorder %s88, %s89
    %p98 = scmp.eq.s32.totalorder %s16, 0
    %p99 = por %p97, %p98
    %p100 = scmp.ne.s32.totalorder %s88, %s89
    %p101 = scmp.eq.s32.totalorder %s17, 5
    %p102 = por %p100, %p101
    %p104 = scmp.ne.s32.totalorder %s89, %s103
    %p105 = scmp.eq.s32.totalorder %s17, 0
    %p106 = por %p104, %p105
    %s107 = ssub.s32 %s18, %s30
    %p108 = scmp.eq.s32.totalorder %s107, 0
    %s110 = sadd.s32 %s109, 1
    %s111 = scalar_select %p108, %s109, %s110
    %p114 = pneg %p108
    %p115 = scmp.eq.s32.totalorder %s11, 5
    %p116 = por %p114, %p115
    %p117 = scmp.ne.s32.totalorder %s109, %s112
    %p118 = scmp.eq.s32.totalorder %s11, 0
    %p119 = por %p117, %p118
    %p120 = scmp.ne.s32.totalorder %s109, %s112
    %p121 = scmp.eq.s32.totalorder %s16, 5
    %p122 = por %p120, %p121
    %p123 = scmp.ne.s32.totalorder %s112, %s113
    %p124 = scmp.eq.s32.totalorder %s16, 0
    %p125 = por %p123, %p124
    %p126 = scmp.ne.s32.totalorder %s112, %s113
    %p127 = scmp.eq.s32.totalorder %s17, 5
    %p128 = por %p126, %p127
    %p130 = scmp.ne.s32.totalorder %s113, %s129
    %p131 = scmp.eq.s32.totalorder %s17, 0
    %p132 = por %p130, %p131
    %s133 = ssub.s32 %s18, %s30
    %p134 = scmp.eq.s32.totalorder %s133, 0
    %s136 = sadd.s32 %s135, 1
    %s137 = scalar_select %p134, %s135, %s136
    %p140 = pneg %p134
    %p141 = scmp.eq.s32.totalorder %s11, 5
    %p142 = por %p140, %p141
    %p143 = scmp.ne.s32.totalorder %s135, %s138
    %p144 = scmp.eq.s32.totalorder %s11, 0
    %p145 = por %p143, %p144
    %p146 = scmp.ne.s32.totalorder %s135, %s138
    %p147 = scmp.eq.s32.totalorder %s16, 5
    %p148 = por %p146, %p147
    %p149 = scmp.ne.s32.totalorder %s138, %s139
    %p150 = scmp.eq.s32.totalorder %s16, 0
    %p151 = por %p149, %p150
    %p152 = scmp.ne.s32.totalorder %s138, %s139
    %p153 = scmp.eq.s32.totalorder %s17, 5
    %p154 = por %p152, %p153
    %p156 = scmp.ne.s32.totalorder %s139, %s155
    %p157 = scmp.eq.s32.totalorder %s17, 0
    %p158 = por %p156, %p157
    %p159 = scmp.le.s32.totalorder 1, %s11
    %p160 = scmp.lt.s32.totalorder %s11, 7
    %p161 = pnand %p159, %p160
    %p162 = pneg %p161
    // Predicated region
    $region9: #{pixel_classifier_forward.3} parent=5 // pred_check
      _
    $region10: #{pixel_classifier_forward.3} parent=5 // pred_check_branch
      %164 = sbr.rel (%p161) target = $region12
    $region11: #{pixel_classifier_forward.3} parent=5 // pred_region
      %s165 = ssub.s32 %s11, 1
      // Predicated region
      $region13: #{pixel_classifier_forward.3} parent=11 // pred_check
        %p166 = pneg %p78
      $region14: #{pixel_classifier_forward.3} parent=11 // pred_check_branch
        %168 = sbr.rel (%p166) target = $region16
      $region15: #{pixel_classifier_forward.3} parent=11 // pred_region
        _
      $region16: #{pixel_classifier_forward.3} parent=11 // pred_fallthru
        _
      // Predicated region
      $region17: #{pixel_classifier_forward.3} parent=11 // pred_check
        %p169 = pneg %p99
      $region18: #{pixel_classifier_forward.3} parent=11 // pred_check_branch
        %171 = sbr.rel (%p169) target = $region20
      $region19: #{pixel_classifier_forward.3} parent=11 // pred_region
        _
      $region20: #{pixel_classifier_forward.3} parent=11 // pred_fallthru
        _
    $region12: #{pixel_classifier_forward.3} parent=5 // pred_fallthru
      _
    %p172 = scmp.lt.s32.totalorder %s11, 6
    // Predicated region
    $region21: #{pixel_classifier_forward.3} parent=5 // pred_check
      %p173 = pneg %p172
    $region22: #{pixel_classifier_forward.3} parent=5 // pred_check_branch
      %175 = sbr.rel (%p173) target = $region24
    $region23: #{pixel_classifier_forward.3} parent=5 // pred_region
      // Predicated region
      $region25: #{pixel_classifier_forward.3} parent=23 // pred_check
        %p176 = pneg %p51
      $region26: #{pixel_classifier_forward.3} parent=23 // pred_check_branch
        %178 = sbr.rel (%p176) target = $region28
      $region27: #{pixel_classifier_forward.3} parent=23 // pred_region
        %s179 = smul.u32 %s18, 3
        %s180 = sadd.s32 %s179, %s19
        %p181 = scmp.lt.s32.totalorder %s180, 4
        %s182 = scalar_select %p181, %s180, 4
        %s183 = smul.u32 64, %s182
        %s184 = ssub.s32 288, %s183
        %p185 = scmp.lt.s32.totalorder %s184, 64
        %s186 = scalar_select %p185, %s184, 64
        %s187 = smul.u32 128, %s186
        %p188 = scmp.lt.s32.totalorder %s183, 287
        %s189 = scalar_select %p188, %s183, 287
        %s190 = smul.addr %s189, 8
        %s191 = scalar_lea.vmem %s0, %s190
        %s192 = smul.u32 %s18, 3
        %s193 = sadd.s32 %s192, %s19
        %p194 = scmp.lt.s32.totalorder %s193, 4
        %s195 = scalar_select %p194, %s193, 4
        %s196 = smul.u32 64, %s195
        %s197 = ssub.s32 288, %s196
        %p198 = scmp.lt.s32.totalorder %s197, 64
        %s199 = scalar_select %p198, %s197, 64
        %s200 = smul.u32 128, %s199
      $region28: #{pixel_classifier_forward.3} parent=23 // pred_fallthru
        _
    $region24: #{pixel_classifier_forward.3} parent=5 // pred_fallthru
      _
    %p201 = scmp.le.s32.totalorder 1, %s11
    %p202 = scmp.lt.s32.totalorder %s11, 7
    %p203 = pnand %p201, %p202
    %p204 = pneg %p203
    // Predicated region
    $region29: #{pixel_classifier_forward.3} parent=5 // pred_check
      _
    $region30: #{pixel_classifier_forward.3} parent=5 // pred_check_branch
      %206 = sbr.rel (%p203) target = $region32
    $region31: #{pixel_classifier_forward.3} parent=5 // pred_region
      %s207 = ssub.s32 %s11, 1
      %s208 = smul.u32 %s20, 3
      %s209 = sadd.s32 %s208, %s21
      %p210 = scmp.lt.s32.totalorder %s209, 4
      %s211 = scalar_select %p210, %s209, 4
      %s212 = smul.u32 64, %s211
      %s213 = ssub.s32 288, %s212
      %p214 = scmp.lt.s32.totalorder %s213, 64
      %s215 = scalar_select %p214, %s213, 64
      %s216 = smul.u32 128, %s215
      %p217 = scmp.lt.s32.totalorder %s212, 287
      %s218 = scalar_select %p217, %s212, 287
      %s219 = smul.addr %s218, 8
      %s220 = scalar_lea.vmem %s0, %s219
      %p221 = pneg %p57
      %p222 = pneg %p54
      %p223 = pneg %p78
      %p224 = pneg %p75
      %p225 = pneg %p99
      %p226 = pneg %p96
      %p227 = pneg %p125
      %p228 = pneg %p122
      %p229 = scmp.lt.s32.totalorder %s20, 1
      %s230 = scalar_select %p229, %s20, 1
      %s231 = smul.addr %s230, 8
      %s232 = scalar_lea.vmem %s3, %s231
      %p233 = pneg %p151
      %p234 = pneg %p148
      %p235 = scmp.lt.s32.totalorder %s20, 1
      %s236 = scalar_select %p235, %s20, 1
      %s237 = smul.addr %s236, 8
      %s238 = scalar_lea.vmem %s4, %s237
      %s239 = smul.u32 %s20, 3
      %s240 = sadd.s32 %s239, %s21
      %p241 = scmp.lt.s32.totalorder %s240, 4
      %s242 = scalar_select %p241, %s240, 4
      %s243 = smul.u32 64, %s242
      %s244 = ssub.s32 288, %s243
      %p245 = scmp.lt.s32.totalorder %s244, 64
      %s246 = scalar_select %p245, %s244, 64
      %s247 = smul.u32 128, %s246
      %p248 = scmp.lt.s32.totalorder %s243, 287
      %s249 = scalar_select %p248, %s243, 287
      %s250 = smul.addr %s249, 8
      %s251 = scalar_lea.vmem %s0, %s250
      %s252 = smul.u32 %s20, 3
      %s253 = sadd.s32 %s252, %s21
      %p254 = scmp.lt.s32.totalorder %s253, 4
      %s255 = scalar_select %p254, %s253, 4
      %s256 = smul.u32 64, %s255
      %s257 = ssub.s32 288, %s256
      %p258 = scmp.lt.s32.totalorder %s257, 64
      %s259 = scalar_select %p258, %s257, 64
      %s260 = smul.u32 128, %s259
      %p261 = scmp.lt.s32.totalorder %s20, 1
      %s262 = scalar_select %p261, %s20, 1
      %s263 = smul.addr %s262, 8
      %s264 = scalar_lea.vmem %s3, %s263
      %p265 = scmp.lt.s32.totalorder %s20, 1
      %s266 = scalar_select %p265, %s20, 1
      %s267 = smul.addr %s266, 8
      %s268 = scalar_lea.vmem %s4, %s267
      %p269 = scmp.eq.s32.totalorder %s21, 0
      // Predicated region
      $region33: #{pixel_classifier_forward.3} parent=31 // pred_check
        %p270 = pneg %p269
      $region34: #{pixel_classifier_forward.3} parent=31 // pred_check_branch
        %272 = sbr.rel (%p270) target = $region36
      $region35: #{pixel_classifier_forward.3} parent=31 // pred_region
        %273 = vst [vmem:[%s264] sm:$0xff] 0.0
        %274 = vst [vmem:[%s268] sm:$0xff] 0.0
      $region36: #{pixel_classifier_forward.3} parent=31 // pred_fallthru
        _
      %v275 = vld [vmem:[%s251] sm:$0xff]
      %v276 = vld [vmem:[%s251 + $0x8] sm:$0xff]
      %v277 = vld [vmem:[%s251 + $0x10] sm:$0xff]
      %v278 = vld [vmem:[%s251 + $0x18] sm:$0xff]
      %v279 = vld [vmem:[%s251 + $0x20] sm:$0xff]
      %v280 = vld [vmem:[%s251 + $0x28] sm:$0xff]
      %v281 = vld [vmem:[%s251 + $0x30] sm:$0xff]
      %v282 = vld [vmem:[%s251 + $0x38] sm:$0xff]
      %v283 = vld [vmem:[%s251 + $0x40] sm:$0xff]
      %v284 = vld [vmem:[%s251 + $0x48] sm:$0xff]
      %v285 = vld [vmem:[%s251 + $0x50] sm:$0xff]
      %v286 = vld [vmem:[%s251 + $0x58] sm:$0xff]
      %v287 = vld [vmem:[%s251 + $0x60] sm:$0xff]
      %v288 = vld [vmem:[%s251 + $0x68] sm:$0xff]
      %v289 = vld [vmem:[%s251 + $0x70] sm:$0xff]
      %v290 = vld [vmem:[%s251 + $0x78] sm:$0xff]
      %v291 = vld [vmem:[%s251 + $0x80] sm:$0xff]
      %v292 = vld [vmem:[%s251 + $0x88] sm:$0xff]
      %v293 = vld [vmem:[%s251 + $0x90] sm:$0xff]
      %v294 = vld [vmem:[%s251 + $0x98] sm:$0xff]
      %v295 = vld [vmem:[%s251 + $0xa0] sm:$0xff]
      %v296 = vld [vmem:[%s251 + $0xa8] sm:$0xff]
      %v297 = vld [vmem:[%s251 + $0xb0] sm:$0xff]
      %v298 = vld [vmem:[%s251 + $0xb8] sm:$0xff]
      %v299 = vld [vmem:[%s251 + $0xc0] sm:$0xff]
      %v300 = vld [vmem:[%s251 + $0xc8] sm:$0xff]
      %v301 = vld [vmem:[%s251 + $0xd0] sm:$0xff]
      %v302 = vld [vmem:[%s251 + $0xd8] sm:$0xff]
      %v303 = vld [vmem:[%s251 + $0xe0] sm:$0xff]
      %v304 = vld [vmem:[%s251 + $0xe8] sm:$0xff]
      %v305 = vld [vmem:[%s251 + $0xf0] sm:$0xff]
      %v306 = vld [vmem:[%s251 + $0xf8] sm:$0xff]
      %v307 = vld [vmem:[%s251 + $0x100] sm:$0xff]
      %v308 = vld [vmem:[%s251 + $0x108] sm:$0xff]
      %v309 = vld [vmem:[%s251 + $0x110] sm:$0xff]
      %v310 = vld [vmem:[%s251 + $0x118] sm:$0xff]
      %v311 = vld [vmem:[%s251 + $0x120] sm:$0xff]
      %v312 = vld [vmem:[%s251 + $0x128] sm:$0xff]
      %v313 = vld [vmem:[%s251 + $0x130] sm:$0xff]
      %v314 = vld [vmem:[%s251 + $0x138] sm:$0xff]
      %v315 = vld [vmem:[%s251 + $0x140] sm:$0xff]
      %v316 = vld [vmem:[%s251 + $0x148] sm:$0xff]
      %v317 = vld [vmem:[%s251 + $0x150] sm:$0xff]
      %v318 = vld [vmem:[%s251 + $0x158] sm:$0xff]
      %v319 = vld [vmem:[%s251 + $0x160] sm:$0xff]
      %v320 = vld [vmem:[%s251 + $0x168] sm:$0xff]
      %v321 = vld [vmem:[%s251 + $0x170] sm:$0xff]
      %v322 = vld [vmem:[%s251 + $0x178] sm:$0xff]
      %v323 = vld [vmem:[%s251 + $0x180] sm:$0xff]
      %v324 = vld [vmem:[%s251 + $0x188] sm:$0xff]
      %v325 = vld [vmem:[%s251 + $0x190] sm:$0xff]
      %v326 = vld [vmem:[%s251 + $0x198] sm:$0xff]
      %v327 = vld [vmem:[%s251 + $0x1a0] sm:$0xff]
      %v328 = vld [vmem:[%s251 + $0x1a8] sm:$0xff]
      %v329 = vld [vmem:[%s251 + $0x1b0] sm:$0xff]
      %v330 = vld [vmem:[%s251 + $0x1b8] sm:$0xff]
      %v331 = vld [vmem:[%s251 + $0x1c0] sm:$0xff]
      %v332 = vld [vmem:[%s251 + $0x1c8] sm:$0xff]
      %v333 = vld [vmem:[%s251 + $0x1d0] sm:$0xff]
      %v334 = vld [vmem:[%s251 + $0x1d8] sm:$0xff]
      %v335 = vld [vmem:[%s251 + $0x1e0] sm:$0xff]
      %v336 = vld [vmem:[%s251 + $0x1e8] sm:$0xff]
      %v337 = vld [vmem:[%s251 + $0x1f0] sm:$0xff]
      %v338 = vld [vmem:[%s251 + $0x1f8] sm:$0xff]
      %v339 = vld [vmem:[%s1] sm:$0xff]
      %v340 = vld [vmem:[%s1 + $0x8] sm:$0xff]
      %v341 = vld [vmem:[%s1 + $0x10] sm:$0xff]
      %v342 = vld [vmem:[%s1 + $0x18] sm:$0xff]
      %v343 = vld [vmem:[%s2] sm:$0x1]
      %v345 = vlaneseq
      %v346 = vshrl.u32 %v345, 7
      %v347 = vsub.s32 0, %v346
      %v348 = vrot.slane %v343, %v347
      %vm350 = vcmask 261120
      %v352 = vsel %vm350, %v275, 0
      %v355 = vsel %vm350, %v276, 0
      %v358 = vsel %vm350, %v277, 0
      %v361 = vsel %vm350, %v278, 0
      %v364 = vsel %vm350, %v279, 0
      %v367 = vsel %vm350, %v280, 0
      %v370 = vsel %vm350, %v281, 0
      %v373 = vsel %vm350, %v282, 0
      %v376 = vsel %vm350, %v283, 0
      %v379 = vsel %vm350, %v284, 0
      %v382 = vsel %vm350, %v285, 0
      %v385 = vsel %vm350, %v286, 0
      %v388 = vsel %vm350, %v287, 0
      %v391 = vsel %vm350, %v288, 0
      %v394 = vsel %vm350, %v289, 0
      %v397 = vsel %vm350, %v290, 0
      %v400 = vsel %vm350, %v291, 0
      %v403 = vsel %vm350, %v292, 0
      %v406 = vsel %vm350, %v293, 0
      %v409 = vsel %vm350, %v294, 0
      %v412 = vsel %vm350, %v295, 0
      %v415 = vsel %vm350, %v296, 0
      %v418 = vsel %vm350, %v297, 0
      %v421 = vsel %vm350, %v298, 0
      %v424 = vsel %vm350, %v299, 0
      %v427 = vsel %vm350, %v300, 0
      %v430 = vsel %vm350, %v301, 0
      %v433 = vsel %vm350, %v302, 0
      %v436 = vsel %vm350, %v303, 0
      %v439 = vsel %vm350, %v304, 0
      %v442 = vsel %vm350, %v305, 0
      %v445 = vsel %vm350, %v306, 0
      %v448 = vsel %vm350, %v307, 0
      %v451 = vsel %vm350, %v308, 0
      %v454 = vsel %vm350, %v309, 0
      %v457 = vsel %vm350, %v310, 0
      %v460 = vsel %vm350, %v311, 0
      %v463 = vsel %vm350, %v312, 0
      %v466 = vsel %vm350, %v313, 0
      %v469 = vsel %vm350, %v314, 0
      %v472 = vsel %vm350, %v315, 0
      %v475 = vsel %vm350, %v316, 0
      %v478 = vsel %vm350, %v317, 0
      %v481 = vsel %vm350, %v318, 0
      %v484 = vsel %vm350, %v319, 0
      %v487 = vsel %vm350, %v320, 0
      %v490 = vsel %vm350, %v321, 0
      %v493 = vsel %vm350, %v322, 0
      %v496 = vsel %vm350, %v323, 0
      %v499 = vsel %vm350, %v324, 0
      %v502 = vsel %vm350, %v325, 0
      %v505 = vsel %vm350, %v326, 0
      %v508 = vsel %vm350, %v327, 0
      %v511 = vsel %vm350, %v328, 0
      %v514 = vsel %vm350, %v329, 0
      %v517 = vsel %vm350, %v330, 0
      %v520 = vsel %vm350, %v331, 0
      %v523 = vsel %vm350, %v332, 0
      %v526 = vsel %vm350, %v333, 0
      %v529 = vsel %vm350, %v334, 0
      %v532 = vsel %vm350, %v335, 0
      %v535 = vsel %vm350, %v336, 0
      %v538 = vsel %vm350, %v337, 0
      %v541 = vsel %vm350, %v338, 0
      %543 = vmatprep.subr.mxu0 0.0
      %544 = vmatpush1.msra.mxu0 %v339
      %545 = vmatprep.subr.mxu0 0.0
      %546 = vmatpush1.msra.mxu0 %v340
      %547 = vmatprep.subr.mxu0 0.0
      %548 = vmatpush1.msra.mxu0 %v341
      %549 = vmatprep.subr.mxu0 0.0
      %550 = vmatpush1.msra.mxu0 %v342
      %551 = vmatprep.subr.mxu0 0.0
      %552 = vmatpush1.msra.mxu0 0.0
      %553 = vmatprep.subr.mxu0 0.0
      %554 = vmatpush1.msra.mxu0 0.0
      %555 = vmatprep.subr.mxu0 0.0
      %556 = vmatpush1.msra.mxu0 0.0
      %557 = vmatprep.subr.mxu0 0.0
      %558 = vmatpush1.msra.mxu0 0.0
      %559 = vmatprep.subr.mxu0 0.0
      %560 = vmatpush1.msra.mxu0 0.0
      %561 = vmatprep.subr.mxu0 0.0
      %562 = vmatpush1.msra.mxu0 0.0
      %563 = vmatprep.subr.mxu0 0.0
      %564 = vmatpush1.msra.mxu0 0.0
      %565 = vmatprep.subr.mxu0 0.0
      %566 = vmatpush1.msra.mxu0 0.0
      %567 = vmatprep.subr.mxu0 0.0
      %568 = vmatpush1.msra.mxu0 0.0
      %569 = vmatprep.subr.mxu0 0.0
      %570 = vmatpush1.msra.mxu0 0.0
      %571 = vmatprep.subr.mxu0 0.0
      %572 = vmatpush1.msra.mxu0 0.0
      %573 = vmatprep.subr.mxu0 0.0
      %574 = vmatpush1.msra.mxu0 0.0
      %575 = vmatprep.subr.mxu0 0.0
      %576 = vmatpush1.msra.mxu0 0.0
      %577 = vmatprep.subr.mxu0 0.0
      %578 = vmatpush1.msra.mxu0 0.0
      %579 = vmatprep.subr.mxu0 0.0
      %580 = vmatpush1.msra.mxu0 0.0
      %581 = vmatprep.subr.mxu0 0.0
      %582 = vmatpush1.msra.mxu0 0.0
      %583 = vmatprep.subr.mxu0 0.0
      %584 = vmatpush1.msra.mxu0 0.0
      %585 = vmatprep.subr.mxu0 0.0
      %586 = vmatpush1.msra.mxu0 0.0
      %587 = vmatprep.subr.mxu0 0.0
      %588 = vmatpush1.msra.mxu0 0.0
      %589 = vmatprep.subr.mxu0 0.0
      %590 = vmatpush1.msra.mxu0 0.0
      %591 = vmatprep.subr.mxu0 0.0
      %592 = vmatpush1.msra.mxu0 0.0
      %593 = vmatprep.subr.mxu0 0.0
      %594 = vmatpush1.msra.mxu0 0.0
      %595 = vmatprep.subr.mxu0 0.0
      %596 = vmatpush1.msra.mxu0 0.0
      %597 = vmatprep.subr.mxu0 0.0
      %598 = vmatpush1.msra.mxu0 0.0
      %599 = vmatprep.subr.mxu0 0.0
      %600 = vmatpush1.msra.mxu0 0.0
      %601 = vmatprep.subr.mxu0 0.0
      %602 = vmatpush1.msra.mxu0 0.0
      %603 = vmatprep.subr.mxu0 0.0
      %604 = vmatpush1.msra.mxu0 0.0
      %605 = vmatprep.subr.mxu0 0.0
      %606 = vmatpush1.msra.mxu0 0.0
      %607 = vmatprep.mubr.f32.mxu0 0.0
      %608 = vmatmul.mubr.f32.gmra.mrb[0].mxu0 %v352
      %v609 = vpop.f32.mrb[0].mxu0
      %v610 = vadd.f32 %v348, %v609
      %v611 = vpop.f32.mrb[0].mxu0
      %612 = vmatprep.mubr.f32.mxu0 0.0
      %613 = vmatmul.mubr.f32.gmra.mrb[0].mxu0 %v355
      %v614 = vpop.f32.mrb[0].mxu0
      %v615 = vadd.f32 %v348, %v614
      %v616 = vpop.f32.mrb[0].mxu0
      %617 = vmatprep.mubr.f32.mxu0 0.0
      %618 = vmatmul.mubr.f32.gmra.mrb[0].mxu0 %v358
      %v619 = vpop.f32.mrb[0].mxu0
      %v620 = vadd.f32 %v348, %v619
      %v621 = vpop.f32.mrb[0].mxu0
      %622 = vmatprep.mubr.f32.mxu0 0.0
      %623 = vmatmul.mubr.f32.gmra.mrb[0].mxu0 %v361
      %v624 = vpop.f32.mrb[0].mxu0
      %v625 = vadd.f32 %v348, %v624
      %v626 = vpop.f32.mrb[0].mxu0
      %627 = vmatprep.mubr.f32.mxu0 0.0
      %628 = vmatmul.mubr.f32.gmra.mrb[0].mxu0 %v364
      %v629 = vpop.f32.mrb[0].mxu0
      %v630 = vadd.f32 %v348, %v629
      %v631 = vpop.f32.mrb[0].mxu0
      %632 = vmatprep.mubr.f32.mxu0 0.0
      %633 = vmatmul.mubr.f32.gmra.mrb[0].mxu0 %v367
      %v634 = vpop.f32.mrb[0].mxu0
      %v635 = vadd.f32 %v348, %v634
      %v636 = vpop.f32.mrb[0].mxu0
      %637 = vmatprep.mubr.f32.mxu0 0.0
      %638 = vmatmul.mubr.f32.gmra.mrb[0].mxu0 %v370
      %v639 = vpop.f32.mrb[0].mxu0
      %v640 = vadd.f32 %v348, %v639
      %v641 = vpop.f32.mrb[0].mxu0
      %642 = vmatprep.mubr.f32.mxu0 0.0
      %643 = vmatmul.mubr.f32.gmra.mrb[0].mxu0 %v373
      %v644 = vpop.f32.mrb[0].mxu0
      %v645 = vadd.f32 %v348, %v644
      %v646 = vpop.f32.mrb[0].mxu0
      %647 = vmatprep.mubr.f32.mxu0 0.0
      %648 = vmatmul.mubr.f32.gmra.mrb[0].mxu0 %v376
      %v649 = vpop.f32.mrb[0].mxu0
      %v650 = vadd.f32 %v348, %v649
      %v651 = vpop.f32.mrb[0].mxu0
      %652 = vmatprep.mubr.f32.mxu0 0.0
      %653 = vmatmul.mubr.f32.gmra.mrb[0].mxu0 %v379
      %v654 = vpop.f32.mrb[0].mxu0
      %v655 = vadd.f32 %v348, %v654
      %v656 = vpop.f32.mrb[0].mxu0
      %657 = vmatprep.mubr.f32.mxu0 0.0
      %658 = vmatmul.mubr.f32.gmra.mrb[0].mxu0 %v382
      %v659 = vpop.f32.mrb[0].mxu0
      %v660 = vadd.f32 %v348, %v659
      %v661 = vpop.f32.mrb[0].mxu0
      %662 = vmatprep.mubr.f32.mxu0 0.0
      %663 = vmatmul.mubr.f32.gmra.mrb[0].mxu0 %v385
      %v664 = vpop.f32.mrb[0].mxu0
      %v665 = vadd.f32 %v348, %v664
      %v666 = vpop.f32.mrb[0].mxu0
      %667 = vmatprep.mubr.f32.mxu0 0.0
      %668 = vmatmul.mubr.f32.gmra.mrb[0].mxu0 %v388
      %v669 = vpop.f32.mrb[0].mxu0
      %v670 = vadd.f32 %v348, %v669
      %v671 = vpop.f32.mrb[0].mxu0
      %672 = vmatprep.mubr.f32.mxu0 0.0
      %673 = vmatmul.mubr.f32.gmra.mrb[0].mxu0 %v391
      %v674 = vpop.f32.mrb[0].mxu0
      %v675 = vadd.f32 %v348, %v674
      %v676 = vpop.f32.mrb[0].mxu0
      %677 = vmatprep.mubr.f32.mxu0 0.0
      %678 = vmatmul.mubr.f32.gmra.mrb[0].mxu0 %v394
      %v679 = vpop.f32.mrb[0].mxu0
      %v680 = vadd.f32 %v348, %v679
      %v681 = vpop.f32.mrb[0].mxu0
      %682 = vmatprep.mubr.f32.mxu0 0.0
      %683 = vmatmul.mubr.f32.gmra.mrb[0].mxu0 %v397
      %v684 = vpop.f32.mrb[0].mxu0
      %v685 = vadd.f32 %v348, %v684
      %v686 = vpop.f32.mrb[0].mxu0
      %687 = vmatprep.mubr.f32.mxu0 0.0
      %688 = vmatmul.mubr.f32.gmra.mrb[0].mxu0 %v400
      %v689 = vpop.f32.mrb[0].mxu0
      %v690 = vadd.f32 %v348, %v689
      %v691 = vpop.f32.mrb[0].mxu0
      %692 = vmatprep.mubr.f32.mxu0 0.0
      %693 = vmatmul.mubr.f32.gmra.mrb[0].mxu0 %v403
      %v694 = vpop.f32.mrb[0].mxu0
      %v695 = vadd.f32 %v348, %v694
      %v696 = vpop.f32.mrb[0].mxu0
      %697 = vmatprep.mubr.f32.mxu0 0.0
      %698 = vmatmul.mubr.f32.gmra.mrb[0].mxu0 %v406
      %v699 = vpop.f32.mrb[0].mxu0
      %v700 = vadd.f32 %v348, %v699
      %v701 = vpop.f32.mrb[0].mxu0
      %702 = vmatprep.mubr.f32.mxu0 0.0
      %703 = vmatmul.mubr.f32.gmra.mrb[0].mxu0 %v409
      %v704 = vpop.f32.mrb[0].mxu0
      %v705 = vadd.f32 %v348, %v704
      %v706 = vpop.f32.mrb[0].mxu0
      %707 = vmatprep.mubr.f32.mxu0 0.0
      %708 = vmatmul.mubr.f32.gmra.mrb[0].mxu0 %v412
      %v709 = vpop.f32.mrb[0].mxu0
      %v710 = vadd.f32 %v348, %v709
      %v711 = vpop.f32.mrb[0].mxu0
      %712 = vmatprep.mubr.f32.mxu0 0.0
      %713 = vmatmul.mubr.f32.gmra.mrb[0].mxu0 %v415
      %v714 = vpop.f32.mrb[0].mxu0
      %v715 = vadd.f32 %v348, %v714
      %v716 = vpop.f32.mrb[0].mxu0
      %717 = vmatprep.mubr.f32.mxu0 0.0
      %718 = vmatmul.mubr.f32.gmra.mrb[0].mxu0 %v418
      %v719 = vpop.f32.mrb[0].mxu0
      %v720 = vadd.f32 %v348, %v719
      %v721 = vpop.f32.mrb[0].mxu0
      %722 = vmatprep.mubr.f32.mxu0 0.0
      %723 = vmatmul.mubr.f32.gmra.mrb[0].mxu0 %v421
      %v724 = vpop.f32.mrb[0].mxu0
      %v725 = vadd.f32 %v348, %v724
      %v726 = vpop.f32.mrb[0].mxu0
      %727 = vmatprep.mubr.f32.mxu0 0.0
      %728 = vmatmul.mubr.f32.gmra.mrb[0].mxu0 %v424
      %v729 = vpop.f32.mrb[0].mxu0
      %v730 = vadd.f32 %v348, %v729
      %v731 = vpop.f32.mrb[0].mxu0
      %732 = vmatprep.mubr.f32.mxu0 0.0
      %733 = vmatmul.mubr.f32.gmra.mrb[0].mxu0 %v427
      %v734 = vpop.f32.mrb[0].mxu0
      %v735 = vadd.f32 %v348, %v734
      %v736 = vpop.f32.mrb[0].mxu0
      %737 = vmatprep.mubr.f32.mxu0 0.0
      %738 = vmatmul.mubr.f32.gmra.mrb[0].mxu0 %v430
      %v739 = vpop.f32.mrb[0].mxu0
      %v740 = vadd.f32 %v348, %v739
      %v741 = vpop.f32.mrb[0].mxu0
      %742 = vmatprep.mubr.f32.mxu0 0.0
      %743 = vmatmul.mubr.f32.gmra.mrb[0].mxu0 %v433
      %v744 = vpop.f32.mrb[0].mxu0
      %v745 = vadd.f32 %v348, %v744
      %v746 = vpop.f32.mrb[0].mxu0
      %747 = vmatprep.mubr.f32.mxu0 0.0
      %748 = vmatmul.mubr.f32.gmra.mrb[0].mxu0 %v436
      %v749 = vpop.f32.mrb[0].mxu0
      %v750 = vadd.f32 %v348, %v749
      %v751 = vpop.f32.mrb[0].mxu0
      %752 = vmatprep.mubr.f32.mxu0 0.0
      %753 = vmatmul.mubr.f32.gmra.mrb[0].mxu0 %v439
      %v754 = vpop.f32.mrb[0].mxu0
      %v755 = vadd.f32 %v348, %v754
      %v756 = vpop.f32.mrb[0].mxu0
      %757 = vmatprep.mubr.f32.mxu0 0.0
      %758 = vmatmul.mubr.f32.gmra.mrb[0].mxu0 %v442
      %v759 = vpop.f32.mrb[0].mxu0
      %v760 = vadd.f32 %v348, %v759
      %v761 = vpop.f32.mrb[0].mxu0
      %762 = vmatprep.mubr.f32.mxu0 0.0
      %763 = vmatmul.mubr.f32.gmra.mrb[0].mxu0 %v445
      %v764 = vpop.f32.mrb[0].mxu0
      %v765 = vadd.f32 %v348, %v764
      %v766 = vpop.f32.mrb[0].mxu0
      %767 = vmatprep.mubr.f32.mxu0 0.0
      %768 = vmatmul.mubr.f32.gmra.mrb[0].mxu0 %v448
      %v769 = vpop.f32.mrb[0].mxu0
      %v770 = vadd.f32 %v348, %v769
      %v771 = vpop.f32.mrb[0].mxu0
      %772 = vmatprep.mubr.f32.mxu0 0.0
      %773 = vmatmul.mubr.f32.gmra.mrb[0].mxu0 %v451
      %v774 = vpop.f32.mrb[0].mxu0
      %v775 = vadd.f32 %v348, %v774
      %v776 = vpop.f32.mrb[0].mxu0
      %777 = vmatprep.mubr.f32.mxu0 0.0
      %778 = vmatmul.mubr.f32.gmra.mrb[0].mxu0 %v454
      %v779 = vpop.f32.mrb[0].mxu0
      %v780 = vadd.f32 %v348, %v779
      %v781 = vpop.f32.mrb[0].mxu0
      %782 = vmatprep.mubr.f32.mxu0 0.0
      %783 = vmatmul.mubr.f32.gmra.mrb[0].mxu0 %v457
      %v784 = vpop.f32.mrb[0].mxu0
      %v785 = vadd.f32 %v348, %v784
      %v786 = vpop.f32.mrb[0].mxu0
      %787 = vmatprep.mubr.f32.mxu0 0.0
      %788 = vmatmul.mubr.f32.gmra.mrb[0].mxu0 %v460
      %v789 = vpop.f32.mrb[0].mxu0
      %v790 = vadd.f32 %v348, %v789
      %v791 = vpop.f32.mrb[0].mxu0
      %792 = vmatprep.mubr.f32.mxu0 0.0
      %793 = vmatmul.mubr.f32.gmra.mrb[0].mxu0 %v463
      %v794 = vpop.f32.mrb[0].mxu0
      %v795 = vadd.f32 %v348, %v794
      %v796 = vpop.f32.mrb[0].mxu0
      %797 = vmatprep.mubr.f32.mxu0 0.0
      %798 = vmatmul.mubr.f32.gmra.mrb[0].mxu0 %v466
      %v799 = vpop.f32.mrb[0].mxu0
      %v800 = vadd.f32 %v348, %v799
      %v801 = vpop.f32.mrb[0].mxu0
      %802 = vmatprep.mubr.f32.mxu0 0.0
      %803 = vmatmul.mubr.f32.gmra.mrb[0].mxu0 %v469
      %v804 = vpop.f32.mrb[0].mxu0
      %v805 = vadd.f32 %v348, %v804
      %v806 = vpop.f32.mrb[0].mxu0
      %807 = vmatprep.mubr.f32.mxu0 0.0
      %808 = vmatmul.mubr.f32.gmra.mrb[0].mxu0 %v472
      %v809 = vpop.f32.mrb[0].mxu0
      %v810 = vadd.f32 %v348, %v809
      %v811 = vpop.f32.mrb[0].mxu0
      %812 = vmatprep.mubr.f32.mxu0 0.0
      %813 = vmatmul.mubr.f32.gmra.mrb[0].mxu0 %v475
      %v814 = vpop.f32.mrb[0].mxu0
      %v815 = vadd.f32 %v348, %v814
      %v816 = vpop.f32.mrb[0].mxu0
      %817 = vmatprep.mubr.f32.mxu0 0.0
      %818 = vmatmul.mubr.f32.gmra.mrb[0].mxu0 %v478
      %v819 = vpop.f32.mrb[0].mxu0
      %v820 = vadd.f32 %v348, %v819
      %v821 = vpop.f32.mrb[0].mxu0
      %822 = vmatprep.mubr.f32.mxu0 0.0
      %823 = vmatmul.mubr.f32.gmra.mrb[0].mxu0 %v481
      %v824 = vpop.f32.mrb[0].mxu0
      %v825 = vadd.f32 %v348, %v824
      %v826 = vpop.f32.mrb[0].mxu0
      %827 = vmatprep.mubr.f32.mxu0 0.0
      %828 = vmatmul.mubr.f32.gmra.mrb[0].mxu0 %v484
      %v829 = vpop.f32.mrb[0].mxu0
      %v830 = vadd.f32 %v348, %v829
      %v831 = vpop.f32.mrb[0].mxu0
      %832 = vmatprep.mubr.f32.mxu0 0.0
      %833 = vmatmul.mubr.f32.gmra.mrb[0].mxu0 %v487
      %v834 = vpop.f32.mrb[0].mxu0
      %v835 = vadd.f32 %v348, %v834
      %v836 = vpop.f32.mrb[0].mxu0
      %837 = vmatprep.mubr.f32.mxu0 0.0
      %838 = vmatmul.mubr.f32.gmra.mrb[0].mxu0 %v490
      %v839 = vpop.f32.mrb[0].mxu0
      %v840 = vadd.f32 %v348, %v839
      %v841 = vpop.f32.mrb[0].mxu0
      %842 = vmatprep.mubr.f32.mxu0 0.0
      %843 = vmatmul.mubr.f32.gmra.mrb[0].mxu0 %v493
      %v844 = vpop.f32.mrb[0].mxu0
      %v845 = vadd.f32 %v348, %v844
      %v846 = vpop.f32.mrb[0].mxu0
      %847 = vmatprep.mubr.f32.mxu0 0.0
      %848 = vmatmul.mubr.f32.gmra.mrb[0].mxu0 %v496
      %v849 = vpop.f32.mrb[0].mxu0
      %v850 = vadd.f32 %v348, %v849
      %v851 = vpop.f32.mrb[0].mxu0
      %852 = vmatprep.mubr.f32.mxu0 0.0
      %853 = vmatmul.mubr.f32.gmra.mrb[0].mxu0 %v499
      %v854 = vpop.f32.mrb[0].mxu0
      %v855 = vadd.f32 %v348, %v854
      %v856 = vpop.f32.mrb[0].mxu0
      %857 = vmatprep.mubr.f32.mxu0 0.0
      %858 = vmatmul.mubr.f32.gmra.mrb[0].mxu0 %v502
      %v859 = vpop.f32.mrb[0].mxu0
      %v860 = vadd.f32 %v348, %v859
      %v861 = vpop.f32.mrb[0].mxu0
      %862 = vmatprep.mubr.f32.mxu0 0.0
      %863 = vmatmul.mubr.f32.gmra.mrb[0].mxu0 %v505
      %v864 = vpop.f32.mrb[0].mxu0
      %v865 = vadd.f32 %v348, %v864
      %v866 = vpop.f32.mrb[0].mxu0
      %867 = vmatprep.mubr.f32.mxu0 0.0
      %868 = vmatmul.mubr.f32.gmra.mrb[0].mxu0 %v508
      %v869 = vpop.f32.mrb[0].mxu0
      %v870 = vadd.f32 %v348, %v869
      %v871 = vpop.f32.mrb[0].mxu0
      %872 = vmatprep.mubr.f32.mxu0 0.0
      %873 = vmatmul.mubr.f32.gmra.mrb[0].mxu0 %v511
      %v874 = vpop.f32.mrb[0].mxu0
      %v875 = vadd.f32 %v348, %v874
      %v876 = vpop.f32.mrb[0].mxu0
      %877 = vmatprep.mubr.f32.mxu0 0.0
      %878 = vmatmul.mubr.f32.gmra.mrb[0].mxu0 %v514
      %v879 = vpop.f32.mrb[0].mxu0
      %v880 = vadd.f32 %v348, %v879
      %v881 = vpop.f32.mrb[0].mxu0
      %882 = vmatprep.mubr.f32.mxu0 0.0
      %883 = vmatmul.mubr.f32.gmra.mrb[0].mxu0 %v517
      %v884 = vpop.f32.mrb[0].mxu0
      %v885 = vadd.f32 %v348, %v884
      %v886 = vpop.f32.mrb[0].mxu0
      %887 = vmatprep.mubr.f32.mxu0 0.0
      %888 = vmatmul.mubr.f32.gmra.mrb[0].mxu0 %v520
      %v889 = vpop.f32.mrb[0].mxu0
      %v890 = vadd.f32 %v348, %v889
      %v891 = vpop.f32.mrb[0].mxu0
      %892 = vmatprep.mubr.f32.mxu0 0.0
      %893 = vmatmul.mubr.f32.gmra.mrb[0].mxu0 %v523
      %v894 = vpop.f32.mrb[0].mxu0
      %v895 = vadd.f32 %v348, %v894
      %v896 = vpop.f32.mrb[0].mxu0
      %897 = vmatprep.mubr.f32.mxu0 0.0
      %898 = vmatmul.mubr.f32.gmra.mrb[0].mxu0 %v526
      %v899 = vpop.f32.mrb[0].mxu0
      %v900 = vadd.f32 %v348, %v899
      %v901 = vpop.f32.mrb[0].mxu0
      %902 = vmatprep.mubr.f32.mxu0 0.0
      %903 = vmatmul.mubr.f32.gmra.mrb[0].mxu0 %v529
      %v904 = vpop.f32.mrb[0].mxu0
      %v905 = vadd.f32 %v348, %v904
      %v906 = vpop.f32.mrb[0].mxu0
      %907 = vmatprep.mubr.f32.mxu0 0.0
      %908 = vmatmul.mubr.f32.gmra.mrb[0].mxu0 %v532
      %v909 = vpop.f32.mrb[0].mxu0
      %v910 = vadd.f32 %v348, %v909
      %v911 = vpop.f32.mrb[0].mxu0
      %912 = vmatprep.mubr.f32.mxu0 0.0
      %913 = vmatmul.mubr.f32.gmra.mrb[0].mxu0 %v535
      %v914 = vpop.f32.mrb[0].mxu0
      %v915 = vadd.f32 %v348, %v914
      %v916 = vpop.f32.mrb[0].mxu0
      %917 = vmatprep.mubr.f32.mxu0 0.0
      %918 = vmatmul.mubr.f32.gmra.mrb[0].mxu0 %v538
      %v919 = vpop.f32.mrb[0].mxu0
      %v920 = vadd.f32 %v348, %v919
      %v921 = vpop.f32.mrb[0].mxu0
      %922 = vmatprep.mubr.f32.mxu0 0.0
      %923 = vmatmul.mubr.f32.gmra.mrb[0].mxu0 %v541
      %v924 = vpop.f32.mrb[0].mxu0
      %v925 = vadd.f32 %v348, %v924
      %v926 = vpop.f32.mrb[0].mxu0
      %927 = vdwg.mxu0
      %v928 = vmax.f32 %v610, 0.0
      %v929 = vmax.f32 %v615, 0.0
      %v930 = vmax.f32 %v620, 0.0
      %v931 = vmax.f32 %v625, 0.0
      %v932 = vmax.f32 %v630, 0.0
      %v933 = vmax.f32 %v635, 0.0
      %v934 = vmax.f32 %v640, 0.0
      %v935 = vmax.f32 %v645, 0.0
      %v936 = vmax.f32 %v650, 0.0
      %v937 = vmax.f32 %v655, 0.0
      %v938 = vmax.f32 %v660, 0.0
      %v939 = vmax.f32 %v665, 0.0
      %v940 = vmax.f32 %v670, 0.0
      %v941 = vmax.f32 %v675, 0.0
      %v942 = vmax.f32 %v680, 0.0
      %v943 = vmax.f32 %v685, 0.0
      %v944 = vmax.f32 %v690, 0.0
      %v945 = vmax.f32 %v695, 0.0
      %v946 = vmax.f32 %v700, 0.0
      %v947 = vmax.f32 %v705, 0.0
      %v948 = vmax.f32 %v710, 0.0
      %v949 = vmax.f32 %v715, 0.0
      %v950 = vmax.f32 %v720, 0.0
      %v951 = vmax.f32 %v725, 0.0
      %v952 = vmax.f32 %v730, 0.0
      %v953 = vmax.f32 %v735, 0.0
      %v954 = vmax.f32 %v740, 0.0
      %v955 = vmax.f32 %v745, 0.0
      %v956 = vmax.f32 %v750, 0.0
      %v957 = vmax.f32 %v755, 0.0
      %v958 = vmax.f32 %v760, 0.0
      %v959 = vmax.f32 %v765, 0.0
      %v960 = vmax.f32 %v770, 0.0
      %v961 = vmax.f32 %v775, 0.0
      %v962 = vmax.f32 %v780, 0.0
      %v963 = vmax.f32 %v785, 0.0
      %v964 = vmax.f32 %v790, 0.0
      %v965 = vmax.f32 %v795, 0.0
      %v966 = vmax.f32 %v800, 0.0
      %v967 = vmax.f32 %v805, 0.0
      %v968 = vmax.f32 %v810, 0.0
      %v969 = vmax.f32 %v815, 0.0
      %v970 = vmax.f32 %v820, 0.0
      %v971 = vmax.f32 %v825, 0.0
      %v972 = vmax.f32 %v830, 0.0
      %v973 = vmax.f32 %v835, 0.0
      %v974 = vmax.f32 %v840, 0.0
      %v975 = vmax.f32 %v845, 0.0
      %v976 = vmax.f32 %v850, 0.0
      %v977 = vmax.f32 %v855, 0.0
      %v978 = vmax.f32 %v860, 0.0
      %v979 = vmax.f32 %v865, 0.0
      %v980 = vmax.f32 %v870, 0.0
      %v981 = vmax.f32 %v875, 0.0
      %v982 = vmax.f32 %v880, 0.0
      %v983 = vmax.f32 %v885, 0.0
      %v984 = vmax.f32 %v890, 0.0
      %v985 = vmax.f32 %v895, 0.0
      %v986 = vmax.f32 %v900, 0.0
      %v987 = vmax.f32 %v905, 0.0
      %v988 = vmax.f32 %v910, 0.0
      %v989 = vmax.f32 %v915, 0.0
      %v990 = vmax.f32 %v920, 0.0
      %v991 = vmax.f32 %v925, 0.0
      %s992 = smul.u32 %s20, 3
      %s993 = sadd.s32 %s992, %s21
      %s994 = smul.u32 %s993, 512
      %s995 = sadd.s32 %s994, 512
      %p996 = scmp.gt.s32.totalorder %s995, 2304
      %p997 = scmp.le.s32.totalorder %s995, 2304
      // Predicated region
      $region37: #{pixel_classifier_forward.3} parent=31 // pred_check
        %p998 = pneg %p997
      $region38: #{pixel_classifier_forward.3} parent=31 // pred_check_branch
        %1000 = sbr.rel (%p998) target = $region40
      $region39: #{pixel_classifier_forward.3} parent=31 // pred_region
        %v1001 = vld [vmem:[%s264] sm:$0x1]
        %v1002 = vadd.f32 %v928, %v929
        %v1003 = vadd.f32 %v1002, %v930
        %v1004 = vadd.f32 %v1003, %v931
        %v1005 = vadd.f32 %v1004, %v932
        %v1006 = vadd.f32 %v1005, %v933
        %v1007 = vadd.f32 %v1006, %v934
        %v1008 = vadd.f32 %v1007, %v935
        %v1009 = vadd.f32 %v1008, %v936
        %v1010 = vadd.f32 %v1009, %v937
        %v1011 = vadd.f32 %v1010, %v938
        %v1012 = vadd.f32 %v1011, %v939
        %v1013 = vadd.f32 %v1012, %v940
        %v1014 = vadd.f32 %v1013, %v941
        %v1015 = vadd.f32 %v1014, %v942
        %v1016 = vadd.f32 %v1015, %v943
        %v1017 = vadd.f32 %v1016, %v944
        %v1018 = vadd.f32 %v1017, %v945
        %v1019 = vadd.f32 %v1018, %v946
        %v1020 = vadd.f32 %v1019, %v947
        %v1021 = vadd.f32 %v1020, %v948
        %v1022 = vadd.f32 %v1021, %v949
        %v1023 = vadd.f32 %v1022, %v950
        %v1024 = vadd.f32 %v1023, %v951
        %v1025 = vadd.f32 %v1024, %v952
        %v1026 = vadd.f32 %v1025, %v953
        %v1027 = vadd.f32 %v1026, %v954
        %v1028 = vadd.f32 %v1027, %v955
        %v1029 = vadd.f32 %v1028, %v956
        %v1030 = vadd.f32 %v1029, %v957
        %v1031 = vadd.f32 %v1030, %v958
        %v1032 = vadd.f32 %v1031, %v959
        %v1033 = vadd.f32 %v1032, %v960
        %v1034 = vadd.f32 %v1033, %v961
        %v1035 = vadd.f32 %v1034, %v962
        %v1036 = vadd.f32 %v1035, %v963
        %v1037 = vadd.f32 %v1036, %v964
        %v1038 = vadd.f32 %v1037, %v965
        %v1039 = vadd.f32 %v1038, %v966
        %v1040 = vadd.f32 %v1039, %v967
        %v1041 = vadd.f32 %v1040, %v968
        %v1042 = vadd.f32 %v1041, %v969
        %v1043 = vadd.f32 %v1042, %v970
        %v1044 = vadd.f32 %v1043, %v971
        %v1045 = vadd.f32 %v1044, %v972
        %v1046 = vadd.f32 %v1045, %v973
        %v1047 = vadd.f32 %v1046, %v974
        %v1048 = vadd.f32 %v1047, %v975
        %v1049 = vadd.f32 %v1048, %v976
        %v1050 = vadd.f32 %v1049, %v977
        %v1051 = vadd.f32 %v1050, %v978
        %v1052 = vadd.f32 %v1051, %v979
        %v1053 = vadd.f32 %v1052, %v980
        %v1054 = vadd.f32 %v1053, %v981
        %v1055 = vadd.f32 %v1054, %v982
        %v1056 = vadd.f32 %v1055, %v983
        %v1057 = vadd.f32 %v1056, %v984
        %v1058 = vadd.f32 %v1057, %v985
        %v1059 = vadd.f32 %v1058, %v986
        %v1060 = vadd.f32 %v1059, %v987
        %v1061 = vadd.f32 %v1060, %v988
        %v1062 = vadd.f32 %v1061, %v989
        %v1063 = vadd.f32 %v1062, %v990
        %v1064 = vadd.f32 %v1063, %v991
        %v1065 = vrot.slane %v1064, 4
        %v1066 = vadd.f32 %v1064, %v1065
        %v1067 = vrot.slane %v1066, 2
        %v1068 = vadd.f32 %v1066, %v1067
        %v1069 = vrot.slane %v1068, 1
        %v1070 = vadd.f32 %v1068, %v1069
        %v1071 = vadd.f32 %v1001, %v1070
        %1072 = vst [vmem:[%s264] sm:$0x1] %v1071
        %v1073 = vld [vmem:[%s268] sm:$0x1]
        %v1074 = vmul.f32 %v928, %v928
        %v1075 = vmul.f32 %v929, %v929
        %v1076 = vmul.f32 %v930, %v930
        %v1077 = vmul.f32 %v931, %v931
        %v1078 = vmul.f32 %v932, %v932
        %v1079 = vmul.f32 %v933, %v933
        %v1080 = vmul.f32 %v934, %v934
        %v1081 = vmul.f32 %v935, %v935
        %v1082 = vmul.f32 %v936, %v936
        %v1083 = vmul.f32 %v937, %v937
        %v1084 = vmul.f32 %v938, %v938
        %v1085 = vmul.f32 %v939, %v939
        %v1086 = vmul.f32 %v940, %v940
        %v1087 = vmul.f32 %v941, %v941
        %v1088 = vmul.f32 %v942, %v942
        %v1089 = vmul.f32 %v943, %v943
        %v1090 = vmul.f32 %v944, %v944
        %v1091 = vmul.f32 %v945, %v945
        %v1092 = vmul.f32 %v946, %v946
        %v1093 = vmul.f32 %v947, %v947
        %v1094 = vmul.f32 %v948, %v948
        %v1095 = vmul.f32 %v949, %v949
        %v1096 = vmul.f32 %v950, %v950
        %v1097 = vmul.f32 %v951, %v951
        %v1098 = vmul.f32 %v952, %v952
        %v1099 = vmul.f32 %v953, %v953
        %v1100 = vmul.f32 %v954, %v954
        %v1101 = vmul.f32 %v955, %v955
        %v1102 = vmul.f32 %v956, %v956
        %v1103 = vmul.f32 %v957, %v957
        %v1104 = vmul.f32 %v958, %v958
        %v1105 = vmul.f32 %v959, %v959
        %v1106 = vmul.f32 %v960, %v960
        %v1107 = vmul.f32 %v961, %v961
        %v1108 = vmul.f32 %v962, %v962
        %v1109 = vmul.f32 %v963, %v963
        %v1110 = vmul.f32 %v964, %v964
        %v1111 = vmul.f32 %v965, %v965
        %v1112 = vmul.f32 %v966, %v966
        %v1113 = vmul.f32 %v967, %v967
        %v1114 = vmul.f32 %v968, %v968
        %v1115 = vmul.f32 %v969, %v969
        %v1116 = vmul.f32 %v970, %v970
        %v1117 = vmul.f32 %v971, %v971
        %v1118 = vmul.f32 %v972, %v972
        %v1119 = vmul.f32 %v973, %v973
        %v1120 = vmul.f32 %v974, %v974
        %v1121 = vmul.f32 %v975, %v975
        %v1122 = vmul.f32 %v976, %v976
        %v1123 = vmul.f32 %v977, %v977
        %v1124 = vmul.f32 %v978, %v978
        %v1125 = vmul.f32 %v979, %v979
        %v1126 = vmul.f32 %v980, %v980
        %v1127 = vmul.f32 %v981, %v981
        %v1128 = vmul.f32 %v982, %v982
        %v1129 = vmul.f32 %v983, %v983
        %v1130 = vmul.f32 %v984, %v984
        %v1131 = vmul.f32 %v985, %v985
        %v1132 = vmul.f32 %v986, %v986
        %v1133 = vmul.f32 %v987, %v987
        %v1134 = vmul.f32 %v988, %v988
        %v1135 = vmul.f32 %v989, %v989
        %v1136 = vmul.f32 %v990, %v990
        %v1137 = vmul.f32 %v991, %v991
        %v1138 = vadd.f32 %v1074, %v1075
        %v1139 = vadd.f32 %v1138, %v1076
        %v1140 = vadd.f32 %v1139, %v1077
        %v1141 = vadd.f32 %v1140, %v1078
        %v1142 = vadd.f32 %v1141, %v1079
        %v1143 = vadd.f32 %v1142, %v1080
        %v1144 = vadd.f32 %v1143, %v1081
        %v1145 = vadd.f32 %v1144, %v1082
        %v1146 = vadd.f32 %v1145, %v1083
        %v1147 = vadd.f32 %v1146, %v1084
        %v1148 = vadd.f32 %v1147, %v1085
        %v1149 = vadd.f32 %v1148, %v1086
        %v1150 = vadd.f32 %v1149, %v1087
        %v1151 = vadd.f32 %v1150, %v1088
        %v1152 = vadd.f32 %v1151, %v1089
        %v1153 = vadd.f32 %v1152, %v1090
        %v1154 = vadd.f32 %v1153, %v1091
        %v1155 = vadd.f32 %v1154, %v1092
        %v1156 = vadd.f32 %v1155, %v1093
        %v1157 = vadd.f32 %v1156, %v1094
        %v1158 = vadd.f32 %v1157, %v1095
        %v1159 = vadd.f32 %v1158, %v1096
        %v1160 = vadd.f32 %v1159, %v1097
        %v1161 = vadd.f32 %v1160, %v1098
        %v1162 = vadd.f32 %v1161, %v1099
        %v1163 = vadd.f32 %v1162, %v1100
        %v1164 = vadd.f32 %v1163, %v1101
        %v1165 = vadd.f32 %v1164, %v1102
        %v1166 = vadd.f32 %v1165, %v1103
        %v1167 = vadd.f32 %v1166, %v1104
        %v1168 = vadd.f32 %v1167, %v1105
        %v1169 = vadd.f32 %v1168, %v1106
        %v1170 = vadd.f32 %v1169, %v1107
        %v1171 = vadd.f32 %v1170, %v1108
        %v1172 = vadd.f32 %v1171, %v1109
        %v1173 = vadd.f32 %v1172, %v1110
        %v1174 = vadd.f32 %v1173, %v1111
        %v1175 = vadd.f32 %v1174, %v1112
        %v1176 = vadd.f32 %v1175, %v1113
        %v1177 = vadd.f32 %v1176, %v1114
        %v1178 = vadd.f32 %v1177, %v1115
        %v1179 = vadd.f32 %v1178, %v1116
        %v1180 = vadd.f32 %v1179, %v1117
        %v1181 = vadd.f32 %v1180, %v1118
        %v1182 = vadd.f32 %v1181, %v1119
        %v1183 = vadd.f32 %v1182, %v1120
        %v1184 = vadd.f32 %v1183, %v1121
        %v1185 = vadd.f32 %v1184, %v1122
        %v1186 = vadd.f32 %v1185, %v1123
        %v1187 = vadd.f32 %v1186, %v1124
        %v1188 = vadd.f32 %v1187, %v1125
        %v1189 = vadd.f32 %v1188, %v1126
        %v1190 = vadd.f32 %v1189, %v1127
        %v1191 = vadd.f32 %v1190, %v1128
        %v1192 = vadd.f32 %v1191, %v1129
        %v1193 = vadd.f32 %v1192, %v1130
        %v1194 = vadd.f32 %v1193, %v1131
        %v1195 = vadd.f32 %v1194, %v1132
        %v1196 = vadd.f32 %v1195, %v1133
        %v1197 = vadd.f32 %v1196, %v1134
        %v1198 = vadd.f32 %v1197, %v1135
        %v1199 = vadd.f32 %v1198, %v1136
        %v1200 = vadd.f32 %v1199, %v1137
        %v1201 = vrot.slane %v1200, 4
        %v1202 = vadd.f32 %v1200, %v1201
        %v1203 = vrot.slane %v1202, 2
        %v1204 = vadd.f32 %v1202, %v1203
        %v1205 = vrot.slane %v1204, 1
        %v1206 = vadd.f32 %v1204, %v1205
        %v1207 = vadd.f32 %v1073, %v1206
        %1208 = vst [vmem:[%s268] sm:$0x1] %v1207
      $region40: #{pixel_classifier_forward.3} parent=31 // pred_fallthru
        _
      // Predicated region
      $region41: #{pixel_classifier_forward.3} parent=31 // pred_check
        %p1209 = pneg %p996
      $region42: #{pixel_classifier_forward.3} parent=31 // pred_check_branch
        %1211 = sbr.rel (%p1209) target = $region44
      $region43: #{pixel_classifier_forward.3} parent=31 // pred_region
        %v1212 = vlaneseq
        %v1213 = vshrl.u32 %v1212, 7
        %v1214 = vadd.s32 %v1213, 8
        %v1215 = vadd.s32 %v1213, 16
        %v1216 = vadd.s32 %v1213, 24
        %v1217 = vadd.s32 %v1213, 32
        %v1218 = vadd.s32 %v1213, 40
        %v1219 = vadd.s32 %v1213, 48
        %v1220 = vadd.s32 %v1213, 56
        %v1221 = vadd.s32 %v1213, 64
        %v1222 = vadd.s32 %v1213, 72
        %v1223 = vadd.s32 %v1213, 80
        %v1224 = vadd.s32 %v1213, 88
        %v1225 = vadd.s32 %v1213, 96
        %v1226 = vadd.s32 %v1213, 104
        %v1227 = vadd.s32 %v1213, 112
        %v1228 = vadd.s32 %v1213, 120
        %v1229 = vadd.s32 %v1213, 128
        %v1230 = vadd.s32 %v1213, 136
        %v1231 = vadd.s32 %v1213, 144
        %v1232 = vadd.s32 %v1213, 152
        %v1233 = vadd.s32 %v1213, 160
        %v1234 = vadd.s32 %v1213, 168
        %v1235 = vadd.s32 %v1213, 176
        %v1236 = vadd.s32 %v1213, 184
        %v1237 = vadd.s32 %v1213, 192
        %v1238 = vadd.s32 %v1213, 200
        %v1239 = vadd.s32 %v1213, 208
        %v1240 = vadd.s32 %v1213, 216
        %v1241 = vadd.s32 %v1213, 224
        %v1242 = vadd.s32 %v1213, 232
        %v1243 = vadd.s32 %v1213, 240
        %v1244 = vadd.s32 %v1213, 248
        %v1245 = vadd.s32 %v1213, 256
        %v1246 = vadd.s32 %v1213, 264
        %v1247 = vadd.s32 %v1213, 272
        %v1248 = vadd.s32 %v1213, 280
        %v1249 = vadd.s32 %v1213, 288
        %v1250 = vadd.s32 %v1213, 296
        %v1251 = vadd.s32 %v1213, 304
        %v1252 = vadd.s32 %v1213, 312
        %v1253 = vadd.s32 %v1213, 320
        %v1254 = vadd.s32 %v1213, 328
        %v1255 = vadd.s32 %v1213, 336
        %v1256 = vadd.s32 %v1213, 344
        %v1257 = vadd.s32 %v1213, 352
        %v1258 = vadd.s32 %v1213, 360
        %v1259 = vadd.s32 %v1213, 368
        %v1260 = vadd.s32 %v1213, 376
        %v1261 = vadd.s32 %v1213, 384
        %v1262 = vadd.s32 %v1213, 392
        %v1263 = vadd.s32 %v1213, 400
        %v1264 = vadd.s32 %v1213, 408
        %v1265 = vadd.s32 %v1213, 416
        %v1266 = vadd.s32 %v1213, 424
        %v1267 = vadd.s32 %v1213, 432
        %v1268 = vadd.s32 %v1213, 440
        %v1269 = vadd.s32 %v1213, 448
        %v1270 = vadd.s32 %v1213, 456
        %v1271 = vadd.s32 %v1213, 464
        %v1272 = vadd.s32 %v1213, 472
        %v1273 = vadd.s32 %v1213, 480
        %v1274 = vadd.s32 %v1213, 488
        %v1275 = vadd.s32 %v1213, 496
        %v1276 = vadd.s32 %v1213, 504
        %v1277 = vstv %s994
        %v1278 = vadd.s32 %v1277, %v1213
        %v1279 = vadd.s32 %v1277, %v1214
        %v1280 = vadd.s32 %v1277, %v1215
        %v1281 = vadd.s32 %v1277, %v1216
        %v1282 = vadd.s32 %v1277, %v1217
        %v1283 = vadd.s32 %v1277, %v1218
        %v1284 = vadd.s32 %v1277, %v1219
        %v1285 = vadd.s32 %v1277, %v1220
        %v1286 = vadd.s32 %v1277, %v1221
        %v1287 = vadd.s32 %v1277, %v1222
        %v1288 = vadd.s32 %v1277, %v1223
        %v1289 = vadd.s32 %v1277, %v1224
        %v1290 = vadd.s32 %v1277, %v1225
        %v1291 = vadd.s32 %v1277, %v1226
        %v1292 = vadd.s32 %v1277, %v1227
        %v1293 = vadd.s32 %v1277, %v1228
        %v1294 = vadd.s32 %v1277, %v1229
        %v1295 = vadd.s32 %v1277, %v1230
        %v1296 = vadd.s32 %v1277, %v1231
        %v1297 = vadd.s32 %v1277, %v1232
        %v1298 = vadd.s32 %v1277, %v1233
        %v1299 = vadd.s32 %v1277, %v1234
        %v1300 = vadd.s32 %v1277, %v1235
        %v1301 = vadd.s32 %v1277, %v1236
        %v1302 = vadd.s32 %v1277, %v1237
        %v1303 = vadd.s32 %v1277, %v1238
        %v1304 = vadd.s32 %v1277, %v1239
        %v1305 = vadd.s32 %v1277, %v1240
        %v1306 = vadd.s32 %v1277, %v1241
        %v1307 = vadd.s32 %v1277, %v1242
        %v1308 = vadd.s32 %v1277, %v1243
        %v1309 = vadd.s32 %v1277, %v1244
        %v1310 = vadd.s32 %v1277, %v1245
        %v1311 = vadd.s32 %v1277, %v1246
        %v1312 = vadd.s32 %v1277, %v1247
        %v1313 = vadd.s32 %v1277, %v1248
        %v1314 = vadd.s32 %v1277, %v1249
        %v1315 = vadd.s32 %v1277, %v1250
        %v1316 = vadd.s32 %v1277, %v1251
        %v1317 = vadd.s32 %v1277, %v1252
        %v1318 = vadd.s32 %v1277, %v1253
        %v1319 = vadd.s32 %v1277, %v1254
        %v1320 = vadd.s32 %v1277, %v1255
        %v1321 = vadd.s32 %v1277, %v1256
        %v1322 = vadd.s32 %v1277, %v1257
        %v1323 = vadd.s32 %v1277, %v1258
        %v1324 = vadd.s32 %v1277, %v1259
        %v1325 = vadd.s32 %v1277, %v1260
        %v1326 = vadd.s32 %v1277, %v1261
        %v1327 = vadd.s32 %v1277, %v1262
        %v1328 = vadd.s32 %v1277, %v1263
        %v1329 = vadd.s32 %v1277, %v1264
        %v1330 = vadd.s32 %v1277, %v1265
        %v1331 = vadd.s32 %v1277, %v1266
        %v1332 = vadd.s32 %v1277, %v1267
        %v1333 = vadd.s32 %v1277, %v1268
        %v1334 = vadd.s32 %v1277, %v1269
        %v1335 = vadd.s32 %v1277, %v1270
        %v1336 = vadd.s32 %v1277, %v1271
        %v1337 = vadd.s32 %v1277, %v1272
        %v1338 = vadd.s32 %v1277, %v1273
        %v1339 = vadd.s32 %v1277, %v1274
        %v1340 = vadd.s32 %v1277, %v1275
        %v1341 = vadd.s32 %v1277, %v1276
        %vm1342 = vcmp.lt.s32.totalorder %v1278, 2304
        %vm1343 = vcmp.lt.s32.totalorder %v1279, 2304
        %vm1344 = vcmp.lt.s32.totalorder %v1280, 2304
        %vm1345 = vcmp.lt.s32.totalorder %v1281, 2304
        %vm1346 = vcmp.lt.s32.totalorder %v1282, 2304
        %vm1347 = vcmp.lt.s32.totalorder %v1283, 2304
        %vm1348 = vcmp.lt.s32.totalorder %v1284, 2304
        %vm1349 = vcmp.lt.s32.totalorder %v1285, 2304
        %vm1350 = vcmp.lt.s32.totalorder %v1286, 2304
        %vm1351 = vcmp.lt.s32.totalorder %v1287, 2304
        %vm1352 = vcmp.lt.s32.totalorder %v1288, 2304
        %vm1353 = vcmp.lt.s32.totalorder %v1289, 2304
        %vm1354 = vcmp.lt.s32.totalorder %v1290, 2304
        %vm1355 = vcmp.lt.s32.totalorder %v1291, 2304
        %vm1356 = vcmp.lt.s32.totalorder %v1292, 2304
        %vm1357 = vcmp.lt.s32.totalorder %v1293, 2304
        %vm1358 = vcmp.lt.s32.totalorder %v1294, 2304
        %vm1359 = vcmp.lt.s32.totalorder %v1295, 2304
        %vm1360 = vcmp.lt.s32.totalorder %v1296, 2304
        %vm1361 = vcmp.lt.s32.totalorder %v1297, 2304
        %vm1362 = vcmp.lt.s32.totalorder %v1298, 2304
        %vm1363 = vcmp.lt.s32.totalorder %v1299, 2304
        %vm1364 = vcmp.lt.s32.totalorder %v1300, 2304
        %vm1365 = vcmp.lt.s32.totalorder %v1301, 2304
        %vm1366 = vcmp.lt.s32.totalorder %v1302, 2304
        %vm1367 = vcmp.lt.s32.totalorder %v1303, 2304
        %vm1368 = vcmp.lt.s32.totalorder %v1304, 2304
        %vm1369 = vcmp.lt.s32.totalorder %v1305, 2304
        %vm1370 = vcmp.lt.s32.totalorder %v1306, 2304
        %vm1371 = vcmp.lt.s32.totalorder %v1307, 2304
        %vm1372 = vcmp.lt.s32.totalorder %v1308, 2304
        %vm1373 = vcmp.lt.s32.totalorder %v1309, 2304
        %vm1374 = vcmp.lt.s32.totalorder %v1310, 2304
        %vm1375 = vcmp.lt.s32.totalorder %v1311, 2304
        %vm1376 = vcmp.lt.s32.totalorder %v1312, 2304
        %vm1377 = vcmp.lt.s32.totalorder %v1313, 2304
        %vm1378 = vcmp.lt.s32.totalorder %v1314, 2304
        %vm1379 = vcmp.lt.s32.totalorder %v1315, 2304
        %vm1380 = vcmp.lt.s32.totalorder %v1316, 2304
        %vm1381 = vcmp.lt.s32.totalorder %v1317, 2304
        %vm1382 = vcmp.lt.s32.totalorder %v1318, 2304
        %vm1383 = vcmp.lt.s32.totalorder %v1319, 2304
        %vm1384 = vcmp.lt.s32.totalorder %v1320, 2304
        %vm1385 = vcmp.lt.s32.totalorder %v1321, 2304
        %vm1386 = vcmp.lt.s32.totalorder %v1322, 2304
        %vm1387 = vcmp.lt.s32.totalorder %v1323, 2304
        %vm1388 = vcmp.lt.s32.totalorder %v1324, 2304
        %vm1389 = vcmp.lt.s32.totalorder %v1325, 2304
        %vm1390 = vcmp.lt.s32.totalorder %v1326, 2304
        %vm1391 = vcmp.lt.s32.totalorder %v1327, 2304
        %vm1392 = vcmp.lt.s32.totalorder %v1328, 2304
        %vm1393 = vcmp.lt.s32.totalorder %v1329, 2304
        %vm1394 = vcmp.lt.s32.totalorder %v1330, 2304
        %vm1395 = vcmp.lt.s32.totalorder %v1331, 2304
        %vm1396 = vcmp.lt.s32.totalorder %v1332, 2304
        %vm1397 = vcmp.lt.s32.totalorder %v1333, 2304
        %vm1398 = vcmp.lt.s32.totalorder %v1334, 2304
        %vm1399 = vcmp.lt.s32.totalorder %v1335, 2304
        %vm1400 = vcmp.lt.s32.totalorder %v1336, 2304
        %vm1401 = vcmp.lt.s32.totalorder %v1337, 2304
        %vm1402 = vcmp.lt.s32.totalorder %v1338, 2304
        %vm1403 = vcmp.lt.s32.totalorder %v1339, 2304
        %vm1404 = vcmp.lt.s32.totalorder %v1340, 2304
        %vm1405 = vcmp.lt.s32.totalorder %v1341, 2304
        %v1406 = vsel %vm1342, 1, 0
        %v1407 = vsel %vm1343, 1, 0
        %v1408 = vsel %vm1344, 1, 0
        %v1409 = vsel %vm1345, 1, 0
        %v1410 = vsel %vm1346, 1, 0
        %v1411 = vsel %vm1347, 1, 0
        %v1412 = vsel %vm1348, 1, 0
        %v1413 = vsel %vm1349, 1, 0
        %v1414 = vsel %vm1350, 1, 0
        %v1415 = vsel %vm1351, 1, 0
        %v1416 = vsel %vm1352, 1, 0
        %v1417 = vsel %vm1353, 1, 0
        %v1418 = vsel %vm1354, 1, 0
        %v1419 = vsel %vm1355, 1, 0
        %v1420 = vsel %vm1356, 1, 0
        %v1421 = vsel %vm1357, 1, 0
        %v1422 = vsel %vm1358, 1, 0
        %v1423 = vsel %vm1359, 1, 0
        %v1424 = vsel %vm1360, 1, 0
        %v1425 = vsel %vm1361, 1, 0
        %v1426 = vsel %vm1362, 1, 0
        %v1427 = vsel %vm1363, 1, 0
        %v1428 = vsel %vm1364, 1, 0
        %v1429 = vsel %vm1365, 1, 0
        %v1430 = vsel %vm1366, 1, 0
        %v1431 = vsel %vm1367, 1, 0
        %v1432 = vsel %vm1368, 1, 0
        %v1433 = vsel %vm1369, 1, 0
        %v1434 = vsel %vm1370, 1, 0
        %v1435 = vsel %vm1371, 1, 0
        %v1436 = vsel %vm1372, 1, 0
        %v1437 = vsel %vm1373, 1, 0
        %v1438 = vsel %vm1374, 1, 0
        %v1439 = vsel %vm1375, 1, 0
        %v1440 = vsel %vm1376, 1, 0
        %v1441 = vsel %vm1377, 1, 0
        %v1442 = vsel %vm1378, 1, 0
        %v1443 = vsel %vm1379, 1, 0
        %v1444 = vsel %vm1380, 1, 0
        %v1445 = vsel %vm1381, 1, 0
        %v1446 = vsel %vm1382, 1, 0
        %v1447 = vsel %vm1383, 1, 0
        %v1448 = vsel %vm1384, 1, 0
        %v1449 = vsel %vm1385, 1, 0
        %v1450 = vsel %vm1386, 1, 0
        %v1451 = vsel %vm1387, 1, 0
        %v1452 = vsel %vm1388, 1, 0
        %v1453 = vsel %vm1389, 1, 0
        %v1454 = vsel %vm1390, 1, 0
        %v1455 = vsel %vm1391, 1, 0
        %v1456 = vsel %vm1392, 1, 0
        %v1457 = vsel %vm1393, 1, 0
        %v1458 = vsel %vm1394, 1, 0
        %v1459 = vsel %vm1395, 1, 0
        %v1460 = vsel %vm1396, 1, 0
        %v1461 = vsel %vm1397, 1, 0
        %v1462 = vsel %vm1398, 1, 0
        %v1463 = vsel %vm1399, 1, 0
        %v1464 = vsel %vm1400, 1, 0
        %v1465 = vsel %vm1401, 1, 0
        %v1466 = vsel %vm1402, 1, 0
        %v1467 = vsel %vm1403, 1, 0
        %v1468 = vsel %vm1404, 1, 0
        %v1469 = vsel %vm1405, 1, 0
        %vm1470 = vcmp.eq.s32.totalorder %v1406, 1
        %vm1471 = vcmp.eq.s32.totalorder %v1407, 1
        %vm1472 = vcmp.eq.s32.totalorder %v1408, 1
        %vm1473 = vcmp.eq.s32.totalorder %v1409, 1
        %vm1474 = vcmp.eq.s32.totalorder %v1410, 1
        %vm1475 = vcmp.eq.s32.totalorder %v1411, 1
        %vm1476 = vcmp.eq.s32.totalorder %v1412, 1
        %vm1477 = vcmp.eq.s32.totalorder %v1413, 1
        %vm1478 = vcmp.eq.s32.totalorder %v1414, 1
        %vm1479 = vcmp.eq.s32.totalorder %v1415, 1
        %vm1480 = vcmp.eq.s32.totalorder %v1416, 1
        %vm1481 = vcmp.eq.s32.totalorder %v1417, 1
        %vm1482 = vcmp.eq.s32.totalorder %v1418, 1
        %vm1483 = vcmp.eq.s32.totalorder %v1419, 1
        %vm1484 = vcmp.eq.s32.totalorder %v1420, 1
        %vm1485 = vcmp.eq.s32.totalorder %v1421, 1
        %vm1486 = vcmp.eq.s32.totalorder %v1422, 1
        %vm1487 = vcmp.eq.s32.totalorder %v1423, 1
        %vm1488 = vcmp.eq.s32.totalorder %v1424, 1
        %vm1489 = vcmp.eq.s32.totalorder %v1425, 1
        %vm1490 = vcmp.eq.s32.totalorder %v1426, 1
        %vm1491 = vcmp.eq.s32.totalorder %v1427, 1
        %vm1492 = vcmp.eq.s32.totalorder %v1428, 1
        %vm1493 = vcmp.eq.s32.totalorder %v1429, 1
        %vm1494 = vcmp.eq.s32.totalorder %v1430, 1
        %vm1495 = vcmp.eq.s32.totalorder %v1431, 1
        %vm1496 = vcmp.eq.s32.totalorder %v1432, 1
        %vm1497 = vcmp.eq.s32.totalorder %v1433, 1
        %vm1498 = vcmp.eq.s32.totalorder %v1434, 1
        %vm1499 = vcmp.eq.s32.totalorder %v1435, 1
        %vm1500 = vcmp.eq.s32.totalorder %v1436, 1
        %vm1501 = vcmp.eq.s32.totalorder %v1437, 1
        %vm1502 = vcmp.eq.s32.totalorder %v1438, 1
        %vm1503 = vcmp.eq.s32.totalorder %v1439, 1
        %vm1504 = vcmp.eq.s32.totalorder %v1440, 1
        %vm1505 = vcmp.eq.s32.totalorder %v1441, 1
        %vm1506 = vcmp.eq.s32.totalorder %v1442, 1
        %vm1507 = vcmp.eq.s32.totalorder %v1443, 1
        %vm1508 = vcmp.eq.s32.totalorder %v1444, 1
        %vm1509 = vcmp.eq.s32.totalorder %v1445, 1
        %vm1510 = vcmp.eq.s32.totalorder %v1446, 1
        %vm1511 = vcmp.eq.s32.totalorder %v1447, 1
        %vm1512 = vcmp.eq.s32.totalorder %v1448, 1
        %vm1513 = vcmp.eq.s32.totalorder %v1449, 1
        %vm1514 = vcmp.eq.s32.totalorder %v1450, 1
        %vm1515 = vcmp.eq.s32.totalorder %v1451, 1
        %vm1516 = vcmp.eq.s32.totalorder %v1452, 1
        %vm1517 = vcmp.eq.s32.totalorder %v1453, 1
        %vm1518 = vcmp.eq.s32.totalorder %v1454, 1
        %vm1519 = vcmp.eq.s32.totalorder %v1455, 1
        %vm1520 = vcmp.eq.s32.totalorder %v1456, 1
        %vm1521 = vcmp.eq.s32.totalorder %v1457, 1
        %vm1522 = vcmp.eq.s32.totalorder %v1458, 1
        %vm1523 = vcmp.eq.s32.totalorder %v1459, 1
        %vm1524 = vcmp.eq.s32.totalorder %v1460, 1
        %vm1525 = vcmp.eq.s32.totalorder %v1461, 1
        %vm1526 = vcmp.eq.s32.totalorder %v1462, 1
        %vm1527 = vcmp.eq.s32.totalorder %v1463, 1
        %vm1528 = vcmp.eq.s32.totalorder %v1464, 1
        %vm1529 = vcmp.eq.s32.totalorder %v1465, 1
        %vm1530 = vcmp.eq.s32.totalorder %v1466, 1
        %vm1531 = vcmp.eq.s32.totalorder %v1467, 1
        %vm1532 = vcmp.eq.s32.totalorder %v1468, 1
        %vm1533 = vcmp.eq.s32.totalorder %v1469, 1
        %v1534 = vsel %vm1470, %v928, 0.0
        %v1535 = vsel %vm1471, %v929, 0.0
        %v1536 = vsel %vm1472, %v930, 0.0
        %v1537 = vsel %vm1473, %v931, 0.0
        %v1538 = vsel %vm1474, %v932, 0.0
        %v1539 = vsel %vm1475, %v933, 0.0
        %v1540 = vsel %vm1476, %v934, 0.0
        %v1541 = vsel %vm1477, %v935, 0.0
        %v1542 = vsel %vm1478, %v936, 0.0
        %v1543 = vsel %vm1479, %v937, 0.0
        %v1544 = vsel %vm1480, %v938, 0.0
        %v1545 = vsel %vm1481, %v939, 0.0
        %v1546 = vsel %vm1482, %v940, 0.0
        %v1547 = vsel %vm1483, %v941, 0.0
        %v1548 = vsel %vm1484, %v942, 0.0
        %v1549 = vsel %vm1485, %v943, 0.0
        %v1550 = vsel %vm1486, %v944, 0.0
        %v1551 = vsel %vm1487, %v945, 0.0
        %v1552 = vsel %vm1488, %v946, 0.0
        %v1553 = vsel %vm1489, %v947, 0.0
        %v1554 = vsel %vm1490, %v948, 0.0
        %v1555 = vsel %vm1491, %v949, 0.0
        %v1556 = vsel %vm1492, %v950, 0.0
        %v1557 = vsel %vm1493, %v951, 0.0
        %v1558 = vsel %vm1494, %v952, 0.0
        %v1559 = vsel %vm1495, %v953, 0.0
        %v1560 = vsel %vm1496, %v954, 0.0
        %v1561 = vsel %vm1497, %v955, 0.0
        %v1562 = vsel %vm1498, %v956, 0.0
        %v1563 = vsel %vm1499, %v957, 0.0
        %v1564 = vsel %vm1500, %v958, 0.0
        %v1565 = vsel %vm1501, %v959, 0.0
        %v1566 = vsel %vm1502, %v960, 0.0
        %v1567 = vsel %vm1503, %v961, 0.0
        %v1568 = vsel %vm1504, %v962, 0.0
        %v1569 = vsel %vm1505, %v963, 0.0
        %v1570 = vsel %vm1506, %v964, 0.0
        %v1571 = vsel %vm1507, %v965, 0.0
        %v1572 = vsel %vm1508, %v966, 0.0
        %v1573 = vsel %vm1509, %v967, 0.0
        %v1574 = vsel %vm1510, %v968, 0.0
        %v1575 = vsel %vm1511, %v969, 0.0
        %v1576 = vsel %vm1512, %v970, 0.0
        %v1577 = vsel %vm1513, %v971, 0.0
        %v1578 = vsel %vm1514, %v972, 0.0
        %v1579 = vsel %vm1515, %v973, 0.0
        %v1580 = vsel %vm1516, %v974, 0.0
        %v1581 = vsel %vm1517, %v975, 0.0
        %v1582 = vsel %vm1518, %v976, 0.0
        %v1583 = vsel %vm1519, %v977, 0.0
        %v1584 = vsel %vm1520, %v978, 0.0
        %v1585 = vsel %vm1521, %v979, 0.0
        %v1586 = vsel %vm1522, %v980, 0.0
        %v1587 = vsel %vm1523, %v981, 0.0
        %v1588 = vsel %vm1524, %v982, 0.0
        %v1589 = vsel %vm1525, %v983, 0.0
        %v1590 = vsel %vm1526, %v984, 0.0
        %v1591 = vsel %vm1527, %v985, 0.0
        %v1592 = vsel %vm1528, %v986, 0.0
        %v1593 = vsel %vm1529, %v987, 0.0
        %v1594 = vsel %vm1530, %v988, 0.0
        %v1595 = vsel %vm1531, %v989, 0.0
        %v1596 = vsel %vm1532, %v990, 0.0
        %v1597 = vsel %vm1533, %v991, 0.0
        %v1598 = vld [vmem:[%s264] sm:$0x1]
        %v1599 = vadd.f32 %v1534, %v1535
        %v1600 = vadd.f32 %v1599, %v1536
        %v1601 = vadd.f32 %v1600, %v1537
        %v1602 = vadd.f32 %v1601, %v1538
        %v1603 = vadd.f32 %v1602, %v1539
        %v1604 = vadd.f32 %v1603, %v1540
        %v1605 = vadd.f32 %v1604, %v1541
        %v1606 = vadd.f32 %v1605, %v1542
        %v1607 = vadd.f32 %v1606, %v1543
        %v1608 = vadd.f32 %v1607, %v1544
        %v1609 = vadd.f32 %v1608, %v1545
        %v1610 = vadd.f32 %v1609, %v1546
        %v1611 = vadd.f32 %v1610, %v1547
        %v1612 = vadd.f32 %v1611, %v1548
        %v1613 = vadd.f32 %v1612, %v1549
        %v1614 = vadd.f32 %v1613, %v1550
        %v1615 = vadd.f32 %v1614, %v1551
        %v1616 = vadd.f32 %v1615, %v1552
        %v1617 = vadd.f32 %v1616, %v1553
        %v1618 = vadd.f32 %v1617, %v1554
        %v1619 = vadd.f32 %v1618, %v1555
        %v1620 = vadd.f32 %v1619, %v1556
        %v1621 = vadd.f32 %v1620, %v1557
        %v1622 = vadd.f32 %v1621, %v1558
        %v1623 = vadd.f32 %v1622, %v1559
        %v1624 = vadd.f32 %v1623, %v1560
        %v1625 = vadd.f32 %v1624, %v1561
        %v1626 = vadd.f32 %v1625, %v1562
        %v1627 = vadd.f32 %v1626, %v1563
        %v1628 = vadd.f32 %v1627, %v1564
        %v1629 = vadd.f32 %v1628, %v1565
        %v1630 = vadd.f32 %v1629, %v1566
        %v1631 = vadd.f32 %v1630, %v1567
        %v1632 = vadd.f32 %v1631, %v1568
        %v1633 = vadd.f32 %v1632, %v1569
        %v1634 = vadd.f32 %v1633, %v1570
        %v1635 = vadd.f32 %v1634, %v1571
        %v1636 = vadd.f32 %v1635, %v1572
        %v1637 = vadd.f32 %v1636, %v1573
        %v1638 = vadd.f32 %v1637, %v1574
        %v1639 = vadd.f32 %v1638, %v1575
        %v1640 = vadd.f32 %v1639, %v1576
        %v1641 = vadd.f32 %v1640, %v1577
        %v1642 = vadd.f32 %v1641, %v1578
        %v1643 = vadd.f32 %v1642, %v1579
        %v1644 = vadd.f32 %v1643, %v1580
        %v1645 = vadd.f32 %v1644, %v1581
        %v1646 = vadd.f32 %v1645, %v1582
        %v1647 = vadd.f32 %v1646, %v1583
        %v1648 = vadd.f32 %v1647, %v1584
        %v1649 = vadd.f32 %v1648, %v1585
        %v1650 = vadd.f32 %v1649, %v1586
        %v1651 = vadd.f32 %v1650, %v1587
        %v1652 = vadd.f32 %v1651, %v1588
        %v1653 = vadd.f32 %v1652, %v1589
        %v1654 = vadd.f32 %v1653, %v1590
        %v1655 = vadd.f32 %v1654, %v1591
        %v1656 = vadd.f32 %v1655, %v1592
        %v1657 = vadd.f32 %v1656, %v1593
        %v1658 = vadd.f32 %v1657, %v1594
        %v1659 = vadd.f32 %v1658, %v1595
        %v1660 = vadd.f32 %v1659, %v1596
        %v1661 = vadd.f32 %v1660, %v1597
        %v1662 = vrot.slane %v1661, 4
        %v1663 = vadd.f32 %v1661, %v1662
        %v1664 = vrot.slane %v1663, 2
        %v1665 = vadd.f32 %v1663, %v1664
        %v1666 = vrot.slane %v1665, 1
        %v1667 = vadd.f32 %v1665, %v1666
        %v1668 = vadd.f32 %v1598, %v1667
        %1669 = vst [vmem:[%s264] sm:$0x1] %v1668
        %v1670 = vld [vmem:[%s268] sm:$0x1]
        %v1671 = vmul.f32 %v1534, %v1534
        %v1672 = vmul.f32 %v1535, %v1535
        %v1673 = vmul.f32 %v1536, %v1536
        %v1674 = vmul.f32 %v1537, %v1537
        %v1675 = vmul.f32 %v1538, %v1538
        %v1676 = vmul.f32 %v1539, %v1539
        %v1677 = vmul.f32 %v1540, %v1540
        %v1678 = vmul.f32 %v1541, %v1541
        %v1679 = vmul.f32 %v1542, %v1542
        %v1680 = vmul.f32 %v1543, %v1543
        %v1681 = vmul.f32 %v1544, %v1544
        %v1682 = vmul.f32 %v1545, %v1545
        %v1683 = vmul.f32 %v1546, %v1546
        %v1684 = vmul.f32 %v1547, %v1547
        %v1685 = vmul.f32 %v1548, %v1548
        %v1686 = vmul.f32 %v1549, %v1549
        %v1687 = vmul.f32 %v1550, %v1550
        %v1688 = vmul.f32 %v1551, %v1551
        %v1689 = vmul.f32 %v1552, %v1552
        %v1690 = vmul.f32 %v1553, %v1553
        %v1691 = vmul.f32 %v1554, %v1554
        %v1692 = vmul.f32 %v1555, %v1555
        %v1693 = vmul.f32 %v1556, %v1556
        %v1694 = vmul.f32 %v1557, %v1557
        %v1695 = vmul.f32 %v1558, %v1558
        %v1696 = vmul.f32 %v1559, %v1559
        %v1697 = vmul.f32 %v1560, %v1560
        %v1698 = vmul.f32 %v1561, %v1561
        %v1699 = vmul.f32 %v1562, %v1562
        %v1700 = vmul.f32 %v1563, %v1563
        %v1701 = vmul.f32 %v1564, %v1564
        %v1702 = vmul.f32 %v1565, %v1565
        %v1703 = vmul.f32 %v1566, %v1566
        %v1704 = vmul.f32 %v1567, %v1567
        %v1705 = vmul.f32 %v1568, %v1568
        %v1706 = vmul.f32 %v1569, %v1569
        %v1707 = vmul.f32 %v1570, %v1570
        %v1708 = vmul.f32 %v1571, %v1571
        %v1709 = vmul.f32 %v1572, %v1572
        %v1710 = vmul.f32 %v1573, %v1573
        %v1711 = vmul.f32 %v1574, %v1574
        %v1712 = vmul.f32 %v1575, %v1575
        %v1713 = vmul.f32 %v1576, %v1576
        %v1714 = vmul.f32 %v1577, %v1577
        %v1715 = vmul.f32 %v1578, %v1578
        %v1716 = vmul.f32 %v1579, %v1579
        %v1717 = vmul.f32 %v1580, %v1580
        %v1718 = vmul.f32 %v1581, %v1581
        %v1719 = vmul.f32 %v1582, %v1582
        %v1720 = vmul.f32 %v1583, %v1583
        %v1721 = vmul.f32 %v1584, %v1584
        %v1722 = vmul.f32 %v1585, %v1585
        %v1723 = vmul.f32 %v1586, %v1586
        %v1724 = vmul.f32 %v1587, %v1587
        %v1725 = vmul.f32 %v1588, %v1588
        %v1726 = vmul.f32 %v1589, %v1589
        %v1727 = vmul.f32 %v1590, %v1590
        %v1728 = vmul.f32 %v1591, %v1591
        %v1729 = vmul.f32 %v1592, %v1592
        %v1730 = vmul.f32 %v1593, %v1593
        %v1731 = vmul.f32 %v1594, %v1594
        %v1732 = vmul.f32 %v1595, %v1595
        %v1733 = vmul.f32 %v1596, %v1596
        %v1734 = vmul.f32 %v1597, %v1597
        %v1735 = vadd.f32 %v1671, %v1672
        %v1736 = vadd.f32 %v1735, %v1673
        %v1737 = vadd.f32 %v1736, %v1674
        %v1738 = vadd.f32 %v1737, %v1675
        %v1739 = vadd.f32 %v1738, %v1676
        %v1740 = vadd.f32 %v1739, %v1677
        %v1741 = vadd.f32 %v1740, %v1678
        %v1742 = vadd.f32 %v1741, %v1679
        %v1743 = vadd.f32 %v1742, %v1680
        %v1744 = vadd.f32 %v1743, %v1681
        %v1745 = vadd.f32 %v1744, %v1682
        %v1746 = vadd.f32 %v1745, %v1683
        %v1747 = vadd.f32 %v1746, %v1684
        %v1748 = vadd.f32 %v1747, %v1685
        %v1749 = vadd.f32 %v1748, %v1686
        %v1750 = vadd.f32 %v1749, %v1687
        %v1751 = vadd.f32 %v1750, %v1688
        %v1752 = vadd.f32 %v1751, %v1689
        %v1753 = vadd.f32 %v1752, %v1690
        %v1754 = vadd.f32 %v1753, %v1691
        %v1755 = vadd.f32 %v1754, %v1692
        %v1756 = vadd.f32 %v1755, %v1693
        %v1757 = vadd.f32 %v1756, %v1694
        %v1758 = vadd.f32 %v1757, %v1695
        %v1759 = vadd.f32 %v1758, %v1696
        %v1760 = vadd.f32 %v1759, %v1697
        %v1761 = vadd.f32 %v1760, %v1698
        %v1762 = vadd.f32 %v1761, %v1699
        %v1763 = vadd.f32 %v1762, %v1700
        %v1764 = vadd.f32 %v1763, %v1701
        %v1765 = vadd.f32 %v1764, %v1702
        %v1766 = vadd.f32 %v1765, %v1703
        %v1767 = vadd.f32 %v1766, %v1704
        %v1768 = vadd.f32 %v1767, %v1705
        %v1769 = vadd.f32 %v1768, %v1706
        %v1770 = vadd.f32 %v1769, %v1707
        %v1771 = vadd.f32 %v1770, %v1708
        %v1772 = vadd.f32 %v1771, %v1709
        %v1773 = vadd.f32 %v1772, %v1710
        %v1774 = vadd.f32 %v1773, %v1711
        %v1775 = vadd.f32 %v1774, %v1712
        %v1776 = vadd.f32 %v1775, %v1713
        %v1777 = vadd.f32 %v1776, %v1714
        %v1778 = vadd.f32 %v1777, %v1715
        %v1779 = vadd.f32 %v1778, %v1716
        %v1780 = vadd.f32 %v1779, %v1717
        %v1781 = vadd.f32 %v1780, %v1718
        %v1782 = vadd.f32 %v1781, %v1719
        %v1783 = vadd.f32 %v1782, %v1720
        %v1784 = vadd.f32 %v1783, %v1721
        %v1785 = vadd.f32 %v1784, %v1722
        %v1786 = vadd.f32 %v1785, %v1723
        %v1787 = vadd.f32 %v1786, %v1724
        %v1788 = vadd.f32 %v1787, %v1725
        %v1789 = vadd.f32 %v1788, %v1726
        %v1790 = vadd.f32 %v1789, %v1727
        %v1791 = vadd.f32 %v1790, %v1728
        %v1792 = vadd.f32 %v1791, %v1729
        %v1793 = vadd.f32 %v1792, %v1730
        %v1794 = vadd.f32 %v1793, %v1731
        %v1795 = vadd.f32 %v1794, %v1732
        %v1796 = vadd.f32 %v1795, %v1733
        %v1797 = vadd.f32 %v1796, %v1734
        %v1798 = vrot.slane %v1797, 4
        %v1799 = vadd.f32 %v1797, %v1798
        %v1800 = vrot.slane %v1799, 2
        %v1801 = vadd.f32 %v1799, %v1800
        %v1802 = vrot.slane %v1801, 1
        %v1803 = vadd.f32 %v1801, %v1802
        %v1804 = vadd.f32 %v1670, %v1803
        %1805 = vst [vmem:[%s268] sm:$0x1] %v1804
      $region44: #{pixel_classifier_forward.3} parent=31 // pred_fallthru
        _
      %p1806 = scmp.lt.s32.totalorder %s20, 1
      %s1807 = scalar_select %p1806, %s20, 1
      %s1808 = smul.addr %s1807, 8
      %s1809 = scalar_lea.vmem %s3, %s1808
      %p1810 = scmp.lt.s32.totalorder %s20, 1
      %s1811 = scalar_select %p1810, %s20, 1
      %s1812 = smul.addr %s1811, 8
      %s1813 = scalar_lea.vmem %s4, %s1812
      // Predicated region
      $region45: #{pixel_classifier_forward.3} parent=31 // pred_check
        %p1814 = pneg %p122
      $region46: #{pixel_classifier_forward.3} parent=31 // pred_check_branch
        %1816 = sbr.rel (%p1814) target = $region48
      $region47: #{pixel_classifier_forward.3} parent=31 // pred_region
        _
      $region48: #{pixel_classifier_forward.3} parent=31 // pred_fallthru
        _
      // Predicated region
      $region49: #{pixel_classifier_forward.3} parent=31 // pred_check
        %p1817 = pneg %p148
      $region50: #{pixel_classifier_forward.3} parent=31 // pred_check_branch
        %1819 = sbr.rel (%p1817) target = $region52
      $region51: #{pixel_classifier_forward.3} parent=31 // pred_region
        _
      $region52: #{pixel_classifier_forward.3} parent=31 // pred_fallthru
        _
    $region32: #{pixel_classifier_forward.3} parent=5 // pred_fallthru
      _
    %p1820 = scmp.le.s32.totalorder 2, %s11
    // Predicated region
    $region53: #{pixel_classifier_forward.3} parent=5 // pred_check
      %p1821 = pneg %p1820
    $region54: #{pixel_classifier_forward.3} parent=5 // pred_check_branch
      %1823 = sbr.rel (%p1821) target = $region56
    $region55: #{pixel_classifier_forward.3} parent=5 // pred_region
      %s1824 = ssub.s32 %s11, 2
      // Predicated region
      $region57: #{pixel_classifier_forward.3} parent=55 // pred_check
        %p1825 = pneg %p128
      $region58: #{pixel_classifier_forward.3} parent=55 // pred_check_branch
        %1827 = sbr.rel (%p1825) target = $region60
      $region59: #{pixel_classifier_forward.3} parent=55 // pred_region
        %p1828 = scmp.lt.s32.totalorder %s22, 1
        %s1829 = scalar_select %p1828, %s22, 1
        %s1830 = smul.addr %s1829, 8
        %s1831 = scalar_lea.vmem %s3, %s1830
      $region60: #{pixel_classifier_forward.3} parent=55 // pred_fallthru
        _
      // Predicated region
      $region61: #{pixel_classifier_forward.3} parent=55 // pred_check
        %p1832 = pneg %p154
      $region62: #{pixel_classifier_forward.3} parent=55 // pred_check_branch
        %1834 = sbr.rel (%p1832) target = $region64
      $region63: #{pixel_classifier_forward.3} parent=55 // pred_region
        %p1835 = scmp.lt.s32.totalorder %s22, 1
        %s1836 = scalar_select %p1835, %s22, 1
        %s1837 = smul.addr %s1836, 8
        %s1838 = scalar_lea.vmem %s4, %s1837
      $region64: #{pixel_classifier_forward.3} parent=55 // pred_fallthru
        _
    $region56: #{pixel_classifier_forward.3} parent=5 // pred_fallthru
      _
  $region6: #{pixel_classifier_forward.3} parent=0 // loop_footer
    %s15 = sadd.s32 1, %s11
  $region7: #{pixel_classifier_forward.3} parent=0 // loop_footer_branch
    %10 = sbr.rel target = $region3
  $region8: #{pixel_classifier_forward.3} parent=0 // loop_exit
    _

// kernel: pixel_classifier_forward.4
$region0: #{pixel_classifier_forward.4}
  #allocation0 [shape = 'u32[]', space=smem, size = 0x4, offset = 0x4, fixed_abs, tag = 'smem constant byte address 0x4 - core index']
  #allocation1 [shape = 'u32[144,128]{1,0:T(1,128)}', space=vmem, size = 0x12000, scoped, tag = 'internal scratch']
  %s0 = inlined_call_operand.vmem [shape: f32[2304,32], index: 0, kind: input, shape index: {}]
  %s1 = inlined_call_operand.vmem [shape: f32[32,128], index: 1, kind: input, shape index: {}]
  %s2 = inlined_call_operand.vmem [shape: f32[1,128], index: 2, kind: input, shape index: {}]
  %s3 = inlined_call_operand.vmem [shape: f32[128,32], index: 3, kind: input, shape index: {}]
  %s4 = inlined_call_operand.vmem [shape: f32[1,32], index: 4, kind: input, shape index: {}]
  %s5 = inlined_call_operand.vmem [shape: f32[16,32], index: 5, kind: output, shape index: {0}]
  %s6 = inlined_call_operand.vmem [shape: f32[16,32], index: 6, kind: output, shape index: {1}]
  %s7 = inlined_call_operand.vmem [shape: f32[2304,32], index: 7, kind: output, shape index: {2}]
  %8 = xla_tuple %s5, %s6, %s7
  %s9 = sld [smem:[#allocation0]]
  $region129: #{pixel_classifier_forward.4} parent=0
    _
  %s11 = ssub.s32 1, %s9
  %s12 = scalar_select 0, %s11, %s9
  $region1: #{pixel_classifier_forward.4} parent=0
    #allocation2 [shape = 'u8[524288]{0}', space=vmem, size = 0x80000, scoped, tag = 'output window, operand 2']
    loop: start=0, step=1, limit=8
    $region2: #{pixel_classifier_forward.4} parent=1 // loop_pre_header
      _
    $region3: #{pixel_classifier_forward.4} parent=1 // loop_header
      %s14 = sphi 0, %s18
      %p15 = scmp.ge.s32.totalorder %s14, 8
      %s21 = sphi 0, %s33
      %s22 = sphi 0, %s29
      %s23 = sphi 0, %s21
      %s24 = sphi 0, %s22
      %s25 = sphi 0, %s23
      %s26 = sphi 0, %s24
      %s44 = sphi 0, %s46
      %s47 = sphi 0, %s44
      %s48 = sphi 0, %s47
      %s64 = sphi 0, %s48
      %s68 = sphi 0, %s68
      %s70 = sphi 0, %s68
      %s71 = sphi 0, %s70
      %s85 = sphi 0, %s71
      %s89 = sphi 0, %s89
      %s91 = sphi 0, %s89
      %s92 = sphi 0, %s91
      %s106 = sphi 0, %s92
      %s110 = sphi 0, %s110
      %s112 = sphi 0, %s110
      %s113 = sphi 0, %s112
      %s127 = sphi 0, %s113
      %s131 = sphi 0, %s131
      %s133 = sphi 0, %s131
      %s134 = sphi 0, %s133
      %s148 = sphi 0, %s134
      %s154 = sphi 0, %s156
      %s157 = sphi 0, %s154
      %s158 = sphi 0, %s157
      %s174 = sphi 0, %s158
      %s180 = sphi 0, %s182
      %s183 = sphi 0, %s180
      %s184 = sphi 0, %s183
      %s200 = sphi 0, %s184
      %s214 = sphi 0, %s216
      %s217 = sphi 0, %s214
      %s218 = sphi 0, %s217
      %s234 = sphi 0, %s218
    $region4: #{pixel_classifier_forward.4} parent=1 // loop_header_branch
      %17 = sbr.rel (%p15) target = $region8
    $region5: #{pixel_classifier_forward.4} parent=1 // loop_body
      %s19 = ssub.s32 %s14, 1
      %s20 = ssub.s32 %s14, 2
      %s27 = sadd.s32 1, %s22
      %p28 = scmp.ge.s32.totalorder %s27, 3
      %s29 = scalar_select %p28, 0, %s27
      %s30 = sadd.s32 1, %s21
      %s31 = scalar_select %p28, %s30, %s21
      %p32 = scmp.ge.s32.totalorder %s31, 2
      %s33 = scalar_select %p32, 0, %s31
      %s34 = smul.u32 %s21, 3
      %s35 = sadd.s32 %s34, %s22
      %p36 = scmp.lt.s32.totalorder %s35, 4
      %s37 = scalar_select %p36, %s35, 4
      %s38 = smul.u32 %s33, 3
      %s39 = sadd.s32 %s38, %s29
      %p40 = scmp.lt.s32.totalorder %s39, 4
      %s41 = scalar_select %p40, %s39, 4
      %s42 = ssub.s32 %s37, %s41
      %p43 = scmp.eq.s32.totalorder %s42, 0
      %s45 = sadd.s32 %s44, 1
      %s46 = scalar_select %p43, %s44, %s45
      %p49 = pneg %p43
      %p50 = scmp.eq.s32.totalorder %s14, 5
      %p51 = por %p49, %p50
      %p52 = scmp.ne.s32.totalorder %s44, %s47
      %p53 = scmp.eq.s32.totalorder %s14, 0
      %p54 = por %p52, %p53
      %p55 = scmp.ne.s32.totalorder %s44, %s47
      %p56 = scmp.eq.s32.totalorder %s19, 5
      %p57 = por %p55, %p56
      %p58 = scmp.ne.s32.totalorder %s47, %s48
      %p59 = scmp.eq.s32.totalorder %s19, 0
      %p60 = por %p58, %p59
      %p61 = scmp.ne.s32.totalorder %s47, %s48
      %p62 = scmp.eq.s32.totalorder %s20, 5
      %p63 = por %p61, %p62
      %p65 = scmp.ne.s32.totalorder %s48, %s64
      %p66 = scmp.eq.s32.totalorder %s20, 0
      %p67 = por %p65, %p66
      %s69 = sadd.s32 %s68, 1
      %p72 = scmp.eq.s32.totalorder %s14, 5
      %p73 = scmp.ne.s32.totalorder %s68, %s70
      %p74 = scmp.eq.s32.totalorder %s14, 0
      %p75 = por %p73, %p74
      %p76 = scmp.ne.s32.totalorder %s68, %s70
      %p77 = scmp.eq.s32.totalorder %s19, 5
      %p78 = por %p76, %p77
      %p79 = scmp.ne.s32.totalorder %s70, %s71
      %p80 = scmp.eq.s32.totalorder %s19, 0
      %p81 = por %p79, %p80
      %p82 = scmp.ne.s32.totalorder %s70, %s71
      %p83 = scmp.eq.s32.totalorder %s20, 5
      %p84 = por %p82, %p83
      %p86 = scmp.ne.s32.totalorder %s71, %s85
      %p87 = scmp.eq.s32.totalorder %s20, 0
      %p88 = por %p86, %p87
      %s90 = sadd.s32 %s89, 1
      %p93 = scmp.eq.s32.totalorder %s14, 5
      %p94 = scmp.ne.s32.totalorder %s89, %s91
      %p95 = scmp.eq.s32.totalorder %s14, 0
      %p96 = por %p94, %p95
      %p97 = scmp.ne.s32.totalorder %s89, %s91
      %p98 = scmp.eq.s32.totalorder %s19, 5
      %p99 = por %p97, %p98
      %p100 = scmp.ne.s32.totalorder %s91, %s92
      %p101 = scmp.eq.s32.totalorder %s19, 0
      %p102 = por %p100, %p101
      %p103 = scmp.ne.s32.totalorder %s91, %s92
      %p104 = scmp.eq.s32.totalorder %s20, 5
      %p105 = por %p103, %p104
      %p107 = scmp.ne.s32.totalorder %s92, %s106
      %p108 = scmp.eq.s32.totalorder %s20, 0
      %p109 = por %p107, %p108
      %s111 = sadd.s32 %s110, 1
      %p114 = scmp.eq.s32.totalorder %s14, 5
      %p115 = scmp.ne.s32.totalorder %s110, %s112
      %p116 = scmp.eq.s32.totalorder %s14, 0
      %p117 = por %p115, %p116
      %p118 = scmp.ne.s32.totalorder %s110, %s112
      %p119 = scmp.eq.s32.totalorder %s19, 5
      %p120 = por %p118, %p119
      %p121 = scmp.ne.s32.totalorder %s112, %s113
      %p122 = scmp.eq.s32.totalorder %s19, 0
      %p123 = por %p121, %p122
      %p124 = scmp.ne.s32.totalorder %s112, %s113
      %p125 = scmp.eq.s32.totalorder %s20, 5
      %p126 = por %p124, %p125
      %p128 = scmp.ne.s32.totalorder %s113, %s127
      %p129 = scmp.eq.s32.totalorder %s20, 0
      %p130 = por %p128, %p129
      %s132 = sadd.s32 %s131, 1
      %p135 = scmp.eq.s32.totalorder %s14, 5
      %p136 = scmp.ne.s32.totalorder %s131, %s133
      %p137 = scmp.eq.s32.totalorder %s14, 0
      %p138 = por %p136, %p137
      %p139 = scmp.ne.s32.totalorder %s131, %s133
      %p140 = scmp.eq.s32.totalorder %s19, 5
      %p141 = por %p139, %p140
      %p142 = scmp.ne.s32.totalorder %s133, %s134
      %p143 = scmp.eq.s32.totalorder %s19, 0
      %p144 = por %p142, %p143
      %p145 = scmp.ne.s32.totalorder %s133, %s134
      %p146 = scmp.eq.s32.totalorder %s20, 5
      %p147 = por %p145, %p146
      %p149 = scmp.ne.s32.totalorder %s134, %s148
      %p150 = scmp.eq.s32.totalorder %s20, 0
      %p151 = por %p149, %p150
      %s152 = ssub.s32 %s21, %s33
      %p153 = scmp.eq.s32.totalorder %s152, 0
      %s155 = sadd.s32 %s154, 1
      %s156 = scalar_select %p153, %s154, %s155
      %p159 = pneg %p153
      %p160 = scmp.eq.s32.totalorder %s14, 5
      %p161 = por %p159, %p160
      %p162 = scmp.ne.s32.totalorder %s154, %s157
      %p163 = scmp.eq.s32.totalorder %s14, 0
      %p164 = por %p162, %p163
      %p165 = scmp.ne.s32.totalorder %s154, %s157
      %p166 = scmp.eq.s32.totalorder %s19, 5
      %p167 = por %p165, %p166
      %p168 = scmp.ne.s32.totalorder %s157, %s158
      %p169 = scmp.eq.s32.totalorder %s19, 0
      %p170 = por %p168, %p169
      %p171 = scmp.ne.s32.totalorder %s157, %s158
      %p172 = scmp.eq.s32.totalorder %s20, 5
      %p173 = por %p171, %p172
      %p175 = scmp.ne.s32.totalorder %s158, %s174
      %p176 = scmp.eq.s32.totalorder %s20, 0
      %p177 = por %p175, %p176
      %s178 = ssub.s32 %s21, %s33
      %p179 = scmp.eq.s32.totalorder %s178, 0
      %s181 = sadd.s32 %s180, 1
      %s182 = scalar_select %p179, %s180, %s181
      %p185 = pneg %p179
      %p186 = scmp.eq.s32.totalorder %s14, 5
      %p187 = por %p185, %p186
      %p188 = scmp.ne.s32.totalorder %s180, %s183
      %p189 = scmp.eq.s32.totalorder %s14, 0
      %p190 = por %p188, %p189
      %p191 = scmp.ne.s32.totalorder %s180, %s183
      %p192 = scmp.eq.s32.totalorder %s19, 5
      %p193 = por %p191, %p192
      %p194 = scmp.ne.s32.totalorder %s183, %s184
      %p195 = scmp.eq.s32.totalorder %s19, 0
      %p196 = por %p194, %p195
      %p197 = scmp.ne.s32.totalorder %s183, %s184
      %p198 = scmp.eq.s32.totalorder %s20, 5
      %p199 = por %p197, %p198
      %p201 = scmp.ne.s32.totalorder %s184, %s200
      %p202 = scmp.eq.s32.totalorder %s20, 0
      %p203 = por %p201, %p202
      %s204 = smul.u32 %s21, 3
      %s205 = sadd.s32 %s204, %s22
      %p206 = scmp.lt.s32.totalorder %s205, 4
      %s207 = scalar_select %p206, %s205, 4
      %s208 = smul.u32 %s33, 3
      %s209 = sadd.s32 %s208, %s29
      %p210 = scmp.lt.s32.totalorder %s209, 4
      %s211 = scalar_select %p210, %s209, 4
      %s212 = ssub.s32 %s207, %s211
      %p213 = scmp.eq.s32.totalorder %s212, 0
      %s215 = sadd.s32 %s214, 1
      %s216 = scalar_select %p213, %s214, %s215
      %p219 = pneg %p213
      %p220 = scmp.eq.s32.totalorder %s14, 5
      %p221 = por %p219, %p220
      %p222 = scmp.ne.s32.totalorder %s214, %s217
      %p223 = scmp.eq.s32.totalorder %s14, 0
      %p224 = por %p222, %p223
      %p225 = scmp.ne.s32.totalorder %s214, %s217
      %p226 = scmp.eq.s32.totalorder %s19, 5
      %p227 = por %p225, %p226
      %p228 = scmp.ne.s32.totalorder %s217, %s218
      %p229 = scmp.eq.s32.totalorder %s19, 0
      %p230 = por %p228, %p229
      %p231 = scmp.ne.s32.totalorder %s217, %s218
      %p232 = scmp.eq.s32.totalorder %s20, 5
      %p233 = por %p231, %p232
      %p235 = scmp.ne.s32.totalorder %s218, %s234
      %p236 = scmp.eq.s32.totalorder %s20, 0
      %p237 = por %p235, %p236
      %p238 = scmp.le.s32.totalorder 1, %s14
      %p239 = scmp.lt.s32.totalorder %s14, 7
      %p240 = pnand %p238, %p239
      %p241 = pneg %p240
      // Predicated region
      $region9: #{pixel_classifier_forward.4} parent=5 // pred_check
        _
      $region10: #{pixel_classifier_forward.4} parent=5 // pred_check_branch
        %243 = sbr.rel (%p240) target = $region12
      $region11: #{pixel_classifier_forward.4} parent=5 // pred_region
        %s244 = ssub.s32 %s14, 1
        // Predicated region
        $region13: #{pixel_classifier_forward.4} parent=11 // pred_check
          %p245 = pneg %p81
        $region14: #{pixel_classifier_forward.4} parent=11 // pred_check_branch
          %247 = sbr.rel (%p245) target = $region16
        $region15: #{pixel_classifier_forward.4} parent=11 // pred_region
          _
        $region16: #{pixel_classifier_forward.4} parent=11 // pred_fallthru
          _
        // Predicated region
        $region17: #{pixel_classifier_forward.4} parent=11 // pred_check
          %p248 = pneg %p102
        $region18: #{pixel_classifier_forward.4} parent=11 // pred_check_branch
          %250 = sbr.rel (%p248) target = $region20
        $region19: #{pixel_classifier_forward.4} parent=11 // pred_region
          _
        $region20: #{pixel_classifier_forward.4} parent=11 // pred_fallthru
          _
        // Predicated region
        $region21: #{pixel_classifier_forward.4} parent=11 // pred_check
          %p251 = pneg %p123
        $region22: #{pixel_classifier_forward.4} parent=11 // pred_check_branch
          %253 = sbr.rel (%p251) target = $region24
        $region23: #{pixel_classifier_forward.4} parent=11 // pred_region
          _
        $region24: #{pixel_classifier_forward.4} parent=11 // pred_fallthru
          _
        // Predicated region
        $region25: #{pixel_classifier_forward.4} parent=11 // pred_check
          %p254 = pneg %p144
        $region26: #{pixel_classifier_forward.4} parent=11 // pred_check_branch
          %256 = sbr.rel (%p254) target = $region28
        $region27: #{pixel_classifier_forward.4} parent=11 // pred_region
          _
        $region28: #{pixel_classifier_forward.4} parent=11 // pred_fallthru
          _
      $region12: #{pixel_classifier_forward.4} parent=5 // pred_fallthru
        _
      %p257 = scmp.lt.s32.totalorder %s14, 6
      // Predicated region
      $region29: #{pixel_classifier_forward.4} parent=5 // pred_check
        %p258 = pneg %p257
      $region30: #{pixel_classifier_forward.4} parent=5 // pred_check_branch
        %260 = sbr.rel (%p258) target = $region32
      $region31: #{pixel_classifier_forward.4} parent=5 // pred_region
        // Predicated region
        $region33: #{pixel_classifier_forward.4} parent=31 // pred_check
          %p261 = pneg %p54
        $region34: #{pixel_classifier_forward.4} parent=31 // pred_check_branch
          %263 = sbr.rel (%p261) target = $region36
        $region35: #{pixel_classifier_forward.4} parent=31 // pred_region
          %s264 = smul.u32 %s21, 3
          %s265 = sadd.s32 %s264, %s22
          %p266 = scmp.lt.s32.totalorder %s265, 4
          %s267 = scalar_select %p266, %s265, 4
          %s268 = smul.u32 64, %s267
          %s269 = ssub.s32 288, %s268
          %p270 = scmp.lt.s32.totalorder %s269, 64
          %s271 = scalar_select %p270, %s269, 64
          %s272 = smul.u32 128, %s271
          %p273 = scmp.lt.s32.totalorder %s268, 287
          %s274 = scalar_select %p273, %s268, 287
          %s275 = smul.addr %s274, 8
          %s276 = scalar_lea.vmem %s0, %s275
          %s277 = smul.u32 %s21, 3
          %s278 = sadd.s32 %s277, %s22
          %p279 = scmp.lt.s32.totalorder %s278, 4
          %s280 = scalar_select %p279, %s278, 4
          %s281 = smul.u32 64, %s280
          %s282 = ssub.s32 288, %s281
          %p283 = scmp.lt.s32.totalorder %s282, 64
          %s284 = scalar_select %p283, %s282, 64
          %s285 = smul.u32 128, %s284
        $region36: #{pixel_classifier_forward.4} parent=31 // pred_fallthru
          _
      $region32: #{pixel_classifier_forward.4} parent=5 // pred_fallthru
        _
      %p286 = scmp.le.s32.totalorder 1, %s14
      %p287 = scmp.lt.s32.totalorder %s14, 7
      %p288 = pnand %p286, %p287
      %p289 = pneg %p288
      // Predicated region
      $region37: #{pixel_classifier_forward.4} parent=5 // pred_check
        _
      $region38: #{pixel_classifier_forward.4} parent=5 // pred_check_branch
        %291 = sbr.rel (%p288) target = $region40
      $region39: #{pixel_classifier_forward.4} parent=5 // pred_region
        %s292 = ssub.s32 %s14, 1
        %s293 = smul.u32 %s23, 3
        %s294 = sadd.s32 %s293, %s24
        %p295 = scmp.lt.s32.totalorder %s294, 4
        %s296 = scalar_select %p295, %s294, 4
        %s297 = smul.u32 64, %s296
        %s298 = ssub.s32 288, %s297
        %p299 = scmp.lt.s32.totalorder %s298, 64
        %s300 = scalar_select %p299, %s298, 64
        %s301 = smul.u32 128, %s300
        %p302 = scmp.lt.s32.totalorder %s297, 287
        %s303 = scalar_select %p302, %s297, 287
        %s304 = smul.addr %s303, 8
        %s305 = scalar_lea.vmem %s0, %s304
        %p306 = pneg %p60
        %p307 = pneg %p57
        %p308 = pneg %p81
        %p309 = pneg %p78
        %p310 = pneg %p102
        %p311 = pneg %p99
        %p312 = pneg %p123
        %p313 = pneg %p120
        %p314 = pneg %p144
        %p315 = pneg %p141
        %p316 = pneg %p170
        %p317 = pneg %p167
        %p318 = scmp.lt.s32.totalorder %s23, 1
        %s319 = scalar_select %p318, %s23, 1
        %s320 = smul.addr %s319, 8
        %s321 = scalar_lea.vmem %s5, %s320
        %p322 = pneg %p196
        %p323 = pneg %p193
        %p324 = scmp.lt.s32.totalorder %s23, 1
        %s325 = scalar_select %p324, %s23, 1
        %s326 = smul.addr %s325, 8
        %s327 = scalar_lea.vmem %s6, %s326
        %p328 = pneg %p230
        %p329 = pneg %p227
        %s330 = sand.u32 %s217, 1
        %s331 = sand.u32 %s217, 1
        %s332 = smul.addr %s331, 512
        %s333 = scalar_lea.vmem [#allocation2], %s332
        %s334 = smul.u32 %s23, 3
        %s335 = sadd.s32 %s334, %s24
        %p336 = scmp.lt.s32.totalorder %s335, 4
        %s337 = scalar_select %p336, %s335, 4
        %s338 = smul.u32 64, %s337
        %s339 = ssub.s32 288, %s338
        %p340 = scmp.lt.s32.totalorder %s339, 64
        %s341 = scalar_select %p340, %s339, 64
        %s342 = smul.u32 128, %s341
        %p343 = scmp.lt.s32.totalorder %s338, 287
        %s344 = scalar_select %p343, %s338, 287
        %s345 = smul.addr %s344, 8
        %s346 = scalar_lea.vmem %s0, %s345
        %s347 = smul.u32 %s23, 3
        %s348 = sadd.s32 %s347, %s24
        %p349 = scmp.lt.s32.totalorder %s348, 4
        %s350 = scalar_select %p349, %s348, 4
        %s351 = smul.u32 64, %s350
        %s352 = ssub.s32 288, %s351
        %p353 = scmp.lt.s32.totalorder %s352, 64
        %s354 = scalar_select %p353, %s352, 64
        %s355 = smul.u32 128, %s354
        %p356 = scmp.lt.s32.totalorder %s23, 1
        %s357 = scalar_select %p356, %s23, 1
        %s358 = smul.addr %s357, 8
        %s359 = scalar_lea.vmem %s5, %s358
        %p360 = scmp.lt.s32.totalorder %s23, 1
        %s361 = scalar_select %p360, %s23, 1
        %s362 = smul.addr %s361, 8
        %s363 = scalar_lea.vmem %s6, %s362
        %s364 = smul.u32 %s23, 3
        %s365 = sadd.s32 %s364, %s24
        %p366 = scmp.lt.s32.totalorder %s365, 4
        %s367 = scalar_select %p366, %s365, 4
        %s368 = smul.u32 64, %s367
        %s369 = ssub.s32 288, %s368
        %p370 = scmp.lt.s32.totalorder %s369, 64
        %s371 = scalar_select %p370, %s369, 64
        %s372 = smul.u32 128, %s371
        %p373 = scmp.eq.s32.totalorder %s24, 0
        // Predicated region
        $region41: #{pixel_classifier_forward.4} parent=39 // pred_check
          %p374 = pneg %p373
        $region42: #{pixel_classifier_forward.4} parent=39 // pred_check_branch
          %376 = sbr.rel (%p374) target = $region44
        $region43: #{pixel_classifier_forward.4} parent=39 // pred_region
          %vm377 = vcmask 261120
          %378 = vst.msk [vmem:[%s359] sm:$0xff] %vm377, 0.0
          %379 = vst.msk [vmem:[%s363] sm:$0xff] %vm377, 0.0
        $region44: #{pixel_classifier_forward.4} parent=39 // pred_fallthru
          _
        %v380 = vld [vmem:[%s346] sm:$0xff]
        %v381 = vld [vmem:[%s346 + $0x8] sm:$0xff]
        %v382 = vld [vmem:[%s346 + $0x10] sm:$0xff]
        %v383 = vld [vmem:[%s346 + $0x18] sm:$0xff]
        %v384 = vld [vmem:[%s346 + $0x20] sm:$0xff]
        %v385 = vld [vmem:[%s346 + $0x28] sm:$0xff]
        %v386 = vld [vmem:[%s346 + $0x30] sm:$0xff]
        %v387 = vld [vmem:[%s346 + $0x38] sm:$0xff]
        %v388 = vld [vmem:[%s346 + $0x40] sm:$0xff]
        %v389 = vld [vmem:[%s346 + $0x48] sm:$0xff]
        %v390 = vld [vmem:[%s346 + $0x50] sm:$0xff]
        %v391 = vld [vmem:[%s346 + $0x58] sm:$0xff]
        %v392 = vld [vmem:[%s346 + $0x60] sm:$0xff]
        %v393 = vld [vmem:[%s346 + $0x68] sm:$0xff]
        %v394 = vld [vmem:[%s346 + $0x70] sm:$0xff]
        %v395 = vld [vmem:[%s346 + $0x78] sm:$0xff]
        %v396 = vld [vmem:[%s346 + $0x80] sm:$0xff]
        %v397 = vld [vmem:[%s346 + $0x88] sm:$0xff]
        %v398 = vld [vmem:[%s346 + $0x90] sm:$0xff]
        %v399 = vld [vmem:[%s346 + $0x98] sm:$0xff]
        %v400 = vld [vmem:[%s346 + $0xa0] sm:$0xff]
        %v401 = vld [vmem:[%s346 + $0xa8] sm:$0xff]
        %v402 = vld [vmem:[%s346 + $0xb0] sm:$0xff]
        %v403 = vld [vmem:[%s346 + $0xb8] sm:$0xff]
        %v404 = vld [vmem:[%s346 + $0xc0] sm:$0xff]
        %v405 = vld [vmem:[%s346 + $0xc8] sm:$0xff]
        %v406 = vld [vmem:[%s346 + $0xd0] sm:$0xff]
        %v407 = vld [vmem:[%s346 + $0xd8] sm:$0xff]
        %v408 = vld [vmem:[%s346 + $0xe0] sm:$0xff]
        %v409 = vld [vmem:[%s346 + $0xe8] sm:$0xff]
        %v410 = vld [vmem:[%s346 + $0xf0] sm:$0xff]
        %v411 = vld [vmem:[%s346 + $0xf8] sm:$0xff]
        %v412 = vld [vmem:[%s346 + $0x100] sm:$0xff]
        %v413 = vld [vmem:[%s346 + $0x108] sm:$0xff]
        %v414 = vld [vmem:[%s346 + $0x110] sm:$0xff]
        %v415 = vld [vmem:[%s346 + $0x118] sm:$0xff]
        %v416 = vld [vmem:[%s346 + $0x120] sm:$0xff]
        %v417 = vld [vmem:[%s346 + $0x128] sm:$0xff]
        %v418 = vld [vmem:[%s346 + $0x130] sm:$0xff]
        %v419 = vld [vmem:[%s346 + $0x138] sm:$0xff]
        %v420 = vld [vmem:[%s346 + $0x140] sm:$0xff]
        %v421 = vld [vmem:[%s346 + $0x148] sm:$0xff]
        %v422 = vld [vmem:[%s346 + $0x150] sm:$0xff]
        %v423 = vld [vmem:[%s346 + $0x158] sm:$0xff]
        %v424 = vld [vmem:[%s346 + $0x160] sm:$0xff]
        %v425 = vld [vmem:[%s346 + $0x168] sm:$0xff]
        %v426 = vld [vmem:[%s346 + $0x170] sm:$0xff]
        %v427 = vld [vmem:[%s346 + $0x178] sm:$0xff]
        %v428 = vld [vmem:[%s346 + $0x180] sm:$0xff]
        %v429 = vld [vmem:[%s346 + $0x188] sm:$0xff]
        %v430 = vld [vmem:[%s346 + $0x190] sm:$0xff]
        %v431 = vld [vmem:[%s346 + $0x198] sm:$0xff]
        %v432 = vld [vmem:[%s346 + $0x1a0] sm:$0xff]
        %v433 = vld [vmem:[%s346 + $0x1a8] sm:$0xff]
        %v434 = vld [vmem:[%s346 + $0x1b0] sm:$0xff]
        %v435 = vld [vmem:[%s346 + $0x1b8] sm:$0xff]
        %v436 = vld [vmem:[%s346 + $0x1c0] sm:$0xff]
        %v437 = vld [vmem:[%s346 + $0x1c8] sm:$0xff]
        %v438 = vld [vmem:[%s346 + $0x1d0] sm:$0xff]
        %v439 = vld [vmem:[%s346 + $0x1d8] sm:$0xff]
        %v440 = vld [vmem:[%s346 + $0x1e0] sm:$0xff]
        %v441 = vld [vmem:[%s346 + $0x1e8] sm:$0xff]
        %v442 = vld [vmem:[%s346 + $0x1f0] sm:$0xff]
        %v443 = vld [vmem:[%s346 + $0x1f8] sm:$0xff]
        %v444 = vld [vmem:[%s1] sm:$0xff]
        %v445 = vld [vmem:[%s1 + $0x8] sm:$0xff]
        %v446 = vld [vmem:[%s1 + $0x10] sm:$0xff]
        %v447 = vld [vmem:[%s1 + $0x18] sm:$0xff]
        %v448 = vld [vmem:[%s2] sm:$0x1]
        %v450 = vlaneseq
        %v451 = vshrl.u32 %v450, 7
        %v452 = vsub.s32 0, %v451
        %v453 = vrot.slane %v448, %v452
        %vm455 = vcmask 261120
        %v457 = vsel %vm455, %v380, 0
        %v460 = vsel %vm455, %v381, 0
        %v463 = vsel %vm455, %v382, 0
        %v466 = vsel %vm455, %v383, 0
        %v469 = vsel %vm455, %v384, 0
        %v472 = vsel %vm455, %v385, 0
        %v475 = vsel %vm455, %v386, 0
        %v478 = vsel %vm455, %v387, 0
        %v481 = vsel %vm455, %v388, 0
        %v484 = vsel %vm455, %v389, 0
        %v487 = vsel %vm455, %v390, 0
        %v490 = vsel %vm455, %v391, 0
        %v493 = vsel %vm455, %v392, 0
        %v496 = vsel %vm455, %v393, 0
        %v499 = vsel %vm455, %v394, 0
        %v502 = vsel %vm455, %v395, 0
        %v505 = vsel %vm455, %v396, 0
        %v508 = vsel %vm455, %v397, 0
        %v511 = vsel %vm455, %v398, 0
        %v514 = vsel %vm455, %v399, 0
        %v517 = vsel %vm455, %v400, 0
        %v520 = vsel %vm455, %v401, 0
        %v523 = vsel %vm455, %v402, 0
        %v526 = vsel %vm455, %v403, 0
        %v529 = vsel %vm455, %v404, 0
        %v532 = vsel %vm455, %v405, 0
        %v535 = vsel %vm455, %v406, 0
        %v538 = vsel %vm455, %v407, 0
        %v541 = vsel %vm455, %v408, 0
        %v544 = vsel %vm455, %v409, 0
        %v547 = vsel %vm455, %v410, 0
        %v550 = vsel %vm455, %v411, 0
        %v553 = vsel %vm455, %v412, 0
        %v556 = vsel %vm455, %v413, 0
        %v559 = vsel %vm455, %v414, 0
        %v562 = vsel %vm455, %v415, 0
        %v565 = vsel %vm455, %v416, 0
        %v568 = vsel %vm455, %v417, 0
        %v571 = vsel %vm455, %v418, 0
        %v574 = vsel %vm455, %v419, 0
        %v577 = vsel %vm455, %v420, 0
        %v580 = vsel %vm455, %v421, 0
        %v583 = vsel %vm455, %v422, 0
        %v586 = vsel %vm455, %v423, 0
        %v589 = vsel %vm455, %v424, 0
        %v592 = vsel %vm455, %v425, 0
        %v595 = vsel %vm455, %v426, 0
        %v598 = vsel %vm455, %v427, 0
        %v601 = vsel %vm455, %v428, 0
        %v604 = vsel %vm455, %v429, 0
        %v607 = vsel %vm455, %v430, 0
        %v610 = vsel %vm455, %v431, 0
        %v613 = vsel %vm455, %v432, 0
        %v616 = vsel %vm455, %v433, 0
        %v619 = vsel %vm455, %v434, 0
        %v622 = vsel %vm455, %v435, 0
        %v625 = vsel %vm455, %v436, 0
        %v628 = vsel %vm455, %v437, 0
        %v631 = vsel %vm455, %v438, 0
        %v634 = vsel %vm455, %v439, 0
        %v637 = vsel %vm455, %v440, 0
        %v640 = vsel %vm455, %v441, 0
        %v643 = vsel %vm455, %v442, 0
        %v646 = vsel %vm455, %v443, 0
        %648 = vmatprep.subr.mxu0 0.0
        %649 = vmatpush1.msra.mxu0 %v444
        %650 = vmatprep.subr.mxu0 0.0
        %651 = vmatpush1.msra.mxu0 %v445
        %652 = vmatprep.subr.mxu0 0.0
        %653 = vmatpush1.msra.mxu0 %v446
        %654 = vmatprep.subr.mxu0 0.0
        %655 = vmatpush1.msra.mxu0 %v447
        %656 = vmatprep.subr.mxu0 0.0
        %657 = vmatpush1.msra.mxu0 0.0
        %658 = vmatprep.subr.mxu0 0.0
        %659 = vmatpush1.msra.mxu0 0.0
        %660 = vmatprep.subr.mxu0 0.0
        %661 = vmatpush1.msra.mxu0 0.0
        %662 = vmatprep.subr.mxu0 0.0
        %663 = vmatpush1.msra.mxu0 0.0
        %664 = vmatprep.subr.mxu0 0.0
        %665 = vmatpush1.msra.mxu0 0.0
        %666 = vmatprep.subr.mxu0 0.0
        %667 = vmatpush1.msra.mxu0 0.0
        %668 = vmatprep.subr.mxu0 0.0
        %669 = vmatpush1.msra.mxu0 0.0
        %670 = vmatprep.subr.mxu0 0.0
        %671 = vmatpush1.msra.mxu0 0.0
        %672 = vmatprep.subr.mxu0 0.0
        %673 = vmatpush1.msra.mxu0 0.0
        %674 = vmatprep.subr.mxu0 0.0
        %675 = vmatpush1.msra.mxu0 0.0
        %676 = vmatprep.subr.mxu0 0.0
        %677 = vmatpush1.msra.mxu0 0.0
        %678 = vmatprep.subr.mxu0 0.0
        %679 = vmatpush1.msra.mxu0 0.0
        %680 = vmatprep.subr.mxu0 0.0
        %681 = vmatpush1.msra.mxu0 0.0
        %682 = vmatprep.subr.mxu0 0.0
        %683 = vmatpush1.msra.mxu0 0.0
        %684 = vmatprep.subr.mxu0 0.0
        %685 = vmatpush1.msra.mxu0 0.0
        %686 = vmatprep.subr.mxu0 0.0
        %687 = vmatpush1.msra.mxu0 0.0
        %688 = vmatprep.subr.mxu0 0.0
        %689 = vmatpush1.msra.mxu0 0.0
        %690 = vmatprep.subr.mxu0 0.0
        %691 = vmatpush1.msra.mxu0 0.0
        %692 = vmatprep.subr.mxu0 0.0
        %693 = vmatpush1.msra.mxu0 0.0
        %694 = vmatprep.subr.mxu0 0.0
        %695 = vmatpush1.msra.mxu0 0.0
        %696 = vmatprep.subr.mxu0 0.0
        %697 = vmatpush1.msra.mxu0 0.0
        %698 = vmatprep.subr.mxu0 0.0
        %699 = vmatpush1.msra.mxu0 0.0
        %700 = vmatprep.subr.mxu0 0.0
        %701 = vmatpush1.msra.mxu0 0.0
        %702 = vmatprep.subr.mxu0 0.0
        %703 = vmatpush1.msra.mxu0 0.0
        %704 = vmatprep.subr.mxu0 0.0
        %705 = vmatpush1.msra.mxu0 0.0
        %706 = vmatprep.subr.mxu0 0.0
        %707 = vmatpush1.msra.mxu0 0.0
        %708 = vmatprep.subr.mxu0 0.0
        %709 = vmatpush1.msra.mxu0 0.0
        %710 = vmatprep.subr.mxu0 0.0
        %711 = vmatpush1.msra.mxu0 0.0
        %712 = vmatprep.mubr.f32.mxu0 0.0
        %713 = vmatmul.mubr.f32.gmra.mrb[0].mxu0 %v457
        %v714 = vpop.f32.mrb[0].mxu0
        %v715 = vadd.f32 %v453, %v714
        %v716 = vpop.f32.mrb[0].mxu0
        %717 = vmatprep.mubr.f32.mxu0 0.0
        %718 = vmatmul.mubr.f32.gmra.mrb[0].mxu0 %v460
        %v719 = vpop.f32.mrb[0].mxu0
        %v720 = vadd.f32 %v453, %v719
        %v721 = vpop.f32.mrb[0].mxu0
        %722 = vmatprep.mubr.f32.mxu0 0.0
        %723 = vmatmul.mubr.f32.gmra.mrb[0].mxu0 %v463
        %v724 = vpop.f32.mrb[0].mxu0
        %v725 = vadd.f32 %v453, %v724
        %v726 = vpop.f32.mrb[0].mxu0
        %727 = vmatprep.mubr.f32.mxu0 0.0
        %728 = vmatmul.mubr.f32.gmra.mrb[0].mxu0 %v466
        %v729 = vpop.f32.mrb[0].mxu0
        %v730 = vadd.f32 %v453, %v729
        %v731 = vpop.f32.mrb[0].mxu0
        %732 = vmatprep.mubr.f32.mxu0 0.0
        %733 = vmatmul.mubr.f32.gmra.mrb[0].mxu0 %v469
        %v734 = vpop.f32.mrb[0].mxu0
        %v735 = vadd.f32 %v453, %v734
        %v736 = vpop.f32.mrb[0].mxu0
        %737 = vmatprep.mubr.f32.mxu0 0.0
        %738 = vmatmul.mubr.f32.gmra.mrb[0].mxu0 %v472
        %v739 = vpop.f32.mrb[0].mxu0
        %v740 = vadd.f32 %v453, %v739
        %v741 = vpop.f32.mrb[0].mxu0
        %742 = vmatprep.mubr.f32.mxu0 0.0
        %743 = vmatmul.mubr.f32.gmra.mrb[0].mxu0 %v475
        %v744 = vpop.f32.mrb[0].mxu0
        %v745 = vadd.f32 %v453, %v744
        %v746 = vpop.f32.mrb[0].mxu0
        %747 = vmatprep.mubr.f32.mxu0 0.0
        %748 = vmatmul.mubr.f32.gmra.mrb[0].mxu0 %v478
        %v749 = vpop.f32.mrb[0].mxu0
        %v750 = vadd.f32 %v453, %v749
        %v751 = vpop.f32.mrb[0].mxu0
        %752 = vmatprep.mubr.f32.mxu0 0.0
        %753 = vmatmul.mubr.f32.gmra.mrb[0].mxu0 %v481
        %v754 = vpop.f32.mrb[0].mxu0
        %v755 = vadd.f32 %v453, %v754
        %v756 = vpop.f32.mrb[0].mxu0
        %757 = vmatprep.mubr.f32.mxu0 0.0
        %758 = vmatmul.mubr.f32.gmra.mrb[0].mxu0 %v484
        %v759 = vpop.f32.mrb[0].mxu0
        %v760 = vadd.f32 %v453, %v759
        %v761 = vpop.f32.mrb[0].mxu0
        %762 = vmatprep.mubr.f32.mxu0 0.0
        %763 = vmatmul.mubr.f32.gmra.mrb[0].mxu0 %v487
        %v764 = vpop.f32.mrb[0].mxu0
        %v765 = vadd.f32 %v453, %v764
        %v766 = vpop.f32.mrb[0].mxu0
        %767 = vmatprep.mubr.f32.mxu0 0.0
        %768 = vmatmul.mubr.f32.gmra.mrb[0].mxu0 %v490
        %v769 = vpop.f32.mrb[0].mxu0
        %v770 = vadd.f32 %v453, %v769
        %v771 = vpop.f32.mrb[0].mxu0
        %772 = vmatprep.mubr.f32.mxu0 0.0
        %773 = vmatmul.mubr.f32.gmra.mrb[0].mxu0 %v493
        %v774 = vpop.f32.mrb[0].mxu0
        %v775 = vadd.f32 %v453, %v774
        %v776 = vpop.f32.mrb[0].mxu0
        %777 = vmatprep.mubr.f32.mxu0 0.0
        %778 = vmatmul.mubr.f32.gmra.mrb[0].mxu0 %v496
        %v779 = vpop.f32.mrb[0].mxu0
        %v780 = vadd.f32 %v453, %v779
        %v781 = vpop.f32.mrb[0].mxu0
        %782 = vmatprep.mubr.f32.mxu0 0.0
        %783 = vmatmul.mubr.f32.gmra.mrb[0].mxu0 %v499
        %v784 = vpop.f32.mrb[0].mxu0
        %v785 = vadd.f32 %v453, %v784
        %v786 = vpop.f32.mrb[0].mxu0
        %787 = vmatprep.mubr.f32.mxu0 0.0
        %788 = vmatmul.mubr.f32.gmra.mrb[0].mxu0 %v502
        %v789 = vpop.f32.mrb[0].mxu0
        %v790 = vadd.f32 %v453, %v789
        %v791 = vpop.f32.mrb[0].mxu0
        %792 = vmatprep.mubr.f32.mxu0 0.0
        %793 = vmatmul.mubr.f32.gmra.mrb[0].mxu0 %v505
        %v794 = vpop.f32.mrb[0].mxu0
        %v795 = vadd.f32 %v453, %v794
        %v796 = vpop.f32.mrb[0].mxu0
        %797 = vmatprep.mubr.f32.mxu0 0.0
        %798 = vmatmul.mubr.f32.gmra.mrb[0].mxu0 %v508
        %v799 = vpop.f32.mrb[0].mxu0
        %v800 = vadd.f32 %v453, %v799
        %v801 = vpop.f32.mrb[0].mxu0
        %802 = vmatprep.mubr.f32.mxu0 0.0
        %803 = vmatmul.mubr.f32.gmra.mrb[0].mxu0 %v511
        %v804 = vpop.f32.mrb[0].mxu0
        %v805 = vadd.f32 %v453, %v804
        %v806 = vpop.f32.mrb[0].mxu0
        %807 = vmatprep.mubr.f32.mxu0 0.0
        %808 = vmatmul.mubr.f32.gmra.mrb[0].mxu0 %v514
        %v809 = vpop.f32.mrb[0].mxu0
        %v810 = vadd.f32 %v453, %v809
        %v811 = vpop.f32.mrb[0].mxu0
        %812 = vmatprep.mubr.f32.mxu0 0.0
        %813 = vmatmul.mubr.f32.gmra.mrb[0].mxu0 %v517
        %v814 = vpop.f32.mrb[0].mxu0
        %v815 = vadd.f32 %v453, %v814
        %v816 = vpop.f32.mrb[0].mxu0
        %817 = vmatprep.mubr.f32.mxu0 0.0
        %818 = vmatmul.mubr.f32.gmra.mrb[0].mxu0 %v520
        %v819 = vpop.f32.mrb[0].mxu0
        %v820 = vadd.f32 %v453, %v819
        %v821 = vpop.f32.mrb[0].mxu0
        %822 = vmatprep.mubr.f32.mxu0 0.0
        %823 = vmatmul.mubr.f32.gmra.mrb[0].mxu0 %v523
        %v824 = vpop.f32.mrb[0].mxu0
        %v825 = vadd.f32 %v453, %v824
        %v826 = vpop.f32.mrb[0].mxu0
        %827 = vmatprep.mubr.f32.mxu0 0.0
        %828 = vmatmul.mubr.f32.gmra.mrb[0].mxu0 %v526
        %v829 = vpop.f32.mrb[0].mxu0
        %v830 = vadd.f32 %v453, %v829
        %v831 = vpop.f32.mrb[0].mxu0
        %832 = vmatprep.mubr.f32.mxu0 0.0
        %833 = vmatmul.mubr.f32.gmra.mrb[0].mxu0 %v529
        %v834 = vpop.f32.mrb[0].mxu0
        %v835 = vadd.f32 %v453, %v834
        %v836 = vpop.f32.mrb[0].mxu0
        %837 = vmatprep.mubr.f32.mxu0 0.0
        %838 = vmatmul.mubr.f32.gmra.mrb[0].mxu0 %v532
        %v839 = vpop.f32.mrb[0].mxu0
        %v840 = vadd.f32 %v453, %v839
        %v841 = vpop.f32.mrb[0].mxu0
        %842 = vmatprep.mubr.f32.mxu0 0.0
        %843 = vmatmul.mubr.f32.gmra.mrb[0].mxu0 %v535
        %v844 = vpop.f32.mrb[0].mxu0
        %v845 = vadd.f32 %v453, %v844
        %v846 = vpop.f32.mrb[0].mxu0
        %847 = vmatprep.mubr.f32.mxu0 0.0
        %848 = vmatmul.mubr.f32.gmra.mrb[0].mxu0 %v538
        %v849 = vpop.f32.mrb[0].mxu0
        %v850 = vadd.f32 %v453, %v849
        %v851 = vpop.f32.mrb[0].mxu0
        %852 = vmatprep.mubr.f32.mxu0 0.0
        %853 = vmatmul.mubr.f32.gmra.mrb[0].mxu0 %v541
        %v854 = vpop.f32.mrb[0].mxu0
        %v855 = vadd.f32 %v453, %v854
        %v856 = vpop.f32.mrb[0].mxu0
        %857 = vmatprep.mubr.f32.mxu0 0.0
        %858 = vmatmul.mubr.f32.gmra.mrb[0].mxu0 %v544
        %v859 = vpop.f32.mrb[0].mxu0
        %v860 = vadd.f32 %v453, %v859
        %v861 = vpop.f32.mrb[0].mxu0
        %862 = vmatprep.mubr.f32.mxu0 0.0
        %863 = vmatmul.mubr.f32.gmra.mrb[0].mxu0 %v547
        %v864 = vpop.f32.mrb[0].mxu0
        %v865 = vadd.f32 %v453, %v864
        %v866 = vpop.f32.mrb[0].mxu0
        %867 = vmatprep.mubr.f32.mxu0 0.0
        %868 = vmatmul.mubr.f32.gmra.mrb[0].mxu0 %v550
        %v869 = vpop.f32.mrb[0].mxu0
        %v870 = vadd.f32 %v453, %v869
        %v871 = vpop.f32.mrb[0].mxu0
        %872 = vmatprep.mubr.f32.mxu0 0.0
        %873 = vmatmul.mubr.f32.gmra.mrb[0].mxu0 %v553
        %v874 = vpop.f32.mrb[0].mxu0
        %v875 = vadd.f32 %v453, %v874
        %v876 = vpop.f32.mrb[0].mxu0
        %877 = vmatprep.mubr.f32.mxu0 0.0
        %878 = vmatmul.mubr.f32.gmra.mrb[0].mxu0 %v556
        %v879 = vpop.f32.mrb[0].mxu0
        %v880 = vadd.f32 %v453, %v879
        %v881 = vpop.f32.mrb[0].mxu0
        %882 = vmatprep.mubr.f32.mxu0 0.0
        %883 = vmatmul.mubr.f32.gmra.mrb[0].mxu0 %v559
        %v884 = vpop.f32.mrb[0].mxu0
        %v885 = vadd.f32 %v453, %v884
        %v886 = vpop.f32.mrb[0].mxu0
        %887 = vmatprep.mubr.f32.mxu0 0.0
        %888 = vmatmul.mubr.f32.gmra.mrb[0].mxu0 %v562
        %v889 = vpop.f32.mrb[0].mxu0
        %v890 = vadd.f32 %v453, %v889
        %v891 = vpop.f32.mrb[0].mxu0
        %892 = vmatprep.mubr.f32.mxu0 0.0
        %893 = vmatmul.mubr.f32.gmra.mrb[0].mxu0 %v565
        %v894 = vpop.f32.mrb[0].mxu0
        %v895 = vadd.f32 %v453, %v894
        %v896 = vpop.f32.mrb[0].mxu0
        %897 = vmatprep.mubr.f32.mxu0 0.0
        %898 = vmatmul.mubr.f32.gmra.mrb[0].mxu0 %v568
        %v899 = vpop.f32.mrb[0].mxu0
        %v900 = vadd.f32 %v453, %v899
        %v901 = vpop.f32.mrb[0].mxu0
        %902 = vmatprep.mubr.f32.mxu0 0.0
        %903 = vmatmul.mubr.f32.gmra.mrb[0].mxu0 %v571
        %v904 = vpop.f32.mrb[0].mxu0
        %v905 = vadd.f32 %v453, %v904
        %v906 = vpop.f32.mrb[0].mxu0
        %907 = vmatprep.mubr.f32.mxu0 0.0
        %908 = vmatmul.mubr.f32.gmra.mrb[0].mxu0 %v574
        %v909 = vpop.f32.mrb[0].mxu0
        %v910 = vadd.f32 %v453, %v909
        %v911 = vpop.f32.mrb[0].mxu0
        %912 = vmatprep.mubr.f32.mxu0 0.0
        %913 = vmatmul.mubr.f32.gmra.mrb[0].mxu0 %v577
        %v914 = vpop.f32.mrb[0].mxu0
        %v915 = vadd.f32 %v453, %v914
        %v916 = vpop.f32.mrb[0].mxu0
        %917 = vmatprep.mubr.f32.mxu0 0.0
        %918 = vmatmul.mubr.f32.gmra.mrb[0].mxu0 %v580
        %v919 = vpop.f32.mrb[0].mxu0
        %v920 = vadd.f32 %v453, %v919
        %v921 = vpop.f32.mrb[0].mxu0
        %922 = vmatprep.mubr.f32.mxu0 0.0
        %923 = vmatmul.mubr.f32.gmra.mrb[0].mxu0 %v583
        %v924 = vpop.f32.mrb[0].mxu0
        %v925 = vadd.f32 %v453, %v924
        %v926 = vpop.f32.mrb[0].mxu0
        %927 = vmatprep.mubr.f32.mxu0 0.0
        %928 = vmatmul.mubr.f32.gmra.mrb[0].mxu0 %v586
        %v929 = vpop.f32.mrb[0].mxu0
        %v930 = vadd.f32 %v453, %v929
        %v931 = vpop.f32.mrb[0].mxu0
        %932 = vmatprep.mubr.f32.mxu0 0.0
        %933 = vmatmul.mubr.f32.gmra.mrb[0].mxu0 %v589
        %v934 = vpop.f32.mrb[0].mxu0
        %v935 = vadd.f32 %v453, %v934
        %v936 = vpop.f32.mrb[0].mxu0
        %937 = vmatprep.mubr.f32.mxu0 0.0
        %938 = vmatmul.mubr.f32.gmra.mrb[0].mxu0 %v592
        %v939 = vpop.f32.mrb[0].mxu0
        %v940 = vadd.f32 %v453, %v939
        %v941 = vpop.f32.mrb[0].mxu0
        %942 = vmatprep.mubr.f32.mxu0 0.0
        %943 = vmatmul.mubr.f32.gmra.mrb[0].mxu0 %v595
        %v944 = vpop.f32.mrb[0].mxu0
        %v945 = vadd.f32 %v453, %v944
        %v946 = vpop.f32.mrb[0].mxu0
        %947 = vmatprep.mubr.f32.mxu0 0.0
        %948 = vmatmul.mubr.f32.gmra.mrb[0].mxu0 %v598
        %v949 = vpop.f32.mrb[0].mxu0
        %v950 = vadd.f32 %v453, %v949
        %v951 = vpop.f32.mrb[0].mxu0
        %952 = vmatprep.mubr.f32.mxu0 0.0
        %953 = vmatmul.mubr.f32.gmra.mrb[0].mxu0 %v601
        %v954 = vpop.f32.mrb[0].mxu0
        %v955 = vadd.f32 %v453, %v954
        %v956 = vpop.f32.mrb[0].mxu0
        %957 = vmatprep.mubr.f32.mxu0 0.0
        %958 = vmatmul.mubr.f32.gmra.mrb[0].mxu0 %v604
        %v959 = vpop.f32.mrb[0].mxu0
        %v960 = vadd.f32 %v453, %v959
        %v961 = vpop.f32.mrb[0].mxu0
        %962 = vmatprep.mubr.f32.mxu0 0.0
        %963 = vmatmul.mubr.f32.gmra.mrb[0].mxu0 %v607
        %v964 = vpop.f32.mrb[0].mxu0
        %v965 = vadd.f32 %v453, %v964
        %v966 = vpop.f32.mrb[0].mxu0
        %967 = vmatprep.mubr.f32.mxu0 0.0
        %968 = vmatmul.mubr.f32.gmra.mrb[0].mxu0 %v610
        %v969 = vpop.f32.mrb[0].mxu0
        %v970 = vadd.f32 %v453, %v969
        %v971 = vpop.f32.mrb[0].mxu0
        %972 = vmatprep.mubr.f32.mxu0 0.0
        %973 = vmatmul.mubr.f32.gmra.mrb[0].mxu0 %v613
        %v974 = vpop.f32.mrb[0].mxu0
        %v975 = vadd.f32 %v453, %v974
        %v976 = vpop.f32.mrb[0].mxu0
        %977 = vmatprep.mubr.f32.mxu0 0.0
        %978 = vmatmul.mubr.f32.gmra.mrb[0].mxu0 %v616
        %v979 = vpop.f32.mrb[0].mxu0
        %v980 = vadd.f32 %v453, %v979
        %v981 = vpop.f32.mrb[0].mxu0
        %982 = vmatprep.mubr.f32.mxu0 0.0
        %983 = vmatmul.mubr.f32.gmra.mrb[0].mxu0 %v619
        %v984 = vpop.f32.mrb[0].mxu0
        %v985 = vadd.f32 %v453, %v984
        %v986 = vpop.f32.mrb[0].mxu0
        %987 = vmatprep.mubr.f32.mxu0 0.0
        %988 = vmatmul.mubr.f32.gmra.mrb[0].mxu0 %v622
        %v989 = vpop.f32.mrb[0].mxu0
        %v990 = vadd.f32 %v453, %v989
        %v991 = vpop.f32.mrb[0].mxu0
        %992 = vmatprep.mubr.f32.mxu0 0.0
        %993 = vmatmul.mubr.f32.gmra.mrb[0].mxu0 %v625
        %v994 = vpop.f32.mrb[0].mxu0
        %v995 = vadd.f32 %v453, %v994
        %v996 = vpop.f32.mrb[0].mxu0
        %997 = vmatprep.mubr.f32.mxu0 0.0
        %998 = vmatmul.mubr.f32.gmra.mrb[0].mxu0 %v628
        %v999 = vpop.f32.mrb[0].mxu0
        %v1000 = vadd.f32 %v453, %v999
        %v1001 = vpop.f32.mrb[0].mxu0
        %1002 = vmatprep.mubr.f32.mxu0 0.0
        %1003 = vmatmul.mubr.f32.gmra.mrb[0].mxu0 %v631
        %v1004 = vpop.f32.mrb[0].mxu0
        %v1005 = vadd.f32 %v453, %v1004
        %v1006 = vpop.f32.mrb[0].mxu0
        %1007 = vmatprep.mubr.f32.mxu0 0.0
        %1008 = vmatmul.mubr.f32.gmra.mrb[0].mxu0 %v634
        %v1009 = vpop.f32.mrb[0].mxu0
        %v1010 = vadd.f32 %v453, %v1009
        %v1011 = vpop.f32.mrb[0].mxu0
        %1012 = vmatprep.mubr.f32.mxu0 0.0
        %1013 = vmatmul.mubr.f32.gmra.mrb[0].mxu0 %v637
        %v1014 = vpop.f32.mrb[0].mxu0
        %v1015 = vadd.f32 %v453, %v1014
        %v1016 = vpop.f32.mrb[0].mxu0
        %1017 = vmatprep.mubr.f32.mxu0 0.0
        %1018 = vmatmul.mubr.f32.gmra.mrb[0].mxu0 %v640
        %v1019 = vpop.f32.mrb[0].mxu0
        %v1020 = vadd.f32 %v453, %v1019
        %v1021 = vpop.f32.mrb[0].mxu0
        %1022 = vmatprep.mubr.f32.mxu0 0.0
        %1023 = vmatmul.mubr.f32.gmra.mrb[0].mxu0 %v643
        %v1024 = vpop.f32.mrb[0].mxu0
        %v1025 = vadd.f32 %v453, %v1024
        %v1026 = vpop.f32.mrb[0].mxu0
        %1027 = vmatprep.mubr.f32.mxu0 0.0
        %1028 = vmatmul.mubr.f32.gmra.mrb[0].mxu0 %v646
        %v1029 = vpop.f32.mrb[0].mxu0
        %v1030 = vadd.f32 %v453, %v1029
        %v1031 = vpop.f32.mrb[0].mxu0
        %1032 = vdwg.mxu0
        %v1033 = vmax.f32 %v715, 0.0
        %v1034 = vmax.f32 %v720, 0.0
        %v1035 = vmax.f32 %v725, 0.0
        %v1036 = vmax.f32 %v730, 0.0
        %v1037 = vmax.f32 %v735, 0.0
        %v1038 = vmax.f32 %v740, 0.0
        %v1039 = vmax.f32 %v745, 0.0
        %v1040 = vmax.f32 %v750, 0.0
        %v1041 = vmax.f32 %v755, 0.0
        %v1042 = vmax.f32 %v760, 0.0
        %v1043 = vmax.f32 %v765, 0.0
        %v1044 = vmax.f32 %v770, 0.0
        %v1045 = vmax.f32 %v775, 0.0
        %v1046 = vmax.f32 %v780, 0.0
        %v1047 = vmax.f32 %v785, 0.0
        %v1048 = vmax.f32 %v790, 0.0
        %v1049 = vmax.f32 %v795, 0.0
        %v1050 = vmax.f32 %v800, 0.0
        %v1051 = vmax.f32 %v805, 0.0
        %v1052 = vmax.f32 %v810, 0.0
        %v1053 = vmax.f32 %v815, 0.0
        %v1054 = vmax.f32 %v820, 0.0
        %v1055 = vmax.f32 %v825, 0.0
        %v1056 = vmax.f32 %v830, 0.0
        %v1057 = vmax.f32 %v835, 0.0
        %v1058 = vmax.f32 %v840, 0.0
        %v1059 = vmax.f32 %v845, 0.0
        %v1060 = vmax.f32 %v850, 0.0
        %v1061 = vmax.f32 %v855, 0.0
        %v1062 = vmax.f32 %v860, 0.0
        %v1063 = vmax.f32 %v865, 0.0
        %v1064 = vmax.f32 %v870, 0.0
        %v1065 = vmax.f32 %v875, 0.0
        %v1066 = vmax.f32 %v880, 0.0
        %v1067 = vmax.f32 %v885, 0.0
        %v1068 = vmax.f32 %v890, 0.0
        %v1069 = vmax.f32 %v895, 0.0
        %v1070 = vmax.f32 %v900, 0.0
        %v1071 = vmax.f32 %v905, 0.0
        %v1072 = vmax.f32 %v910, 0.0
        %v1073 = vmax.f32 %v915, 0.0
        %v1074 = vmax.f32 %v920, 0.0
        %v1075 = vmax.f32 %v925, 0.0
        %v1076 = vmax.f32 %v930, 0.0
        %v1077 = vmax.f32 %v935, 0.0
        %v1078 = vmax.f32 %v940, 0.0
        %v1079 = vmax.f32 %v945, 0.0
        %v1080 = vmax.f32 %v950, 0.0
        %v1081 = vmax.f32 %v955, 0.0
        %v1082 = vmax.f32 %v960, 0.0
        %v1083 = vmax.f32 %v965, 0.0
        %v1084 = vmax.f32 %v970, 0.0
        %v1085 = vmax.f32 %v975, 0.0
        %v1086 = vmax.f32 %v980, 0.0
        %v1087 = vmax.f32 %v985, 0.0
        %v1088 = vmax.f32 %v990, 0.0
        %v1089 = vmax.f32 %v995, 0.0
        %v1090 = vmax.f32 %v1000, 0.0
        %v1091 = vmax.f32 %v1005, 0.0
        %v1092 = vmax.f32 %v1010, 0.0
        %v1093 = vmax.f32 %v1015, 0.0
        %v1094 = vmax.f32 %v1020, 0.0
        %v1095 = vmax.f32 %v1025, 0.0
        %v1096 = vmax.f32 %v1030, 0.0
        %v1097 = vld [vmem:[%s3] sm:$0xff]
        %v1098 = vld [vmem:[%s3 + $0x8] sm:$0xff]
        %v1099 = vld [vmem:[%s3 + $0x10] sm:$0xff]
        %v1100 = vld [vmem:[%s3 + $0x18] sm:$0xff]
        %v1101 = vld [vmem:[%s3 + $0x20] sm:$0xff]
        %v1102 = vld [vmem:[%s3 + $0x28] sm:$0xff]
        %v1103 = vld [vmem:[%s3 + $0x30] sm:$0xff]
        %v1104 = vld [vmem:[%s3 + $0x38] sm:$0xff]
        %v1105 = vld [vmem:[%s3 + $0x40] sm:$0xff]
        %v1106 = vld [vmem:[%s3 + $0x48] sm:$0xff]
        %v1107 = vld [vmem:[%s3 + $0x50] sm:$0xff]
        %v1108 = vld [vmem:[%s3 + $0x58] sm:$0xff]
        %v1109 = vld [vmem:[%s3 + $0x60] sm:$0xff]
        %v1110 = vld [vmem:[%s3 + $0x68] sm:$0xff]
        %v1111 = vld [vmem:[%s3 + $0x70] sm:$0xff]
        %v1112 = vld [vmem:[%s3 + $0x78] sm:$0xff]
        %v1113 = vld [vmem:[%s4] sm:$0x1]
        %v1115 = vlaneseq
        %v1116 = vshrl.u32 %v1115, 7
        %v1117 = vsub.s32 0, %v1116
        %v1118 = vrot.slane %v1113, %v1117
        %1120 = vmatprep.subr.mxu0 0.0
        %1121 = vmatpush1.msra.mxu0 %v1097
        %1122 = vmatprep.subr.mxu0 0.0
        %1123 = vmatpush1.msra.mxu0 %v1098
        %1124 = vmatprep.subr.mxu0 0.0
        %1125 = vmatpush1.msra.mxu0 %v1099
        %1126 = vmatprep.subr.mxu0 0.0
        %1127 = vmatpush1.msra.mxu0 %v1100
        %1128 = vmatprep.subr.mxu0 0.0
        %1129 = vmatpush1.msra.mxu0 %v1101
        %1130 = vmatprep.subr.mxu0 0.0
        %1131 = vmatpush1.msra.mxu0 %v1102
        %1132 = vmatprep.subr.mxu0 0.0
        %1133 = vmatpush1.msra.mxu0 %v1103
        %1134 = vmatprep.subr.mxu0 0.0
        %1135 = vmatpush1.msra.mxu0 %v1104
        %1136 = vmatprep.subr.mxu0 0.0
        %1137 = vmatpush1.msra.mxu0 %v1105
        %1138 = vmatprep.subr.mxu0 0.0
        %1139 = vmatpush1.msra.mxu0 %v1106
        %1140 = vmatprep.subr.mxu0 0.0
        %1141 = vmatpush1.msra.mxu0 %v1107
        %1142 = vmatprep.subr.mxu0 0.0
        %1143 = vmatpush1.msra.mxu0 %v1108
        %1144 = vmatprep.subr.mxu0 0.0
        %1145 = vmatpush1.msra.mxu0 %v1109
        %1146 = vmatprep.subr.mxu0 0.0
        %1147 = vmatpush1.msra.mxu0 %v1110
        %1148 = vmatprep.subr.mxu0 0.0
        %1149 = vmatpush1.msra.mxu0 %v1111
        %1150 = vmatprep.subr.mxu0 0.0
        %1151 = vmatpush1.msra.mxu0 %v1112
        %1152 = vmatprep.subr.mxu0 0.0
        %1153 = vmatpush1.msra.mxu0 0.0
        %1154 = vmatprep.subr.mxu0 0.0
        %1155 = vmatpush1.msra.mxu0 0.0
        %1156 = vmatprep.subr.mxu0 0.0
        %1157 = vmatpush1.msra.mxu0 0.0
        %1158 = vmatprep.subr.mxu0 0.0
        %1159 = vmatpush1.msra.mxu0 0.0
        %1160 = vmatprep.subr.mxu0 0.0
        %1161 = vmatpush1.msra.mxu0 0.0
        %1162 = vmatprep.subr.mxu0 0.0
        %1163 = vmatpush1.msra.mxu0 0.0
        %1164 = vmatprep.subr.mxu0 0.0
        %1165 = vmatpush1.msra.mxu0 0.0
        %1166 = vmatprep.subr.mxu0 0.0
        %1167 = vmatpush1.msra.mxu0 0.0
        %1168 = vmatprep.subr.mxu0 0.0
        %1169 = vmatpush1.msra.mxu0 0.0
        %1170 = vmatprep.subr.mxu0 0.0
        %1171 = vmatpush1.msra.mxu0 0.0
        %1172 = vmatprep.subr.mxu0 0.0
        %1173 = vmatpush1.msra.mxu0 0.0
        %1174 = vmatprep.subr.mxu0 0.0
        %1175 = vmatpush1.msra.mxu0 0.0
        %1176 = vmatprep.subr.mxu0 0.0
        %1177 = vmatpush1.msra.mxu0 0.0
        %1178 = vmatprep.subr.mxu0 0.0
        %1179 = vmatpush1.msra.mxu0 0.0
        %1180 = vmatprep.subr.mxu0 0.0
        %1181 = vmatpush1.msra.mxu0 0.0
        %1182 = vmatprep.subr.mxu0 0.0
        %1183 = vmatpush1.msra.mxu0 0.0
        %1184 = vmatprep.mubr.f32.mxu0 0.0
        %1185 = vmatmul.mubr.f32.gmra.mrb[0].mxu0 %v1033
        %v1186 = vpop.f32.mrb[0].mxu0
        %v1187 = vadd.f32 %v1118, %v1186
        %v1188 = vpop.f32.mrb[0].mxu0
        %1189 = vmatprep.mubr.f32.mxu0 0.0
        %1190 = vmatmul.mubr.f32.gmra.mrb[0].mxu0 %v1034
        %v1191 = vpop.f32.mrb[0].mxu0
        %v1192 = vadd.f32 %v1118, %v1191
        %v1193 = vpop.f32.mrb[0].mxu0
        %1194 = vmatprep.mubr.f32.mxu0 0.0
        %1195 = vmatmul.mubr.f32.gmra.mrb[0].mxu0 %v1035
        %v1196 = vpop.f32.mrb[0].mxu0
        %v1197 = vadd.f32 %v1118, %v1196
        %v1198 = vpop.f32.mrb[0].mxu0
        %1199 = vmatprep.mubr.f32.mxu0 0.0
        %1200 = vmatmul.mubr.f32.gmra.mrb[0].mxu0 %v1036
        %v1201 = vpop.f32.mrb[0].mxu0
        %v1202 = vadd.f32 %v1118, %v1201
        %v1203 = vpop.f32.mrb[0].mxu0
        %1204 = vmatprep.mubr.f32.mxu0 0.0
        %1205 = vmatmul.mubr.f32.gmra.mrb[0].mxu0 %v1037
        %v1206 = vpop.f32.mrb[0].mxu0
        %v1207 = vadd.f32 %v1118, %v1206
        %v1208 = vpop.f32.mrb[0].mxu0
        %1209 = vmatprep.mubr.f32.mxu0 0.0
        %1210 = vmatmul.mubr.f32.gmra.mrb[0].mxu0 %v1038
        %v1211 = vpop.f32.mrb[0].mxu0
        %v1212 = vadd.f32 %v1118, %v1211
        %v1213 = vpop.f32.mrb[0].mxu0
        %1214 = vmatprep.mubr.f32.mxu0 0.0
        %1215 = vmatmul.mubr.f32.gmra.mrb[0].mxu0 %v1039
        %v1216 = vpop.f32.mrb[0].mxu0
        %v1217 = vadd.f32 %v1118, %v1216
        %v1218 = vpop.f32.mrb[0].mxu0
        %1219 = vmatprep.mubr.f32.mxu0 0.0
        %1220 = vmatmul.mubr.f32.gmra.mrb[0].mxu0 %v1040
        %v1221 = vpop.f32.mrb[0].mxu0
        %v1222 = vadd.f32 %v1118, %v1221
        %v1223 = vpop.f32.mrb[0].mxu0
        %1224 = vmatprep.mubr.f32.mxu0 0.0
        %1225 = vmatmul.mubr.f32.gmra.mrb[0].mxu0 %v1041
        %v1226 = vpop.f32.mrb[0].mxu0
        %v1227 = vadd.f32 %v1118, %v1226
        %v1228 = vpop.f32.mrb[0].mxu0
        %1229 = vmatprep.mubr.f32.mxu0 0.0
        %1230 = vmatmul.mubr.f32.gmra.mrb[0].mxu0 %v1042
        %v1231 = vpop.f32.mrb[0].mxu0
        %v1232 = vadd.f32 %v1118, %v1231
        %v1233 = vpop.f32.mrb[0].mxu0
        %1234 = vmatprep.mubr.f32.mxu0 0.0
        %1235 = vmatmul.mubr.f32.gmra.mrb[0].mxu0 %v1043
        %v1236 = vpop.f32.mrb[0].mxu0
        %v1237 = vadd.f32 %v1118, %v1236
        %v1238 = vpop.f32.mrb[0].mxu0
        %1239 = vmatprep.mubr.f32.mxu0 0.0
        %1240 = vmatmul.mubr.f32.gmra.mrb[0].mxu0 %v1044
        %v1241 = vpop.f32.mrb[0].mxu0
        %v1242 = vadd.f32 %v1118, %v1241
        %v1243 = vpop.f32.mrb[0].mxu0
        %1244 = vmatprep.mubr.f32.mxu0 0.0
        %1245 = vmatmul.mubr.f32.gmra.mrb[0].mxu0 %v1045
        %v1246 = vpop.f32.mrb[0].mxu0
        %v1247 = vadd.f32 %v1118, %v1246
        %v1248 = vpop.f32.mrb[0].mxu0
        %1249 = vmatprep.mubr.f32.mxu0 0.0
        %1250 = vmatmul.mubr.f32.gmra.mrb[0].mxu0 %v1046
        %v1251 = vpop.f32.mrb[0].mxu0
        %v1252 = vadd.f32 %v1118, %v1251
        %v1253 = vpop.f32.mrb[0].mxu0
        %1254 = vmatprep.mubr.f32.mxu0 0.0
        %1255 = vmatmul.mubr.f32.gmra.mrb[0].mxu0 %v1047
        %v1256 = vpop.f32.mrb[0].mxu0
        %v1257 = vadd.f32 %v1118, %v1256
        %v1258 = vpop.f32.mrb[0].mxu0
        %1259 = vmatprep.mubr.f32.mxu0 0.0
        %1260 = vmatmul.mubr.f32.gmra.mrb[0].mxu0 %v1048
        %v1261 = vpop.f32.mrb[0].mxu0
        %v1262 = vadd.f32 %v1118, %v1261
        %v1263 = vpop.f32.mrb[0].mxu0
        %1264 = vmatprep.mubr.f32.mxu0 0.0
        %1265 = vmatmul.mubr.f32.gmra.mrb[0].mxu0 %v1049
        %v1266 = vpop.f32.mrb[0].mxu0
        %v1267 = vadd.f32 %v1118, %v1266
        %v1268 = vpop.f32.mrb[0].mxu0
        %1269 = vmatprep.mubr.f32.mxu0 0.0
        %1270 = vmatmul.mubr.f32.gmra.mrb[0].mxu0 %v1050
        %v1271 = vpop.f32.mrb[0].mxu0
        %v1272 = vadd.f32 %v1118, %v1271
        %v1273 = vpop.f32.mrb[0].mxu0
        %1274 = vmatprep.mubr.f32.mxu0 0.0
        %1275 = vmatmul.mubr.f32.gmra.mrb[0].mxu0 %v1051
        %v1276 = vpop.f32.mrb[0].mxu0
        %v1277 = vadd.f32 %v1118, %v1276
        %v1278 = vpop.f32.mrb[0].mxu0
        %1279 = vmatprep.mubr.f32.mxu0 0.0
        %1280 = vmatmul.mubr.f32.gmra.mrb[0].mxu0 %v1052
        %v1281 = vpop.f32.mrb[0].mxu0
        %v1282 = vadd.f32 %v1118, %v1281
        %v1283 = vpop.f32.mrb[0].mxu0
        %1284 = vmatprep.mubr.f32.mxu0 0.0
        %1285 = vmatmul.mubr.f32.gmra.mrb[0].mxu0 %v1053
        %v1286 = vpop.f32.mrb[0].mxu0
        %v1287 = vadd.f32 %v1118, %v1286
        %v1288 = vpop.f32.mrb[0].mxu0
        %1289 = vmatprep.mubr.f32.mxu0 0.0
        %1290 = vmatmul.mubr.f32.gmra.mrb[0].mxu0 %v1054
        %v1291 = vpop.f32.mrb[0].mxu0
        %v1292 = vadd.f32 %v1118, %v1291
        %v1293 = vpop.f32.mrb[0].mxu0
        %1294 = vmatprep.mubr.f32.mxu0 0.0
        %1295 = vmatmul.mubr.f32.gmra.mrb[0].mxu0 %v1055
        %v1296 = vpop.f32.mrb[0].mxu0
        %v1297 = vadd.f32 %v1118, %v1296
        %v1298 = vpop.f32.mrb[0].mxu0
        %1299 = vmatprep.mubr.f32.mxu0 0.0
        %1300 = vmatmul.mubr.f32.gmra.mrb[0].mxu0 %v1056
        %v1301 = vpop.f32.mrb[0].mxu0
        %v1302 = vadd.f32 %v1118, %v1301
        %v1303 = vpop.f32.mrb[0].mxu0
        %1304 = vmatprep.mubr.f32.mxu0 0.0
        %1305 = vmatmul.mubr.f32.gmra.mrb[0].mxu0 %v1057
        %v1306 = vpop.f32.mrb[0].mxu0
        %v1307 = vadd.f32 %v1118, %v1306
        %v1308 = vpop.f32.mrb[0].mxu0
        %1309 = vmatprep.mubr.f32.mxu0 0.0
        %1310 = vmatmul.mubr.f32.gmra.mrb[0].mxu0 %v1058
        %v1311 = vpop.f32.mrb[0].mxu0
        %v1312 = vadd.f32 %v1118, %v1311
        %v1313 = vpop.f32.mrb[0].mxu0
        %1314 = vmatprep.mubr.f32.mxu0 0.0
        %1315 = vmatmul.mubr.f32.gmra.mrb[0].mxu0 %v1059
        %v1316 = vpop.f32.mrb[0].mxu0
        %v1317 = vadd.f32 %v1118, %v1316
        %v1318 = vpop.f32.mrb[0].mxu0
        %1319 = vmatprep.mubr.f32.mxu0 0.0
        %1320 = vmatmul.mubr.f32.gmra.mrb[0].mxu0 %v1060
        %v1321 = vpop.f32.mrb[0].mxu0
        %v1322 = vadd.f32 %v1118, %v1321
        %v1323 = vpop.f32.mrb[0].mxu0
        %1324 = vmatprep.mubr.f32.mxu0 0.0
        %1325 = vmatmul.mubr.f32.gmra.mrb[0].mxu0 %v1061
        %v1326 = vpop.f32.mrb[0].mxu0
        %v1327 = vadd.f32 %v1118, %v1326
        %v1328 = vpop.f32.mrb[0].mxu0
        %1329 = vmatprep.mubr.f32.mxu0 0.0
        %1330 = vmatmul.mubr.f32.gmra.mrb[0].mxu0 %v1062
        %v1331 = vpop.f32.mrb[0].mxu0
        %v1332 = vadd.f32 %v1118, %v1331
        %v1333 = vpop.f32.mrb[0].mxu0
        %1334 = vmatprep.mubr.f32.mxu0 0.0
        %1335 = vmatmul.mubr.f32.gmra.mrb[0].mxu0 %v1063
        %v1336 = vpop.f32.mrb[0].mxu0
        %v1337 = vadd.f32 %v1118, %v1336
        %v1338 = vpop.f32.mrb[0].mxu0
        %1339 = vmatprep.mubr.f32.mxu0 0.0
        %1340 = vmatmul.mubr.f32.gmra.mrb[0].mxu0 %v1064
        %v1341 = vpop.f32.mrb[0].mxu0
        %v1342 = vadd.f32 %v1118, %v1341
        %v1343 = vpop.f32.mrb[0].mxu0
        %1344 = vmatprep.mubr.f32.mxu0 0.0
        %1345 = vmatmul.mubr.f32.gmra.mrb[0].mxu0 %v1065
        %v1346 = vpop.f32.mrb[0].mxu0
        %v1347 = vadd.f32 %v1118, %v1346
        %v1348 = vpop.f32.mrb[0].mxu0
        %1349 = vmatprep.mubr.f32.mxu0 0.0
        %1350 = vmatmul.mubr.f32.gmra.mrb[0].mxu0 %v1066
        %v1351 = vpop.f32.mrb[0].mxu0
        %v1352 = vadd.f32 %v1118, %v1351
        %v1353 = vpop.f32.mrb[0].mxu0
        %1354 = vmatprep.mubr.f32.mxu0 0.0
        %1355 = vmatmul.mubr.f32.gmra.mrb[0].mxu0 %v1067
        %v1356 = vpop.f32.mrb[0].mxu0
        %v1357 = vadd.f32 %v1118, %v1356
        %v1358 = vpop.f32.mrb[0].mxu0
        %1359 = vmatprep.mubr.f32.mxu0 0.0
        %1360 = vmatmul.mubr.f32.gmra.mrb[0].mxu0 %v1068
        %v1361 = vpop.f32.mrb[0].mxu0
        %v1362 = vadd.f32 %v1118, %v1361
        %v1363 = vpop.f32.mrb[0].mxu0
        %1364 = vmatprep.mubr.f32.mxu0 0.0
        %1365 = vmatmul.mubr.f32.gmra.mrb[0].mxu0 %v1069
        %v1366 = vpop.f32.mrb[0].mxu0
        %v1367 = vadd.f32 %v1118, %v1366
        %v1368 = vpop.f32.mrb[0].mxu0
        %1369 = vmatprep.mubr.f32.mxu0 0.0
        %1370 = vmatmul.mubr.f32.gmra.mrb[0].mxu0 %v1070
        %v1371 = vpop.f32.mrb[0].mxu0
        %v1372 = vadd.f32 %v1118, %v1371
        %v1373 = vpop.f32.mrb[0].mxu0
        %1374 = vmatprep.mubr.f32.mxu0 0.0
        %1375 = vmatmul.mubr.f32.gmra.mrb[0].mxu0 %v1071
        %v1376 = vpop.f32.mrb[0].mxu0
        %v1377 = vadd.f32 %v1118, %v1376
        %v1378 = vpop.f32.mrb[0].mxu0
        %1379 = vmatprep.mubr.f32.mxu0 0.0
        %1380 = vmatmul.mubr.f32.gmra.mrb[0].mxu0 %v1072
        %v1381 = vpop.f32.mrb[0].mxu0
        %v1382 = vadd.f32 %v1118, %v1381
        %v1383 = vpop.f32.mrb[0].mxu0
        %1384 = vmatprep.mubr.f32.mxu0 0.0
        %1385 = vmatmul.mubr.f32.gmra.mrb[0].mxu0 %v1073
        %v1386 = vpop.f32.mrb[0].mxu0
        %v1387 = vadd.f32 %v1118, %v1386
        %v1388 = vpop.f32.mrb[0].mxu0
        %1389 = vmatprep.mubr.f32.mxu0 0.0
        %1390 = vmatmul.mubr.f32.gmra.mrb[0].mxu0 %v1074
        %v1391 = vpop.f32.mrb[0].mxu0
        %v1392 = vadd.f32 %v1118, %v1391
        %v1393 = vpop.f32.mrb[0].mxu0
        %1394 = vmatprep.mubr.f32.mxu0 0.0
        %1395 = vmatmul.mubr.f32.gmra.mrb[0].mxu0 %v1075
        %v1396 = vpop.f32.mrb[0].mxu0
        %v1397 = vadd.f32 %v1118, %v1396
        %v1398 = vpop.f32.mrb[0].mxu0
        %1399 = vmatprep.mubr.f32.mxu0 0.0
        %1400 = vmatmul.mubr.f32.gmra.mrb[0].mxu0 %v1076
        %v1401 = vpop.f32.mrb[0].mxu0
        %v1402 = vadd.f32 %v1118, %v1401
        %v1403 = vpop.f32.mrb[0].mxu0
        %1404 = vmatprep.mubr.f32.mxu0 0.0
        %1405 = vmatmul.mubr.f32.gmra.mrb[0].mxu0 %v1077
        %v1406 = vpop.f32.mrb[0].mxu0
        %v1407 = vadd.f32 %v1118, %v1406
        %v1408 = vpop.f32.mrb[0].mxu0
        %1409 = vmatprep.mubr.f32.mxu0 0.0
        %1410 = vmatmul.mubr.f32.gmra.mrb[0].mxu0 %v1078
        %v1411 = vpop.f32.mrb[0].mxu0
        %v1412 = vadd.f32 %v1118, %v1411
        %v1413 = vpop.f32.mrb[0].mxu0
        %1414 = vmatprep.mubr.f32.mxu0 0.0
        %1415 = vmatmul.mubr.f32.gmra.mrb[0].mxu0 %v1079
        %v1416 = vpop.f32.mrb[0].mxu0
        %v1417 = vadd.f32 %v1118, %v1416
        %v1418 = vpop.f32.mrb[0].mxu0
        %1419 = vmatprep.mubr.f32.mxu0 0.0
        %1420 = vmatmul.mubr.f32.gmra.mrb[0].mxu0 %v1080
        %v1421 = vpop.f32.mrb[0].mxu0
        %v1422 = vadd.f32 %v1118, %v1421
        %v1423 = vpop.f32.mrb[0].mxu0
        %1424 = vmatprep.mubr.f32.mxu0 0.0
        %1425 = vmatmul.mubr.f32.gmra.mrb[0].mxu0 %v1081
        %v1426 = vpop.f32.mrb[0].mxu0
        %v1427 = vadd.f32 %v1118, %v1426
        %v1428 = vpop.f32.mrb[0].mxu0
        %1429 = vmatprep.mubr.f32.mxu0 0.0
        %1430 = vmatmul.mubr.f32.gmra.mrb[0].mxu0 %v1082
        %v1431 = vpop.f32.mrb[0].mxu0
        %v1432 = vadd.f32 %v1118, %v1431
        %v1433 = vpop.f32.mrb[0].mxu0
        %1434 = vmatprep.mubr.f32.mxu0 0.0
        %1435 = vmatmul.mubr.f32.gmra.mrb[0].mxu0 %v1083
        %v1436 = vpop.f32.mrb[0].mxu0
        %v1437 = vadd.f32 %v1118, %v1436
        %v1438 = vpop.f32.mrb[0].mxu0
        %1439 = vmatprep.mubr.f32.mxu0 0.0
        %1440 = vmatmul.mubr.f32.gmra.mrb[0].mxu0 %v1084
        %v1441 = vpop.f32.mrb[0].mxu0
        %v1442 = vadd.f32 %v1118, %v1441
        %v1443 = vpop.f32.mrb[0].mxu0
        %1444 = vmatprep.mubr.f32.mxu0 0.0
        %1445 = vmatmul.mubr.f32.gmra.mrb[0].mxu0 %v1085
        %v1446 = vpop.f32.mrb[0].mxu0
        %v1447 = vadd.f32 %v1118, %v1446
        %v1448 = vpop.f32.mrb[0].mxu0
        %1449 = vmatprep.mubr.f32.mxu0 0.0
        %1450 = vmatmul.mubr.f32.gmra.mrb[0].mxu0 %v1086
        %v1451 = vpop.f32.mrb[0].mxu0
        %v1452 = vadd.f32 %v1118, %v1451
        %v1453 = vpop.f32.mrb[0].mxu0
        %1454 = vmatprep.mubr.f32.mxu0 0.0
        %1455 = vmatmul.mubr.f32.gmra.mrb[0].mxu0 %v1087
        %v1456 = vpop.f32.mrb[0].mxu0
        %v1457 = vadd.f32 %v1118, %v1456
        %v1458 = vpop.f32.mrb[0].mxu0
        %1459 = vmatprep.mubr.f32.mxu0 0.0
        %1460 = vmatmul.mubr.f32.gmra.mrb[0].mxu0 %v1088
        %v1461 = vpop.f32.mrb[0].mxu0
        %v1462 = vadd.f32 %v1118, %v1461
        %v1463 = vpop.f32.mrb[0].mxu0
        %1464 = vmatprep.mubr.f32.mxu0 0.0
        %1465 = vmatmul.mubr.f32.gmra.mrb[0].mxu0 %v1089
        %v1466 = vpop.f32.mrb[0].mxu0
        %v1467 = vadd.f32 %v1118, %v1466
        %v1468 = vpop.f32.mrb[0].mxu0
        %1469 = vmatprep.mubr.f32.mxu0 0.0
        %1470 = vmatmul.mubr.f32.gmra.mrb[0].mxu0 %v1090
        %v1471 = vpop.f32.mrb[0].mxu0
        %v1472 = vadd.f32 %v1118, %v1471
        %v1473 = vpop.f32.mrb[0].mxu0
        %1474 = vmatprep.mubr.f32.mxu0 0.0
        %1475 = vmatmul.mubr.f32.gmra.mrb[0].mxu0 %v1091
        %v1476 = vpop.f32.mrb[0].mxu0
        %v1477 = vadd.f32 %v1118, %v1476
        %v1478 = vpop.f32.mrb[0].mxu0
        %1479 = vmatprep.mubr.f32.mxu0 0.0
        %1480 = vmatmul.mubr.f32.gmra.mrb[0].mxu0 %v1092
        %v1481 = vpop.f32.mrb[0].mxu0
        %v1482 = vadd.f32 %v1118, %v1481
        %v1483 = vpop.f32.mrb[0].mxu0
        %1484 = vmatprep.mubr.f32.mxu0 0.0
        %1485 = vmatmul.mubr.f32.gmra.mrb[0].mxu0 %v1093
        %v1486 = vpop.f32.mrb[0].mxu0
        %v1487 = vadd.f32 %v1118, %v1486
        %v1488 = vpop.f32.mrb[0].mxu0
        %1489 = vmatprep.mubr.f32.mxu0 0.0
        %1490 = vmatmul.mubr.f32.gmra.mrb[0].mxu0 %v1094
        %v1491 = vpop.f32.mrb[0].mxu0
        %v1492 = vadd.f32 %v1118, %v1491
        %v1493 = vpop.f32.mrb[0].mxu0
        %1494 = vmatprep.mubr.f32.mxu0 0.0
        %1495 = vmatmul.mubr.f32.gmra.mrb[0].mxu0 %v1095
        %v1496 = vpop.f32.mrb[0].mxu0
        %v1497 = vadd.f32 %v1118, %v1496
        %v1498 = vpop.f32.mrb[0].mxu0
        %1499 = vmatprep.mubr.f32.mxu0 0.0
        %1500 = vmatmul.mubr.f32.gmra.mrb[0].mxu0 %v1096
        %v1501 = vpop.f32.mrb[0].mxu0
        %v1502 = vadd.f32 %v1118, %v1501
        %v1503 = vpop.f32.mrb[0].mxu0
        %1504 = vdwg.mxu0
        %v1505 = vmax.f32 %v1187, 0.0
        %v1506 = vmax.f32 %v1192, 0.0
        %v1507 = vmax.f32 %v1197, 0.0
        %v1508 = vmax.f32 %v1202, 0.0
        %v1509 = vmax.f32 %v1207, 0.0
        %v1510 = vmax.f32 %v1212, 0.0
        %v1511 = vmax.f32 %v1217, 0.0
        %v1512 = vmax.f32 %v1222, 0.0
        %v1513 = vmax.f32 %v1227, 0.0
        %v1514 = vmax.f32 %v1232, 0.0
        %v1515 = vmax.f32 %v1237, 0.0
        %v1516 = vmax.f32 %v1242, 0.0
        %v1517 = vmax.f32 %v1247, 0.0
        %v1518 = vmax.f32 %v1252, 0.0
        %v1519 = vmax.f32 %v1257, 0.0
        %v1520 = vmax.f32 %v1262, 0.0
        %v1521 = vmax.f32 %v1267, 0.0
        %v1522 = vmax.f32 %v1272, 0.0
        %v1523 = vmax.f32 %v1277, 0.0
        %v1524 = vmax.f32 %v1282, 0.0
        %v1525 = vmax.f32 %v1287, 0.0
        %v1526 = vmax.f32 %v1292, 0.0
        %v1527 = vmax.f32 %v1297, 0.0
        %v1528 = vmax.f32 %v1302, 0.0
        %v1529 = vmax.f32 %v1307, 0.0
        %v1530 = vmax.f32 %v1312, 0.0
        %v1531 = vmax.f32 %v1317, 0.0
        %v1532 = vmax.f32 %v1322, 0.0
        %v1533 = vmax.f32 %v1327, 0.0
        %v1534 = vmax.f32 %v1332, 0.0
        %v1535 = vmax.f32 %v1337, 0.0
        %v1536 = vmax.f32 %v1342, 0.0
        %v1537 = vmax.f32 %v1347, 0.0
        %v1538 = vmax.f32 %v1352, 0.0
        %v1539 = vmax.f32 %v1357, 0.0
        %v1540 = vmax.f32 %v1362, 0.0
        %v1541 = vmax.f32 %v1367, 0.0
        %v1542 = vmax.f32 %v1372, 0.0
        %v1543 = vmax.f32 %v1377, 0.0
        %v1544 = vmax.f32 %v1382, 0.0
        %v1545 = vmax.f32 %v1387, 0.0
        %v1546 = vmax.f32 %v1392, 0.0
        %v1547 = vmax.f32 %v1397, 0.0
        %v1548 = vmax.f32 %v1402, 0.0
        %v1549 = vmax.f32 %v1407, 0.0
        %v1550 = vmax.f32 %v1412, 0.0
        %v1551 = vmax.f32 %v1417, 0.0
        %v1552 = vmax.f32 %v1422, 0.0
        %v1553 = vmax.f32 %v1427, 0.0
        %v1554 = vmax.f32 %v1432, 0.0
        %v1555 = vmax.f32 %v1437, 0.0
        %v1556 = vmax.f32 %v1442, 0.0
        %v1557 = vmax.f32 %v1447, 0.0
        %v1558 = vmax.f32 %v1452, 0.0
        %v1559 = vmax.f32 %v1457, 0.0
        %v1560 = vmax.f32 %v1462, 0.0
        %v1561 = vmax.f32 %v1467, 0.0
        %v1562 = vmax.f32 %v1472, 0.0
        %v1563 = vmax.f32 %v1477, 0.0
        %v1564 = vmax.f32 %v1482, 0.0
        %v1565 = vmax.f32 %v1487, 0.0
        %v1566 = vmax.f32 %v1492, 0.0
        %v1567 = vmax.f32 %v1497, 0.0
        %v1568 = vmax.f32 %v1502, 0.0
        %1569 = vst.msk [vmem:[%s333] sm:$0xff] %vm455, %v1505
        %1570 = vst.msk [vmem:[%s333 + $0x8] sm:$0xff] %vm455, %v1506
        %1571 = vst.msk [vmem:[%s333 + $0x10] sm:$0xff] %vm455, %v1507
        %1572 = vst.msk [vmem:[%s333 + $0x18] sm:$0xff] %vm455, %v1508
        %1573 = vst.msk [vmem:[%s333 + $0x20] sm:$0xff] %vm455, %v1509
        %1574 = vst.msk [vmem:[%s333 + $0x28] sm:$0xff] %vm455, %v1510
        %1575 = vst.msk [vmem:[%s333 + $0x30] sm:$0xff] %vm455, %v1511
        %1576 = vst.msk [vmem:[%s333 + $0x38] sm:$0xff] %vm455, %v1512
        %1577 = vst.msk [vmem:[%s333 + $0x40] sm:$0xff] %vm455, %v1513
        %1578 = vst.msk [vmem:[%s333 + $0x48] sm:$0xff] %vm455, %v1514
        %1579 = vst.msk [vmem:[%s333 + $0x50] sm:$0xff] %vm455, %v1515
        %1580 = vst.msk [vmem:[%s333 + $0x58] sm:$0xff] %vm455, %v1516
        %1581 = vst.msk [vmem:[%s333 + $0x60] sm:$0xff] %vm455, %v1517
        %1582 = vst.msk [vmem:[%s333 + $0x68] sm:$0xff] %vm455, %v1518
        %1583 = vst.msk [vmem:[%s333 + $0x70] sm:$0xff] %vm455, %v1519
        %1584 = vst.msk [vmem:[%s333 + $0x78] sm:$0xff] %vm455, %v1520
        %1585 = vst.msk [vmem:[%s333 + $0x80] sm:$0xff] %vm455, %v1521
        %1586 = vst.msk [vmem:[%s333 + $0x88] sm:$0xff] %vm455, %v1522
        %1587 = vst.msk [vmem:[%s333 + $0x90] sm:$0xff] %vm455, %v1523
        %1588 = vst.msk [vmem:[%s333 + $0x98] sm:$0xff] %vm455, %v1524
        %1589 = vst.msk [vmem:[%s333 + $0xa0] sm:$0xff] %vm455, %v1525
        %1590 = vst.msk [vmem:[%s333 + $0xa8] sm:$0xff] %vm455, %v1526
        %1591 = vst.msk [vmem:[%s333 + $0xb0] sm:$0xff] %vm455, %v1527
        %1592 = vst.msk [vmem:[%s333 + $0xb8] sm:$0xff] %vm455, %v1528
        %1593 = vst.msk [vmem:[%s333 + $0xc0] sm:$0xff] %vm455, %v1529
        %1594 = vst.msk [vmem:[%s333 + $0xc8] sm:$0xff] %vm455, %v1530
        %1595 = vst.msk [vmem:[%s333 + $0xd0] sm:$0xff] %vm455, %v1531
        %1596 = vst.msk [vmem:[%s333 + $0xd8] sm:$0xff] %vm455, %v1532
        %1597 = vst.msk [vmem:[%s333 + $0xe0] sm:$0xff] %vm455, %v1533
        %1598 = vst.msk [vmem:[%s333 + $0xe8] sm:$0xff] %vm455, %v1534
        %1599 = vst.msk [vmem:[%s333 + $0xf0] sm:$0xff] %vm455, %v1535
        %1600 = vst.msk [vmem:[%s333 + $0xf8] sm:$0xff] %vm455, %v1536
        %1601 = vst.msk [vmem:[%s333 + $0x100] sm:$0xff] %vm455, %v1537
        %1602 = vst.msk [vmem:[%s333 + $0x108] sm:$0xff] %vm455, %v1538
        %1603 = vst.msk [vmem:[%s333 + $0x110] sm:$0xff] %vm455, %v1539
        %1604 = vst.msk [vmem:[%s333 + $0x118] sm:$0xff] %vm455, %v1540
        %1605 = vst.msk [vmem:[%s333 + $0x120] sm:$0xff] %vm455, %v1541
        %1606 = vst.msk [vmem:[%s333 + $0x128] sm:$0xff] %vm455, %v1542
        %1607 = vst.msk [vmem:[%s333 + $0x130] sm:$0xff] %vm455, %v1543
        %1608 = vst.msk [vmem:[%s333 + $0x138] sm:$0xff] %vm455, %v1544
        %1609 = vst.msk [vmem:[%s333 + $0x140] sm:$0xff] %vm455, %v1545
        %1610 = vst.msk [vmem:[%s333 + $0x148] sm:$0xff] %vm455, %v1546
        %1611 = vst.msk [vmem:[%s333 + $0x150] sm:$0xff] %vm455, %v1547
        %1612 = vst.msk [vmem:[%s333 + $0x158] sm:$0xff] %vm455, %v1548
        %1613 = vst.msk [vmem:[%s333 + $0x160] sm:$0xff] %vm455, %v1549
        %1614 = vst.msk [vmem:[%s333 + $0x168] sm:$0xff] %vm455, %v1550
        %1615 = vst.msk [vmem:[%s333 + $0x170] sm:$0xff] %vm455, %v1551
        %1616 = vst.msk [vmem:[%s333 + $0x178] sm:$0xff] %vm455, %v1552
        %1617 = vst.msk [vmem:[%s333 + $0x180] sm:$0xff] %vm455, %v1553
        %1618 = vst.msk [vmem:[%s333 + $0x188] sm:$0xff] %vm455, %v1554
        %1619 = vst.msk [vmem:[%s333 + $0x190] sm:$0xff] %vm455, %v1555
        %1620 = vst.msk [vmem:[%s333 + $0x198] sm:$0xff] %vm455, %v1556
        %1621 = vst.msk [vmem:[%s333 + $0x1a0] sm:$0xff] %vm455, %v1557
        %1622 = vst.msk [vmem:[%s333 + $0x1a8] sm:$0xff] %vm455, %v1558
        %1623 = vst.msk [vmem:[%s333 + $0x1b0] sm:$0xff] %vm455, %v1559
        %1624 = vst.msk [vmem:[%s333 + $0x1b8] sm:$0xff] %vm455, %v1560
        %1625 = vst.msk [vmem:[%s333 + $0x1c0] sm:$0xff] %vm455, %v1561
        %1626 = vst.msk [vmem:[%s333 + $0x1c8] sm:$0xff] %vm455, %v1562
        %1627 = vst.msk [vmem:[%s333 + $0x1d0] sm:$0xff] %vm455, %v1563
        %1628 = vst.msk [vmem:[%s333 + $0x1d8] sm:$0xff] %vm455, %v1564
        %1629 = vst.msk [vmem:[%s333 + $0x1e0] sm:$0xff] %vm455, %v1565
        %1630 = vst.msk [vmem:[%s333 + $0x1e8] sm:$0xff] %vm455, %v1566
        %1631 = vst.msk [vmem:[%s333 + $0x1f0] sm:$0xff] %vm455, %v1567
        %1632 = vst.msk [vmem:[%s333 + $0x1f8] sm:$0xff] %vm455, %v1568
        %s1633 = smul.u32 %s23, 3
        %s1634 = sadd.s32 %s1633, %s24
        %s1635 = smul.u32 %s1634, 512
        %s1636 = sadd.s32 %s1635, 512
        %p1637 = scmp.gt.s32.totalorder %s1636, 2304
        %p1638 = scmp.le.s32.totalorder %s1636, 2304
        // Predicated region
        $region45: #{pixel_classifier_forward.4} parent=39 // pred_check
          %p1639 = pneg %p1638
        $region46: #{pixel_classifier_forward.4} parent=39 // pred_check_branch
          %1641 = sbr.rel (%p1639) target = $region48
        $region47: #{pixel_classifier_forward.4} parent=39 // pred_region
          %v1642 = vld [vmem:[%s359] sm:$0x1]
          %v1643 = vsel %vm455, %v1505, 0.0
          %v1644 = vsel %vm455, %v1506, 0.0
          %v1645 = vadd.f32 %v1643, %v1644
          %v1646 = vsel %vm455, %v1507, 0.0
          %v1647 = vadd.f32 %v1645, %v1646
          %v1648 = vsel %vm455, %v1508, 0.0
          %v1649 = vadd.f32 %v1647, %v1648
          %v1650 = vsel %vm455, %v1509, 0.0
          %v1651 = vadd.f32 %v1649, %v1650
          %v1652 = vsel %vm455, %v1510, 0.0
          %v1653 = vadd.f32 %v1651, %v1652
          %v1654 = vsel %vm455, %v1511, 0.0
          %v1655 = vadd.f32 %v1653, %v1654
          %v1656 = vsel %vm455, %v1512, 0.0
          %v1657 = vadd.f32 %v1655, %v1656
          %v1658 = vsel %vm455, %v1513, 0.0
          %v1659 = vadd.f32 %v1657, %v1658
          %v1660 = vsel %vm455, %v1514, 0.0
          %v1661 = vadd.f32 %v1659, %v1660
          %v1662 = vsel %vm455, %v1515, 0.0
          %v1663 = vadd.f32 %v1661, %v1662
          %v1664 = vsel %vm455, %v1516, 0.0
          %v1665 = vadd.f32 %v1663, %v1664
          %v1666 = vsel %vm455, %v1517, 0.0
          %v1667 = vadd.f32 %v1665, %v1666
          %v1668 = vsel %vm455, %v1518, 0.0
          %v1669 = vadd.f32 %v1667, %v1668
          %v1670 = vsel %vm455, %v1519, 0.0
          %v1671 = vadd.f32 %v1669, %v1670
          %v1672 = vsel %vm455, %v1520, 0.0
          %v1673 = vadd.f32 %v1671, %v1672
          %v1674 = vsel %vm455, %v1521, 0.0
          %v1675 = vadd.f32 %v1673, %v1674
          %v1676 = vsel %vm455, %v1522, 0.0
          %v1677 = vadd.f32 %v1675, %v1676
          %v1678 = vsel %vm455, %v1523, 0.0
          %v1679 = vadd.f32 %v1677, %v1678
          %v1680 = vsel %vm455, %v1524, 0.0
          %v1681 = vadd.f32 %v1679, %v1680
          %v1682 = vsel %vm455, %v1525, 0.0
          %v1683 = vadd.f32 %v1681, %v1682
          %v1684 = vsel %vm455, %v1526, 0.0
          %v1685 = vadd.f32 %v1683, %v1684
          %v1686 = vsel %vm455, %v1527, 0.0
          %v1687 = vadd.f32 %v1685, %v1686
          %v1688 = vsel %vm455, %v1528, 0.0
          %v1689 = vadd.f32 %v1687, %v1688
          %v1690 = vsel %vm455, %v1529, 0.0
          %v1691 = vadd.f32 %v1689, %v1690
          %v1692 = vsel %vm455, %v1530, 0.0
          %v1693 = vadd.f32 %v1691, %v1692
          %v1694 = vsel %vm455, %v1531, 0.0
          %v1695 = vadd.f32 %v1693, %v1694
          %v1696 = vsel %vm455, %v1532, 0.0
          %v1697 = vadd.f32 %v1695, %v1696
          %v1698 = vsel %vm455, %v1533, 0.0
          %v1699 = vadd.f32 %v1697, %v1698
          %v1700 = vsel %vm455, %v1534, 0.0
          %v1701 = vadd.f32 %v1699, %v1700
          %v1702 = vsel %vm455, %v1535, 0.0
          %v1703 = vadd.f32 %v1701, %v1702
          %v1704 = vsel %vm455, %v1536, 0.0
          %v1705 = vadd.f32 %v1703, %v1704
          %v1706 = vsel %vm455, %v1537, 0.0
          %v1707 = vadd.f32 %v1705, %v1706
          %v1708 = vsel %vm455, %v1538, 0.0
          %v1709 = vadd.f32 %v1707, %v1708
          %v1710 = vsel %vm455, %v1539, 0.0
          %v1711 = vadd.f32 %v1709, %v1710
          %v1712 = vsel %vm455, %v1540, 0.0
          %v1713 = vadd.f32 %v1711, %v1712
          %v1714 = vsel %vm455, %v1541, 0.0
          %v1715 = vadd.f32 %v1713, %v1714
          %v1716 = vsel %vm455, %v1542, 0.0
          %v1717 = vadd.f32 %v1715, %v1716
          %v1718 = vsel %vm455, %v1543, 0.0
          %v1719 = vadd.f32 %v1717, %v1718
          %v1720 = vsel %vm455, %v1544, 0.0
          %v1721 = vadd.f32 %v1719, %v1720
          %v1722 = vsel %vm455, %v1545, 0.0
          %v1723 = vadd.f32 %v1721, %v1722
          %v1724 = vsel %vm455, %v1546, 0.0
          %v1725 = vadd.f32 %v1723, %v1724
          %v1726 = vsel %vm455, %v1547, 0.0
          %v1727 = vadd.f32 %v1725, %v1726
          %v1728 = vsel %vm455, %v1548, 0.0
          %v1729 = vadd.f32 %v1727, %v1728
          %v1730 = vsel %vm455, %v1549, 0.0
          %v1731 = vadd.f32 %v1729, %v1730
          %v1732 = vsel %vm455, %v1550, 0.0
          %v1733 = vadd.f32 %v1731, %v1732
          %v1734 = vsel %vm455, %v1551, 0.0
          %v1735 = vadd.f32 %v1733, %v1734
          %v1736 = vsel %vm455, %v1552, 0.0
          %v1737 = vadd.f32 %v1735, %v1736
          %v1738 = vsel %vm455, %v1553, 0.0
          %v1739 = vadd.f32 %v1737, %v1738
          %v1740 = vsel %vm455, %v1554, 0.0
          %v1741 = vadd.f32 %v1739, %v1740
          %v1742 = vsel %vm455, %v1555, 0.0
          %v1743 = vadd.f32 %v1741, %v1742
          %v1744 = vsel %vm455, %v1556, 0.0
          %v1745 = vadd.f32 %v1743, %v1744
          %v1746 = vsel %vm455, %v1557, 0.0
          %v1747 = vadd.f32 %v1745, %v1746
          %v1748 = vsel %vm455, %v1558, 0.0
          %v1749 = vadd.f32 %v1747, %v1748
          %v1750 = vsel %vm455, %v1559, 0.0
          %v1751 = vadd.f32 %v1749, %v1750
          %v1752 = vsel %vm455, %v1560, 0.0
          %v1753 = vadd.f32 %v1751, %v1752
          %v1754 = vsel %vm455, %v1561, 0.0
          %v1755 = vadd.f32 %v1753, %v1754
          %v1756 = vsel %vm455, %v1562, 0.0
          %v1757 = vadd.f32 %v1755, %v1756
          %v1758 = vsel %vm455, %v1563, 0.0
          %v1759 = vadd.f32 %v1757, %v1758
          %v1760 = vsel %vm455, %v1564, 0.0
          %v1761 = vadd.f32 %v1759, %v1760
          %v1762 = vsel %vm455, %v1565, 0.0
          %v1763 = vadd.f32 %v1761, %v1762
          %v1764 = vsel %vm455, %v1566, 0.0
          %v1765 = vadd.f32 %v1763, %v1764
          %v1766 = vsel %vm455, %v1567, 0.0
          %v1767 = vadd.f32 %v1765, %v1766
          %v1768 = vsel %vm455, %v1568, 0.0
          %v1769 = vadd.f32 %v1767, %v1768
          %v1770 = vrot.slane %v1769, 4
          %v1771 = vadd.f32 %v1769, %v1770
          %v1772 = vrot.slane %v1771, 2
          %v1773 = vadd.f32 %v1771, %v1772
          %v1774 = vrot.slane %v1773, 1
          %v1775 = vadd.f32 %v1773, %v1774
          %v1776 = vadd.f32 %v1642, %v1775
          %vm1777 = vcmask 253952
          %1778 = vst.msk [vmem:[%s359] sm:$0x1] %vm1777, %v1776
          %v1779 = vld [vmem:[%s363] sm:$0x1]
          %v1780 = vmul.f32 %v1505, %v1505
          %v1781 = vmul.f32 %v1506, %v1506
          %v1782 = vmul.f32 %v1507, %v1507
          %v1783 = vmul.f32 %v1508, %v1508
          %v1784 = vmul.f32 %v1509, %v1509
          %v1785 = vmul.f32 %v1510, %v1510
          %v1786 = vmul.f32 %v1511, %v1511
          %v1787 = vmul.f32 %v1512, %v1512
          %v1788 = vmul.f32 %v1513, %v1513
          %v1789 = vmul.f32 %v1514, %v1514
          %v1790 = vmul.f32 %v1515, %v1515
          %v1791 = vmul.f32 %v1516, %v1516
          %v1792 = vmul.f32 %v1517, %v1517
          %v1793 = vmul.f32 %v1518, %v1518
          %v1794 = vmul.f32 %v1519, %v1519
          %v1795 = vmul.f32 %v1520, %v1520
          %v1796 = vmul.f32 %v1521, %v1521
          %v1797 = vmul.f32 %v1522, %v1522
          %v1798 = vmul.f32 %v1523, %v1523
          %v1799 = vmul.f32 %v1524, %v1524
          %v1800 = vmul.f32 %v1525, %v1525
          %v1801 = vmul.f32 %v1526, %v1526
          %v1802 = vmul.f32 %v1527, %v1527
          %v1803 = vmul.f32 %v1528, %v1528
          %v1804 = vmul.f32 %v1529, %v1529
          %v1805 = vmul.f32 %v1530, %v1530
          %v1806 = vmul.f32 %v1531, %v1531
          %v1807 = vmul.f32 %v1532, %v1532
          %v1808 = vmul.f32 %v1533, %v1533
          %v1809 = vmul.f32 %v1534, %v1534
          %v1810 = vmul.f32 %v1535, %v1535
          %v1811 = vmul.f32 %v1536, %v1536
          %v1812 = vmul.f32 %v1537, %v1537
          %v1813 = vmul.f32 %v1538, %v1538
          %v1814 = vmul.f32 %v1539, %v1539
          %v1815 = vmul.f32 %v1540, %v1540
          %v1816 = vmul.f32 %v1541, %v1541
          %v1817 = vmul.f32 %v1542, %v1542
          %v1818 = vmul.f32 %v1543, %v1543
          %v1819 = vmul.f32 %v1544, %v1544
          %v1820 = vmul.f32 %v1545, %v1545
          %v1821 = vmul.f32 %v1546, %v1546
          %v1822 = vmul.f32 %v1547, %v1547
          %v1823 = vmul.f32 %v1548, %v1548
          %v1824 = vmul.f32 %v1549, %v1549
          %v1825 = vmul.f32 %v1550, %v1550
          %v1826 = vmul.f32 %v1551, %v1551
          %v1827 = vmul.f32 %v1552, %v1552
          %v1828 = vmul.f32 %v1553, %v1553
          %v1829 = vmul.f32 %v1554, %v1554
          %v1830 = vmul.f32 %v1555, %v1555
          %v1831 = vmul.f32 %v1556, %v1556
          %v1832 = vmul.f32 %v1557, %v1557
          %v1833 = vmul.f32 %v1558, %v1558
          %v1834 = vmul.f32 %v1559, %v1559
          %v1835 = vmul.f32 %v1560, %v1560
          %v1836 = vmul.f32 %v1561, %v1561
          %v1837 = vmul.f32 %v1562, %v1562
          %v1838 = vmul.f32 %v1563, %v1563
          %v1839 = vmul.f32 %v1564, %v1564
          %v1840 = vmul.f32 %v1565, %v1565
          %v1841 = vmul.f32 %v1566, %v1566
          %v1842 = vmul.f32 %v1567, %v1567
          %v1843 = vmul.f32 %v1568, %v1568
          %v1844 = vsel %vm455, %v1780, 0.0
          %v1845 = vsel %vm455, %v1781, 0.0
          %v1846 = vadd.f32 %v1844, %v1845
          %v1847 = vsel %vm455, %v1782, 0.0
          %v1848 = vadd.f32 %v1846, %v1847
          %v1849 = vsel %vm455, %v1783, 0.0
          %v1850 = vadd.f32 %v1848, %v1849
          %v1851 = vsel %vm455, %v1784, 0.0
          %v1852 = vadd.f32 %v1850, %v1851
          %v1853 = vsel %vm455, %v1785, 0.0
          %v1854 = vadd.f32 %v1852, %v1853
          %v1855 = vsel %vm455, %v1786, 0.0
          %v1856 = vadd.f32 %v1854, %v1855
          %v1857 = vsel %vm455, %v1787, 0.0
          %v1858 = vadd.f32 %v1856, %v1857
          %v1859 = vsel %vm455, %v1788, 0.0
          %v1860 = vadd.f32 %v1858, %v1859
          %v1861 = vsel %vm455, %v1789, 0.0
          %v1862 = vadd.f32 %v1860, %v1861
          %v1863 = vsel %vm455, %v1790, 0.0
          %v1864 = vadd.f32 %v1862, %v1863
          %v1865 = vsel %vm455, %v1791, 0.0
          %v1866 = vadd.f32 %v1864, %v1865
          %v1867 = vsel %vm455, %v1792, 0.0
          %v1868 = vadd.f32 %v1866, %v1867
          %v1869 = vsel %vm455, %v1793, 0.0
          %v1870 = vadd.f32 %v1868, %v1869
          %v1871 = vsel %vm455, %v1794, 0.0
          %v1872 = vadd.f32 %v1870, %v1871
          %v1873 = vsel %vm455, %v1795, 0.0
          %v1874 = vadd.f32 %v1872, %v1873
          %v1875 = vsel %vm455, %v1796, 0.0
          %v1876 = vadd.f32 %v1874, %v1875
          %v1877 = vsel %vm455, %v1797, 0.0
          %v1878 = vadd.f32 %v1876, %v1877
          %v1879 = vsel %vm455, %v1798, 0.0
          %v1880 = vadd.f32 %v1878, %v1879
          %v1881 = vsel %vm455, %v1799, 0.0
          %v1882 = vadd.f32 %v1880, %v1881
          %v1883 = vsel %vm455, %v1800, 0.0
          %v1884 = vadd.f32 %v1882, %v1883
          %v1885 = vsel %vm455, %v1801, 0.0
          %v1886 = vadd.f32 %v1884, %v1885
          %v1887 = vsel %vm455, %v1802, 0.0
          %v1888 = vadd.f32 %v1886, %v1887
          %v1889 = vsel %vm455, %v1803, 0.0
          %v1890 = vadd.f32 %v1888, %v1889
          %v1891 = vsel %vm455, %v1804, 0.0
          %v1892 = vadd.f32 %v1890, %v1891
          %v1893 = vsel %vm455, %v1805, 0.0
          %v1894 = vadd.f32 %v1892, %v1893
          %v1895 = vsel %vm455, %v1806, 0.0
          %v1896 = vadd.f32 %v1894, %v1895
          %v1897 = vsel %vm455, %v1807, 0.0
          %v1898 = vadd.f32 %v1896, %v1897
          %v1899 = vsel %vm455, %v1808, 0.0
          %v1900 = vadd.f32 %v1898, %v1899
          %v1901 = vsel %vm455, %v1809, 0.0
          %v1902 = vadd.f32 %v1900, %v1901
          %v1903 = vsel %vm455, %v1810, 0.0
          %v1904 = vadd.f32 %v1902, %v1903
          %v1905 = vsel %vm455, %v1811, 0.0
          %v1906 = vadd.f32 %v1904, %v1905
          %v1907 = vsel %vm455, %v1812, 0.0
          %v1908 = vadd.f32 %v1906, %v1907
          %v1909 = vsel %vm455, %v1813, 0.0
          %v1910 = vadd.f32 %v1908, %v1909
          %v1911 = vsel %vm455, %v1814, 0.0
          %v1912 = vadd.f32 %v1910, %v1911
          %v1913 = vsel %vm455, %v1815, 0.0
          %v1914 = vadd.f32 %v1912, %v1913
          %v1915 = vsel %vm455, %v1816, 0.0
          %v1916 = vadd.f32 %v1914, %v1915
          %v1917 = vsel %vm455, %v1817, 0.0
          %v1918 = vadd.f32 %v1916, %v1917
          %v1919 = vsel %vm455, %v1818, 0.0
          %v1920 = vadd.f32 %v1918, %v1919
          %v1921 = vsel %vm455, %v1819, 0.0
          %v1922 = vadd.f32 %v1920, %v1921
          %v1923 = vsel %vm455, %v1820, 0.0
          %v1924 = vadd.f32 %v1922, %v1923
          %v1925 = vsel %vm455, %v1821, 0.0
          %v1926 = vadd.f32 %v1924, %v1925
          %v1927 = vsel %vm455, %v1822, 0.0
          %v1928 = vadd.f32 %v1926, %v1927
          %v1929 = vsel %vm455, %v1823, 0.0
          %v1930 = vadd.f32 %v1928, %v1929
          %v1931 = vsel %vm455, %v1824, 0.0
          %v1932 = vadd.f32 %v1930, %v1931
          %v1933 = vsel %vm455, %v1825, 0.0
          %v1934 = vadd.f32 %v1932, %v1933
          %v1935 = vsel %vm455, %v1826, 0.0
          %v1936 = vadd.f32 %v1934, %v1935
          %v1937 = vsel %vm455, %v1827, 0.0
          %v1938 = vadd.f32 %v1936, %v1937
          %v1939 = vsel %vm455, %v1828, 0.0
          %v1940 = vadd.f32 %v1938, %v1939
          %v1941 = vsel %vm455, %v1829, 0.0
          %v1942 = vadd.f32 %v1940, %v1941
          %v1943 = vsel %vm455, %v1830, 0.0
          %v1944 = vadd.f32 %v1942, %v1943
          %v1945 = vsel %vm455, %v1831, 0.0
          %v1946 = vadd.f32 %v1944, %v1945
          %v1947 = vsel %vm455, %v1832, 0.0
          %v1948 = vadd.f32 %v1946, %v1947
          %v1949 = vsel %vm455, %v1833, 0.0
          %v1950 = vadd.f32 %v1948, %v1949
          %v1951 = vsel %vm455, %v1834, 0.0
          %v1952 = vadd.f32 %v1950, %v1951
          %v1953 = vsel %vm455, %v1835, 0.0
          %v1954 = vadd.f32 %v1952, %v1953
          %v1955 = vsel %vm455, %v1836, 0.0
          %v1956 = vadd.f32 %v1954, %v1955
          %v1957 = vsel %vm455, %v1837, 0.0
          %v1958 = vadd.f32 %v1956, %v1957
          %v1959 = vsel %vm455, %v1838, 0.0
          %v1960 = vadd.f32 %v1958, %v1959
          %v1961 = vsel %vm455, %v1839, 0.0
          %v1962 = vadd.f32 %v1960, %v1961
          %v1963 = vsel %vm455, %v1840, 0.0
          %v1964 = vadd.f32 %v1962, %v1963
          %v1965 = vsel %vm455, %v1841, 0.0
          %v1966 = vadd.f32 %v1964, %v1965
          %v1967 = vsel %vm455, %v1842, 0.0
          %v1968 = vadd.f32 %v1966, %v1967
          %v1969 = vsel %vm455, %v1843, 0.0
          %v1970 = vadd.f32 %v1968, %v1969
          %v1971 = vrot.slane %v1970, 4
          %v1972 = vadd.f32 %v1970, %v1971
          %v1973 = vrot.slane %v1972, 2
          %v1974 = vadd.f32 %v1972, %v1973
          %v1975 = vrot.slane %v1974, 1
          %v1976 = vadd.f32 %v1974, %v1975
          %v1977 = vadd.f32 %v1779, %v1976
          %1978 = vst.msk [vmem:[%s363] sm:$0x1] %vm1777, %v1977
        $region48: #{pixel_classifier_forward.4} parent=39 // pred_fallthru
          _
        // Predicated region
        $region49: #{pixel_classifier_forward.4} parent=39 // pred_check
          %p1979 = pneg %p1637
        $region50: #{pixel_classifier_forward.4} parent=39 // pred_check_branch
          %1981 = sbr.rel (%p1979) target = $region52
        $region51: #{pixel_classifier_forward.4} parent=39 // pred_region
          %v1982 = vlaneseq
          %v1983 = vshrl.u32 %v1982, 7
          %v1984 = vadd.s32 %v1983, 8
          %v1985 = vadd.s32 %v1983, 16
          %v1986 = vadd.s32 %v1983, 24
          %v1987 = vadd.s32 %v1983, 32
          %v1988 = vadd.s32 %v1983, 40
          %v1989 = vadd.s32 %v1983, 48
          %v1990 = vadd.s32 %v1983, 56
          %v1991 = vadd.s32 %v1983, 64
          %v1992 = vadd.s32 %v1983, 72
          %v1993 = vadd.s32 %v1983, 80
          %v1994 = vadd.s32 %v1983, 88
          %v1995 = vadd.s32 %v1983, 96
          %v1996 = vadd.s32 %v1983, 104
          %v1997 = vadd.s32 %v1983, 112
          %v1998 = vadd.s32 %v1983, 120
          %v1999 = vadd.s32 %v1983, 128
          %v2000 = vadd.s32 %v1983, 136
          %v2001 = vadd.s32 %v1983, 144
          %v2002 = vadd.s32 %v1983, 152
          %v2003 = vadd.s32 %v1983, 160
          %v2004 = vadd.s32 %v1983, 168
          %v2005 = vadd.s32 %v1983, 176
          %v2006 = vadd.s32 %v1983, 184
          %v2007 = vadd.s32 %v1983, 192
          %v2008 = vadd.s32 %v1983, 200
          %v2009 = vadd.s32 %v1983, 208
          %v2010 = vadd.s32 %v1983, 216
          %v2011 = vadd.s32 %v1983, 224
          %v2012 = vadd.s32 %v1983, 232
          %v2013 = vadd.s32 %v1983, 240
          %v2014 = vadd.s32 %v1983, 248
          %v2015 = vadd.s32 %v1983, 256
          %v2016 = vadd.s32 %v1983, 264
          %v2017 = vadd.s32 %v1983, 272
          %v2018 = vadd.s32 %v1983, 280
          %v2019 = vadd.s32 %v1983, 288
          %v2020 = vadd.s32 %v1983, 296
          %v2021 = vadd.s32 %v1983, 304
          %v2022 = vadd.s32 %v1983, 312
          %v2023 = vadd.s32 %v1983, 320
          %v2024 = vadd.s32 %v1983, 328
          %v2025 = vadd.s32 %v1983, 336
          %v2026 = vadd.s32 %v1983, 344
          %v2027 = vadd.s32 %v1983, 352
          %v2028 = vadd.s32 %v1983, 360
          %v2029 = vadd.s32 %v1983, 368
          %v2030 = vadd.s32 %v1983, 376
          %v2031 = vadd.s32 %v1983, 384
          %v2032 = vadd.s32 %v1983, 392
          %v2033 = vadd.s32 %v1983, 400
          %v2034 = vadd.s32 %v1983, 408
          %v2035 = vadd.s32 %v1983, 416
          %v2036 = vadd.s32 %v1983, 424
          %v2037 = vadd.s32 %v1983, 432
          %v2038 = vadd.s32 %v1983, 440
          %v2039 = vadd.s32 %v1983, 448
          %v2040 = vadd.s32 %v1983, 456
          %v2041 = vadd.s32 %v1983, 464
          %v2042 = vadd.s32 %v1983, 472
          %v2043 = vadd.s32 %v1983, 480
          %v2044 = vadd.s32 %v1983, 488
          %v2045 = vadd.s32 %v1983, 496
          %v2046 = vadd.s32 %v1983, 504
          %v2047 = vstv %s1635
          %v2048 = vadd.s32 %v2047, %v1983
          %v2049 = vadd.s32 %v2047, %v1984
          %v2050 = vadd.s32 %v2047, %v1985
          %v2051 = vadd.s32 %v2047, %v1986
          %v2052 = vadd.s32 %v2047, %v1987
          %v2053 = vadd.s32 %v2047, %v1988
          %v2054 = vadd.s32 %v2047, %v1989
          %v2055 = vadd.s32 %v2047, %v1990
          %v2056 = vadd.s32 %v2047, %v1991
          %v2057 = vadd.s32 %v2047, %v1992
          %v2058 = vadd.s32 %v2047, %v1993
          %v2059 = vadd.s32 %v2047, %v1994
          %v2060 = vadd.s32 %v2047, %v1995
          %v2061 = vadd.s32 %v2047, %v1996
          %v2062 = vadd.s32 %v2047, %v1997
          %v2063 = vadd.s32 %v2047, %v1998
          %v2064 = vadd.s32 %v2047, %v1999
          %v2065 = vadd.s32 %v2047, %v2000
          %v2066 = vadd.s32 %v2047, %v2001
          %v2067 = vadd.s32 %v2047, %v2002
          %v2068 = vadd.s32 %v2047, %v2003
          %v2069 = vadd.s32 %v2047, %v2004
          %v2070 = vadd.s32 %v2047, %v2005
          %v2071 = vadd.s32 %v2047, %v2006
          %v2072 = vadd.s32 %v2047, %v2007
          %v2073 = vadd.s32 %v2047, %v2008
          %v2074 = vadd.s32 %v2047, %v2009
          %v2075 = vadd.s32 %v2047, %v2010
          %v2076 = vadd.s32 %v2047, %v2011
          %v2077 = vadd.s32 %v2047, %v2012
          %v2078 = vadd.s32 %v2047, %v2013
          %v2079 = vadd.s32 %v2047, %v2014
          %v2080 = vadd.s32 %v2047, %v2015
          %v2081 = vadd.s32 %v2047, %v2016
          %v2082 = vadd.s32 %v2047, %v2017
          %v2083 = vadd.s32 %v2047, %v2018
          %v2084 = vadd.s32 %v2047, %v2019
          %v2085 = vadd.s32 %v2047, %v2020
          %v2086 = vadd.s32 %v2047, %v2021
          %v2087 = vadd.s32 %v2047, %v2022
          %v2088 = vadd.s32 %v2047, %v2023
          %v2089 = vadd.s32 %v2047, %v2024
          %v2090 = vadd.s32 %v2047, %v2025
          %v2091 = vadd.s32 %v2047, %v2026
          %v2092 = vadd.s32 %v2047, %v2027
          %v2093 = vadd.s32 %v2047, %v2028
          %v2094 = vadd.s32 %v2047, %v2029
          %v2095 = vadd.s32 %v2047, %v2030
          %v2096 = vadd.s32 %v2047, %v2031
          %v2097 = vadd.s32 %v2047, %v2032
          %v2098 = vadd.s32 %v2047, %v2033
          %v2099 = vadd.s32 %v2047, %v2034
          %v2100 = vadd.s32 %v2047, %v2035
          %v2101 = vadd.s32 %v2047, %v2036
          %v2102 = vadd.s32 %v2047, %v2037
          %v2103 = vadd.s32 %v2047, %v2038
          %v2104 = vadd.s32 %v2047, %v2039
          %v2105 = vadd.s32 %v2047, %v2040
          %v2106 = vadd.s32 %v2047, %v2041
          %v2107 = vadd.s32 %v2047, %v2042
          %v2108 = vadd.s32 %v2047, %v2043
          %v2109 = vadd.s32 %v2047, %v2044
          %v2110 = vadd.s32 %v2047, %v2045
          %v2111 = vadd.s32 %v2047, %v2046
          %vm2112 = vcmp.lt.s32.totalorder %v2048, 2304
          %vm2113 = vcmp.lt.s32.totalorder %v2049, 2304
          %vm2114 = vcmp.lt.s32.totalorder %v2050, 2304
          %vm2115 = vcmp.lt.s32.totalorder %v2051, 2304
          %vm2116 = vcmp.lt.s32.totalorder %v2052, 2304
          %vm2117 = vcmp.lt.s32.totalorder %v2053, 2304
          %vm2118 = vcmp.lt.s32.totalorder %v2054, 2304
          %vm2119 = vcmp.lt.s32.totalorder %v2055, 2304
          %vm2120 = vcmp.lt.s32.totalorder %v2056, 2304
          %vm2121 = vcmp.lt.s32.totalorder %v2057, 2304
          %vm2122 = vcmp.lt.s32.totalorder %v2058, 2304
          %vm2123 = vcmp.lt.s32.totalorder %v2059, 2304
          %vm2124 = vcmp.lt.s32.totalorder %v2060, 2304
          %vm2125 = vcmp.lt.s32.totalorder %v2061, 2304
          %vm2126 = vcmp.lt.s32.totalorder %v2062, 2304
          %vm2127 = vcmp.lt.s32.totalorder %v2063, 2304
          %vm2128 = vcmp.lt.s32.totalorder %v2064, 2304
          %vm2129 = vcmp.lt.s32.totalorder %v2065, 2304
          %vm2130 = vcmp.lt.s32.totalorder %v2066, 2304
          %vm2131 = vcmp.lt.s32.totalorder %v2067, 2304
          %vm2132 = vcmp.lt.s32.totalorder %v2068, 2304
          %vm2133 = vcmp.lt.s32.totalorder %v2069, 2304
          %vm2134 = vcmp.lt.s32.totalorder %v2070, 2304
          %vm2135 = vcmp.lt.s32.totalorder %v2071, 2304
          %vm2136 = vcmp.lt.s32.totalorder %v2072, 2304
          %vm2137 = vcmp.lt.s32.totalorder %v2073, 2304
          %vm2138 = vcmp.lt.s32.totalorder %v2074, 2304
          %vm2139 = vcmp.lt.s32.totalorder %v2075, 2304
          %vm2140 = vcmp.lt.s32.totalorder %v2076, 2304
          %vm2141 = vcmp.lt.s32.totalorder %v2077, 2304
          %vm2142 = vcmp.lt.s32.totalorder %v2078, 2304
          %vm2143 = vcmp.lt.s32.totalorder %v2079, 2304
          %vm2144 = vcmp.lt.s32.totalorder %v2080, 2304
          %vm2145 = vcmp.lt.s32.totalorder %v2081, 2304
          %vm2146 = vcmp.lt.s32.totalorder %v2082, 2304
          %vm2147 = vcmp.lt.s32.totalorder %v2083, 2304
          %vm2148 = vcmp.lt.s32.totalorder %v2084, 2304
          %vm2149 = vcmp.lt.s32.totalorder %v2085, 2304
          %vm2150 = vcmp.lt.s32.totalorder %v2086, 2304
          %vm2151 = vcmp.lt.s32.totalorder %v2087, 2304
          %vm2152 = vcmp.lt.s32.totalorder %v2088, 2304
          %vm2153 = vcmp.lt.s32.totalorder %v2089, 2304
          %vm2154 = vcmp.lt.s32.totalorder %v2090, 2304
          %vm2155 = vcmp.lt.s32.totalorder %v2091, 2304
          %vm2156 = vcmp.lt.s32.totalorder %v2092, 2304
          %vm2157 = vcmp.lt.s32.totalorder %v2093, 2304
          %vm2158 = vcmp.lt.s32.totalorder %v2094, 2304
          %vm2159 = vcmp.lt.s32.totalorder %v2095, 2304
          %vm2160 = vcmp.lt.s32.totalorder %v2096, 2304
          %vm2161 = vcmp.lt.s32.totalorder %v2097, 2304
          %vm2162 = vcmp.lt.s32.totalorder %v2098, 2304
          %vm2163 = vcmp.lt.s32.totalorder %v2099, 2304
          %vm2164 = vcmp.lt.s32.totalorder %v2100, 2304
          %vm2165 = vcmp.lt.s32.totalorder %v2101, 2304
          %vm2166 = vcmp.lt.s32.totalorder %v2102, 2304
          %vm2167 = vcmp.lt.s32.totalorder %v2103, 2304
          %vm2168 = vcmp.lt.s32.totalorder %v2104, 2304
          %vm2169 = vcmp.lt.s32.totalorder %v2105, 2304
          %vm2170 = vcmp.lt.s32.totalorder %v2106, 2304
          %vm2171 = vcmp.lt.s32.totalorder %v2107, 2304
          %vm2172 = vcmp.lt.s32.totalorder %v2108, 2304
          %vm2173 = vcmp.lt.s32.totalorder %v2109, 2304
          %vm2174 = vcmp.lt.s32.totalorder %v2110, 2304
          %vm2175 = vcmp.lt.s32.totalorder %v2111, 2304
          %v2176 = vsel %vm2112, 1, 0
          %v2177 = vsel %vm2113, 1, 0
          %v2178 = vsel %vm2114, 1, 0
          %v2179 = vsel %vm2115, 1, 0
          %v2180 = vsel %vm2116, 1, 0
          %v2181 = vsel %vm2117, 1, 0
          %v2182 = vsel %vm2118, 1, 0
          %v2183 = vsel %vm2119, 1, 0
          %v2184 = vsel %vm2120, 1, 0
          %v2185 = vsel %vm2121, 1, 0
          %v2186 = vsel %vm2122, 1, 0
          %v2187 = vsel %vm2123, 1, 0
          %v2188 = vsel %vm2124, 1, 0
          %v2189 = vsel %vm2125, 1, 0
          %v2190 = vsel %vm2126, 1, 0
          %v2191 = vsel %vm2127, 1, 0
          %v2192 = vsel %vm2128, 1, 0
          %v2193 = vsel %vm2129, 1, 0
          %v2194 = vsel %vm2130, 1, 0
          %v2195 = vsel %vm2131, 1, 0
          %v2196 = vsel %vm2132, 1, 0
          %v2197 = vsel %vm2133, 1, 0
          %v2198 = vsel %vm2134, 1, 0
          %v2199 = vsel %vm2135, 1, 0
          %v2200 = vsel %vm2136, 1, 0
          %v2201 = vsel %vm2137, 1, 0
          %v2202 = vsel %vm2138, 1, 0
          %v2203 = vsel %vm2139, 1, 0
          %v2204 = vsel %vm2140, 1, 0
          %v2205 = vsel %vm2141, 1, 0
          %v2206 = vsel %vm2142, 1, 0
          %v2207 = vsel %vm2143, 1, 0
          %v2208 = vsel %vm2144, 1, 0
          %v2209 = vsel %vm2145, 1, 0
          %v2210 = vsel %vm2146, 1, 0
          %v2211 = vsel %vm2147, 1, 0
          %v2212 = vsel %vm2148, 1, 0
          %v2213 = vsel %vm2149, 1, 0
          %v2214 = vsel %vm2150, 1, 0
          %v2215 = vsel %vm2151, 1, 0
          %v2216 = vsel %vm2152, 1, 0
          %v2217 = vsel %vm2153, 1, 0
          %v2218 = vsel %vm2154, 1, 0
          %v2219 = vsel %vm2155, 1, 0
          %v2220 = vsel %vm2156, 1, 0
          %v2221 = vsel %vm2157, 1, 0
          %v2222 = vsel %vm2158, 1, 0
          %v2223 = vsel %vm2159, 1, 0
          %v2224 = vsel %vm2160, 1, 0
          %v2225 = vsel %vm2161, 1, 0
          %v2226 = vsel %vm2162, 1, 0
          %v2227 = vsel %vm2163, 1, 0
          %v2228 = vsel %vm2164, 1, 0
          %v2229 = vsel %vm2165, 1, 0
          %v2230 = vsel %vm2166, 1, 0
          %v2231 = vsel %vm2167, 1, 0
          %v2232 = vsel %vm2168, 1, 0
          %v2233 = vsel %vm2169, 1, 0
          %v2234 = vsel %vm2170, 1, 0
          %v2235 = vsel %vm2171, 1, 0
          %v2236 = vsel %vm2172, 1, 0
          %v2237 = vsel %vm2173, 1, 0
          %v2238 = vsel %vm2174, 1, 0
          %v2239 = vsel %vm2175, 1, 0
          %vm2240 = vcmp.eq.s32.totalorder %v2176, 1
          %vm2241 = vcmp.eq.s32.totalorder %v2177, 1
          %vm2242 = vcmp.eq.s32.totalorder %v2178, 1
          %vm2243 = vcmp.eq.s32.totalorder %v2179, 1
          %vm2244 = vcmp.eq.s32.totalorder %v2180, 1
          %vm2245 = vcmp.eq.s32.totalorder %v2181, 1
          %vm2246 = vcmp.eq.s32.totalorder %v2182, 1
          %vm2247 = vcmp.eq.s32.totalorder %v2183, 1
          %vm2248 = vcmp.eq.s32.totalorder %v2184, 1
          %vm2249 = vcmp.eq.s32.totalorder %v2185, 1
          %vm2250 = vcmp.eq.s32.totalorder %v2186, 1
          %vm2251 = vcmp.eq.s32.totalorder %v2187, 1
          %vm2252 = vcmp.eq.s32.totalorder %v2188, 1
          %vm2253 = vcmp.eq.s32.totalorder %v2189, 1
          %vm2254 = vcmp.eq.s32.totalorder %v2190, 1
          %vm2255 = vcmp.eq.s32.totalorder %v2191, 1
          %vm2256 = vcmp.eq.s32.totalorder %v2192, 1
          %vm2257 = vcmp.eq.s32.totalorder %v2193, 1
          %vm2258 = vcmp.eq.s32.totalorder %v2194, 1
          %vm2259 = vcmp.eq.s32.totalorder %v2195, 1
          %vm2260 = vcmp.eq.s32.totalorder %v2196, 1
          %vm2261 = vcmp.eq.s32.totalorder %v2197, 1
          %vm2262 = vcmp.eq.s32.totalorder %v2198, 1
          %vm2263 = vcmp.eq.s32.totalorder %v2199, 1
          %vm2264 = vcmp.eq.s32.totalorder %v2200, 1
          %vm2265 = vcmp.eq.s32.totalorder %v2201, 1
          %vm2266 = vcmp.eq.s32.totalorder %v2202, 1
          %vm2267 = vcmp.eq.s32.totalorder %v2203, 1
          %vm2268 = vcmp.eq.s32.totalorder %v2204, 1
          %vm2269 = vcmp.eq.s32.totalorder %v2205, 1
          %vm2270 = vcmp.eq.s32.totalorder %v2206, 1
          %vm2271 = vcmp.eq.s32.totalorder %v2207, 1
          %vm2272 = vcmp.eq.s32.totalorder %v2208, 1
          %vm2273 = vcmp.eq.s32.totalorder %v2209, 1
          %vm2274 = vcmp.eq.s32.totalorder %v2210, 1
          %vm2275 = vcmp.eq.s32.totalorder %v2211, 1
          %vm2276 = vcmp.eq.s32.totalorder %v2212, 1
          %vm2277 = vcmp.eq.s32.totalorder %v2213, 1
          %vm2278 = vcmp.eq.s32.totalorder %v2214, 1
          %vm2279 = vcmp.eq.s32.totalorder %v2215, 1
          %vm2280 = vcmp.eq.s32.totalorder %v2216, 1
          %vm2281 = vcmp.eq.s32.totalorder %v2217, 1
          %vm2282 = vcmp.eq.s32.totalorder %v2218, 1
          %vm2283 = vcmp.eq.s32.totalorder %v2219, 1
          %vm2284 = vcmp.eq.s32.totalorder %v2220, 1
          %vm2285 = vcmp.eq.s32.totalorder %v2221, 1
          %vm2286 = vcmp.eq.s32.totalorder %v2222, 1
          %vm2287 = vcmp.eq.s32.totalorder %v2223, 1
          %vm2288 = vcmp.eq.s32.totalorder %v2224, 1
          %vm2289 = vcmp.eq.s32.totalorder %v2225, 1
          %vm2290 = vcmp.eq.s32.totalorder %v2226, 1
          %vm2291 = vcmp.eq.s32.totalorder %v2227, 1
          %vm2292 = vcmp.eq.s32.totalorder %v2228, 1
          %vm2293 = vcmp.eq.s32.totalorder %v2229, 1
          %vm2294 = vcmp.eq.s32.totalorder %v2230, 1
          %vm2295 = vcmp.eq.s32.totalorder %v2231, 1
          %vm2296 = vcmp.eq.s32.totalorder %v2232, 1
          %vm2297 = vcmp.eq.s32.totalorder %v2233, 1
          %vm2298 = vcmp.eq.s32.totalorder %v2234, 1
          %vm2299 = vcmp.eq.s32.totalorder %v2235, 1
          %vm2300 = vcmp.eq.s32.totalorder %v2236, 1
          %vm2301 = vcmp.eq.s32.totalorder %v2237, 1
          %vm2302 = vcmp.eq.s32.totalorder %v2238, 1
          %vm2303 = vcmp.eq.s32.totalorder %v2239, 1
          %v2304 = vsel %vm2240, %v1505, 0.0
          %v2305 = vsel %vm2241, %v1506, 0.0
          %v2306 = vsel %vm2242, %v1507, 0.0
          %v2307 = vsel %vm2243, %v1508, 0.0
          %v2308 = vsel %vm2244, %v1509, 0.0
          %v2309 = vsel %vm2245, %v1510, 0.0
          %v2310 = vsel %vm2246, %v1511, 0.0
          %v2311 = vsel %vm2247, %v1512, 0.0
          %v2312 = vsel %vm2248, %v1513, 0.0
          %v2313 = vsel %vm2249, %v1514, 0.0
          %v2314 = vsel %vm2250, %v1515, 0.0
          %v2315 = vsel %vm2251, %v1516, 0.0
          %v2316 = vsel %vm2252, %v1517, 0.0
          %v2317 = vsel %vm2253, %v1518, 0.0
          %v2318 = vsel %vm2254, %v1519, 0.0
          %v2319 = vsel %vm2255, %v1520, 0.0
          %v2320 = vsel %vm2256, %v1521, 0.0
          %v2321 = vsel %vm2257, %v1522, 0.0
          %v2322 = vsel %vm2258, %v1523, 0.0
          %v2323 = vsel %vm2259, %v1524, 0.0
          %v2324 = vsel %vm2260, %v1525, 0.0
          %v2325 = vsel %vm2261, %v1526, 0.0
          %v2326 = vsel %vm2262, %v1527, 0.0
          %v2327 = vsel %vm2263, %v1528, 0.0
          %v2328 = vsel %vm2264, %v1529, 0.0
          %v2329 = vsel %vm2265, %v1530, 0.0
          %v2330 = vsel %vm2266, %v1531, 0.0
          %v2331 = vsel %vm2267, %v1532, 0.0
          %v2332 = vsel %vm2268, %v1533, 0.0
          %v2333 = vsel %vm2269, %v1534, 0.0
          %v2334 = vsel %vm2270, %v1535, 0.0
          %v2335 = vsel %vm2271, %v1536, 0.0
          %v2336 = vsel %vm2272, %v1537, 0.0
          %v2337 = vsel %vm2273, %v1538, 0.0
          %v2338 = vsel %vm2274, %v1539, 0.0
          %v2339 = vsel %vm2275, %v1540, 0.0
          %v2340 = vsel %vm2276, %v1541, 0.0
          %v2341 = vsel %vm2277, %v1542, 0.0
          %v2342 = vsel %vm2278, %v1543, 0.0
          %v2343 = vsel %vm2279, %v1544, 0.0
          %v2344 = vsel %vm2280, %v1545, 0.0
          %v2345 = vsel %vm2281, %v1546, 0.0
          %v2346 = vsel %vm2282, %v1547, 0.0
          %v2347 = vsel %vm2283, %v1548, 0.0
          %v2348 = vsel %vm2284, %v1549, 0.0
          %v2349 = vsel %vm2285, %v1550, 0.0
          %v2350 = vsel %vm2286, %v1551, 0.0
          %v2351 = vsel %vm2287, %v1552, 0.0
          %v2352 = vsel %vm2288, %v1553, 0.0
          %v2353 = vsel %vm2289, %v1554, 0.0
          %v2354 = vsel %vm2290, %v1555, 0.0
          %v2355 = vsel %vm2291, %v1556, 0.0
          %v2356 = vsel %vm2292, %v1557, 0.0
          %v2357 = vsel %vm2293, %v1558, 0.0
          %v2358 = vsel %vm2294, %v1559, 0.0
          %v2359 = vsel %vm2295, %v1560, 0.0
          %v2360 = vsel %vm2296, %v1561, 0.0
          %v2361 = vsel %vm2297, %v1562, 0.0
          %v2362 = vsel %vm2298, %v1563, 0.0
          %v2363 = vsel %vm2299, %v1564, 0.0
          %v2364 = vsel %vm2300, %v1565, 0.0
          %v2365 = vsel %vm2301, %v1566, 0.0
          %v2366 = vsel %vm2302, %v1567, 0.0
          %v2367 = vsel %vm2303, %v1568, 0.0
          %v2368 = vld [vmem:[%s359] sm:$0x1]
          %v2369 = vsel %vm455, %v2304, 0.0
          %v2370 = vsel %vm455, %v2305, 0.0
          %v2371 = vadd.f32 %v2369, %v2370
          %v2372 = vsel %vm455, %v2306, 0.0
          %v2373 = vadd.f32 %v2371, %v2372
          %v2374 = vsel %vm455, %v2307, 0.0
          %v2375 = vadd.f32 %v2373, %v2374
          %v2376 = vsel %vm455, %v2308, 0.0
          %v2377 = vadd.f32 %v2375, %v2376
          %v2378 = vsel %vm455, %v2309, 0.0
          %v2379 = vadd.f32 %v2377, %v2378
          %v2380 = vsel %vm455, %v2310, 0.0
          %v2381 = vadd.f32 %v2379, %v2380
          %v2382 = vsel %vm455, %v2311, 0.0
          %v2383 = vadd.f32 %v2381, %v2382
          %v2384 = vsel %vm455, %v2312, 0.0
          %v2385 = vadd.f32 %v2383, %v2384
          %v2386 = vsel %vm455, %v2313, 0.0
          %v2387 = vadd.f32 %v2385, %v2386
          %v2388 = vsel %vm455, %v2314, 0.0
          %v2389 = vadd.f32 %v2387, %v2388
          %v2390 = vsel %vm455, %v2315, 0.0
          %v2391 = vadd.f32 %v2389, %v2390
          %v2392 = vsel %vm455, %v2316, 0.0
          %v2393 = vadd.f32 %v2391, %v2392
          %v2394 = vsel %vm455, %v2317, 0.0
          %v2395 = vadd.f32 %v2393, %v2394
          %v2396 = vsel %vm455, %v2318, 0.0
          %v2397 = vadd.f32 %v2395, %v2396
          %v2398 = vsel %vm455, %v2319, 0.0
          %v2399 = vadd.f32 %v2397, %v2398
          %v2400 = vsel %vm455, %v2320, 0.0
          %v2401 = vadd.f32 %v2399, %v2400
          %v2402 = vsel %vm455, %v2321, 0.0
          %v2403 = vadd.f32 %v2401, %v2402
          %v2404 = vsel %vm455, %v2322, 0.0
          %v2405 = vadd.f32 %v2403, %v2404
          %v2406 = vsel %vm455, %v2323, 0.0
          %v2407 = vadd.f32 %v2405, %v2406
          %v2408 = vsel %vm455, %v2324, 0.0
          %v2409 = vadd.f32 %v2407, %v2408
          %v2410 = vsel %vm455, %v2325, 0.0
          %v2411 = vadd.f32 %v2409, %v2410
          %v2412 = vsel %vm455, %v2326, 0.0
          %v2413 = vadd.f32 %v2411, %v2412
          %v2414 = vsel %vm455, %v2327, 0.0
          %v2415 = vadd.f32 %v2413, %v2414
          %v2416 = vsel %vm455, %v2328, 0.0
          %v2417 = vadd.f32 %v2415, %v2416
          %v2418 = vsel %vm455, %v2329, 0.0
          %v2419 = vadd.f32 %v2417, %v2418
          %v2420 = vsel %vm455, %v2330, 0.0
          %v2421 = vadd.f32 %v2419, %v2420
          %v2422 = vsel %vm455, %v2331, 0.0
          %v2423 = vadd.f32 %v2421, %v2422
          %v2424 = vsel %vm455, %v2332, 0.0
          %v2425 = vadd.f32 %v2423, %v2424
          %v2426 = vsel %vm455, %v2333, 0.0
          %v2427 = vadd.f32 %v2425, %v2426
          %v2428 = vsel %vm455, %v2334, 0.0
          %v2429 = vadd.f32 %v2427, %v2428
          %v2430 = vsel %vm455, %v2335, 0.0
          %v2431 = vadd.f32 %v2429, %v2430
          %v2432 = vsel %vm455, %v2336, 0.0
          %v2433 = vadd.f32 %v2431, %v2432
          %v2434 = vsel %vm455, %v2337, 0.0
          %v2435 = vadd.f32 %v2433, %v2434
          %v2436 = vsel %vm455, %v2338, 0.0
          %v2437 = vadd.f32 %v2435, %v2436
          %v2438 = vsel %vm455, %v2339, 0.0
          %v2439 = vadd.f32 %v2437, %v2438
          %v2440 = vsel %vm455, %v2340, 0.0
          %v2441 = vadd.f32 %v2439, %v2440
          %v2442 = vsel %vm455, %v2341, 0.0
          %v2443 = vadd.f32 %v2441, %v2442
          %v2444 = vsel %vm455, %v2342, 0.0
          %v2445 = vadd.f32 %v2443, %v2444
          %v2446 = vsel %vm455, %v2343, 0.0
          %v2447 = vadd.f32 %v2445, %v2446
          %v2448 = vsel %vm455, %v2344, 0.0
          %v2449 = vadd.f32 %v2447, %v2448
          %v2450 = vsel %vm455, %v2345, 0.0
          %v2451 = vadd.f32 %v2449, %v2450
          %v2452 = vsel %vm455, %v2346, 0.0
          %v2453 = vadd.f32 %v2451, %v2452
          %v2454 = vsel %vm455, %v2347, 0.0
          %v2455 = vadd.f32 %v2453, %v2454
          %v2456 = vsel %vm455, %v2348, 0.0
          %v2457 = vadd.f32 %v2455, %v2456
          %v2458 = vsel %vm455, %v2349, 0.0
          %v2459 = vadd.f32 %v2457, %v2458
          %v2460 = vsel %vm455, %v2350, 0.0
          %v2461 = vadd.f32 %v2459, %v2460
          %v2462 = vsel %vm455, %v2351, 0.0
          %v2463 = vadd.f32 %v2461, %v2462
          %v2464 = vsel %vm455, %v2352, 0.0
          %v2465 = vadd.f32 %v2463, %v2464
          %v2466 = vsel %vm455, %v2353, 0.0
          %v2467 = vadd.f32 %v2465, %v2466
          %v2468 = vsel %vm455, %v2354, 0.0
          %v2469 = vadd.f32 %v2467, %v2468
          %v2470 = vsel %vm455, %v2355, 0.0
          %v2471 = vadd.f32 %v2469, %v2470
          %v2472 = vsel %vm455, %v2356, 0.0
          %v2473 = vadd.f32 %v2471, %v2472
          %v2474 = vsel %vm455, %v2357, 0.0
          %v2475 = vadd.f32 %v2473, %v2474
          %v2476 = vsel %vm455, %v2358, 0.0
          %v2477 = vadd.f32 %v2475, %v2476
          %v2478 = vsel %vm455, %v2359, 0.0
          %v2479 = vadd.f32 %v2477, %v2478
          %v2480 = vsel %vm455, %v2360, 0.0
          %v2481 = vadd.f32 %v2479, %v2480
          %v2482 = vsel %vm455, %v2361, 0.0
          %v2483 = vadd.f32 %v2481, %v2482
          %v2484 = vsel %vm455, %v2362, 0.0
          %v2485 = vadd.f32 %v2483, %v2484
          %v2486 = vsel %vm455, %v2363, 0.0
          %v2487 = vadd.f32 %v2485, %v2486
          %v2488 = vsel %vm455, %v2364, 0.0
          %v2489 = vadd.f32 %v2487, %v2488
          %v2490 = vsel %vm455, %v2365, 0.0
          %v2491 = vadd.f32 %v2489, %v2490
          %v2492 = vsel %vm455, %v2366, 0.0
          %v2493 = vadd.f32 %v2491, %v2492
          %v2494 = vsel %vm455, %v2367, 0.0
          %v2495 = vadd.f32 %v2493, %v2494
          %v2496 = vrot.slane %v2495, 4
          %v2497 = vadd.f32 %v2495, %v2496
          %v2498 = vrot.slane %v2497, 2
          %v2499 = vadd.f32 %v2497, %v2498
          %v2500 = vrot.slane %v2499, 1
          %v2501 = vadd.f32 %v2499, %v2500
          %v2502 = vadd.f32 %v2368, %v2501
          %vm2503 = vcmask 253952
          %2504 = vst.msk [vmem:[%s359] sm:$0x1] %vm2503, %v2502
          %v2505 = vld [vmem:[%s363] sm:$0x1]
          %v2506 = vmul.f32 %v2304, %v2304
          %v2507 = vmul.f32 %v2305, %v2305
          %v2508 = vmul.f32 %v2306, %v2306
          %v2509 = vmul.f32 %v2307, %v2307
          %v2510 = vmul.f32 %v2308, %v2308
          %v2511 = vmul.f32 %v2309, %v2309
          %v2512 = vmul.f32 %v2310, %v2310
          %v2513 = vmul.f32 %v2311, %v2311
          %v2514 = vmul.f32 %v2312, %v2312
          %v2515 = vmul.f32 %v2313, %v2313
          %v2516 = vmul.f32 %v2314, %v2314
          %v2517 = vmul.f32 %v2315, %v2315
          %v2518 = vmul.f32 %v2316, %v2316
          %v2519 = vmul.f32 %v2317, %v2317
          %v2520 = vmul.f32 %v2318, %v2318
          %v2521 = vmul.f32 %v2319, %v2319
          %v2522 = vmul.f32 %v2320, %v2320
          %v2523 = vmul.f32 %v2321, %v2321
          %v2524 = vmul.f32 %v2322, %v2322
          %v2525 = vmul.f32 %v2323, %v2323
          %v2526 = vmul.f32 %v2324, %v2324
          %v2527 = vmul.f32 %v2325, %v2325
          %v2528 = vmul.f32 %v2326, %v2326
          %v2529 = vmul.f32 %v2327, %v2327
          %v2530 = vmul.f32 %v2328, %v2328
          %v2531 = vmul.f32 %v2329, %v2329
          %v2532 = vmul.f32 %v2330, %v2330
          %v2533 = vmul.f32 %v2331, %v2331
          %v2534 = vmul.f32 %v2332, %v2332
          %v2535 = vmul.f32 %v2333, %v2333
          %v2536 = vmul.f32 %v2334, %v2334
          %v2537 = vmul.f32 %v2335, %v2335
          %v2538 = vmul.f32 %v2336, %v2336
          %v2539 = vmul.f32 %v2337, %v2337
          %v2540 = vmul.f32 %v2338, %v2338
          %v2541 = vmul.f32 %v2339, %v2339
          %v2542 = vmul.f32 %v2340, %v2340
          %v2543 = vmul.f32 %v2341, %v2341
          %v2544 = vmul.f32 %v2342, %v2342
          %v2545 = vmul.f32 %v2343, %v2343
          %v2546 = vmul.f32 %v2344, %v2344
          %v2547 = vmul.f32 %v2345, %v2345
          %v2548 = vmul.f32 %v2346, %v2346
          %v2549 = vmul.f32 %v2347, %v2347
          %v2550 = vmul.f32 %v2348, %v2348
          %v2551 = vmul.f32 %v2349, %v2349
          %v2552 = vmul.f32 %v2350, %v2350
          %v2553 = vmul.f32 %v2351, %v2351
          %v2554 = vmul.f32 %v2352, %v2352
          %v2555 = vmul.f32 %v2353, %v2353
          %v2556 = vmul.f32 %v2354, %v2354
          %v2557 = vmul.f32 %v2355, %v2355
          %v2558 = vmul.f32 %v2356, %v2356
          %v2559 = vmul.f32 %v2357, %v2357
          %v2560 = vmul.f32 %v2358, %v2358
          %v2561 = vmul.f32 %v2359, %v2359
          %v2562 = vmul.f32 %v2360, %v2360
          %v2563 = vmul.f32 %v2361, %v2361
          %v2564 = vmul.f32 %v2362, %v2362
          %v2565 = vmul.f32 %v2363, %v2363
          %v2566 = vmul.f32 %v2364, %v2364
          %v2567 = vmul.f32 %v2365, %v2365
          %v2568 = vmul.f32 %v2366, %v2366
          %v2569 = vmul.f32 %v2367, %v2367
          %v2570 = vsel %vm455, %v2506, 0.0
          %v2571 = vsel %vm455, %v2507, 0.0
          %v2572 = vadd.f32 %v2570, %v2571
          %v2573 = vsel %vm455, %v2508, 0.0
          %v2574 = vadd.f32 %v2572, %v2573
          %v2575 = vsel %vm455, %v2509, 0.0
          %v2576 = vadd.f32 %v2574, %v2575
          %v2577 = vsel %vm455, %v2510, 0.0
          %v2578 = vadd.f32 %v2576, %v2577
          %v2579 = vsel %vm455, %v2511, 0.0
          %v2580 = vadd.f32 %v2578, %v2579
          %v2581 = vsel %vm455, %v2512, 0.0
          %v2582 = vadd.f32 %v2580, %v2581
          %v2583 = vsel %vm455, %v2513, 0.0
          %v2584 = vadd.f32 %v2582, %v2583
          %v2585 = vsel %vm455, %v2514, 0.0
          %v2586 = vadd.f32 %v2584, %v2585
          %v2587 = vsel %vm455, %v2515, 0.0
          %v2588 = vadd.f32 %v2586, %v2587
          %v2589 = vsel %vm455, %v2516, 0.0
          %v2590 = vadd.f32 %v2588, %v2589
          %v2591 = vsel %vm455, %v2517, 0.0
          %v2592 = vadd.f32 %v2590, %v2591
          %v2593 = vsel %vm455, %v2518, 0.0
          %v2594 = vadd.f32 %v2592, %v2593
          %v2595 = vsel %vm455, %v2519, 0.0
          %v2596 = vadd.f32 %v2594, %v2595
          %v2597 = vsel %vm455, %v2520, 0.0
          %v2598 = vadd.f32 %v2596, %v2597
          %v2599 = vsel %vm455, %v2521, 0.0
          %v2600 = vadd.f32 %v2598, %v2599
          %v2601 = vsel %vm455, %v2522, 0.0
          %v2602 = vadd.f32 %v2600, %v2601
          %v2603 = vsel %vm455, %v2523, 0.0
          %v2604 = vadd.f32 %v2602, %v2603
          %v2605 = vsel %vm455, %v2524, 0.0
          %v2606 = vadd.f32 %v2604, %v2605
          %v2607 = vsel %vm455, %v2525, 0.0
          %v2608 = vadd.f32 %v2606, %v2607
          %v2609 = vsel %vm455, %v2526, 0.0
          %v2610 = vadd.f32 %v2608, %v2609
          %v2611 = vsel %vm455, %v2527, 0.0
          %v2612 = vadd.f32 %v2610, %v2611
          %v2613 = vsel %vm455, %v2528, 0.0
          %v2614 = vadd.f32 %v2612, %v2613
          %v2615 = vsel %vm455, %v2529, 0.0
          %v2616 = vadd.f32 %v2614, %v2615
          %v2617 = vsel %vm455, %v2530, 0.0
          %v2618 = vadd.f32 %v2616, %v2617
          %v2619 = vsel %vm455, %v2531, 0.0
          %v2620 = vadd.f32 %v2618, %v2619
          %v2621 = vsel %vm455, %v2532, 0.0
          %v2622 = vadd.f32 %v2620, %v2621
          %v2623 = vsel %vm455, %v2533, 0.0
          %v2624 = vadd.f32 %v2622, %v2623
          %v2625 = vsel %vm455, %v2534, 0.0
          %v2626 = vadd.f32 %v2624, %v2625
          %v2627 = vsel %vm455, %v2535, 0.0
          %v2628 = vadd.f32 %v2626, %v2627
          %v2629 = vsel %vm455, %v2536, 0.0
          %v2630 = vadd.f32 %v2628, %v2629
          %v2631 = vsel %vm455, %v2537, 0.0
          %v2632 = vadd.f32 %v2630, %v2631
          %v2633 = vsel %vm455, %v2538, 0.0
          %v2634 = vadd.f32 %v2632, %v2633
          %v2635 = vsel %vm455, %v2539, 0.0
          %v2636 = vadd.f32 %v2634, %v2635
          %v2637 = vsel %vm455, %v2540, 0.0
          %v2638 = vadd.f32 %v2636, %v2637
          %v2639 = vsel %vm455, %v2541, 0.0
          %v2640 = vadd.f32 %v2638, %v2639
          %v2641 = vsel %vm455, %v2542, 0.0
          %v2642 = vadd.f32 %v2640, %v2641
          %v2643 = vsel %vm455, %v2543, 0.0
          %v2644 = vadd.f32 %v2642, %v2643
          %v2645 = vsel %vm455, %v2544, 0.0
          %v2646 = vadd.f32 %v2644, %v2645
          %v2647 = vsel %vm455, %v2545, 0.0
          %v2648 = vadd.f32 %v2646, %v2647
          %v2649 = vsel %vm455, %v2546, 0.0
          %v2650 = vadd.f32 %v2648, %v2649
          %v2651 = vsel %vm455, %v2547, 0.0
          %v2652 = vadd.f32 %v2650, %v2651
          %v2653 = vsel %vm455, %v2548, 0.0
          %v2654 = vadd.f32 %v2652, %v2653
          %v2655 = vsel %vm455, %v2549, 0.0
          %v2656 = vadd.f32 %v2654, %v2655
          %v2657 = vsel %vm455, %v2550, 0.0
          %v2658 = vadd.f32 %v2656, %v2657
          %v2659 = vsel %vm455, %v2551, 0.0
          %v2660 = vadd.f32 %v2658, %v2659
          %v2661 = vsel %vm455, %v2552, 0.0
          %v2662 = vadd.f32 %v2660, %v2661
          %v2663 = vsel %vm455, %v2553, 0.0
          %v2664 = vadd.f32 %v2662, %v2663
          %v2665 = vsel %vm455, %v2554, 0.0
          %v2666 = vadd.f32 %v2664, %v2665
          %v2667 = vsel %vm455, %v2555, 0.0
          %v2668 = vadd.f32 %v2666, %v2667
          %v2669 = vsel %vm455, %v2556, 0.0
          %v2670 = vadd.f32 %v2668, %v2669
          %v2671 = vsel %vm455, %v2557, 0.0
          %v2672 = vadd.f32 %v2670, %v2671
          %v2673 = vsel %vm455, %v2558, 0.0
          %v2674 = vadd.f32 %v2672, %v2673
          %v2675 = vsel %vm455, %v2559, 0.0
          %v2676 = vadd.f32 %v2674, %v2675
          %v2677 = vsel %vm455, %v2560, 0.0
          %v2678 = vadd.f32 %v2676, %v2677
          %v2679 = vsel %vm455, %v2561, 0.0
          %v2680 = vadd.f32 %v2678, %v2679
          %v2681 = vsel %vm455, %v2562, 0.0
          %v2682 = vadd.f32 %v2680, %v2681
          %v2683 = vsel %vm455, %v2563, 0.0
          %v2684 = vadd.f32 %v2682, %v2683
          %v2685 = vsel %vm455, %v2564, 0.0
          %v2686 = vadd.f32 %v2684, %v2685
          %v2687 = vsel %vm455, %v2565, 0.0
          %v2688 = vadd.f32 %v2686, %v2687
          %v2689 = vsel %vm455, %v2566, 0.0
          %v2690 = vadd.f32 %v2688, %v2689
          %v2691 = vsel %vm455, %v2567, 0.0
          %v2692 = vadd.f32 %v2690, %v2691
          %v2693 = vsel %vm455, %v2568, 0.0
          %v2694 = vadd.f32 %v2692, %v2693
          %v2695 = vsel %vm455, %v2569, 0.0
          %v2696 = vadd.f32 %v2694, %v2695
          %v2697 = vrot.slane %v2696, 4
          %v2698 = vadd.f32 %v2696, %v2697
          %v2699 = vrot.slane %v2698, 2
          %v2700 = vadd.f32 %v2698, %v2699
          %v2701 = vrot.slane %v2700, 1
          %v2702 = vadd.f32 %v2700, %v2701
          %v2703 = vadd.f32 %v2505, %v2702
          %2704 = vst.msk [vmem:[%s363] sm:$0x1] %vm2503, %v2703
        $region52: #{pixel_classifier_forward.4} parent=39 // pred_fallthru
          _
        %p2705 = scmp.lt.s32.totalorder %s23, 1
        %s2706 = scalar_select %p2705, %s23, 1
        %s2707 = smul.addr %s2706, 8
        %s2708 = scalar_lea.vmem %s5, %s2707
        %p2709 = scmp.lt.s32.totalorder %s23, 1
        %s2710 = scalar_select %p2709, %s23, 1
        %s2711 = smul.addr %s2710, 8
        %s2712 = scalar_lea.vmem %s6, %s2711
        %s2713 = sand.u32 %s217, 1
        %s2714 = sand.u32 %s217, 1
        %s2715 = smul.addr %s2714, 512
        %s2716 = scalar_lea.vmem [#allocation2], %s2715
        // Predicated region
        $region53: #{pixel_classifier_forward.4} parent=39 // pred_check
          %p2717 = pneg %p167
        $region54: #{pixel_classifier_forward.4} parent=39 // pred_check_branch
          %2719 = sbr.rel (%p2717) target = $region56
        $region55: #{pixel_classifier_forward.4} parent=39 // pred_region
          _
        $region56: #{pixel_classifier_forward.4} parent=39 // pred_fallthru
          _
        // Predicated region
        $region57: #{pixel_classifier_forward.4} parent=39 // pred_check
          %p2720 = pneg %p193
        $region58: #{pixel_classifier_forward.4} parent=39 // pred_check_branch
          %2722 = sbr.rel (%p2720) target = $region60
        $region59: #{pixel_classifier_forward.4} parent=39 // pred_region
          _
        $region60: #{pixel_classifier_forward.4} parent=39 // pred_fallthru
          _
        // Predicated region
        $region61: #{pixel_classifier_forward.4} parent=39 // pred_check
          %p2723 = pneg %p227
        $region62: #{pixel_classifier_forward.4} parent=39 // pred_check_branch
          %2725 = sbr.rel (%p2723) target = $region64
        $region63: #{pixel_classifier_forward.4} parent=39 // pred_region
          %s2726 = smul.u32 %s23, 3
          %s2727 = sadd.s32 %s2726, %s24
          %p2728 = scmp.lt.s32.totalorder %s2727, 4
          %s2729 = scalar_select %p2728, %s2727, 4
          %s2730 = smul.u32 64, %s2729
          %s2731 = ssub.s32 288, %s2730
          %p2732 = scmp.lt.s32.totalorder %s2731, 64
          %s2733 = scalar_select %p2732, %s2731, 64
          %s2734 = smul.u32 128, %s2733
          %p2735 = scmp.ne.s32.totalorder 0, %s2734
          %s2736 = smul.addr %s2730, 8
          %s2737 = scalar_lea.vmem %s7, %s2736
          // Predicated region
          $region65: #{pixel_classifier_forward.4} parent=63 // pred_check
            %p2738 = pneg %p2735
          $region66: #{pixel_classifier_forward.4} parent=63 // pred_check_branch
            %2740 = sbr.rel (%p2738) target = $region68
          $region67: #{pixel_classifier_forward.4} parent=63 // pred_region
            // Predicated region
            $region69: #{pixel_classifier_forward.4} parent=67 // pred_check
              _
            $region70: #{pixel_classifier_forward.4} parent=67 // pred_check_branch
              %2742 = sbr.rel (0) target = $region72
            $region71: #{pixel_classifier_forward.4} parent=67 // pred_region
              // Predicated region
              $region91: #{pixel_classifier_forward.4} parent=71 // pred_check
                _
              $region92: #{pixel_classifier_forward.4} parent=71 // pred_check_branch
                %2917 = sbr.rel (0) target = $region94
              $region93: #{pixel_classifier_forward.4} parent=71 // pred_region
                %s2918 = sshrl.u32 %s2733, 6
                // While loop
                $region95: #{pixel_classifier_forward.4} parent=93 // loop_pre_header
                  _
                $region96: #{pixel_classifier_forward.4} parent=93 // loop_header
                  %s2920 = sphi 0, %s2922
                  %p2921 = scmp.ge.s32.totalorder %s2920, %s2918
                  %s2925 = sphi 0, %s3058
                  %s2926 = sphi %s2716, %s3061
                  %s2927 = sphi %s2737, %s3062
                $region97: #{pixel_classifier_forward.4} parent=93 // loop_header_branch
                  %2924 = sbr.rel (%p2921) target = $region101
                $region98: #{pixel_classifier_forward.4} parent=93 // loop_body
                  %v2928 = vld [vmem:[%s2926] sm:$0xff]
                  %2929 = vst [vmem:[%s2927] sm:$0xff] %v2928
                  %v2930 = vld [vmem:[%s2926 + $0x8] sm:$0xff]
                  %2931 = vst [vmem:[%s2927 + $0x8] sm:$0xff] %v2930
                  %v2932 = vld [vmem:[%s2926 + $0x10] sm:$0xff]
                  %2933 = vst [vmem:[%s2927 + $0x10] sm:$0xff] %v2932
                  %v2934 = vld [vmem:[%s2926 + $0x18] sm:$0xff]
                  %2935 = vst [vmem:[%s2927 + $0x18] sm:$0xff] %v2934
                  %v2936 = vld [vmem:[%s2926 + $0x20] sm:$0xff]
                  %2937 = vst [vmem:[%s2927 + $0x20] sm:$0xff] %v2936
                  %v2938 = vld [vmem:[%s2926 + $0x28] sm:$0xff]
                  %2939 = vst [vmem:[%s2927 + $0x28] sm:$0xff] %v2938
                  %v2940 = vld [vmem:[%s2926 + $0x30] sm:$0xff]
                  %2941 = vst [vmem:[%s2927 + $0x30] sm:$0xff] %v2940
                  %v2942 = vld [vmem:[%s2926 + $0x38] sm:$0xff]
                  %2943 = vst [vmem:[%s2927 + $0x38] sm:$0xff] %v2942
                  %v2944 = vld [vmem:[%s2926 + $0x40] sm:$0xff]
                  %2945 = vst [vmem:[%s2927 + $0x40] sm:$0xff] %v2944
                  %v2946 = vld [vmem:[%s2926 + $0x48] sm:$0xff]
                  %2947 = vst [vmem:[%s2927 + $0x48] sm:$0xff] %v2946
                  %v2948 = vld [vmem:[%s2926 + $0x50] sm:$0xff]
                  %2949 = vst [vmem:[%s2927 + $0x50] sm:$0xff] %v2948
                  %v2950 = vld [vmem:[%s2926 + $0x58] sm:$0xff]
                  %2951 = vst [vmem:[%s2927 + $0x58] sm:$0xff] %v2950
                  %v2952 = vld [vmem:[%s2926 + $0x60] sm:$0xff]
                  %2953 = vst [vmem:[%s2927 + $0x60] sm:$0xff] %v2952
                  %v2954 = vld [vmem:[%s2926 + $0x68] sm:$0xff]
                  %2955 = vst [vmem:[%s2927 + $0x68] sm:$0xff] %v2954
                  %v2956 = vld [vmem:[%s2926 + $0x70] sm:$0xff]
                  %2957 = vst [vmem:[%s2927 + $0x70] sm:$0xff] %v2956
                  %v2958 = vld [vmem:[%s2926 + $0x78] sm:$0xff]
                  %2959 = vst [vmem:[%s2927 + $0x78] sm:$0xff] %v2958
                  %v2960 = vld [vmem:[%s2926 + $0x80] sm:$0xff]
                  %2961 = vst [vmem:[%s2927 + $0x80] sm:$0xff] %v2960
                  %v2962 = vld [vmem:[%s2926 + $0x88] sm:$0xff]
                  %2963 = vst [vmem:[%s2927 + $0x88] sm:$0xff] %v2962
                  %v2964 = vld [vmem:[%s2926 + $0x90] sm:$0xff]
                  %2965 = vst [vmem:[%s2927 + $0x90] sm:$0xff] %v2964
                  %v2966 = vld [vmem:[%s2926 + $0x98] sm:$0xff]
                  %2967 = vst [vmem:[%s2927 + $0x98] sm:$0xff] %v2966
                  %v2968 = vld [vmem:[%s2926 + $0xa0] sm:$0xff]
                  %2969 = vst [vmem:[%s2927 + $0xa0] sm:$0xff] %v2968
                  %v2970 = vld [vmem:[%s2926 + $0xa8] sm:$0xff]
                  %2971 = vst [vmem:[%s2927 + $0xa8] sm:$0xff] %v2970
                  %v2972 = vld [vmem:[%s2926 + $0xb0] sm:$0xff]
                  %2973 = vst [vmem:[%s2927 + $0xb0] sm:$0xff] %v2972
                  %v2974 = vld [vmem:[%s2926 + $0xb8] sm:$0xff]
                  %2975 = vst [vmem:[%s2927 + $0xb8] sm:$0xff] %v2974
                  %v2976 = vld [vmem:[%s2926 + $0xc0] sm:$0xff]
                  %2977 = vst [vmem:[%s2927 + $0xc0] sm:$0xff] %v2976
                  %v2978 = vld [vmem:[%s2926 + $0xc8] sm:$0xff]
                  %2979 = vst [vmem:[%s2927 + $0xc8] sm:$0xff] %v2978
                  %v2980 = vld [vmem:[%s2926 + $0xd0] sm:$0xff]
                  %2981 = vst [vmem:[%s2927 + $0xd0] sm:$0xff] %v2980
                  %v2982 = vld [vmem:[%s2926 + $0xd8] sm:$0xff]
                  %2983 = vst [vmem:[%s2927 + $0xd8] sm:$0xff] %v2982
                  %v2984 = vld [vmem:[%s2926 + $0xe0] sm:$0xff]
                  %2985 = vst [vmem:[%s2927 + $0xe0] sm:$0xff] %v2984
                  %v2986 = vld [vmem:[%s2926 + $0xe8] sm:$0xff]
                  %2987 = vst [vmem:[%s2927 + $0xe8] sm:$0xff] %v2986
                  %v2988 = vld [vmem:[%s2926 + $0xf0] sm:$0xff]
                  %2989 = vst [vmem:[%s2927 + $0xf0] sm:$0xff] %v2988
                  %v2990 = vld [vmem:[%s2926 + $0xf8] sm:$0xff]
                  %2991 = vst [vmem:[%s2927 + $0xf8] sm:$0xff] %v2990
                  %v2992 = vld [vmem:[%s2926 + $0x100] sm:$0xff]
                  %2993 = vst [vmem:[%s2927 + $0x100] sm:$0xff] %v2992
                  %v2994 = vld [vmem:[%s2926 + $0x108] sm:$0xff]
                  %2995 = vst [vmem:[%s2927 + $0x108] sm:$0xff] %v2994
                  %v2996 = vld [vmem:[%s2926 + $0x110] sm:$0xff]
                  %2997 = vst [vmem:[%s2927 + $0x110] sm:$0xff] %v2996
                  %v2998 = vld [vmem:[%s2926 + $0x118] sm:$0xff]
                  %2999 = vst [vmem:[%s2927 + $0x118] sm:$0xff] %v2998
                  %v3000 = vld [vmem:[%s2926 + $0x120] sm:$0xff]
                  %3001 = vst [vmem:[%s2927 + $0x120] sm:$0xff] %v3000
                  %v3002 = vld [vmem:[%s2926 + $0x128] sm:$0xff]
                  %3003 = vst [vmem:[%s2927 + $0x128] sm:$0xff] %v3002
                  %v3004 = vld [vmem:[%s2926 + $0x130] sm:$0xff]
                  %3005 = vst [vmem:[%s2927 + $0x130] sm:$0xff] %v3004
                  %v3006 = vld [vmem:[%s2926 + $0x138] sm:$0xff]
                  %3007 = vst [vmem:[%s2927 + $0x138] sm:$0xff] %v3006
                  %v3008 = vld [vmem:[%s2926 + $0x140] sm:$0xff]
                  %3009 = vst [vmem:[%s2927 + $0x140] sm:$0xff] %v3008
                  %v3010 = vld [vmem:[%s2926 + $0x148] sm:$0xff]
                  %3011 = vst [vmem:[%s2927 + $0x148] sm:$0xff] %v3010
                  %v3012 = vld [vmem:[%s2926 + $0x150] sm:$0xff]
                  %3013 = vst [vmem:[%s2927 + $0x150] sm:$0xff] %v3012
                  %v3014 = vld [vmem:[%s2926 + $0x158] sm:$0xff]
                  %3015 = vst [vmem:[%s2927 + $0x158] sm:$0xff] %v3014
                  %v3016 = vld [vmem:[%s2926 + $0x160] sm:$0xff]
                  %3017 = vst [vmem:[%s2927 + $0x160] sm:$0xff] %v3016
                  %v3018 = vld [vmem:[%s2926 + $0x168] sm:$0xff]
                  %3019 = vst [vmem:[%s2927 + $0x168] sm:$0xff] %v3018
                  %v3020 = vld [vmem:[%s2926 + $0x170] sm:$0xff]
                  %3021 = vst [vmem:[%s2927 + $0x170] sm:$0xff] %v3020
                  %v3022 = vld [vmem:[%s2926 + $0x178] sm:$0xff]
                  %3023 = vst [vmem:[%s2927 + $0x178] sm:$0xff] %v3022
                  %v3024 = vld [vmem:[%s2926 + $0x180] sm:$0xff]
                  %3025 = vst [vmem:[%s2927 + $0x180] sm:$0xff] %v3024
                  %v3026 = vld [vmem:[%s2926 + $0x188] sm:$0xff]
                  %3027 = vst [vmem:[%s2927 + $0x188] sm:$0xff] %v3026
                  %v3028 = vld [vmem:[%s2926 + $0x190] sm:$0xff]
                  %3029 = vst [vmem:[%s2927 + $0x190] sm:$0xff] %v3028
                  %v3030 = vld [vmem:[%s2926 + $0x198] sm:$0xff]
                  %3031 = vst [vmem:[%s2927 + $0x198] sm:$0xff] %v3030
                  %v3032 = vld [vmem:[%s2926 + $0x1a0] sm:$0xff]
                  %3033 = vst [vmem:[%s2927 + $0x1a0] sm:$0xff] %v3032
                  %v3034 = vld [vmem:[%s2926 + $0x1a8] sm:$0xff]
                  %3035 = vst [vmem:[%s2927 + $0x1a8] sm:$0xff] %v3034
                  %v3036 = vld [vmem:[%s2926 + $0x1b0] sm:$0xff]
                  %3037 = vst [vmem:[%s2927 + $0x1b0] sm:$0xff] %v3036
                  %v3038 = vld [vmem:[%s2926 + $0x1b8] sm:$0xff]
                  %3039 = vst [vmem:[%s2927 + $0x1b8] sm:$0xff] %v3038
                  %v3040 = vld [vmem:[%s2926 + $0x1c0] sm:$0xff]
                  %3041 = vst [vmem:[%s2927 + $0x1c0] sm:$0xff] %v3040
                  %v3042 = vld [vmem:[%s2926 + $0x1c8] sm:$0xff]
                  %3043 = vst [vmem:[%s2927 + $0x1c8] sm:$0xff] %v3042
                  %v3044 = vld [vmem:[%s2926 + $0x1d0] sm:$0xff]
                  %3045 = vst [vmem:[%s2927 + $0x1d0] sm:$0xff] %v3044
                  %v3046 = vld [vmem:[%s2926 + $0x1d8] sm:$0xff]
                  %3047 = vst [vmem:[%s2927 + $0x1d8] sm:$0xff] %v3046
                  %v3048 = vld [vmem:[%s2926 + $0x1e0] sm:$0xff]
                  %3049 = vst [vmem:[%s2927 + $0x1e0] sm:$0xff] %v3048
                  %v3050 = vld [vmem:[%s2926 + $0x1e8] sm:$0xff]
                  %3051 = vst [vmem:[%s2927 + $0x1e8] sm:$0xff] %v3050
                  %v3052 = vld [vmem:[%s2926 + $0x1f0] sm:$0xff]
                  %3053 = vst [vmem:[%s2927 + $0x1f0] sm:$0xff] %v3052
                  %v3054 = vld [vmem:[%s2926 + $0x1f8] sm:$0xff]
                  %3055 = vst [vmem:[%s2927 + $0x1f8] sm:$0xff] %v3054
                  %s3056 = sadd.s32 1, %s2925
                  %p3057 = scmp.ge.s32.totalorder %s3056, %s2918
                  %s3058 = scalar_select %p3057, 0, %s3056
                  %s3059 = smul.u32 %s3058, 512
                  %s3060 = smul.u32 %s3058, 512
                  %s3061 = scalar_lea.vmem %s2716, %s3059 [#allocation2]
                  %s3062 = scalar_lea.vmem %s2737, %s3060
                $region99: #{pixel_classifier_forward.4} parent=93 // loop_footer
                  %s2922 = sadd.s32 %s2920, 1
                $region100: #{pixel_classifier_forward.4} parent=93 // loop_footer_branch
                  %2919 = sbr.rel target = $region96
                $region101: #{pixel_classifier_forward.4} parent=93 // loop_exit
                  _
                %s3063 = sshrl.u32 %s2733, 6
                %s3064 = sand.u32 %s2733, 63
                %s3065 = smul.u32 %s3063, 64
                %s3066 = smul.u32 8, %s3065
                %s3067 = scalar_lea.vmem %s2716, %s3066 [#allocation2]
                %s3068 = smul.u32 8, %s3065
                %s3069 = scalar_lea.vmem %s2737, %s3068
                // While loop
                $region102: #{pixel_classifier_forward.4} parent=93 // loop_pre_header
                  _
                $region103: #{pixel_classifier_forward.4} parent=93 // loop_header
                  %s3071 = sphi 0, %s3073
                  %p3072 = scmp.ge.s32.totalorder %s3071, %s3064
                  %s3076 = sphi 0, %s3083
                  %s3077 = sphi %s3067, %s3086
                  %s3078 = sphi %s3069, %s3087
                $region104: #{pixel_classifier_forward.4} parent=93 // loop_header_branch
                  %3075 = sbr.rel (%p3072) target = $region108
                $region105: #{pixel_classifier_forward.4} parent=93 // loop_body
                  %v3079 = vld [vmem:[%s3077] sm:$0xff]
                  %3080 = vst [vmem:[%s3078] sm:$0xff] %v3079
                  %s3081 = sadd.s32 1, %s3076
                  %p3082 = scmp.ge.s32.totalorder %s3081, %s3064
                  %s3083 = scalar_select %p3082, 0, %s3081
                  %s3084 = smul.u32 %s3083, 8
                  %s3085 = smul.u32 %s3083, 8
                  %s3086 = scalar_lea.vmem %s3067, %s3084 [#allocation2]
                  %s3087 = scalar_lea.vmem %s3069, %s3085
                $region106: #{pixel_classifier_forward.4} parent=93 // loop_footer
                  %s3073 = sadd.s32 %s3071, 1
                $region107: #{pixel_classifier_forward.4} parent=93 // loop_footer_branch
                  %3070 = sbr.rel target = $region103
                $region108: #{pixel_classifier_forward.4} parent=93 // loop_exit
                  _
              $region94: #{pixel_classifier_forward.4} parent=71 // pred_fallthru
                _
              // Predicated region
              $region109: #{pixel_classifier_forward.4} parent=71 // pred_check
                _
              $region110: #{pixel_classifier_forward.4} parent=71 // pred_check_branch
                %3089 = sbr.rel target = $region112
              $region111: #{pixel_classifier_forward.4} parent=71 // pred_region
                _
              $region112: #{pixel_classifier_forward.4} parent=71 // pred_fallthru
                _
            $region72: #{pixel_classifier_forward.4} parent=67 // pred_fallthru
              _
            // Predicated region
            $region73: #{pixel_classifier_forward.4} parent=67 // pred_check
              _
            $region74: #{pixel_classifier_forward.4} parent=67 // pred_check_branch
              %2744 = sbr.rel target = $region76
            $region75: #{pixel_classifier_forward.4} parent=67 // pred_region
              %s2746 = sshrl.u32 %s2733, 6
              // While loop
              $region77: #{pixel_classifier_forward.4} parent=75 // loop_pre_header
                _
              $region78: #{pixel_classifier_forward.4} parent=75 // loop_header
                %s2748 = sphi 0, %s2750
                %p2749 = scmp.ge.s32.totalorder %s2748, %s2746
                %s2753 = sphi 0, %s2886
                %s2754 = sphi %s2716, %s2889
                %s2755 = sphi %s2737, %s2890
              $region79: #{pixel_classifier_forward.4} parent=75 // loop_header_branch
                %2752 = sbr.rel (%p2749) target = $region83
              $region80: #{pixel_classifier_forward.4} parent=75 // loop_body
                %v2756 = vld [vmem:[%s2754] sm:$0xff]
                %2757 = vst [vmem:[%s2755] sm:$0xff] %v2756
                %v2758 = vld [vmem:[%s2754 + $0x8] sm:$0xff]
                %2759 = vst [vmem:[%s2755 + $0x8] sm:$0xff] %v2758
                %v2760 = vld [vmem:[%s2754 + $0x10] sm:$0xff]
                %2761 = vst [vmem:[%s2755 + $0x10] sm:$0xff] %v2760
                %v2762 = vld [vmem:[%s2754 + $0x18] sm:$0xff]
                %2763 = vst [vmem:[%s2755 + $0x18] sm:$0xff] %v2762
                %v2764 = vld [vmem:[%s2754 + $0x20] sm:$0xff]
                %2765 = vst [vmem:[%s2755 + $0x20] sm:$0xff] %v2764
                %v2766 = vld [vmem:[%s2754 + $0x28] sm:$0xff]
                %2767 = vst [vmem:[%s2755 + $0x28] sm:$0xff] %v2766
                %v2768 = vld [vmem:[%s2754 + $0x30] sm:$0xff]
                %2769 = vst [vmem:[%s2755 + $0x30] sm:$0xff] %v2768
                %v2770 = vld [vmem:[%s2754 + $0x38] sm:$0xff]
                %2771 = vst [vmem:[%s2755 + $0x38] sm:$0xff] %v2770
                %v2772 = vld [vmem:[%s2754 + $0x40] sm:$0xff]
                %2773 = vst [vmem:[%s2755 + $0x40] sm:$0xff] %v2772
                %v2774 = vld [vmem:[%s2754 + $0x48] sm:$0xff]
                %2775 = vst [vmem:[%s2755 + $0x48] sm:$0xff] %v2774
                %v2776 = vld [vmem:[%s2754 + $0x50] sm:$0xff]
                %2777 = vst [vmem:[%s2755 + $0x50] sm:$0xff] %v2776
                %v2778 = vld [vmem:[%s2754 + $0x58] sm:$0xff]
                %2779 = vst [vmem:[%s2755 + $0x58] sm:$0xff] %v2778
                %v2780 = vld [vmem:[%s2754 + $0x60] sm:$0xff]
                %2781 = vst [vmem:[%s2755 + $0x60] sm:$0xff] %v2780
                %v2782 = vld [vmem:[%s2754 + $0x68] sm:$0xff]
                %2783 = vst [vmem:[%s2755 + $0x68] sm:$0xff] %v2782
                %v2784 = vld [vmem:[%s2754 + $0x70] sm:$0xff]
                %2785 = vst [vmem:[%s2755 + $0x70] sm:$0xff] %v2784
                %v2786 = vld [vmem:[%s2754 + $0x78] sm:$0xff]
                %2787 = vst [vmem:[%s2755 + $0x78] sm:$0xff] %v2786
                %v2788 = vld [vmem:[%s2754 + $0x80] sm:$0xff]
                %2789 = vst [vmem:[%s2755 + $0x80] sm:$0xff] %v2788
                %v2790 = vld [vmem:[%s2754 + $0x88] sm:$0xff]
                %2791 = vst [vmem:[%s2755 + $0x88] sm:$0xff] %v2790
                %v2792 = vld [vmem:[%s2754 + $0x90] sm:$0xff]
                %2793 = vst [vmem:[%s2755 + $0x90] sm:$0xff] %v2792
                %v2794 = vld [vmem:[%s2754 + $0x98] sm:$0xff]
                %2795 = vst [vmem:[%s2755 + $0x98] sm:$0xff] %v2794
                %v2796 = vld [vmem:[%s2754 + $0xa0] sm:$0xff]
                %2797 = vst [vmem:[%s2755 + $0xa0] sm:$0xff] %v2796
                %v2798 = vld [vmem:[%s2754 + $0xa8] sm:$0xff]
                %2799 = vst [vmem:[%s2755 + $0xa8] sm:$0xff] %v2798
                %v2800 = vld [vmem:[%s2754 + $0xb0] sm:$0xff]
                %2801 = vst [vmem:[%s2755 + $0xb0] sm:$0xff] %v2800
                %v2802 = vld [vmem:[%s2754 + $0xb8] sm:$0xff]
                %2803 = vst [vmem:[%s2755 + $0xb8] sm:$0xff] %v2802
                %v2804 = vld [vmem:[%s2754 + $0xc0] sm:$0xff]
                %2805 = vst [vmem:[%s2755 + $0xc0] sm:$0xff] %v2804
                %v2806 = vld [vmem:[%s2754 + $0xc8] sm:$0xff]
                %2807 = vst [vmem:[%s2755 + $0xc8] sm:$0xff] %v2806
                %v2808 = vld [vmem:[%s2754 + $0xd0] sm:$0xff]
                %2809 = vst [vmem:[%s2755 + $0xd0] sm:$0xff] %v2808
                %v2810 = vld [vmem:[%s2754 + $0xd8] sm:$0xff]
                %2811 = vst [vmem:[%s2755 + $0xd8] sm:$0xff] %v2810
                %v2812 = vld [vmem:[%s2754 + $0xe0] sm:$0xff]
                %2813 = vst [vmem:[%s2755 + $0xe0] sm:$0xff] %v2812
                %v2814 = vld [vmem:[%s2754 + $0xe8] sm:$0xff]
                %2815 = vst [vmem:[%s2755 + $0xe8] sm:$0xff] %v2814
                %v2816 = vld [vmem:[%s2754 + $0xf0] sm:$0xff]
                %2817 = vst [vmem:[%s2755 + $0xf0] sm:$0xff] %v2816
                %v2818 = vld [vmem:[%s2754 + $0xf8] sm:$0xff]
                %2819 = vst [vmem:[%s2755 + $0xf8] sm:$0xff] %v2818
                %v2820 = vld [vmem:[%s2754 + $0x100] sm:$0xff]
                %2821 = vst [vmem:[%s2755 + $0x100] sm:$0xff] %v2820
                %v2822 = vld [vmem:[%s2754 + $0x108] sm:$0xff]
                %2823 = vst [vmem:[%s2755 + $0x108] sm:$0xff] %v2822
                %v2824 = vld [vmem:[%s2754 + $0x110] sm:$0xff]
                %2825 = vst [vmem:[%s2755 + $0x110] sm:$0xff] %v2824
                %v2826 = vld [vmem:[%s2754 + $0x118] sm:$0xff]
                %2827 = vst [vmem:[%s2755 + $0x118] sm:$0xff] %v2826
                %v2828 = vld [vmem:[%s2754 + $0x120] sm:$0xff]
                %2829 = vst [vmem:[%s2755 + $0x120] sm:$0xff] %v2828
                %v2830 = vld [vmem:[%s2754 + $0x128] sm:$0xff]
                %2831 = vst [vmem:[%s2755 + $0x128] sm:$0xff] %v2830
                %v2832 = vld [vmem:[%s2754 + $0x130] sm:$0xff]
                %2833 = vst [vmem:[%s2755 + $0x130] sm:$0xff] %v2832
                %v2834 = vld [vmem:[%s2754 + $0x138] sm:$0xff]
                %2835 = vst [vmem:[%s2755 + $0x138] sm:$0xff] %v2834
                %v2836 = vld [vmem:[%s2754 + $0x140] sm:$0xff]
                %2837 = vst [vmem:[%s2755 + $0x140] sm:$0xff] %v2836
                %v2838 = vld [vmem:[%s2754 + $0x148] sm:$0xff]
                %2839 = vst [vmem:[%s2755 + $0x148] sm:$0xff] %v2838
                %v2840 = vld [vmem:[%s2754 + $0x150] sm:$0xff]
                %2841 = vst [vmem:[%s2755 + $0x150] sm:$0xff] %v2840
                %v2842 = vld [vmem:[%s2754 + $0x158] sm:$0xff]
                %2843 = vst [vmem:[%s2755 + $0x158] sm:$0xff] %v2842
                %v2844 = vld [vmem:[%s2754 + $0x160] sm:$0xff]
                %2845 = vst [vmem:[%s2755 + $0x160] sm:$0xff] %v2844
                %v2846 = vld [vmem:[%s2754 + $0x168] sm:$0xff]
                %2847 = vst [vmem:[%s2755 + $0x168] sm:$0xff] %v2846
                %v2848 = vld [vmem:[%s2754 + $0x170] sm:$0xff]
                %2849 = vst [vmem:[%s2755 + $0x170] sm:$0xff] %v2848
                %v2850 = vld [vmem:[%s2754 + $0x178] sm:$0xff]
                %2851 = vst [vmem:[%s2755 + $0x178] sm:$0xff] %v2850
                %v2852 = vld [vmem:[%s2754 + $0x180] sm:$0xff]
                %2853 = vst [vmem:[%s2755 + $0x180] sm:$0xff] %v2852
                %v2854 = vld [vmem:[%s2754 + $0x188] sm:$0xff]
                %2855 = vst [vmem:[%s2755 + $0x188] sm:$0xff] %v2854
                %v2856 = vld [vmem:[%s2754 + $0x190] sm:$0xff]
                %2857 = vst [vmem:[%s2755 + $0x190] sm:$0xff] %v2856
                %v2858 = vld [vmem:[%s2754 + $0x198] sm:$0xff]
                %2859 = vst [vmem:[%s2755 + $0x198] sm:$0xff] %v2858
                %v2860 = vld [vmem:[%s2754 + $0x1a0] sm:$0xff]
                %2861 = vst [vmem:[%s2755 + $0x1a0] sm:$0xff] %v2860
                %v2862 = vld [vmem:[%s2754 + $0x1a8] sm:$0xff]
                %2863 = vst [vmem:[%s2755 + $0x1a8] sm:$0xff] %v2862
                %v2864 = vld [vmem:[%s2754 + $0x1b0] sm:$0xff]
                %2865 = vst [vmem:[%s2755 + $0x1b0] sm:$0xff] %v2864
                %v2866 = vld [vmem:[%s2754 + $0x1b8] sm:$0xff]
                %2867 = vst [vmem:[%s2755 + $0x1b8] sm:$0xff] %v2866
                %v2868 = vld [vmem:[%s2754 + $0x1c0] sm:$0xff]
                %2869 = vst [vmem:[%s2755 + $0x1c0] sm:$0xff] %v2868
                %v2870 = vld [vmem:[%s2754 + $0x1c8] sm:$0xff]
                %2871 = vst [vmem:[%s2755 + $0x1c8] sm:$0xff] %v2870
                %v2872 = vld [vmem:[%s2754 + $0x1d0] sm:$0xff]
                %2873 = vst [vmem:[%s2755 + $0x1d0] sm:$0xff] %v2872
                %v2874 = vld [vmem:[%s2754 + $0x1d8] sm:$0xff]
                %2875 = vst [vmem:[%s2755 + $0x1d8] sm:$0xff] %v2874
                %v2876 = vld [vmem:[%s2754 + $0x1e0] sm:$0xff]
                %2877 = vst [vmem:[%s2755 + $0x1e0] sm:$0xff] %v2876
                %v2878 = vld [vmem:[%s2754 + $0x1e8] sm:$0xff]
                %2879 = vst [vmem:[%s2755 + $0x1e8] sm:$0xff] %v2878
                %v2880 = vld [vmem:[%s2754 + $0x1f0] sm:$0xff]
                %2881 = vst [vmem:[%s2755 + $0x1f0] sm:$0xff] %v2880
                %v2882 = vld [vmem:[%s2754 + $0x1f8] sm:$0xff]
                %2883 = vst [vmem:[%s2755 + $0x1f8] sm:$0xff] %v2882
                %s2884 = sadd.s32 1, %s2753
                %p2885 = scmp.ge.s32.totalorder %s2884, %s2746
                %s2886 = scalar_select %p2885, 0, %s2884
                %s2887 = smul.u32 %s2886, 512
                %s2888 = smul.u32 %s2886, 512
                %s2889 = scalar_lea.vmem %s2716, %s2887 [#allocation2]
                %s2890 = scalar_lea.vmem %s2737, %s2888
              $region81: #{pixel_classifier_forward.4} parent=75 // loop_footer
                %s2750 = sadd.s32 %s2748, 1
              $region82: #{pixel_classifier_forward.4} parent=75 // loop_footer_branch
                %2747 = sbr.rel target = $region78
              $region83: #{pixel_classifier_forward.4} parent=75 // loop_exit
                _
              %s2891 = sshrl.u32 %s2733, 6
              %s2892 = sand.u32 %s2733, 63
              %s2893 = smul.u32 %s2891, 64
              %s2894 = smul.u32 8, %s2893
              %s2895 = scalar_lea.vmem %s2716, %s2894 [#allocation2]
              %s2896 = smul.u32 8, %s2893
              %s2897 = scalar_lea.vmem %s2737, %s2896
              // While loop
              $region84: #{pixel_classifier_forward.4} parent=75 // loop_pre_header
                _
              $region85: #{pixel_classifier_forward.4} parent=75 // loop_header
                %s2899 = sphi 0, %s2901
                %p2900 = scmp.ge.s32.totalorder %s2899, %s2892
                %s2904 = sphi 0, %s2911
                %s2905 = sphi %s2895, %s2914
                %s2906 = sphi %s2897, %s2915
              $region86: #{pixel_classifier_forward.4} parent=75 // loop_header_branch
                %2903 = sbr.rel (%p2900) target = $region90
              $region87: #{pixel_classifier_forward.4} parent=75 // loop_body
                %v2907 = vld [vmem:[%s2905] sm:$0xff]
                %2908 = vst [vmem:[%s2906] sm:$0xff] %v2907
                %s2909 = sadd.s32 1, %s2904
                %p2910 = scmp.ge.s32.totalorder %s2909, %s2892
                %s2911 = scalar_select %p2910, 0, %s2909
                %s2912 = smul.u32 %s2911, 8
                %s2913 = smul.u32 %s2911, 8
                %s2914 = scalar_lea.vmem %s2895, %s2912 [#allocation2]
                %s2915 = scalar_lea.vmem %s2897, %s2913
              $region88: #{pixel_classifier_forward.4} parent=75 // loop_footer
                %s2901 = sadd.s32 %s2899, 1
              $region89: #{pixel_classifier_forward.4} parent=75 // loop_footer_branch
                %2898 = sbr.rel target = $region85
              $region90: #{pixel_classifier_forward.4} parent=75 // loop_exit
                _
            $region76: #{pixel_classifier_forward.4} parent=67 // pred_fallthru
              _
          $region68: #{pixel_classifier_forward.4} parent=63 // pred_fallthru
            _
          %3090 = vnop
        $region64: #{pixel_classifier_forward.4} parent=39 // pred_fallthru
          _
      $region40: #{pixel_classifier_forward.4} parent=5 // pred_fallthru
        _
      %p3091 = scmp.le.s32.totalorder 2, %s14
      // Predicated region
      $region113: #{pixel_classifier_forward.4} parent=5 // pred_check
        %p3092 = pneg %p3091
      $region114: #{pixel_classifier_forward.4} parent=5 // pred_check_branch
        %3094 = sbr.rel (%p3092) target = $region116
      $region115: #{pixel_classifier_forward.4} parent=5 // pred_region
        %s3095 = ssub.s32 %s14, 2
        // Predicated region
        $region117: #{pixel_classifier_forward.4} parent=115 // pred_check
          %p3096 = pneg %p173
        $region118: #{pixel_classifier_forward.4} parent=115 // pred_check_branch
          %3098 = sbr.rel (%p3096) target = $region120
        $region119: #{pixel_classifier_forward.4} parent=115 // pred_region
          %p3099 = scmp.lt.s32.totalorder %s25, 1
          %s3100 = scalar_select %p3099, %s25, 1
          %s3101 = smul.addr %s3100, 8
          %s3102 = scalar_lea.vmem %s5, %s3101
        $region120: #{pixel_classifier_forward.4} parent=115 // pred_fallthru
          _
        // Predicated region
        $region121: #{pixel_classifier_forward.4} parent=115 // pred_check
          %p3103 = pneg %p199
        $region122: #{pixel_classifier_forward.4} parent=115 // pred_check_branch
          %3105 = sbr.rel (%p3103) target = $region124
        $region123: #{pixel_classifier_forward.4} parent=115 // pred_region
          %p3106 = scmp.lt.s32.totalorder %s25, 1
          %s3107 = scalar_select %p3106, %s25, 1
          %s3108 = smul.addr %s3107, 8
          %s3109 = scalar_lea.vmem %s6, %s3108
        $region124: #{pixel_classifier_forward.4} parent=115 // pred_fallthru
          _
        // Predicated region
        $region125: #{pixel_classifier_forward.4} parent=115 // pred_check
          %p3110 = pneg %p233
        $region126: #{pixel_classifier_forward.4} parent=115 // pred_check_branch
          %3112 = sbr.rel (%p3110) target = $region128
        $region127: #{pixel_classifier_forward.4} parent=115 // pred_region
          %s3113 = sand.u32 %s218, 1
          %s3114 = sand.u32 %s218, 1
          %s3115 = smul.addr %s3114, 512
          %s3116 = scalar_lea.vmem [#allocation2], %s3115
        $region128: #{pixel_classifier_forward.4} parent=115 // pred_fallthru
          _
      $region116: #{pixel_classifier_forward.4} parent=5 // pred_fallthru
        _
    $region6: #{pixel_classifier_forward.4} parent=1 // loop_footer
      %s18 = sadd.s32 1, %s14
    $region7: #{pixel_classifier_forward.4} parent=1 // loop_footer_branch
      %13 = sbr.rel target = $region3
    $region8: #{pixel_classifier_forward.4} parent=1 // loop_exit
      _

</llo_original>
